<compile_context>
chip_gen: v7x
topology: tpu7x:2x2x1
jax: 0.10.0
libtpu: 0.0.40
codegen_flags: <defaults>
</compile_context>

<pallas_src>
import math

import jax
import jax.numpy as jnp
from jax.experimental import pallas as pl
from jax.experimental.pallas import tpu as pltpu


# ------------------------------- fused kernel ------------------------------- #

def _m2a_fused_kernel(x_ref, wd_ref, bd_ref, wu_ref, bu_ref, o_ref):
    # x_ref / o_ref: (1, T, HW, C)   wd: (C, Cr)  bd: (1, Cr)  wu: (Cr, C)  bu: (1, C)
    _, T, HW, C = x_ref.shape
    Cr = wd_ref.shape[1]
    E = HW * Cr
    inv_E = 1.0 / float(E)
    scale = 1.0 / math.sqrt(float(E))

    wd = wd_ref[...]
    bd = bd_ref[...]
    wu = wu_ref[...]
    bu = bu_ref[...]

    def _sum_all(a):  # full reduction kept as a (1, 1) tile (no rank-0 math)
        return jnp.sum(jnp.sum(a, axis=1, keepdims=True), axis=0, keepdims=True)

    # ---- conv_down + layer_norm per time step (everything stays in VMEM) ----
    y_ts = []     # pre-LN conv_down outputs (HW, Cr)  -> residual path
    xn_ts = []    # layer-normalized (HW, Cr)
    for t in range(T):
        x_t = x_ref[0, t].astype(jnp.float32)                                  # (HW, C)
        y_t = jnp.dot(x_t, wd, preferred_element_type=jnp.float32) + bd        # (HW, Cr)
        mu = _sum_all(y_t) * inv_E                                             # (1, 1)
        d = y_t - mu
        var = _sum_all(d * d) * inv_E
        xn_t = d * jax.lax.rsqrt(var + 1e-5)
        y_ts.append(y_t)
        xn_ts.append(xn_t)

    # ---- Motion: left temporal shift minus itself ----
    # m[t] = xn[t+1] - xn[t],  m[T-1] = -xn[T-1]   (zero padding on the right)
    m_ts = [xn_ts[t + 1] - xn_ts[t] for t in range(T - 1)] + [-xn_ts[T - 1]]

    # ---- self_attention(m, m, m): scores are a small TxT table of (1,1) tiles ----
    # TODO(synk): the TxT unrolling assumes a small n_segment (typical: 8).
    s = [[None] * T for _ in range(T)]
    for t in range(T):
        for u in range(t, T):
            v = _sum_all(m_ts[t] * m_ts[u]) * scale
            s[t][u] = v
            s[u][t] = v  # symmetric

    # ---- per-query softmax, attention output, residual, conv_up, sigmoid gate ----
    for t in range(T):
        row = s[t]
        mx = row[0]
        for u in range(1, T):
            mx = jnp.maximum(mx, row[u])
        es = [jnp.exp(row[u] - mx) for u in range(T)]
        den = es[0]
        for u in range(1, T):
            den = den + es[u]
        inv_den = 1.0 / den

        attn = (es[0] * inv_den) * m_ts[0]
        for u in range(1, T):
            attn = attn + (es[u] * inv_den) * m_ts[u]                          # (HW, Cr)

        z_t = attn + y_ts[t]                                                   # pre-LN residual
        up = jnp.dot(z_t, wu, preferred_element_type=jnp.float32) + bu         # (HW, C)
        g = jax.nn.sigmoid(up)
        x_t = x_ref[0, t].astype(jnp.float32)                                  # shortcut
        o_ref[0, t] = (g * x_t + x_t).astype(o_ref.dtype)


# ----------------------------- pallas_call glue ------------------------------ #

def m2a_3dcnn_forward(x, wd, bd, wu, bu):
    """x: (B, C, T, H, W) -> (B, C, T, H, W).  Matches M2A_3DCNN_Wrapper."""
    B, C, T, H, W = x.shape
    Cr = wd.shape[1]
    HW = H * W

    # 'b c t h w -> b t (h w) c'  (T-major, channels-last: layout plumbing only)
    x_tm = jnp.transpose(x, (0, 2, 3, 4, 1)).reshape(B, T, HW, C)

    out_tm = pl.pallas_call(
        _m2a_fused_kernel,
        out_shape=jax.ShapeDtypeStruct((B, T, HW, C), x.dtype),
        grid=(B,),
        in_specs=[
            pl.BlockSpec((1, T, HW, C), lambda b: (b, 0, 0, 0)),
            pl.BlockSpec((C, Cr), lambda b: (0, 0)),
            pl.BlockSpec((1, Cr), lambda b: (0, 0)),
            pl.BlockSpec((Cr, C), lambda b: (0, 0)),
            pl.BlockSpec((1, C), lambda b: (0, 0)),
        ],
        out_specs=pl.BlockSpec((1, T, HW, C), lambda b: (b, 0, 0, 0)),
        compiler_params=pltpu.CompilerParams(dimension_semantics=("parallel",)),
    )(x_tm, wd, bd.reshape(1, Cr), wu, bu.reshape(1, C))

    # back to 'b c t h w'
    return out_tm.reshape(B, T, H, W, C).transpose(0, 4, 1, 2, 3)


# ------------------------------ JAX reference -------------------------------- #

def reference(x, wd, bd, wu, bu):
    B, C, T, H, W = x.shape
    Cr = wd.shape[1]
    x_cl = jnp.transpose(x, (0, 2, 3, 4, 1)).reshape(B * T * H * W, C)
    xd = x_cl @ wd + bd[None, :]
    E = H * W * Cr
    xb = xd.reshape(B, T, E)
    mean = xb.mean(-1, keepdims=True)
    var = ((xb - mean) ** 2).mean(-1, keepdims=True)
    xn = (xb - mean) / jnp.sqrt(var + 1e-5)
    shifted = jnp.concatenate([xn[:, 1:], jnp.zeros_like(xn[:, :1])], axis=1)
    m = shifted - xn
    scores = jnp.einsum('bte,bse->bts', m, m) / math.sqrt(float(E))
    probs = jax.nn.softmax(scores, axis=-1)
    attn = jnp.einsum('bts,bse->bte', probs, m)
    xb = attn + xb
    xu = xb.reshape(B * T * H * W, Cr) @ wu + bu[None, :]
    g = jax.nn.sigmoid(xu)
    out = g * x_cl + x_cl
    return out.reshape(B, T, H, W, C).transpose(0, 4, 1, 2, 3)


# ---------------------------------- main -------------------------------------- #

if __name__ == "__main__":
    # Small deterministic config: in_channels=16, n_segment=8, n_div=2 (Cr=8),
    # spatial 8x8, batch 2.
    B, C, T, H, W = 2, 16, 8, 8, 8
    n_div = 2
    Cr = C // n_div

    key = jax.random.PRNGKey(0)
    kx, kwd, kbd, kwu, kbu = jax.random.split(key, 5)
    x = jax.random.normal(kx, (B, C, T, H, W), jnp.float32)
    # conv_down: PyTorch weight (Cr, C, 1, 1) stored here transposed as (C, Cr)
    wd = jax.random.normal(kwd, (C, Cr), jnp.float32) * 0.1
    bd = jax.random.normal(kbd, (Cr,), jnp.float32) * 0.1
    # conv_up: PyTorch weight (C, Cr, 1, 1) stored here transposed as (Cr, C)
    wu = jax.random.normal(kwu, (Cr, C), jnp.float32) * 0.1
    bu = jax.random.normal(kbu, (C,), jnp.float32) * 0.1

    out = jax.jit(m2a_3dcnn_forward)(x, wd, bd, wu, bu)
    out = jax.block_until_ready(out)

    ref = reference(x, wd, bd, wu, bu)
    assert out.shape == (B, C, T, H, W)
    assert jnp.allclose(out, ref, atol=2e-3, rtol=2e-3), float(
        jnp.max(jnp.abs(out - ref)))

    print("KERNEL_OK")
</pallas_src>

<mosaic_0001>
module attributes {stable_mosaic.version = 11 : i64} {
  func.func @_m2a_fused_kernel(%arg0: i32, %arg1: memref<1x8x64x16xf32, #tpu.memory_space<vmem>>, %arg2: memref<16x8xf32, #tpu.memory_space<vmem>>, %arg3: memref<1x8xf32, #tpu.memory_space<vmem>>, %arg4: memref<8x16xf32, #tpu.memory_space<vmem>>, %arg5: memref<1x16xf32, #tpu.memory_space<vmem>>, %arg6: memref<1x8x64x16xf32, #tpu.memory_space<vmem>>) attributes {dimension_semantics = [#tpu.dimension_semantics<parallel>], iteration_bounds = array<i64: 2>, scalar_prefetch = 0 : i64, scratch_operands = 0 : i64, tpu.core_type = #tpu.core_type<tc>, window_params = [{transform_indices = @transform_0, window_bounds = array<i64: 1, 8, 64, 16>}, {pipeline_mode = #tpu.pipeline_mode<synchronous>, transform_indices = @transform_1, window_bounds = array<i64: 16, 8>}, {pipeline_mode = #tpu.pipeline_mode<synchronous>, transform_indices = @transform_2, window_bounds = array<i64: 1, 8>}, {pipeline_mode = #tpu.pipeline_mode<synchronous>, transform_indices = @transform_3, window_bounds = array<i64: 8, 16>}, {pipeline_mode = #tpu.pipeline_mode<synchronous>, transform_indices = @transform_4, window_bounds = array<i64: 1, 16>}, {transform_indices = @transform_5, window_bounds = array<i64: 1, 8, 64, 16>}]} {
    %c0 = arith.constant 0 : index
    %c0_0 = arith.constant 0 : index
    %0 = vector.load %arg2[%c0, %c0_0] : memref<16x8xf32, #tpu.memory_space<vmem>>, vector<16x8xf32>
    %c0_1 = arith.constant 0 : index
    %c0_2 = arith.constant 0 : index
    %1 = vector.load %arg3[%c0_1, %c0_2] : memref<1x8xf32, #tpu.memory_space<vmem>>, vector<1x8xf32>
    %c0_3 = arith.constant 0 : index
    %c0_4 = arith.constant 0 : index
    %2 = vector.load %arg4[%c0_3, %c0_4] : memref<8x16xf32, #tpu.memory_space<vmem>>, vector<8x16xf32>
    %c0_5 = arith.constant 0 : index
    %c0_6 = arith.constant 0 : index
    %3 = vector.load %arg5[%c0_5, %c0_6] : memref<1x16xf32, #tpu.memory_space<vmem>>, vector<1x16xf32>
    %c0_7 = arith.constant 0 : index
    %c0_8 = arith.constant 0 : index
    %c0_9 = arith.constant 0 : index
    %c0_10 = arith.constant 0 : index
    %4 = vector.load %arg1[%c0_7, %c0_8, %c0_9, %c0_10] : memref<1x8x64x16xf32, #tpu.memory_space<vmem>>, vector<1x1x64x16xf32>
    %5 = vector.shape_cast %4 : vector<1x1x64x16xf32> to vector<64x16xf32>
    %cst = arith.constant dense<0.000000e+00> : vector<64x8xf32>
    %6 = tpu.matmul %5, %0, %cst {dimension_numbers = #tpu.dot_dimension_numbers<[1], [0], [0], [1], [0, 0, 1, 1], [], []>} : vector<64x16xf32>, vector<16x8xf32>, vector<64x8xf32> -> vector<64x8xf32>
    %7 = vector.broadcast %1 : vector<1x8xf32> to vector<64x8xf32>
    %8 = arith.addf %6, %7 : vector<64x8xf32>
    %cst_11 = arith.constant dense<0.000000e+00> : vector<64xf32>
    %9 = vector.multi_reduction <add>, %8, %cst_11 [1] : vector<64x8xf32> to vector<64xf32>
    %10 = vector.shape_cast %9 : vector<64xf32> to vector<64x1xf32>
    %cst_12 = arith.constant dense<0.000000e+00> : vector<1xf32>
    %11 = vector.multi_reduction <add>, %10, %cst_12 [0] : vector<64x1xf32> to vector<1xf32>
    %12 = vector.shape_cast %11 : vector<1xf32> to vector<1x1xf32>
    %cst_13 = arith.constant 0.001953125 : f32
    %13 = vector.broadcast %cst_13 : f32 to vector<1x1xf32>
    %14 = arith.mulf %12, %13 : vector<1x1xf32>
    %15 = vector.broadcast %14 : vector<1x1xf32> to vector<64x8xf32>
    %16 = arith.subf %8, %15 : vector<64x8xf32>
    %17 = arith.mulf %16, %16 : vector<64x8xf32>
    %cst_14 = arith.constant dense<0.000000e+00> : vector<64xf32>
    %18 = vector.multi_reduction <add>, %17, %cst_14 [1] : vector<64x8xf32> to vector<64xf32>
    %19 = vector.shape_cast %18 : vector<64xf32> to vector<64x1xf32>
    %cst_15 = arith.constant dense<0.000000e+00> : vector<1xf32>
    %20 = vector.multi_reduction <add>, %19, %cst_15 [0] : vector<64x1xf32> to vector<1xf32>
    %21 = vector.shape_cast %20 : vector<1xf32> to vector<1x1xf32>
    %cst_16 = arith.constant 0.001953125 : f32
    %22 = vector.broadcast %cst_16 : f32 to vector<1x1xf32>
    %23 = arith.mulf %21, %22 : vector<1x1xf32>
    %cst_17 = arith.constant 9.99999974E-6 : f32
    %24 = vector.broadcast %cst_17 : f32 to vector<1x1xf32>
    %25 = arith.addf %23, %24 : vector<1x1xf32>
    %26 = math.rsqrt %25 : vector<1x1xf32>
    %27 = vector.broadcast %26 : vector<1x1xf32> to vector<64x8xf32>
    %28 = arith.mulf %16, %27 : vector<64x8xf32>
    %c0_18 = arith.constant 0 : index
    %c1 = arith.constant 1 : index
    %c0_19 = arith.constant 0 : index
    %c0_20 = arith.constant 0 : index
    %29 = vector.load %arg1[%c0_18, %c1, %c0_19, %c0_20] : memref<1x8x64x16xf32, #tpu.memory_space<vmem>>, vector<1x1x64x16xf32>
    %30 = vector.shape_cast %29 : vector<1x1x64x16xf32> to vector<64x16xf32>
    %cst_21 = arith.constant dense<0.000000e+00> : vector<64x8xf32>
    %31 = tpu.matmul %30, %0, %cst_21 {dimension_numbers = #tpu.dot_dimension_numbers<[1], [0], [0], [1], [0, 0, 1, 1], [], []>} : vector<64x16xf32>, vector<16x8xf32>, vector<64x8xf32> -> vector<64x8xf32>
    %32 = vector.broadcast %1 : vector<1x8xf32> to vector<64x8xf32>
    %33 = arith.addf %31, %32 : vector<64x8xf32>
    %cst_22 = arith.constant dense<0.000000e+00> : vector<64xf32>
    %34 = vector.multi_reduction <add>, %33, %cst_22 [1] : vector<64x8xf32> to vector<64xf32>
    %35 = vector.shape_cast %34 : vector<64xf32> to vector<64x1xf32>
    %cst_23 = arith.constant dense<0.000000e+00> : vector<1xf32>
    %36 = vector.multi_reduction <add>, %35, %cst_23 [0] : vector<64x1xf32> to vector<1xf32>
    %37 = vector.shape_cast %36 : vector<1xf32> to vector<1x1xf32>
    %cst_24 = arith.constant 0.001953125 : f32
    %38 = vector.broadcast %cst_24 : f32 to vector<1x1xf32>
    %39 = arith.mulf %37, %38 : vector<1x1xf32>
    %40 = vector.broadcast %39 : vector<1x1xf32> to vector<64x8xf32>
    %41 = arith.subf %33, %40 : vector<64x8xf32>
    %42 = arith.mulf %41, %41 : vector<64x8xf32>
    %cst_25 = arith.constant dense<0.000000e+00> : vector<64xf32>
    %43 = vector.multi_reduction <add>, %42, %cst_25 [1] : vector<64x8xf32> to vector<64xf32>
    %44 = vector.shape_cast %43 : vector<64xf32> to vector<64x1xf32>
    %cst_26 = arith.constant dense<0.000000e+00> : vector<1xf32>
    %45 = vector.multi_reduction <add>, %44, %cst_26 [0] : vector<64x1xf32> to vector<1xf32>
    %46 = vector.shape_cast %45 : vector<1xf32> to vector<1x1xf32>
    %cst_27 = arith.constant 0.001953125 : f32
    %47 = vector.broadcast %cst_27 : f32 to vector<1x1xf32>
    %48 = arith.mulf %46, %47 : vector<1x1xf32>
    %cst_28 = arith.constant 9.99999974E-6 : f32
    %49 = vector.broadcast %cst_28 : f32 to vector<1x1xf32>
    %50 = arith.addf %48, %49 : vector<1x1xf32>
    %51 = math.rsqrt %50 : vector<1x1xf32>
    %52 = vector.broadcast %51 : vector<1x1xf32> to vector<64x8xf32>
    %53 = arith.mulf %41, %52 : vector<64x8xf32>
    %c0_29 = arith.constant 0 : index
    %c2 = arith.constant 2 : index
    %c0_30 = arith.constant 0 : index
    %c0_31 = arith.constant 0 : index
    %54 = vector.load %arg1[%c0_29, %c2, %c0_30, %c0_31] : memref<1x8x64x16xf32, #tpu.memory_space<vmem>>, vector<1x1x64x16xf32>
    %55 = vector.shape_cast %54 : vector<1x1x64x16xf32> to vector<64x16xf32>
    %cst_32 = arith.constant dense<0.000000e+00> : vector<64x8xf32>
    %56 = tpu.matmul %55, %0, %cst_32 {dimension_numbers = #tpu.dot_dimension_numbers<[1], [0], [0], [1], [0, 0, 1, 1], [], []>} : vector<64x16xf32>, vector<16x8xf32>, vector<64x8xf32> -> vector<64x8xf32>
    %57 = vector.broadcast %1 : vector<1x8xf32> to vector<64x8xf32>
    %58 = arith.addf %56, %57 : vector<64x8xf32>
    %cst_33 = arith.constant dense<0.000000e+00> : vector<64xf32>
    %59 = vector.multi_reduction <add>, %58, %cst_33 [1] : vector<64x8xf32> to vector<64xf32>
    %60 = vector.shape_cast %59 : vector<64xf32> to vector<64x1xf32>
    %cst_34 = arith.constant dense<0.000000e+00> : vector<1xf32>
    %61 = vector.multi_reduction <add>, %60, %cst_34 [0] : vector<64x1xf32> to vector<1xf32>
    %62 = vector.shape_cast %61 : vector<1xf32> to vector<1x1xf32>
    %cst_35 = arith.constant 0.001953125 : f32
    %63 = vector.broadcast %cst_35 : f32 to vector<1x1xf32>
    %64 = arith.mulf %62, %63 : vector<1x1xf32>
    %65 = vector.broadcast %64 : vector<1x1xf32> to vector<64x8xf32>
    %66 = arith.subf %58, %65 : vector<64x8xf32>
    %67 = arith.mulf %66, %66 : vector<64x8xf32>
    %cst_36 = arith.constant dense<0.000000e+00> : vector<64xf32>
    %68 = vector.multi_reduction <add>, %67, %cst_36 [1] : vector<64x8xf32> to vector<64xf32>
    %69 = vector.shape_cast %68 : vector<64xf32> to vector<64x1xf32>
    %cst_37 = arith.constant dense<0.000000e+00> : vector<1xf32>
    %70 = vector.multi_reduction <add>, %69, %cst_37 [0] : vector<64x1xf32> to vector<1xf32>
    %71 = vector.shape_cast %70 : vector<1xf32> to vector<1x1xf32>
    %cst_38 = arith.constant 0.001953125 : f32
    %72 = vector.broadcast %cst_38 : f32 to vector<1x1xf32>
    %73 = arith.mulf %71, %72 : vector<1x1xf32>
    %cst_39 = arith.constant 9.99999974E-6 : f32
    %74 = vector.broadcast %cst_39 : f32 to vector<1x1xf32>
    %75 = arith.addf %73, %74 : vector<1x1xf32>
    %76 = math.rsqrt %75 : vector<1x1xf32>
    %77 = vector.broadcast %76 : vector<1x1xf32> to vector<64x8xf32>
    %78 = arith.mulf %66, %77 : vector<64x8xf32>
    %c0_40 = arith.constant 0 : index
    %c3 = arith.constant 3 : index
    %c0_41 = arith.constant 0 : index
    %c0_42 = arith.constant 0 : index
    %79 = vector.load %arg1[%c0_40, %c3, %c0_41, %c0_42] : memref<1x8x64x16xf32, #tpu.memory_space<vmem>>, vector<1x1x64x16xf32>
    %80 = vector.shape_cast %79 : vector<1x1x64x16xf32> to vector<64x16xf32>
    %cst_43 = arith.constant dense<0.000000e+00> : vector<64x8xf32>
    %81 = tpu.matmul %80, %0, %cst_43 {dimension_numbers = #tpu.dot_dimension_numbers<[1], [0], [0], [1], [0, 0, 1, 1], [], []>} : vector<64x16xf32>, vector<16x8xf32>, vector<64x8xf32> -> vector<64x8xf32>
    %82 = vector.broadcast %1 : vector<1x8xf32> to vector<64x8xf32>
    %83 = arith.addf %81, %82 : vector<64x8xf32>
    %cst_44 = arith.constant dense<0.000000e+00> : vector<64xf32>
    %84 = vector.multi_reduction <add>, %83, %cst_44 [1] : vector<64x8xf32> to vector<64xf32>
    %85 = vector.shape_cast %84 : vector<64xf32> to vector<64x1xf32>
    %cst_45 = arith.constant dense<0.000000e+00> : vector<1xf32>
    %86 = vector.multi_reduction <add>, %85, %cst_45 [0] : vector<64x1xf32> to vector<1xf32>
    %87 = vector.shape_cast %86 : vector<1xf32> to vector<1x1xf32>
    %cst_46 = arith.constant 0.001953125 : f32
    %88 = vector.broadcast %cst_46 : f32 to vector<1x1xf32>
    %89 = arith.mulf %87, %88 : vector<1x1xf32>
    %90 = vector.broadcast %89 : vector<1x1xf32> to vector<64x8xf32>
    %91 = arith.subf %83, %90 : vector<64x8xf32>
    %92 = arith.mulf %91, %91 : vector<64x8xf32>
    %cst_47 = arith.constant dense<0.000000e+00> : vector<64xf32>
    %93 = vector.multi_reduction <add>, %92, %cst_47 [1] : vector<64x8xf32> to vector<64xf32>
    %94 = vector.shape_cast %93 : vector<64xf32> to vector<64x1xf32>
    %cst_48 = arith.constant dense<0.000000e+00> : vector<1xf32>
    %95 = vector.multi_reduction <add>, %94, %cst_48 [0] : vector<64x1xf32> to vector<1xf32>
    %96 = vector.shape_cast %95 : vector<1xf32> to vector<1x1xf32>
    %cst_49 = arith.constant 0.001953125 : f32
    %97 = vector.broadcast %cst_49 : f32 to vector<1x1xf32>
    %98 = arith.mulf %96, %97 : vector<1x1xf32>
    %cst_50 = arith.constant 9.99999974E-6 : f32
    %99 = vector.broadcast %cst_50 : f32 to vector<1x1xf32>
    %100 = arith.addf %98, %99 : vector<1x1xf32>
    %101 = math.rsqrt %100 : vector<1x1xf32>
    %102 = vector.broadcast %101 : vector<1x1xf32> to vector<64x8xf32>
    %103 = arith.mulf %91, %102 : vector<64x8xf32>
    %c0_51 = arith.constant 0 : index
    %c4 = arith.constant 4 : index
    %c0_52 = arith.constant 0 : index
    %c0_53 = arith.constant 0 : index
    %104 = vector.load %arg1[%c0_51, %c4, %c0_52, %c0_53] : memref<1x8x64x16xf32, #tpu.memory_space<vmem>>, vector<1x1x64x16xf32>
    %105 = vector.shape_cast %104 : vector<1x1x64x16xf32> to vector<64x16xf32>
    %cst_54 = arith.constant dense<0.000000e+00> : vector<64x8xf32>
    %106 = tpu.matmul %105, %0, %cst_54 {dimension_numbers = #tpu.dot_dimension_numbers<[1], [0], [0], [1], [0, 0, 1, 1], [], []>} : vector<64x16xf32>, vector<16x8xf32>, vector<64x8xf32> -> vector<64x8xf32>
    %107 = vector.broadcast %1 : vector<1x8xf32> to vector<64x8xf32>
    %108 = arith.addf %106, %107 : vector<64x8xf32>
    %cst_55 = arith.constant dense<0.000000e+00> : vector<64xf32>
    %109 = vector.multi_reduction <add>, %108, %cst_55 [1] : vector<64x8xf32> to vector<64xf32>
    %110 = vector.shape_cast %109 : vector<64xf32> to vector<64x1xf32>
    %cst_56 = arith.constant dense<0.000000e+00> : vector<1xf32>
    %111 = vector.multi_reduction <add>, %110, %cst_56 [0] : vector<64x1xf32> to vector<1xf32>
    %112 = vector.shape_cast %111 : vector<1xf32> to vector<1x1xf32>
    %cst_57 = arith.constant 0.001953125 : f32
    %113 = vector.broadcast %cst_57 : f32 to vector<1x1xf32>
    %114 = arith.mulf %112, %113 : vector<1x1xf32>
    %115 = vector.broadcast %114 : vector<1x1xf32> to vector<64x8xf32>
    %116 = arith.subf %108, %115 : vector<64x8xf32>
    %117 = arith.mulf %116, %116 : vector<64x8xf32>
    %cst_58 = arith.constant dense<0.000000e+00> : vector<64xf32>
    %118 = vector.multi_reduction <add>, %117, %cst_58 [1] : vector<64x8xf32> to vector<64xf32>
    %119 = vector.shape_cast %118 : vector<64xf32> to vector<64x1xf32>
    %cst_59 = arith.constant dense<0.000000e+00> : vector<1xf32>
    %120 = vector.multi_reduction <add>, %119, %cst_59 [0] : vector<64x1xf32> to vector<1xf32>
    %121 = vector.shape_cast %120 : vector<1xf32> to vector<1x1xf32>
    %cst_60 = arith.constant 0.001953125 : f32
    %122 = vector.broadcast %cst_60 : f32 to vector<1x1xf32>
    %123 = arith.mulf %121, %122 : vector<1x1xf32>
    %cst_61 = arith.constant 9.99999974E-6 : f32
    %124 = vector.broadcast %cst_61 : f32 to vector<1x1xf32>
    %125 = arith.addf %123, %124 : vector<1x1xf32>
    %126 = math.rsqrt %125 : vector<1x1xf32>
    %127 = vector.broadcast %126 : vector<1x1xf32> to vector<64x8xf32>
    %128 = arith.mulf %116, %127 : vector<64x8xf32>
    %c0_62 = arith.constant 0 : index
    %c5 = arith.constant 5 : index
    %c0_63 = arith.constant 0 : index
    %c0_64 = arith.constant 0 : index
    %129 = vector.load %arg1[%c0_62, %c5, %c0_63, %c0_64] : memref<1x8x64x16xf32, #tpu.memory_space<vmem>>, vector<1x1x64x16xf32>
    %130 = vector.shape_cast %129 : vector<1x1x64x16xf32> to vector<64x16xf32>
    %cst_65 = arith.constant dense<0.000000e+00> : vector<64x8xf32>
    %131 = tpu.matmul %130, %0, %cst_65 {dimension_numbers = #tpu.dot_dimension_numbers<[1], [0], [0], [1], [0, 0, 1, 1], [], []>} : vector<64x16xf32>, vector<16x8xf32>, vector<64x8xf32> -> vector<64x8xf32>
    %132 = vector.broadcast %1 : vector<1x8xf32> to vector<64x8xf32>
    %133 = arith.addf %131, %132 : vector<64x8xf32>
    %cst_66 = arith.constant dense<0.000000e+00> : vector<64xf32>
    %134 = vector.multi_reduction <add>, %133, %cst_66 [1] : vector<64x8xf32> to vector<64xf32>
    %135 = vector.shape_cast %134 : vector<64xf32> to vector<64x1xf32>
    %cst_67 = arith.constant dense<0.000000e+00> : vector<1xf32>
    %136 = vector.multi_reduction <add>, %135, %cst_67 [0] : vector<64x1xf32> to vector<1xf32>
    %137 = vector.shape_cast %136 : vector<1xf32> to vector<1x1xf32>
    %cst_68 = arith.constant 0.001953125 : f32
    %138 = vector.broadcast %cst_68 : f32 to vector<1x1xf32>
    %139 = arith.mulf %137, %138 : vector<1x1xf32>
    %140 = vector.broadcast %139 : vector<1x1xf32> to vector<64x8xf32>
    %141 = arith.subf %133, %140 : vector<64x8xf32>
    %142 = arith.mulf %141, %141 : vector<64x8xf32>
    %cst_69 = arith.constant dense<0.000000e+00> : vector<64xf32>
    %143 = vector.multi_reduction <add>, %142, %cst_69 [1] : vector<64x8xf32> to vector<64xf32>
    %144 = vector.shape_cast %143 : vector<64xf32> to vector<64x1xf32>
    %cst_70 = arith.constant dense<0.000000e+00> : vector<1xf32>
    %145 = vector.multi_reduction <add>, %144, %cst_70 [0] : vector<64x1xf32> to vector<1xf32>
    %146 = vector.shape_cast %145 : vector<1xf32> to vector<1x1xf32>
    %cst_71 = arith.constant 0.001953125 : f32
    %147 = vector.broadcast %cst_71 : f32 to vector<1x1xf32>
    %148 = arith.mulf %146, %147 : vector<1x1xf32>
    %cst_72 = arith.constant 9.99999974E-6 : f32
    %149 = vector.broadcast %cst_72 : f32 to vector<1x1xf32>
    %150 = arith.addf %148, %149 : vector<1x1xf32>
    %151 = math.rsqrt %150 : vector<1x1xf32>
    %152 = vector.broadcast %151 : vector<1x1xf32> to vector<64x8xf32>
    %153 = arith.mulf %141, %152 : vector<64x8xf32>
    %c0_73 = arith.constant 0 : index
    %c6 = arith.constant 6 : index
    %c0_74 = arith.constant 0 : index
    %c0_75 = arith.constant 0 : index
    %154 = vector.load %arg1[%c0_73, %c6, %c0_74, %c0_75] : memref<1x8x64x16xf32, #tpu.memory_space<vmem>>, vector<1x1x64x16xf32>
    %155 = vector.shape_cast %154 : vector<1x1x64x16xf32> to vector<64x16xf32>
    %cst_76 = arith.constant dense<0.000000e+00> : vector<64x8xf32>
    %156 = tpu.matmul %155, %0, %cst_76 {dimension_numbers = #tpu.dot_dimension_numbers<[1], [0], [0], [1], [0, 0, 1, 1], [], []>} : vector<64x16xf32>, vector<16x8xf32>, vector<64x8xf32> -> vector<64x8xf32>
    %157 = vector.broadcast %1 : vector<1x8xf32> to vector<64x8xf32>
    %158 = arith.addf %156, %157 : vector<64x8xf32>
    %cst_77 = arith.constant dense<0.000000e+00> : vector<64xf32>
    %159 = vector.multi_reduction <add>, %158, %cst_77 [1] : vector<64x8xf32> to vector<64xf32>
    %160 = vector.shape_cast %159 : vector<64xf32> to vector<64x1xf32>
    %cst_78 = arith.constant dense<0.000000e+00> : vector<1xf32>
    %161 = vector.multi_reduction <add>, %160, %cst_78 [0] : vector<64x1xf32> to vector<1xf32>
    %162 = vector.shape_cast %161 : vector<1xf32> to vector<1x1xf32>
    %cst_79 = arith.constant 0.001953125 : f32
    %163 = vector.broadcast %cst_79 : f32 to vector<1x1xf32>
    %164 = arith.mulf %162, %163 : vector<1x1xf32>
    %165 = vector.broadcast %164 : vector<1x1xf32> to vector<64x8xf32>
    %166 = arith.subf %158, %165 : vector<64x8xf32>
    %167 = arith.mulf %166, %166 : vector<64x8xf32>
    %cst_80 = arith.constant dense<0.000000e+00> : vector<64xf32>
    %168 = vector.multi_reduction <add>, %167, %cst_80 [1] : vector<64x8xf32> to vector<64xf32>
    %169 = vector.shape_cast %168 : vector<64xf32> to vector<64x1xf32>
    %cst_81 = arith.constant dense<0.000000e+00> : vector<1xf32>
    %170 = vector.multi_reduction <add>, %169, %cst_81 [0] : vector<64x1xf32> to vector<1xf32>
    %171 = vector.shape_cast %170 : vector<1xf32> to vector<1x1xf32>
    %cst_82 = arith.constant 0.001953125 : f32
    %172 = vector.broadcast %cst_82 : f32 to vector<1x1xf32>
    %173 = arith.mulf %171, %172 : vector<1x1xf32>
    %cst_83 = arith.constant 9.99999974E-6 : f32
    %174 = vector.broadcast %cst_83 : f32 to vector<1x1xf32>
    %175 = arith.addf %173, %174 : vector<1x1xf32>
    %176 = math.rsqrt %175 : vector<1x1xf32>
    %177 = vector.broadcast %176 : vector<1x1xf32> to vector<64x8xf32>
    %178 = arith.mulf %166, %177 : vector<64x8xf32>
    %c0_84 = arith.constant 0 : index
    %c7 = arith.constant 7 : index
    %c0_85 = arith.constant 0 : index
    %c0_86 = arith.constant 0 : index
    %179 = vector.load %arg1[%c0_84, %c7, %c0_85, %c0_86] : memref<1x8x64x16xf32, #tpu.memory_space<vmem>>, vector<1x1x64x16xf32>
    %180 = vector.shape_cast %179 : vector<1x1x64x16xf32> to vector<64x16xf32>
    %cst_87 = arith.constant dense<0.000000e+00> : vector<64x8xf32>
    %181 = tpu.matmul %180, %0, %cst_87 {dimension_numbers = #tpu.dot_dimension_numbers<[1], [0], [0], [1], [0, 0, 1, 1], [], []>} : vector<64x16xf32>, vector<16x8xf32>, vector<64x8xf32> -> vector<64x8xf32>
    %182 = vector.broadcast %1 : vector<1x8xf32> to vector<64x8xf32>
    %183 = arith.addf %181, %182 : vector<64x8xf32>
    %cst_88 = arith.constant dense<0.000000e+00> : vector<64xf32>
    %184 = vector.multi_reduction <add>, %183, %cst_88 [1] : vector<64x8xf32> to vector<64xf32>
    %185 = vector.shape_cast %184 : vector<64xf32> to vector<64x1xf32>
    %cst_89 = arith.constant dense<0.000000e+00> : vector<1xf32>
    %186 = vector.multi_reduction <add>, %185, %cst_89 [0] : vector<64x1xf32> to vector<1xf32>
    %187 = vector.shape_cast %186 : vector<1xf32> to vector<1x1xf32>
    %cst_90 = arith.constant 0.001953125 : f32
    %188 = vector.broadcast %cst_90 : f32 to vector<1x1xf32>
    %189 = arith.mulf %187, %188 : vector<1x1xf32>
    %190 = vector.broadcast %189 : vector<1x1xf32> to vector<64x8xf32>
    %191 = arith.subf %183, %190 : vector<64x8xf32>
    %192 = arith.mulf %191, %191 : vector<64x8xf32>
    %cst_91 = arith.constant dense<0.000000e+00> : vector<64xf32>
    %193 = vector.multi_reduction <add>, %192, %cst_91 [1] : vector<64x8xf32> to vector<64xf32>
    %194 = vector.shape_cast %193 : vector<64xf32> to vector<64x1xf32>
    %cst_92 = arith.constant dense<0.000000e+00> : vector<1xf32>
    %195 = vector.multi_reduction <add>, %194, %cst_92 [0] : vector<64x1xf32> to vector<1xf32>
    %196 = vector.shape_cast %195 : vector<1xf32> to vector<1x1xf32>
    %cst_93 = arith.constant 0.001953125 : f32
    %197 = vector.broadcast %cst_93 : f32 to vector<1x1xf32>
    %198 = arith.mulf %196, %197 : vector<1x1xf32>
    %cst_94 = arith.constant 9.99999974E-6 : f32
    %199 = vector.broadcast %cst_94 : f32 to vector<1x1xf32>
    %200 = arith.addf %198, %199 : vector<1x1xf32>
    %201 = math.rsqrt %200 : vector<1x1xf32>
    %202 = vector.broadcast %201 : vector<1x1xf32> to vector<64x8xf32>
    %203 = arith.mulf %191, %202 : vector<64x8xf32>
    %204 = arith.subf %53, %28 : vector<64x8xf32>
    %205 = arith.subf %78, %53 : vector<64x8xf32>
    %206 = arith.subf %103, %78 : vector<64x8xf32>
    %207 = arith.subf %128, %103 : vector<64x8xf32>
    %208 = arith.subf %153, %128 : vector<64x8xf32>
    %209 = arith.subf %178, %153 : vector<64x8xf32>
    %210 = arith.subf %203, %178 : vector<64x8xf32>
    %cst_95 = arith.constant 0.000000e+00 : f32
    %211 = vector.broadcast %cst_95 : f32 to vector<64x8xf32>
    %212 = arith.subf %211, %203 : vector<64x8xf32>
    %213 = arith.mulf %204, %204 : vector<64x8xf32>
    %cst_96 = arith.constant dense<0.000000e+00> : vector<64xf32>
    %214 = vector.multi_reduction <add>, %213, %cst_96 [1] : vector<64x8xf32> to vector<64xf32>
    %215 = vector.shape_cast %214 : vector<64xf32> to vector<64x1xf32>
    %cst_97 = arith.constant dense<0.000000e+00> : vector<1xf32>
    %216 = vector.multi_reduction <add>, %215, %cst_97 [0] : vector<64x1xf32> to vector<1xf32>
    %217 = vector.shape_cast %216 : vector<1xf32> to vector<1x1xf32>
    %cst_98 = arith.constant 0.0441941731 : f32
    %218 = vector.broadcast %cst_98 : f32 to vector<1x1xf32>
    %219 = arith.mulf %217, %218 : vector<1x1xf32>
    %220 = arith.mulf %204, %205 : vector<64x8xf32>
    %cst_99 = arith.constant dense<0.000000e+00> : vector<64xf32>
    %221 = vector.multi_reduction <add>, %220, %cst_99 [1] : vector<64x8xf32> to vector<64xf32>
    %222 = vector.shape_cast %221 : vector<64xf32> to vector<64x1xf32>
    %cst_100 = arith.constant dense<0.000000e+00> : vector<1xf32>
    %223 = vector.multi_reduction <add>, %222, %cst_100 [0] : vector<64x1xf32> to vector<1xf32>
    %224 = vector.shape_cast %223 : vector<1xf32> to vector<1x1xf32>
    %cst_101 = arith.constant 0.0441941731 : f32
    %225 = vector.broadcast %cst_101 : f32 to vector<1x1xf32>
    %226 = arith.mulf %224, %225 : vector<1x1xf32>
    %227 = arith.mulf %204, %206 : vector<64x8xf32>
    %cst_102 = arith.constant dense<0.000000e+00> : vector<64xf32>
    %228 = vector.multi_reduction <add>, %227, %cst_102 [1] : vector<64x8xf32> to vector<64xf32>
    %229 = vector.shape_cast %228 : vector<64xf32> to vector<64x1xf32>
    %cst_103 = arith.constant dense<0.000000e+00> : vector<1xf32>
    %230 = vector.multi_reduction <add>, %229, %cst_103 [0] : vector<64x1xf32> to vector<1xf32>
    %231 = vector.shape_cast %230 : vector<1xf32> to vector<1x1xf32>
    %cst_104 = arith.constant 0.0441941731 : f32
    %232 = vector.broadcast %cst_104 : f32 to vector<1x1xf32>
    %233 = arith.mulf %231, %232 : vector<1x1xf32>
    %234 = arith.mulf %204, %207 : vector<64x8xf32>
    %cst_105 = arith.constant dense<0.000000e+00> : vector<64xf32>
    %235 = vector.multi_reduction <add>, %234, %cst_105 [1] : vector<64x8xf32> to vector<64xf32>
    %236 = vector.shape_cast %235 : vector<64xf32> to vector<64x1xf32>
    %cst_106 = arith.constant dense<0.000000e+00> : vector<1xf32>
    %237 = vector.multi_reduction <add>, %236, %cst_106 [0] : vector<64x1xf32> to vector<1xf32>
    %238 = vector.shape_cast %237 : vector<1xf32> to vector<1x1xf32>
    %cst_107 = arith.constant 0.0441941731 : f32
    %239 = vector.broadcast %cst_107 : f32 to vector<1x1xf32>
    %240 = arith.mulf %238, %239 : vector<1x1xf32>
    %241 = arith.mulf %204, %208 : vector<64x8xf32>
    %cst_108 = arith.constant dense<0.000000e+00> : vector<64xf32>
    %242 = vector.multi_reduction <add>, %241, %cst_108 [1] : vector<64x8xf32> to vector<64xf32>
    %243 = vector.shape_cast %242 : vector<64xf32> to vector<64x1xf32>
    %cst_109 = arith.constant dense<0.000000e+00> : vector<1xf32>
    %244 = vector.multi_reduction <add>, %243, %cst_109 [0] : vector<64x1xf32> to vector<1xf32>
    %245 = vector.shape_cast %244 : vector<1xf32> to vector<1x1xf32>
    %cst_110 = arith.constant 0.0441941731 : f32
    %246 = vector.broadcast %cst_110 : f32 to vector<1x1xf32>
    %247 = arith.mulf %245, %246 : vector<1x1xf32>
    %248 = arith.mulf %204, %209 : vector<64x8xf32>
    %cst_111 = arith.constant dense<0.000000e+00> : vector<64xf32>
    %249 = vector.multi_reduction <add>, %248, %cst_111 [1] : vector<64x8xf32> to vector<64xf32>
    %250 = vector.shape_cast %249 : vector<64xf32> to vector<64x1xf32>
    %cst_112 = arith.constant dense<0.000000e+00> : vector<1xf32>
    %251 = vector.multi_reduction <add>, %250, %cst_112 [0] : vector<64x1xf32> to vector<1xf32>
    %252 = vector.shape_cast %251 : vector<1xf32> to vector<1x1xf32>
    %cst_113 = arith.constant 0.0441941731 : f32
    %253 = vector.broadcast %cst_113 : f32 to vector<1x1xf32>
    %254 = arith.mulf %252, %253 : vector<1x1xf32>
    %255 = arith.mulf %204, %210 : vector<64x8xf32>
    %cst_114 = arith.constant dense<0.000000e+00> : vector<64xf32>
    %256 = vector.multi_reduction <add>, %255, %cst_114 [1] : vector<64x8xf32> to vector<64xf32>
    %257 = vector.shape_cast %256 : vector<64xf32> to vector<64x1xf32>
    %cst_115 = arith.constant dense<0.000000e+00> : vector<1xf32>
    %258 = vector.multi_reduction <add>, %257, %cst_115 [0] : vector<64x1xf32> to vector<1xf32>
    %259 = vector.shape_cast %258 : vector<1xf32> to vector<1x1xf32>
    %cst_116 = arith.constant 0.0441941731 : f32
    %260 = vector.broadcast %cst_116 : f32 to vector<1x1xf32>
    %261 = arith.mulf %259, %260 : vector<1x1xf32>
    %262 = arith.mulf %204, %212 : vector<64x8xf32>
    %cst_117 = arith.constant dense<0.000000e+00> : vector<64xf32>
    %263 = vector.multi_reduction <add>, %262, %cst_117 [1] : vector<64x8xf32> to vector<64xf32>
    %264 = vector.shape_cast %263 : vector<64xf32> to vector<64x1xf32>
    %cst_118 = arith.constant dense<0.000000e+00> : vector<1xf32>
    %265 = vector.multi_reduction <add>, %264, %cst_118 [0] : vector<64x1xf32> to vector<1xf32>
    %266 = vector.shape_cast %265 : vector<1xf32> to vector<1x1xf32>
    %cst_119 = arith.constant 0.0441941731 : f32
    %267 = vector.broadcast %cst_119 : f32 to vector<1x1xf32>
    %268 = arith.mulf %266, %267 : vector<1x1xf32>
    %269 = arith.mulf %205, %205 : vector<64x8xf32>
    %cst_120 = arith.constant dense<0.000000e+00> : vector<64xf32>
    %270 = vector.multi_reduction <add>, %269, %cst_120 [1] : vector<64x8xf32> to vector<64xf32>
    %271 = vector.shape_cast %270 : vector<64xf32> to vector<64x1xf32>
    %cst_121 = arith.constant dense<0.000000e+00> : vector<1xf32>
    %272 = vector.multi_reduction <add>, %271, %cst_121 [0] : vector<64x1xf32> to vector<1xf32>
    %273 = vector.shape_cast %272 : vector<1xf32> to vector<1x1xf32>
    %cst_122 = arith.constant 0.0441941731 : f32
    %274 = vector.broadcast %cst_122 : f32 to vector<1x1xf32>
    %275 = arith.mulf %273, %274 : vector<1x1xf32>
    %276 = arith.mulf %205, %206 : vector<64x8xf32>
    %cst_123 = arith.constant dense<0.000000e+00> : vector<64xf32>
    %277 = vector.multi_reduction <add>, %276, %cst_123 [1] : vector<64x8xf32> to vector<64xf32>
    %278 = vector.shape_cast %277 : vector<64xf32> to vector<64x1xf32>
    %cst_124 = arith.constant dense<0.000000e+00> : vector<1xf32>
    %279 = vector.multi_reduction <add>, %278, %cst_124 [0] : vector<64x1xf32> to vector<1xf32>
    %280 = vector.shape_cast %279 : vector<1xf32> to vector<1x1xf32>
    %cst_125 = arith.constant 0.0441941731 : f32
    %281 = vector.broadcast %cst_125 : f32 to vector<1x1xf32>
    %282 = arith.mulf %280, %281 : vector<1x1xf32>
    %283 = arith.mulf %205, %207 : vector<64x8xf32>
    %cst_126 = arith.constant dense<0.000000e+00> : vector<64xf32>
    %284 = vector.multi_reduction <add>, %283, %cst_126 [1] : vector<64x8xf32> to vector<64xf32>
    %285 = vector.shape_cast %284 : vector<64xf32> to vector<64x1xf32>
    %cst_127 = arith.constant dense<0.000000e+00> : vector<1xf32>
    %286 = vector.multi_reduction <add>, %285, %cst_127 [0] : vector<64x1xf32> to vector<1xf32>
    %287 = vector.shape_cast %286 : vector<1xf32> to vector<1x1xf32>
    %cst_128 = arith.constant 0.0441941731 : f32
    %288 = vector.broadcast %cst_128 : f32 to vector<1x1xf32>
    %289 = arith.mulf %287, %288 : vector<1x1xf32>
    %290 = arith.mulf %205, %208 : vector<64x8xf32>
    %cst_129 = arith.constant dense<0.000000e+00> : vector<64xf32>
    %291 = vector.multi_reduction <add>, %290, %cst_129 [1] : vector<64x8xf32> to vector<64xf32>
    %292 = vector.shape_cast %291 : vector<64xf32> to vector<64x1xf32>
    %cst_130 = arith.constant dense<0.000000e+00> : vector<1xf32>
    %293 = vector.multi_reduction <add>, %292, %cst_130 [0] : vector<64x1xf32> to vector<1xf32>
    %294 = vector.shape_cast %293 : vector<1xf32> to vector<1x1xf32>
    %cst_131 = arith.constant 0.0441941731 : f32
    %295 = vector.broadcast %cst_131 : f32 to vector<1x1xf32>
    %296 = arith.mulf %294, %295 : vector<1x1xf32>
    %297 = arith.mulf %205, %209 : vector<64x8xf32>
    %cst_132 = arith.constant dense<0.000000e+00> : vector<64xf32>
    %298 = vector.multi_reduction <add>, %297, %cst_132 [1] : vector<64x8xf32> to vector<64xf32>
    %299 = vector.shape_cast %298 : vector<64xf32> to vector<64x1xf32>
    %cst_133 = arith.constant dense<0.000000e+00> : vector<1xf32>
    %300 = vector.multi_reduction <add>, %299, %cst_133 [0] : vector<64x1xf32> to vector<1xf32>
    %301 = vector.shape_cast %300 : vector<1xf32> to vector<1x1xf32>
    %cst_134 = arith.constant 0.0441941731 : f32
    %302 = vector.broadcast %cst_134 : f32 to vector<1x1xf32>
    %303 = arith.mulf %301, %302 : vector<1x1xf32>
    %304 = arith.mulf %205, %210 : vector<64x8xf32>
    %cst_135 = arith.constant dense<0.000000e+00> : vector<64xf32>
    %305 = vector.multi_reduction <add>, %304, %cst_135 [1] : vector<64x8xf32> to vector<64xf32>
    %306 = vector.shape_cast %305 : vector<64xf32> to vector<64x1xf32>
    %cst_136 = arith.constant dense<0.000000e+00> : vector<1xf32>
    %307 = vector.multi_reduction <add>, %306, %cst_136 [0] : vector<64x1xf32> to vector<1xf32>
    %308 = vector.shape_cast %307 : vector<1xf32> to vector<1x1xf32>
    %cst_137 = arith.constant 0.0441941731 : f32
    %309 = vector.broadcast %cst_137 : f32 to vector<1x1xf32>
    %310 = arith.mulf %308, %309 : vector<1x1xf32>
    %311 = arith.mulf %205, %212 : vector<64x8xf32>
    %cst_138 = arith.constant dense<0.000000e+00> : vector<64xf32>
    %312 = vector.multi_reduction <add>, %311, %cst_138 [1] : vector<64x8xf32> to vector<64xf32>
    %313 = vector.shape_cast %312 : vector<64xf32> to vector<64x1xf32>
    %cst_139 = arith.constant dense<0.000000e+00> : vector<1xf32>
    %314 = vector.multi_reduction <add>, %313, %cst_139 [0] : vector<64x1xf32> to vector<1xf32>
    %315 = vector.shape_cast %314 : vector<1xf32> to vector<1x1xf32>
    %cst_140 = arith.constant 0.0441941731 : f32
    %316 = vector.broadcast %cst_140 : f32 to vector<1x1xf32>
    %317 = arith.mulf %315, %316 : vector<1x1xf32>
    %318 = arith.mulf %206, %206 : vector<64x8xf32>
    %cst_141 = arith.constant dense<0.000000e+00> : vector<64xf32>
    %319 = vector.multi_reduction <add>, %318, %cst_141 [1] : vector<64x8xf32> to vector<64xf32>
    %320 = vector.shape_cast %319 : vector<64xf32> to vector<64x1xf32>
    %cst_142 = arith.constant dense<0.000000e+00> : vector<1xf32>
    %321 = vector.multi_reduction <add>, %320, %cst_142 [0] : vector<64x1xf32> to vector<1xf32>
    %322 = vector.shape_cast %321 : vector<1xf32> to vector<1x1xf32>
    %cst_143 = arith.constant 0.0441941731 : f32
    %323 = vector.broadcast %cst_143 : f32 to vector<1x1xf32>
    %324 = arith.mulf %322, %323 : vector<1x1xf32>
    %325 = arith.mulf %206, %207 : vector<64x8xf32>
    %cst_144 = arith.constant dense<0.000000e+00> : vector<64xf32>
    %326 = vector.multi_reduction <add>, %325, %cst_144 [1] : vector<64x8xf32> to vector<64xf32>
    %327 = vector.shape_cast %326 : vector<64xf32> to vector<64x1xf32>
    %cst_145 = arith.constant dense<0.000000e+00> : vector<1xf32>
    %328 = vector.multi_reduction <add>, %327, %cst_145 [0] : vector<64x1xf32> to vector<1xf32>
    %329 = vector.shape_cast %328 : vector<1xf32> to vector<1x1xf32>
    %cst_146 = arith.constant 0.0441941731 : f32
    %330 = vector.broadcast %cst_146 : f32 to vector<1x1xf32>
    %331 = arith.mulf %329, %330 : vector<1x1xf32>
    %332 = arith.mulf %206, %208 : vector<64x8xf32>
    %cst_147 = arith.constant dense<0.000000e+00> : vector<64xf32>
    %333 = vector.multi_reduction <add>, %332, %cst_147 [1] : vector<64x8xf32> to vector<64xf32>
    %334 = vector.shape_cast %333 : vector<64xf32> to vector<64x1xf32>
    %cst_148 = arith.constant dense<0.000000e+00> : vector<1xf32>
    %335 = vector.multi_reduction <add>, %334, %cst_148 [0] : vector<64x1xf32> to vector<1xf32>
    %336 = vector.shape_cast %335 : vector<1xf32> to vector<1x1xf32>
    %cst_149 = arith.constant 0.0441941731 : f32
    %337 = vector.broadcast %cst_149 : f32 to vector<1x1xf32>
    %338 = arith.mulf %336, %337 : vector<1x1xf32>
    %339 = arith.mulf %206, %209 : vector<64x8xf32>
    %cst_150 = arith.constant dense<0.000000e+00> : vector<64xf32>
    %340 = vector.multi_reduction <add>, %339, %cst_150 [1] : vector<64x8xf32> to vector<64xf32>
    %341 = vector.shape_cast %340 : vector<64xf32> to vector<64x1xf32>
    %cst_151 = arith.constant dense<0.000000e+00> : vector<1xf32>
    %342 = vector.multi_reduction <add>, %341, %cst_151 [0] : vector<64x1xf32> to vector<1xf32>
    %343 = vector.shape_cast %342 : vector<1xf32> to vector<1x1xf32>
    %cst_152 = arith.constant 0.0441941731 : f32
    %344 = vector.broadcast %cst_152 : f32 to vector<1x1xf32>
    %345 = arith.mulf %343, %344 : vector<1x1xf32>
    %346 = arith.mulf %206, %210 : vector<64x8xf32>
    %cst_153 = arith.constant dense<0.000000e+00> : vector<64xf32>
    %347 = vector.multi_reduction <add>, %346, %cst_153 [1] : vector<64x8xf32> to vector<64xf32>
    %348 = vector.shape_cast %347 : vector<64xf32> to vector<64x1xf32>
    %cst_154 = arith.constant dense<0.000000e+00> : vector<1xf32>
    %349 = vector.multi_reduction <add>, %348, %cst_154 [0] : vector<64x1xf32> to vector<1xf32>
    %350 = vector.shape_cast %349 : vector<1xf32> to vector<1x1xf32>
    %cst_155 = arith.constant 0.0441941731 : f32
    %351 = vector.broadcast %cst_155 : f32 to vector<1x1xf32>
    %352 = arith.mulf %350, %351 : vector<1x1xf32>
    %353 = arith.mulf %206, %212 : vector<64x8xf32>
    %cst_156 = arith.constant dense<0.000000e+00> : vector<64xf32>
    %354 = vector.multi_reduction <add>, %353, %cst_156 [1] : vector<64x8xf32> to vector<64xf32>
    %355 = vector.shape_cast %354 : vector<64xf32> to vector<64x1xf32>
    %cst_157 = arith.constant dense<0.000000e+00> : vector<1xf32>
    %356 = vector.multi_reduction <add>, %355, %cst_157 [0] : vector<64x1xf32> to vector<1xf32>
    %357 = vector.shape_cast %356 : vector<1xf32> to vector<1x1xf32>
    %cst_158 = arith.constant 0.0441941731 : f32
    %358 = vector.broadcast %cst_158 : f32 to vector<1x1xf32>
    %359 = arith.mulf %357, %358 : vector<1x1xf32>
    %360 = arith.mulf %207, %207 : vector<64x8xf32>
    %cst_159 = arith.constant dense<0.000000e+00> : vector<64xf32>
    %361 = vector.multi_reduction <add>, %360, %cst_159 [1] : vector<64x8xf32> to vector<64xf32>
    %362 = vector.shape_cast %361 : vector<64xf32> to vector<64x1xf32>
    %cst_160 = arith.constant dense<0.000000e+00> : vector<1xf32>
    %363 = vector.multi_reduction <add>, %362, %cst_160 [0] : vector<64x1xf32> to vector<1xf32>
    %364 = vector.shape_cast %363 : vector<1xf32> to vector<1x1xf32>
    %cst_161 = arith.constant 0.0441941731 : f32
    %365 = vector.broadcast %cst_161 : f32 to vector<1x1xf32>
    %366 = arith.mulf %364, %365 : vector<1x1xf32>
    %367 = arith.mulf %207, %208 : vector<64x8xf32>
    %cst_162 = arith.constant dense<0.000000e+00> : vector<64xf32>
    %368 = vector.multi_reduction <add>, %367, %cst_162 [1] : vector<64x8xf32> to vector<64xf32>
    %369 = vector.shape_cast %368 : vector<64xf32> to vector<64x1xf32>
    %cst_163 = arith.constant dense<0.000000e+00> : vector<1xf32>
    %370 = vector.multi_reduction <add>, %369, %cst_163 [0] : vector<64x1xf32> to vector<1xf32>
    %371 = vector.shape_cast %370 : vector<1xf32> to vector<1x1xf32>
    %cst_164 = arith.constant 0.0441941731 : f32
    %372 = vector.broadcast %cst_164 : f32 to vector<1x1xf32>
    %373 = arith.mulf %371, %372 : vector<1x1xf32>
    %374 = arith.mulf %207, %209 : vector<64x8xf32>
    %cst_165 = arith.constant dense<0.000000e+00> : vector<64xf32>
    %375 = vector.multi_reduction <add>, %374, %cst_165 [1] : vector<64x8xf32> to vector<64xf32>
    %376 = vector.shape_cast %375 : vector<64xf32> to vector<64x1xf32>
    %cst_166 = arith.constant dense<0.000000e+00> : vector<1xf32>
    %377 = vector.multi_reduction <add>, %376, %cst_166 [0] : vector<64x1xf32> to vector<1xf32>
    %378 = vector.shape_cast %377 : vector<1xf32> to vector<1x1xf32>
    %cst_167 = arith.constant 0.0441941731 : f32
    %379 = vector.broadcast %cst_167 : f32 to vector<1x1xf32>
    %380 = arith.mulf %378, %379 : vector<1x1xf32>
    %381 = arith.mulf %207, %210 : vector<64x8xf32>
    %cst_168 = arith.constant dense<0.000000e+00> : vector<64xf32>
    %382 = vector.multi_reduction <add>, %381, %cst_168 [1] : vector<64x8xf32> to vector<64xf32>
    %383 = vector.shape_cast %382 : vector<64xf32> to vector<64x1xf32>
    %cst_169 = arith.constant dense<0.000000e+00> : vector<1xf32>
    %384 = vector.multi_reduction <add>, %383, %cst_169 [0] : vector<64x1xf32> to vector<1xf32>
    %385 = vector.shape_cast %384 : vector<1xf32> to vector<1x1xf32>
    %cst_170 = arith.constant 0.0441941731 : f32
    %386 = vector.broadcast %cst_170 : f32 to vector<1x1xf32>
    %387 = arith.mulf %385, %386 : vector<1x1xf32>
    %388 = arith.mulf %207, %212 : vector<64x8xf32>
    %cst_171 = arith.constant dense<0.000000e+00> : vector<64xf32>
    %389 = vector.multi_reduction <add>, %388, %cst_171 [1] : vector<64x8xf32> to vector<64xf32>
    %390 = vector.shape_cast %389 : vector<64xf32> to vector<64x1xf32>
    %cst_172 = arith.constant dense<0.000000e+00> : vector<1xf32>
    %391 = vector.multi_reduction <add>, %390, %cst_172 [0] : vector<64x1xf32> to vector<1xf32>
    %392 = vector.shape_cast %391 : vector<1xf32> to vector<1x1xf32>
    %cst_173 = arith.constant 0.0441941731 : f32
    %393 = vector.broadcast %cst_173 : f32 to vector<1x1xf32>
    %394 = arith.mulf %392, %393 : vector<1x1xf32>
    %395 = arith.mulf %208, %208 : vector<64x8xf32>
    %cst_174 = arith.constant dense<0.000000e+00> : vector<64xf32>
    %396 = vector.multi_reduction <add>, %395, %cst_174 [1] : vector<64x8xf32> to vector<64xf32>
    %397 = vector.shape_cast %396 : vector<64xf32> to vector<64x1xf32>
    %cst_175 = arith.constant dense<0.000000e+00> : vector<1xf32>
    %398 = vector.multi_reduction <add>, %397, %cst_175 [0] : vector<64x1xf32> to vector<1xf32>
    %399 = vector.shape_cast %398 : vector<1xf32> to vector<1x1xf32>
    %cst_176 = arith.constant 0.0441941731 : f32
    %400 = vector.broadcast %cst_176 : f32 to vector<1x1xf32>
    %401 = arith.mulf %399, %400 : vector<1x1xf32>
    %402 = arith.mulf %208, %209 : vector<64x8xf32>
    %cst_177 = arith.constant dense<0.000000e+00> : vector<64xf32>
    %403 = vector.multi_reduction <add>, %402, %cst_177 [1] : vector<64x8xf32> to vector<64xf32>
    %404 = vector.shape_cast %403 : vector<64xf32> to vector<64x1xf32>
    %cst_178 = arith.constant dense<0.000000e+00> : vector<1xf32>
    %405 = vector.multi_reduction <add>, %404, %cst_178 [0] : vector<64x1xf32> to vector<1xf32>
    %406 = vector.shape_cast %405 : vector<1xf32> to vector<1x1xf32>
    %cst_179 = arith.constant 0.0441941731 : f32
    %407 = vector.broadcast %cst_179 : f32 to vector<1x1xf32>
    %408 = arith.mulf %406, %407 : vector<1x1xf32>
    %409 = arith.mulf %208, %210 : vector<64x8xf32>
    %cst_180 = arith.constant dense<0.000000e+00> : vector<64xf32>
    %410 = vector.multi_reduction <add>, %409, %cst_180 [1] : vector<64x8xf32> to vector<64xf32>
    %411 = vector.shape_cast %410 : vector<64xf32> to vector<64x1xf32>
    %cst_181 = arith.constant dense<0.000000e+00> : vector<1xf32>
    %412 = vector.multi_reduction <add>, %411, %cst_181 [0] : vector<64x1xf32> to vector<1xf32>
    %413 = vector.shape_cast %412 : vector<1xf32> to vector<1x1xf32>
    %cst_182 = arith.constant 0.0441941731 : f32
    %414 = vector.broadcast %cst_182 : f32 to vector<1x1xf32>
    %415 = arith.mulf %413, %414 : vector<1x1xf32>
    %416 = arith.mulf %208, %212 : vector<64x8xf32>
    %cst_183 = arith.constant dense<0.000000e+00> : vector<64xf32>
    %417 = vector.multi_reduction <add>, %416, %cst_183 [1] : vector<64x8xf32> to vector<64xf32>
    %418 = vector.shape_cast %417 : vector<64xf32> to vector<64x1xf32>
    %cst_184 = arith.constant dense<0.000000e+00> : vector<1xf32>
    %419 = vector.multi_reduction <add>, %418, %cst_184 [0] : vector<64x1xf32> to vector<1xf32>
    %420 = vector.shape_cast %419 : vector<1xf32> to vector<1x1xf32>
    %cst_185 = arith.constant 0.0441941731 : f32
    %421 = vector.broadcast %cst_185 : f32 to vector<1x1xf32>
    %422 = arith.mulf %420, %421 : vector<1x1xf32>
    %423 = arith.mulf %209, %209 : vector<64x8xf32>
    %cst_186 = arith.constant dense<0.000000e+00> : vector<64xf32>
    %424 = vector.multi_reduction <add>, %423, %cst_186 [1] : vector<64x8xf32> to vector<64xf32>
    %425 = vector.shape_cast %424 : vector<64xf32> to vector<64x1xf32>
    %cst_187 = arith.constant dense<0.000000e+00> : vector<1xf32>
    %426 = vector.multi_reduction <add>, %425, %cst_187 [0] : vector<64x1xf32> to vector<1xf32>
    %427 = vector.shape_cast %426 : vector<1xf32> to vector<1x1xf32>
    %cst_188 = arith.constant 0.0441941731 : f32
    %428 = vector.broadcast %cst_188 : f32 to vector<1x1xf32>
    %429 = arith.mulf %427, %428 : vector<1x1xf32>
    %430 = arith.mulf %209, %210 : vector<64x8xf32>
    %cst_189 = arith.constant dense<0.000000e+00> : vector<64xf32>
    %431 = vector.multi_reduction <add>, %430, %cst_189 [1] : vector<64x8xf32> to vector<64xf32>
    %432 = vector.shape_cast %431 : vector<64xf32> to vector<64x1xf32>
    %cst_190 = arith.constant dense<0.000000e+00> : vector<1xf32>
    %433 = vector.multi_reduction <add>, %432, %cst_190 [0] : vector<64x1xf32> to vector<1xf32>
    %434 = vector.shape_cast %433 : vector<1xf32> to vector<1x1xf32>
    %cst_191 = arith.constant 0.0441941731 : f32
    %435 = vector.broadcast %cst_191 : f32 to vector<1x1xf32>
    %436 = arith.mulf %434, %435 : vector<1x1xf32>
    %437 = arith.mulf %209, %212 : vector<64x8xf32>
    %cst_192 = arith.constant dense<0.000000e+00> : vector<64xf32>
    %438 = vector.multi_reduction <add>, %437, %cst_192 [1] : vector<64x8xf32> to vector<64xf32>
    %439 = vector.shape_cast %438 : vector<64xf32> to vector<64x1xf32>
    %cst_193 = arith.constant dense<0.000000e+00> : vector<1xf32>
    %440 = vector.multi_reduction <add>, %439, %cst_193 [0] : vector<64x1xf32> to vector<1xf32>
    %441 = vector.shape_cast %440 : vector<1xf32> to vector<1x1xf32>
    %cst_194 = arith.constant 0.0441941731 : f32
    %442 = vector.broadcast %cst_194 : f32 to vector<1x1xf32>
    %443 = arith.mulf %441, %442 : vector<1x1xf32>
    %444 = arith.mulf %210, %210 : vector<64x8xf32>
    %cst_195 = arith.constant dense<0.000000e+00> : vector<64xf32>
    %445 = vector.multi_reduction <add>, %444, %cst_195 [1] : vector<64x8xf32> to vector<64xf32>
    %446 = vector.shape_cast %445 : vector<64xf32> to vector<64x1xf32>
    %cst_196 = arith.constant dense<0.000000e+00> : vector<1xf32>
    %447 = vector.multi_reduction <add>, %446, %cst_196 [0] : vector<64x1xf32> to vector<1xf32>
    %448 = vector.shape_cast %447 : vector<1xf32> to vector<1x1xf32>
    %cst_197 = arith.constant 0.0441941731 : f32
    %449 = vector.broadcast %cst_197 : f32 to vector<1x1xf32>
    %450 = arith.mulf %448, %449 : vector<1x1xf32>
    %451 = arith.mulf %210, %212 : vector<64x8xf32>
    %cst_198 = arith.constant dense<0.000000e+00> : vector<64xf32>
    %452 = vector.multi_reduction <add>, %451, %cst_198 [1] : vector<64x8xf32> to vector<64xf32>
    %453 = vector.shape_cast %452 : vector<64xf32> to vector<64x1xf32>
    %cst_199 = arith.constant dense<0.000000e+00> : vector<1xf32>
    %454 = vector.multi_reduction <add>, %453, %cst_199 [0] : vector<64x1xf32> to vector<1xf32>
    %455 = vector.shape_cast %454 : vector<1xf32> to vector<1x1xf32>
    %cst_200 = arith.constant 0.0441941731 : f32
    %456 = vector.broadcast %cst_200 : f32 to vector<1x1xf32>
    %457 = arith.mulf %455, %456 : vector<1x1xf32>
    %458 = arith.mulf %212, %212 : vector<64x8xf32>
    %cst_201 = arith.constant dense<0.000000e+00> : vector<64xf32>
    %459 = vector.multi_reduction <add>, %458, %cst_201 [1] : vector<64x8xf32> to vector<64xf32>
    %460 = vector.shape_cast %459 : vector<64xf32> to vector<64x1xf32>
    %cst_202 = arith.constant dense<0.000000e+00> : vector<1xf32>
    %461 = vector.multi_reduction <add>, %460, %cst_202 [0] : vector<64x1xf32> to vector<1xf32>
    %462 = vector.shape_cast %461 : vector<1xf32> to vector<1x1xf32>
    %cst_203 = arith.constant 0.0441941731 : f32
    %463 = vector.broadcast %cst_203 : f32 to vector<1x1xf32>
    %464 = arith.mulf %462, %463 : vector<1x1xf32>
    %465 = arith.maximumf %219, %226 : vector<1x1xf32>
    %466 = arith.maximumf %465, %233 : vector<1x1xf32>
    %467 = arith.maximumf %466, %240 : vector<1x1xf32>
    %468 = arith.maximumf %467, %247 : vector<1x1xf32>
    %469 = arith.maximumf %468, %254 : vector<1x1xf32>
    %470 = arith.maximumf %469, %261 : vector<1x1xf32>
    %471 = arith.maximumf %470, %268 : vector<1x1xf32>
    %472 = arith.subf %219, %471 : vector<1x1xf32>
    %473 = math.exp %472 : vector<1x1xf32>
    %474 = arith.subf %226, %471 : vector<1x1xf32>
    %475 = math.exp %474 : vector<1x1xf32>
    %476 = arith.subf %233, %471 : vector<1x1xf32>
    %477 = math.exp %476 : vector<1x1xf32>
    %478 = arith.subf %240, %471 : vector<1x1xf32>
    %479 = math.exp %478 : vector<1x1xf32>
    %480 = arith.subf %247, %471 : vector<1x1xf32>
    %481 = math.exp %480 : vector<1x1xf32>
    %482 = arith.subf %254, %471 : vector<1x1xf32>
    %483 = math.exp %482 : vector<1x1xf32>
    %484 = arith.subf %261, %471 : vector<1x1xf32>
    %485 = math.exp %484 : vector<1x1xf32>
    %486 = arith.subf %268, %471 : vector<1x1xf32>
    %487 = math.exp %486 : vector<1x1xf32>
    %488 = arith.addf %473, %475 : vector<1x1xf32>
    %489 = arith.addf %488, %477 : vector<1x1xf32>
    %490 = arith.addf %489, %479 : vector<1x1xf32>
    %491 = arith.addf %490, %481 : vector<1x1xf32>
    %492 = arith.addf %491, %483 : vector<1x1xf32>
    %493 = arith.addf %492, %485 : vector<1x1xf32>
    %494 = arith.addf %493, %487 : vector<1x1xf32>
    %cst_204 = arith.constant 1.000000e+00 : f32
    %495 = vector.broadcast %cst_204 : f32 to vector<1x1xf32>
    %496 = arith.divf %495, %494 : vector<1x1xf32>
    %497 = arith.mulf %473, %496 : vector<1x1xf32>
    %498 = vector.broadcast %497 : vector<1x1xf32> to vector<64x8xf32>
    %499 = arith.mulf %498, %204 : vector<64x8xf32>
    %500 = arith.mulf %475, %496 : vector<1x1xf32>
    %501 = vector.broadcast %500 : vector<1x1xf32> to vector<64x8xf32>
    %502 = arith.mulf %501, %205 : vector<64x8xf32>
    %503 = arith.addf %499, %502 : vector<64x8xf32>
    %504 = arith.mulf %477, %496 : vector<1x1xf32>
    %505 = vector.broadcast %504 : vector<1x1xf32> to vector<64x8xf32>
    %506 = arith.mulf %505, %206 : vector<64x8xf32>
    %507 = arith.addf %503, %506 : vector<64x8xf32>
    %508 = arith.mulf %479, %496 : vector<1x1xf32>
    %509 = vector.broadcast %508 : vector<1x1xf32> to vector<64x8xf32>
    %510 = arith.mulf %509, %207 : vector<64x8xf32>
    %511 = arith.addf %507, %510 : vector<64x8xf32>
    %512 = arith.mulf %481, %496 : vector<1x1xf32>
    %513 = vector.broadcast %512 : vector<1x1xf32> to vector<64x8xf32>
    %514 = arith.mulf %513, %208 : vector<64x8xf32>
    %515 = arith.addf %511, %514 : vector<64x8xf32>
    %516 = arith.mulf %483, %496 : vector<1x1xf32>
    %517 = vector.broadcast %516 : vector<1x1xf32> to vector<64x8xf32>
    %518 = arith.mulf %517, %209 : vector<64x8xf32>
    %519 = arith.addf %515, %518 : vector<64x8xf32>
    %520 = arith.mulf %485, %496 : vector<1x1xf32>
    %521 = vector.broadcast %520 : vector<1x1xf32> to vector<64x8xf32>
    %522 = arith.mulf %521, %210 : vector<64x8xf32>
    %523 = arith.addf %519, %522 : vector<64x8xf32>
    %524 = arith.mulf %487, %496 : vector<1x1xf32>
    %525 = vector.broadcast %524 : vector<1x1xf32> to vector<64x8xf32>
    %526 = arith.mulf %525, %212 : vector<64x8xf32>
    %527 = arith.addf %523, %526 : vector<64x8xf32>
    %528 = arith.addf %527, %8 : vector<64x8xf32>
    %cst_205 = arith.constant dense<0.000000e+00> : vector<64x16xf32>
    %529 = tpu.matmul %528, %2, %cst_205 {dimension_numbers = #tpu.dot_dimension_numbers<[1], [0], [0], [1], [0, 0, 1, 1], [], []>} : vector<64x8xf32>, vector<8x16xf32>, vector<64x16xf32> -> vector<64x16xf32>
    %530 = vector.broadcast %3 : vector<1x16xf32> to vector<64x16xf32>
    %531 = arith.addf %529, %530 : vector<64x16xf32>
    %532 = arith.negf %531 : vector<64x16xf32>
    %533 = math.exp %532 : vector<64x16xf32>
    %cst_206 = arith.constant 1.000000e+00 : f32
    %534 = vector.broadcast %cst_206 : f32 to vector<64x16xf32>
    %535 = arith.addf %534, %533 : vector<64x16xf32>
    %536 = arith.divf %534, %535 : vector<64x16xf32>
    %c0_207 = arith.constant 0 : index
    %c0_208 = arith.constant 0 : index
    %c0_209 = arith.constant 0 : index
    %c0_210 = arith.constant 0 : index
    %537 = vector.load %arg1[%c0_207, %c0_208, %c0_209, %c0_210] : memref<1x8x64x16xf32, #tpu.memory_space<vmem>>, vector<1x1x64x16xf32>
    %538 = vector.shape_cast %537 : vector<1x1x64x16xf32> to vector<64x16xf32>
    %539 = arith.mulf %536, %538 : vector<64x16xf32>
    %540 = arith.addf %539, %538 : vector<64x16xf32>
    %c0_211 = arith.constant 0 : index
    %c0_212 = arith.constant 0 : index
    %c0_213 = arith.constant 0 : index
    %c0_214 = arith.constant 0 : index
    %541 = vector.load %arg6[%c0_211, %c0_212, %c0_213, %c0_214] : memref<1x8x64x16xf32, #tpu.memory_space<vmem>>, vector<1x1x64x16xf32>
    %542 = vector.shape_cast %541 : vector<1x1x64x16xf32> to vector<64x16xf32>
    %543 = vector.shape_cast %540 : vector<64x16xf32> to vector<1x1x64x16xf32>
    tpu.vector_store %arg6[%c0_211, %c0_212, %c0_213, %c0_214], %543 {strides = array<i32>} : memref<1x8x64x16xf32, #tpu.memory_space<vmem>>, vector<1x1x64x16xf32>,
    %544 = arith.maximumf %226, %275 : vector<1x1xf32>
    %545 = arith.maximumf %544, %282 : vector<1x1xf32>
    %546 = arith.maximumf %545, %289 : vector<1x1xf32>
    %547 = arith.maximumf %546, %296 : vector<1x1xf32>
    %548 = arith.maximumf %547, %303 : vector<1x1xf32>
    %549 = arith.maximumf %548, %310 : vector<1x1xf32>
    %550 = arith.maximumf %549, %317 : vector<1x1xf32>
    %551 = arith.subf %226, %550 : vector<1x1xf32>
    %552 = math.exp %551 : vector<1x1xf32>
    %553 = arith.subf %275, %550 : vector<1x1xf32>
    %554 = math.exp %553 : vector<1x1xf32>
    %555 = arith.subf %282, %550 : vector<1x1xf32>
    %556 = math.exp %555 : vector<1x1xf32>
    %557 = arith.subf %289, %550 : vector<1x1xf32>
    %558 = math.exp %557 : vector<1x1xf32>
    %559 = arith.subf %296, %550 : vector<1x1xf32>
    %560 = math.exp %559 : vector<1x1xf32>
    %561 = arith.subf %303, %550 : vector<1x1xf32>
    %562 = math.exp %561 : vector<1x1xf32>
    %563 = arith.subf %310, %550 : vector<1x1xf32>
    %564 = math.exp %563 : vector<1x1xf32>
    %565 = arith.subf %317, %550 : vector<1x1xf32>
    %566 = math.exp %565 : vector<1x1xf32>
    %567 = arith.addf %552, %554 : vector<1x1xf32>
    %568 = arith.addf %567, %556 : vector<1x1xf32>
    %569 = arith.addf %568, %558 : vector<1x1xf32>
    %570 = arith.addf %569, %560 : vector<1x1xf32>
    %571 = arith.addf %570, %562 : vector<1x1xf32>
    %572 = arith.addf %571, %564 : vector<1x1xf32>
    %573 = arith.addf %572, %566 : vector<1x1xf32>
    %cst_215 = arith.constant 1.000000e+00 : f32
    %574 = vector.broadcast %cst_215 : f32 to vector<1x1xf32>
    %575 = arith.divf %574, %573 : vector<1x1xf32>
    %576 = arith.mulf %552, %575 : vector<1x1xf32>
    %577 = vector.broadcast %576 : vector<1x1xf32> to vector<64x8xf32>
    %578 = arith.mulf %577, %204 : vector<64x8xf32>
    %579 = arith.mulf %554, %575 : vector<1x1xf32>
    %580 = vector.broadcast %579 : vector<1x1xf32> to vector<64x8xf32>
    %581 = arith.mulf %580, %205 : vector<64x8xf32>
    %582 = arith.addf %578, %581 : vector<64x8xf32>
    %583 = arith.mulf %556, %575 : vector<1x1xf32>
    %584 = vector.broadcast %583 : vector<1x1xf32> to vector<64x8xf32>
    %585 = arith.mulf %584, %206 : vector<64x8xf32>
    %586 = arith.addf %582, %585 : vector<64x8xf32>
    %587 = arith.mulf %558, %575 : vector<1x1xf32>
    %588 = vector.broadcast %587 : vector<1x1xf32> to vector<64x8xf32>
    %589 = arith.mulf %588, %207 : vector<64x8xf32>
    %590 = arith.addf %586, %589 : vector<64x8xf32>
    %591 = arith.mulf %560, %575 : vector<1x1xf32>
    %592 = vector.broadcast %591 : vector<1x1xf32> to vector<64x8xf32>
    %593 = arith.mulf %592, %208 : vector<64x8xf32>
    %594 = arith.addf %590, %593 : vector<64x8xf32>
    %595 = arith.mulf %562, %575 : vector<1x1xf32>
    %596 = vector.broadcast %595 : vector<1x1xf32> to vector<64x8xf32>
    %597 = arith.mulf %596, %209 : vector<64x8xf32>
    %598 = arith.addf %594, %597 : vector<64x8xf32>
    %599 = arith.mulf %564, %575 : vector<1x1xf32>
    %600 = vector.broadcast %599 : vector<1x1xf32> to vector<64x8xf32>
    %601 = arith.mulf %600, %210 : vector<64x8xf32>
    %602 = arith.addf %598, %601 : vector<64x8xf32>
    %603 = arith.mulf %566, %575 : vector<1x1xf32>
    %604 = vector.broadcast %603 : vector<1x1xf32> to vector<64x8xf32>
    %605 = arith.mulf %604, %212 : vector<64x8xf32>
    %606 = arith.addf %602, %605 : vector<64x8xf32>
    %607 = arith.addf %606, %33 : vector<64x8xf32>
    %cst_216 = arith.constant dense<0.000000e+00> : vector<64x16xf32>
    %608 = tpu.matmul %607, %2, %cst_216 {dimension_numbers = #tpu.dot_dimension_numbers<[1], [0], [0], [1], [0, 0, 1, 1], [], []>} : vector<64x8xf32>, vector<8x16xf32>, vector<64x16xf32> -> vector<64x16xf32>
    %609 = vector.broadcast %3 : vector<1x16xf32> to vector<64x16xf32>
    %610 = arith.addf %608, %609 : vector<64x16xf32>
    %611 = arith.negf %610 : vector<64x16xf32>
    %612 = math.exp %611 : vector<64x16xf32>
    %cst_217 = arith.constant 1.000000e+00 : f32
    %613 = vector.broadcast %cst_217 : f32 to vector<64x16xf32>
    %614 = arith.addf %613, %612 : vector<64x16xf32>
    %615 = arith.divf %613, %614 : vector<64x16xf32>
    %c0_218 = arith.constant 0 : index
    %c1_219 = arith.constant 1 : index
    %c0_220 = arith.constant 0 : index
    %c0_221 = arith.constant 0 : index
    %616 = vector.load %arg1[%c0_218, %c1_219, %c0_220, %c0_221] : memref<1x8x64x16xf32, #tpu.memory_space<vmem>>, vector<1x1x64x16xf32>
    %617 = vector.shape_cast %616 : vector<1x1x64x16xf32> to vector<64x16xf32>
    %618 = arith.mulf %615, %617 : vector<64x16xf32>
    %619 = arith.addf %618, %617 : vector<64x16xf32>
    %c0_222 = arith.constant 0 : index
    %c1_223 = arith.constant 1 : index
    %c0_224 = arith.constant 0 : index
    %c0_225 = arith.constant 0 : index
    %620 = vector.load %arg6[%c0_222, %c1_223, %c0_224, %c0_225] : memref<1x8x64x16xf32, #tpu.memory_space<vmem>>, vector<1x1x64x16xf32>
    %621 = vector.shape_cast %620 : vector<1x1x64x16xf32> to vector<64x16xf32>
    %622 = vector.shape_cast %619 : vector<64x16xf32> to vector<1x1x64x16xf32>
    tpu.vector_store %arg6[%c0_222, %c1_223, %c0_224, %c0_225], %622 {strides = array<i32>} : memref<1x8x64x16xf32, #tpu.memory_space<vmem>>, vector<1x1x64x16xf32>,
    %623 = arith.maximumf %233, %282 : vector<1x1xf32>
    %624 = arith.maximumf %623, %324 : vector<1x1xf32>
    %625 = arith.maximumf %624, %331 : vector<1x1xf32>
    %626 = arith.maximumf %625, %338 : vector<1x1xf32>
    %627 = arith.maximumf %626, %345 : vector<1x1xf32>
    %628 = arith.maximumf %627, %352 : vector<1x1xf32>
    %629 = arith.maximumf %628, %359 : vector<1x1xf32>
    %630 = arith.subf %233, %629 : vector<1x1xf32>
    %631 = math.exp %630 : vector<1x1xf32>
    %632 = arith.subf %282, %629 : vector<1x1xf32>
    %633 = math.exp %632 : vector<1x1xf32>
    %634 = arith.subf %324, %629 : vector<1x1xf32>
    %635 = math.exp %634 : vector<1x1xf32>
    %636 = arith.subf %331, %629 : vector<1x1xf32>
    %637 = math.exp %636 : vector<1x1xf32>
    %638 = arith.subf %338, %629 : vector<1x1xf32>
    %639 = math.exp %638 : vector<1x1xf32>
    %640 = arith.subf %345, %629 : vector<1x1xf32>
    %641 = math.exp %640 : vector<1x1xf32>
    %642 = arith.subf %352, %629 : vector<1x1xf32>
    %643 = math.exp %642 : vector<1x1xf32>
    %644 = arith.subf %359, %629 : vector<1x1xf32>
    %645 = math.exp %644 : vector<1x1xf32>
    %646 = arith.addf %631, %633 : vector<1x1xf32>
    %647 = arith.addf %646, %635 : vector<1x1xf32>
    %648 = arith.addf %647, %637 : vector<1x1xf32>
    %649 = arith.addf %648, %639 : vector<1x1xf32>
    %650 = arith.addf %649, %641 : vector<1x1xf32>
    %651 = arith.addf %650, %643 : vector<1x1xf32>
    %652 = arith.addf %651, %645 : vector<1x1xf32>
    %cst_226 = arith.constant 1.000000e+00 : f32
    %653 = vector.broadcast %cst_226 : f32 to vector<1x1xf32>
    %654 = arith.divf %653, %652 : vector<1x1xf32>
    %655 = arith.mulf %631, %654 : vector<1x1xf32>
    %656 = vector.broadcast %655 : vector<1x1xf32> to vector<64x8xf32>
    %657 = arith.mulf %656, %204 : vector<64x8xf32>
    %658 = arith.mulf %633, %654 : vector<1x1xf32>
    %659 = vector.broadcast %658 : vector<1x1xf32> to vector<64x8xf32>
    %660 = arith.mulf %659, %205 : vector<64x8xf32>
    %661 = arith.addf %657, %660 : vector<64x8xf32>
    %662 = arith.mulf %635, %654 : vector<1x1xf32>
    %663 = vector.broadcast %662 : vector<1x1xf32> to vector<64x8xf32>
    %664 = arith.mulf %663, %206 : vector<64x8xf32>
    %665 = arith.addf %661, %664 : vector<64x8xf32>
    %666 = arith.mulf %637, %654 : vector<1x1xf32>
    %667 = vector.broadcast %666 : vector<1x1xf32> to vector<64x8xf32>
    %668 = arith.mulf %667, %207 : vector<64x8xf32>
    %669 = arith.addf %665, %668 : vector<64x8xf32>
    %670 = arith.mulf %639, %654 : vector<1x1xf32>
    %671 = vector.broadcast %670 : vector<1x1xf32> to vector<64x8xf32>
    %672 = arith.mulf %671, %208 : vector<64x8xf32>
    %673 = arith.addf %669, %672 : vector<64x8xf32>
    %674 = arith.mulf %641, %654 : vector<1x1xf32>
    %675 = vector.broadcast %674 : vector<1x1xf32> to vector<64x8xf32>
    %676 = arith.mulf %675, %209 : vector<64x8xf32>
    %677 = arith.addf %673, %676 : vector<64x8xf32>
    %678 = arith.mulf %643, %654 : vector<1x1xf32>
    %679 = vector.broadcast %678 : vector<1x1xf32> to vector<64x8xf32>
    %680 = arith.mulf %679, %210 : vector<64x8xf32>
    %681 = arith.addf %677, %680 : vector<64x8xf32>
    %682 = arith.mulf %645, %654 : vector<1x1xf32>
    %683 = vector.broadcast %682 : vector<1x1xf32> to vector<64x8xf32>
    %684 = arith.mulf %683, %212 : vector<64x8xf32>
    %685 = arith.addf %681, %684 : vector<64x8xf32>
    %686 = arith.addf %685, %58 : vector<64x8xf32>
    %cst_227 = arith.constant dense<0.000000e+00> : vector<64x16xf32>
    %687 = tpu.matmul %686, %2, %cst_227 {dimension_numbers = #tpu.dot_dimension_numbers<[1], [0], [0], [1], [0, 0, 1, 1], [], []>} : vector<64x8xf32>, vector<8x16xf32>, vector<64x16xf32> -> vector<64x16xf32>
    %688 = vector.broadcast %3 : vector<1x16xf32> to vector<64x16xf32>
    %689 = arith.addf %687, %688 : vector<64x16xf32>
    %690 = arith.negf %689 : vector<64x16xf32>
    %691 = math.exp %690 : vector<64x16xf32>
    %cst_228 = arith.constant 1.000000e+00 : f32
    %692 = vector.broadcast %cst_228 : f32 to vector<64x16xf32>
    %693 = arith.addf %692, %691 : vector<64x16xf32>
    %694 = arith.divf %692, %693 : vector<64x16xf32>
    %c0_229 = arith.constant 0 : index
    %c2_230 = arith.constant 2 : index
    %c0_231 = arith.constant 0 : index
    %c0_232 = arith.constant 0 : index
    %695 = vector.load %arg1[%c0_229, %c2_230, %c0_231, %c0_232] : memref<1x8x64x16xf32, #tpu.memory_space<vmem>>, vector<1x1x64x16xf32>
    %696 = vector.shape_cast %695 : vector<1x1x64x16xf32> to vector<64x16xf32>
    %697 = arith.mulf %694, %696 : vector<64x16xf32>
    %698 = arith.addf %697, %696 : vector<64x16xf32>
    %c0_233 = arith.constant 0 : index
    %c2_234 = arith.constant 2 : index
    %c0_235 = arith.constant 0 : index
    %c0_236 = arith.constant 0 : index
    %699 = vector.load %arg6[%c0_233, %c2_234, %c0_235, %c0_236] : memref<1x8x64x16xf32, #tpu.memory_space<vmem>>, vector<1x1x64x16xf32>
    %700 = vector.shape_cast %699 : vector<1x1x64x16xf32> to vector<64x16xf32>
    %701 = vector.shape_cast %698 : vector<64x16xf32> to vector<1x1x64x16xf32>
    tpu.vector_store %arg6[%c0_233, %c2_234, %c0_235, %c0_236], %701 {strides = array<i32>} : memref<1x8x64x16xf32, #tpu.memory_space<vmem>>, vector<1x1x64x16xf32>,
    %702 = arith.maximumf %240, %289 : vector<1x1xf32>
    %703 = arith.maximumf %702, %331 : vector<1x1xf32>
    %704 = arith.maximumf %703, %366 : vector<1x1xf32>
    %705 = arith.maximumf %704, %373 : vector<1x1xf32>
    %706 = arith.maximumf %705, %380 : vector<1x1xf32>
    %707 = arith.maximumf %706, %387 : vector<1x1xf32>
    %708 = arith.maximumf %707, %394 : vector<1x1xf32>
    %709 = arith.subf %240, %708 : vector<1x1xf32>
    %710 = math.exp %709 : vector<1x1xf32>
    %711 = arith.subf %289, %708 : vector<1x1xf32>
    %712 = math.exp %711 : vector<1x1xf32>
    %713 = arith.subf %331, %708 : vector<1x1xf32>
    %714 = math.exp %713 : vector<1x1xf32>
    %715 = arith.subf %366, %708 : vector<1x1xf32>
    %716 = math.exp %715 : vector<1x1xf32>
    %717 = arith.subf %373, %708 : vector<1x1xf32>
    %718 = math.exp %717 : vector<1x1xf32>
    %719 = arith.subf %380, %708 : vector<1x1xf32>
    %720 = math.exp %719 : vector<1x1xf32>
    %721 = arith.subf %387, %708 : vector<1x1xf32>
    %722 = math.exp %721 : vector<1x1xf32>
    %723 = arith.subf %394, %708 : vector<1x1xf32>
    %724 = math.exp %723 : vector<1x1xf32>
    %725 = arith.addf %710, %712 : vector<1x1xf32>
    %726 = arith.addf %725, %714 : vector<1x1xf32>
    %727 = arith.addf %726, %716 : vector<1x1xf32>
    %728 = arith.addf %727, %718 : vector<1x1xf32>
    %729 = arith.addf %728, %720 : vector<1x1xf32>
    %730 = arith.addf %729, %722 : vector<1x1xf32>
    %731 = arith.addf %730, %724 : vector<1x1xf32>
    %cst_237 = arith.constant 1.000000e+00 : f32
    %732 = vector.broadcast %cst_237 : f32 to vector<1x1xf32>
    %733 = arith.divf %732, %731 : vector<1x1xf32>
    %734 = arith.mulf %710, %733 : vector<1x1xf32>
    %735 = vector.broadcast %734 : vector<1x1xf32> to vector<64x8xf32>
    %736 = arith.mulf %735, %204 : vector<64x8xf32>
    %737 = arith.mulf %712, %733 : vector<1x1xf32>
    %738 = vector.broadcast %737 : vector<1x1xf32> to vector<64x8xf32>
    %739 = arith.mulf %738, %205 : vector<64x8xf32>
    %740 = arith.addf %736, %739 : vector<64x8xf32>
    %741 = arith.mulf %714, %733 : vector<1x1xf32>
    %742 = vector.broadcast %741 : vector<1x1xf32> to vector<64x8xf32>
    %743 = arith.mulf %742, %206 : vector<64x8xf32>
    %744 = arith.addf %740, %743 : vector<64x8xf32>
    %745 = arith.mulf %716, %733 : vector<1x1xf32>
    %746 = vector.broadcast %745 : vector<1x1xf32> to vector<64x8xf32>
    %747 = arith.mulf %746, %207 : vector<64x8xf32>
    %748 = arith.addf %744, %747 : vector<64x8xf32>
    %749 = arith.mulf %718, %733 : vector<1x1xf32>
    %750 = vector.broadcast %749 : vector<1x1xf32> to vector<64x8xf32>
    %751 = arith.mulf %750, %208 : vector<64x8xf32>
    %752 = arith.addf %748, %751 : vector<64x8xf32>
    %753 = arith.mulf %720, %733 : vector<1x1xf32>
    %754 = vector.broadcast %753 : vector<1x1xf32> to vector<64x8xf32>
    %755 = arith.mulf %754, %209 : vector<64x8xf32>
    %756 = arith.addf %752, %755 : vector<64x8xf32>
    %757 = arith.mulf %722, %733 : vector<1x1xf32>
    %758 = vector.broadcast %757 : vector<1x1xf32> to vector<64x8xf32>
    %759 = arith.mulf %758, %210 : vector<64x8xf32>
    %760 = arith.addf %756, %759 : vector<64x8xf32>
    %761 = arith.mulf %724, %733 : vector<1x1xf32>
    %762 = vector.broadcast %761 : vector<1x1xf32> to vector<64x8xf32>
    %763 = arith.mulf %762, %212 : vector<64x8xf32>
    %764 = arith.addf %760, %763 : vector<64x8xf32>
    %765 = arith.addf %764, %83 : vector<64x8xf32>
    %cst_238 = arith.constant dense<0.000000e+00> : vector<64x16xf32>
    %766 = tpu.matmul %765, %2, %cst_238 {dimension_numbers = #tpu.dot_dimension_numbers<[1], [0], [0], [1], [0, 0, 1, 1], [], []>} : vector<64x8xf32>, vector<8x16xf32>, vector<64x16xf32> -> vector<64x16xf32>
    %767 = vector.broadcast %3 : vector<1x16xf32> to vector<64x16xf32>
    %768 = arith.addf %766, %767 : vector<64x16xf32>
    %769 = arith.negf %768 : vector<64x16xf32>
    %770 = math.exp %769 : vector<64x16xf32>
    %cst_239 = arith.constant 1.000000e+00 : f32
    %771 = vector.broadcast %cst_239 : f32 to vector<64x16xf32>
    %772 = arith.addf %771, %770 : vector<64x16xf32>
    %773 = arith.divf %771, %772 : vector<64x16xf32>
    %c0_240 = arith.constant 0 : index
    %c3_241 = arith.constant 3 : index
    %c0_242 = arith.constant 0 : index
    %c0_243 = arith.constant 0 : index
    %774 = vector.load %arg1[%c0_240, %c3_241, %c0_242, %c0_243] : memref<1x8x64x16xf32, #tpu.memory_space<vmem>>, vector<1x1x64x16xf32>
    %775 = vector.shape_cast %774 : vector<1x1x64x16xf32> to vector<64x16xf32>
    %776 = arith.mulf %773, %775 : vector<64x16xf32>
    %777 = arith.addf %776, %775 : vector<64x16xf32>
    %c0_244 = arith.constant 0 : index
    %c3_245 = arith.constant 3 : index
    %c0_246 = arith.constant 0 : index
    %c0_247 = arith.constant 0 : index
    %778 = vector.load %arg6[%c0_244, %c3_245, %c0_246, %c0_247] : memref<1x8x64x16xf32, #tpu.memory_space<vmem>>, vector<1x1x64x16xf32>
    %779 = vector.shape_cast %778 : vector<1x1x64x16xf32> to vector<64x16xf32>
    %780 = vector.shape_cast %777 : vector<64x16xf32> to vector<1x1x64x16xf32>
    tpu.vector_store %arg6[%c0_244, %c3_245, %c0_246, %c0_247], %780 {strides = array<i32>} : memref<1x8x64x16xf32, #tpu.memory_space<vmem>>, vector<1x1x64x16xf32>,
    %781 = arith.maximumf %247, %296 : vector<1x1xf32>
    %782 = arith.maximumf %781, %338 : vector<1x1xf32>
    %783 = arith.maximumf %782, %373 : vector<1x1xf32>
    %784 = arith.maximumf %783, %401 : vector<1x1xf32>
    %785 = arith.maximumf %784, %408 : vector<1x1xf32>
    %786 = arith.maximumf %785, %415 : vector<1x1xf32>
    %787 = arith.maximumf %786, %422 : vector<1x1xf32>
    %788 = arith.subf %247, %787 : vector<1x1xf32>
    %789 = math.exp %788 : vector<1x1xf32>
    %790 = arith.subf %296, %787 : vector<1x1xf32>
    %791 = math.exp %790 : vector<1x1xf32>
    %792 = arith.subf %338, %787 : vector<1x1xf32>
    %793 = math.exp %792 : vector<1x1xf32>
    %794 = arith.subf %373, %787 : vector<1x1xf32>
    %795 = math.exp %794 : vector<1x1xf32>
    %796 = arith.subf %401, %787 : vector<1x1xf32>
    %797 = math.exp %796 : vector<1x1xf32>
    %798 = arith.subf %408, %787 : vector<1x1xf32>
    %799 = math.exp %798 : vector<1x1xf32>
    %800 = arith.subf %415, %787 : vector<1x1xf32>
    %801 = math.exp %800 : vector<1x1xf32>
    %802 = arith.subf %422, %787 : vector<1x1xf32>
    %803 = math.exp %802 : vector<1x1xf32>
    %804 = arith.addf %789, %791 : vector<1x1xf32>
    %805 = arith.addf %804, %793 : vector<1x1xf32>
    %806 = arith.addf %805, %795 : vector<1x1xf32>
    %807 = arith.addf %806, %797 : vector<1x1xf32>
    %808 = arith.addf %807, %799 : vector<1x1xf32>
    %809 = arith.addf %808, %801 : vector<1x1xf32>
    %810 = arith.addf %809, %803 : vector<1x1xf32>
    %cst_248 = arith.constant 1.000000e+00 : f32
    %811 = vector.broadcast %cst_248 : f32 to vector<1x1xf32>
    %812 = arith.divf %811, %810 : vector<1x1xf32>
    %813 = arith.mulf %789, %812 : vector<1x1xf32>
    %814 = vector.broadcast %813 : vector<1x1xf32> to vector<64x8xf32>
    %815 = arith.mulf %814, %204 : vector<64x8xf32>
    %816 = arith.mulf %791, %812 : vector<1x1xf32>
    %817 = vector.broadcast %816 : vector<1x1xf32> to vector<64x8xf32>
    %818 = arith.mulf %817, %205 : vector<64x8xf32>
    %819 = arith.addf %815, %818 : vector<64x8xf32>
    %820 = arith.mulf %793, %812 : vector<1x1xf32>
    %821 = vector.broadcast %820 : vector<1x1xf32> to vector<64x8xf32>
    %822 = arith.mulf %821, %206 : vector<64x8xf32>
    %823 = arith.addf %819, %822 : vector<64x8xf32>
    %824 = arith.mulf %795, %812 : vector<1x1xf32>
    %825 = vector.broadcast %824 : vector<1x1xf32> to vector<64x8xf32>
    %826 = arith.mulf %825, %207 : vector<64x8xf32>
    %827 = arith.addf %823, %826 : vector<64x8xf32>
    %828 = arith.mulf %797, %812 : vector<1x1xf32>
    %829 = vector.broadcast %828 : vector<1x1xf32> to vector<64x8xf32>
    %830 = arith.mulf %829, %208 : vector<64x8xf32>
    %831 = arith.addf %827, %830 : vector<64x8xf32>
    %832 = arith.mulf %799, %812 : vector<1x1xf32>
    %833 = vector.broadcast %832 : vector<1x1xf32> to vector<64x8xf32>
    %834 = arith.mulf %833, %209 : vector<64x8xf32>
    %835 = arith.addf %831, %834 : vector<64x8xf32>
    %836 = arith.mulf %801, %812 : vector<1x1xf32>
    %837 = vector.broadcast %836 : vector<1x1xf32> to vector<64x8xf32>
    %838 = arith.mulf %837, %210 : vector<64x8xf32>
    %839 = arith.addf %835, %838 : vector<64x8xf32>
    %840 = arith.mulf %803, %812 : vector<1x1xf32>
    %841 = vector.broadcast %840 : vector<1x1xf32> to vector<64x8xf32>
    %842 = arith.mulf %841, %212 : vector<64x8xf32>
    %843 = arith.addf %839, %842 : vector<64x8xf32>
    %844 = arith.addf %843, %108 : vector<64x8xf32>
    %cst_249 = arith.constant dense<0.000000e+00> : vector<64x16xf32>
    %845 = tpu.matmul %844, %2, %cst_249 {dimension_numbers = #tpu.dot_dimension_numbers<[1], [0], [0], [1], [0, 0, 1, 1], [], []>} : vector<64x8xf32>, vector<8x16xf32>, vector<64x16xf32> -> vector<64x16xf32>
    %846 = vector.broadcast %3 : vector<1x16xf32> to vector<64x16xf32>
    %847 = arith.addf %845, %846 : vector<64x16xf32>
    %848 = arith.negf %847 : vector<64x16xf32>
    %849 = math.exp %848 : vector<64x16xf32>
    %cst_250 = arith.constant 1.000000e+00 : f32
    %850 = vector.broadcast %cst_250 : f32 to vector<64x16xf32>
    %851 = arith.addf %850, %849 : vector<64x16xf32>
    %852 = arith.divf %850, %851 : vector<64x16xf32>
    %c0_251 = arith.constant 0 : index
    %c4_252 = arith.constant 4 : index
    %c0_253 = arith.constant 0 : index
    %c0_254 = arith.constant 0 : index
    %853 = vector.load %arg1[%c0_251, %c4_252, %c0_253, %c0_254] : memref<1x8x64x16xf32, #tpu.memory_space<vmem>>, vector<1x1x64x16xf32>
    %854 = vector.shape_cast %853 : vector<1x1x64x16xf32> to vector<64x16xf32>
    %855 = arith.mulf %852, %854 : vector<64x16xf32>
    %856 = arith.addf %855, %854 : vector<64x16xf32>
    %c0_255 = arith.constant 0 : index
    %c4_256 = arith.constant 4 : index
    %c0_257 = arith.constant 0 : index
    %c0_258 = arith.constant 0 : index
    %857 = vector.load %arg6[%c0_255, %c4_256, %c0_257, %c0_258] : memref<1x8x64x16xf32, #tpu.memory_space<vmem>>, vector<1x1x64x16xf32>
    %858 = vector.shape_cast %857 : vector<1x1x64x16xf32> to vector<64x16xf32>
    %859 = vector.shape_cast %856 : vector<64x16xf32> to vector<1x1x64x16xf32>
    tpu.vector_store %arg6[%c0_255, %c4_256, %c0_257, %c0_258], %859 {strides = array<i32>} : memref<1x8x64x16xf32, #tpu.memory_space<vmem>>, vector<1x1x64x16xf32>,
    %860 = arith.maximumf %254, %303 : vector<1x1xf32>
    %861 = arith.maximumf %860, %345 : vector<1x1xf32>
    %862 = arith.maximumf %861, %380 : vector<1x1xf32>
    %863 = arith.maximumf %862, %408 : vector<1x1xf32>
    %864 = arith.maximumf %863, %429 : vector<1x1xf32>
    %865 = arith.maximumf %864, %436 : vector<1x1xf32>
    %866 = arith.maximumf %865, %443 : vector<1x1xf32>
    %867 = arith.subf %254, %866 : vector<1x1xf32>
    %868 = math.exp %867 : vector<1x1xf32>
    %869 = arith.subf %303, %866 : vector<1x1xf32>
    %870 = math.exp %869 : vector<1x1xf32>
    %871 = arith.subf %345, %866 : vector<1x1xf32>
    %872 = math.exp %871 : vector<1x1xf32>
    %873 = arith.subf %380, %866 : vector<1x1xf32>
    %874 = math.exp %873 : vector<1x1xf32>
    %875 = arith.subf %408, %866 : vector<1x1xf32>
    %876 = math.exp %875 : vector<1x1xf32>
    %877 = arith.subf %429, %866 : vector<1x1xf32>
    %878 = math.exp %877 : vector<1x1xf32>
    %879 = arith.subf %436, %866 : vector<1x1xf32>
    %880 = math.exp %879 : vector<1x1xf32>
    %881 = arith.subf %443, %866 : vector<1x1xf32>
    %882 = math.exp %881 : vector<1x1xf32>
    %883 = arith.addf %868, %870 : vector<1x1xf32>
    %884 = arith.addf %883, %872 : vector<1x1xf32>
    %885 = arith.addf %884, %874 : vector<1x1xf32>
    %886 = arith.addf %885, %876 : vector<1x1xf32>
    %887 = arith.addf %886, %878 : vector<1x1xf32>
    %888 = arith.addf %887, %880 : vector<1x1xf32>
    %889 = arith.addf %888, %882 : vector<1x1xf32>
    %cst_259 = arith.constant 1.000000e+00 : f32
    %890 = vector.broadcast %cst_259 : f32 to vector<1x1xf32>
    %891 = arith.divf %890, %889 : vector<1x1xf32>
    %892 = arith.mulf %868, %891 : vector<1x1xf32>
    %893 = vector.broadcast %892 : vector<1x1xf32> to vector<64x8xf32>
    %894 = arith.mulf %893, %204 : vector<64x8xf32>
    %895 = arith.mulf %870, %891 : vector<1x1xf32>
    %896 = vector.broadcast %895 : vector<1x1xf32> to vector<64x8xf32>
    %897 = arith.mulf %896, %205 : vector<64x8xf32>
    %898 = arith.addf %894, %897 : vector<64x8xf32>
    %899 = arith.mulf %872, %891 : vector<1x1xf32>
    %900 = vector.broadcast %899 : vector<1x1xf32> to vector<64x8xf32>
    %901 = arith.mulf %900, %206 : vector<64x8xf32>
    %902 = arith.addf %898, %901 : vector<64x8xf32>
    %903 = arith.mulf %874, %891 : vector<1x1xf32>
    %904 = vector.broadcast %903 : vector<1x1xf32> to vector<64x8xf32>
    %905 = arith.mulf %904, %207 : vector<64x8xf32>
    %906 = arith.addf %902, %905 : vector<64x8xf32>
    %907 = arith.mulf %876, %891 : vector<1x1xf32>
    %908 = vector.broadcast %907 : vector<1x1xf32> to vector<64x8xf32>
    %909 = arith.mulf %908, %208 : vector<64x8xf32>
    %910 = arith.addf %906, %909 : vector<64x8xf32>
    %911 = arith.mulf %878, %891 : vector<1x1xf32>
    %912 = vector.broadcast %911 : vector<1x1xf32> to vector<64x8xf32>
    %913 = arith.mulf %912, %209 : vector<64x8xf32>
    %914 = arith.addf %910, %913 : vector<64x8xf32>
    %915 = arith.mulf %880, %891 : vector<1x1xf32>
    %916 = vector.broadcast %915 : vector<1x1xf32> to vector<64x8xf32>
    %917 = arith.mulf %916, %210 : vector<64x8xf32>
    %918 = arith.addf %914, %917 : vector<64x8xf32>
    %919 = arith.mulf %882, %891 : vector<1x1xf32>
    %920 = vector.broadcast %919 : vector<1x1xf32> to vector<64x8xf32>
    %921 = arith.mulf %920, %212 : vector<64x8xf32>
    %922 = arith.addf %918, %921 : vector<64x8xf32>
    %923 = arith.addf %922, %133 : vector<64x8xf32>
    %cst_260 = arith.constant dense<0.000000e+00> : vector<64x16xf32>
    %924 = tpu.matmul %923, %2, %cst_260 {dimension_numbers = #tpu.dot_dimension_numbers<[1], [0], [0], [1], [0, 0, 1, 1], [], []>} : vector<64x8xf32>, vector<8x16xf32>, vector<64x16xf32> -> vector<64x16xf32>
    %925 = vector.broadcast %3 : vector<1x16xf32> to vector<64x16xf32>
    %926 = arith.addf %924, %925 : vector<64x16xf32>
    %927 = arith.negf %926 : vector<64x16xf32>
    %928 = math.exp %927 : vector<64x16xf32>
    %cst_261 = arith.constant 1.000000e+00 : f32
    %929 = vector.broadcast %cst_261 : f32 to vector<64x16xf32>
    %930 = arith.addf %929, %928 : vector<64x16xf32>
    %931 = arith.divf %929, %930 : vector<64x16xf32>
    %c0_262 = arith.constant 0 : index
    %c5_263 = arith.constant 5 : index
    %c0_264 = arith.constant 0 : index
    %c0_265 = arith.constant 0 : index
    %932 = vector.load %arg1[%c0_262, %c5_263, %c0_264, %c0_265] : memref<1x8x64x16xf32, #tpu.memory_space<vmem>>, vector<1x1x64x16xf32>
    %933 = vector.shape_cast %932 : vector<1x1x64x16xf32> to vector<64x16xf32>
    %934 = arith.mulf %931, %933 : vector<64x16xf32>
    %935 = arith.addf %934, %933 : vector<64x16xf32>
    %c0_266 = arith.constant 0 : index
    %c5_267 = arith.constant 5 : index
    %c0_268 = arith.constant 0 : index
    %c0_269 = arith.constant 0 : index
    %936 = vector.load %arg6[%c0_266, %c5_267, %c0_268, %c0_269] : memref<1x8x64x16xf32, #tpu.memory_space<vmem>>, vector<1x1x64x16xf32>
    %937 = vector.shape_cast %936 : vector<1x1x64x16xf32> to vector<64x16xf32>
    %938 = vector.shape_cast %935 : vector<64x16xf32> to vector<1x1x64x16xf32>
    tpu.vector_store %arg6[%c0_266, %c5_267, %c0_268, %c0_269], %938 {strides = array<i32>} : memref<1x8x64x16xf32, #tpu.memory_space<vmem>>, vector<1x1x64x16xf32>,
    %939 = arith.maximumf %261, %310 : vector<1x1xf32>
    %940 = arith.maximumf %939, %352 : vector<1x1xf32>
    %941 = arith.maximumf %940, %387 : vector<1x1xf32>
    %942 = arith.maximumf %941, %415 : vector<1x1xf32>
    %943 = arith.maximumf %942, %436 : vector<1x1xf32>
    %944 = arith.maximumf %943, %450 : vector<1x1xf32>
    %945 = arith.maximumf %944, %457 : vector<1x1xf32>
    %946 = arith.subf %261, %945 : vector<1x1xf32>
    %947 = math.exp %946 : vector<1x1xf32>
    %948 = arith.subf %310, %945 : vector<1x1xf32>
    %949 = math.exp %948 : vector<1x1xf32>
    %950 = arith.subf %352, %945 : vector<1x1xf32>
    %951 = math.exp %950 : vector<1x1xf32>
    %952 = arith.subf %387, %945 : vector<1x1xf32>
    %953 = math.exp %952 : vector<1x1xf32>
    %954 = arith.subf %415, %945 : vector<1x1xf32>
    %955 = math.exp %954 : vector<1x1xf32>
    %956 = arith.subf %436, %945 : vector<1x1xf32>
    %957 = math.exp %956 : vector<1x1xf32>
    %958 = arith.subf %450, %945 : vector<1x1xf32>
    %959 = math.exp %958 : vector<1x1xf32>
    %960 = arith.subf %457, %945 : vector<1x1xf32>
    %961 = math.exp %960 : vector<1x1xf32>
    %962 = arith.addf %947, %949 : vector<1x1xf32>
    %963 = arith.addf %962, %951 : vector<1x1xf32>
    %964 = arith.addf %963, %953 : vector<1x1xf32>
    %965 = arith.addf %964, %955 : vector<1x1xf32>
    %966 = arith.addf %965, %957 : vector<1x1xf32>
    %967 = arith.addf %966, %959 : vector<1x1xf32>
    %968 = arith.addf %967, %961 : vector<1x1xf32>
    %cst_270 = arith.constant 1.000000e+00 : f32
    %969 = vector.broadcast %cst_270 : f32 to vector<1x1xf32>
    %970 = arith.divf %969, %968 : vector<1x1xf32>
    %971 = arith.mulf %947, %970 : vector<1x1xf32>
    %972 = vector.broadcast %971 : vector<1x1xf32> to vector<64x8xf32>
    %973 = arith.mulf %972, %204 : vector<64x8xf32>
    %974 = arith.mulf %949, %970 : vector<1x1xf32>
    %975 = vector.broadcast %974 : vector<1x1xf32> to vector<64x8xf32>
    %976 = arith.mulf %975, %205 : vector<64x8xf32>
    %977 = arith.addf %973, %976 : vector<64x8xf32>
    %978 = arith.mulf %951, %970 : vector<1x1xf32>
    %979 = vector.broadcast %978 : vector<1x1xf32> to vector<64x8xf32>
    %980 = arith.mulf %979, %206 : vector<64x8xf32>
    %981 = arith.addf %977, %980 : vector<64x8xf32>
    %982 = arith.mulf %953, %970 : vector<1x1xf32>
    %983 = vector.broadcast %982 : vector<1x1xf32> to vector<64x8xf32>
    %984 = arith.mulf %983, %207 : vector<64x8xf32>
    %985 = arith.addf %981, %984 : vector<64x8xf32>
    %986 = arith.mulf %955, %970 : vector<1x1xf32>
    %987 = vector.broadcast %986 : vector<1x1xf32> to vector<64x8xf32>
    %988 = arith.mulf %987, %208 : vector<64x8xf32>
    %989 = arith.addf %985, %988 : vector<64x8xf32>
    %990 = arith.mulf %957, %970 : vector<1x1xf32>
    %991 = vector.broadcast %990 : vector<1x1xf32> to vector<64x8xf32>
    %992 = arith.mulf %991, %209 : vector<64x8xf32>
    %993 = arith.addf %989, %992 : vector<64x8xf32>
    %994 = arith.mulf %959, %970 : vector<1x1xf32>
    %995 = vector.broadcast %994 : vector<1x1xf32> to vector<64x8xf32>
    %996 = arith.mulf %995, %210 : vector<64x8xf32>
    %997 = arith.addf %993, %996 : vector<64x8xf32>
    %998 = arith.mulf %961, %970 : vector<1x1xf32>
    %999 = vector.broadcast %998 : vector<1x1xf32> to vector<64x8xf32>
    %1000 = arith.mulf %999, %212 : vector<64x8xf32>
    %1001 = arith.addf %997, %1000 : vector<64x8xf32>
    %1002 = arith.addf %1001, %158 : vector<64x8xf32>
    %cst_271 = arith.constant dense<0.000000e+00> : vector<64x16xf32>
    %1003 = tpu.matmul %1002, %2, %cst_271 {dimension_numbers = #tpu.dot_dimension_numbers<[1], [0], [0], [1], [0, 0, 1, 1], [], []>} : vector<64x8xf32>, vector<8x16xf32>, vector<64x16xf32> -> vector<64x16xf32>
    %1004 = vector.broadcast %3 : vector<1x16xf32> to vector<64x16xf32>
    %1005 = arith.addf %1003, %1004 : vector<64x16xf32>
    %1006 = arith.negf %1005 : vector<64x16xf32>
    %1007 = math.exp %1006 : vector<64x16xf32>
    %cst_272 = arith.constant 1.000000e+00 : f32
    %1008 = vector.broadcast %cst_272 : f32 to vector<64x16xf32>
    %1009 = arith.addf %1008, %1007 : vector<64x16xf32>
    %1010 = arith.divf %1008, %1009 : vector<64x16xf32>
    %c0_273 = arith.constant 0 : index
    %c6_274 = arith.constant 6 : index
    %c0_275 = arith.constant 0 : index
    %c0_276 = arith.constant 0 : index
    %1011 = vector.load %arg1[%c0_273, %c6_274, %c0_275, %c0_276] : memref<1x8x64x16xf32, #tpu.memory_space<vmem>>, vector<1x1x64x16xf32>
    %1012 = vector.shape_cast %1011 : vector<1x1x64x16xf32> to vector<64x16xf32>
    %1013 = arith.mulf %1010, %1012 : vector<64x16xf32>
    %1014 = arith.addf %1013, %1012 : vector<64x16xf32>
    %c0_277 = arith.constant 0 : index
    %c6_278 = arith.constant 6 : index
    %c0_279 = arith.constant 0 : index
    %c0_280 = arith.constant 0 : index
    %1015 = vector.load %arg6[%c0_277, %c6_278, %c0_279, %c0_280] : memref<1x8x64x16xf32, #tpu.memory_space<vmem>>, vector<1x1x64x16xf32>
    %1016 = vector.shape_cast %1015 : vector<1x1x64x16xf32> to vector<64x16xf32>
    %1017 = vector.shape_cast %1014 : vector<64x16xf32> to vector<1x1x64x16xf32>
    tpu.vector_store %arg6[%c0_277, %c6_278, %c0_279, %c0_280], %1017 {strides = array<i32>} : memref<1x8x64x16xf32, #tpu.memory_space<vmem>>, vector<1x1x64x16xf32>,
    %1018 = arith.maximumf %268, %317 : vector<1x1xf32>
    %1019 = arith.maximumf %1018, %359 : vector<1x1xf32>
    %1020 = arith.maximumf %1019, %394 : vector<1x1xf32>
    %1021 = arith.maximumf %1020, %422 : vector<1x1xf32>
    %1022 = arith.maximumf %1021, %443 : vector<1x1xf32>
    %1023 = arith.maximumf %1022, %457 : vector<1x1xf32>
    %1024 = arith.maximumf %1023, %464 : vector<1x1xf32>
    %1025 = arith.subf %268, %1024 : vector<1x1xf32>
    %1026 = math.exp %1025 : vector<1x1xf32>
    %1027 = arith.subf %317, %1024 : vector<1x1xf32>
    %1028 = math.exp %1027 : vector<1x1xf32>
    %1029 = arith.subf %359, %1024 : vector<1x1xf32>
    %1030 = math.exp %1029 : vector<1x1xf32>
    %1031 = arith.subf %394, %1024 : vector<1x1xf32>
    %1032 = math.exp %1031 : vector<1x1xf32>
    %1033 = arith.subf %422, %1024 : vector<1x1xf32>
    %1034 = math.exp %1033 : vector<1x1xf32>
    %1035 = arith.subf %443, %1024 : vector<1x1xf32>
    %1036 = math.exp %1035 : vector<1x1xf32>
    %1037 = arith.subf %457, %1024 : vector<1x1xf32>
    %1038 = math.exp %1037 : vector<1x1xf32>
    %1039 = arith.subf %464, %1024 : vector<1x1xf32>
    %1040 = math.exp %1039 : vector<1x1xf32>
    %1041 = arith.addf %1026, %1028 : vector<1x1xf32>
    %1042 = arith.addf %1041, %1030 : vector<1x1xf32>
    %1043 = arith.addf %1042, %1032 : vector<1x1xf32>
    %1044 = arith.addf %1043, %1034 : vector<1x1xf32>
    %1045 = arith.addf %1044, %1036 : vector<1x1xf32>
    %1046 = arith.addf %1045, %1038 : vector<1x1xf32>
    %1047 = arith.addf %1046, %1040 : vector<1x1xf32>
    %cst_281 = arith.constant 1.000000e+00 : f32
    %1048 = vector.broadcast %cst_281 : f32 to vector<1x1xf32>
    %1049 = arith.divf %1048, %1047 : vector<1x1xf32>
    %1050 = arith.mulf %1026, %1049 : vector<1x1xf32>
    %1051 = vector.broadcast %1050 : vector<1x1xf32> to vector<64x8xf32>
    %1052 = arith.mulf %1051, %204 : vector<64x8xf32>
    %1053 = arith.mulf %1028, %1049 : vector<1x1xf32>
    %1054 = vector.broadcast %1053 : vector<1x1xf32> to vector<64x8xf32>
    %1055 = arith.mulf %1054, %205 : vector<64x8xf32>
    %1056 = arith.addf %1052, %1055 : vector<64x8xf32>
    %1057 = arith.mulf %1030, %1049 : vector<1x1xf32>
    %1058 = vector.broadcast %1057 : vector<1x1xf32> to vector<64x8xf32>
    %1059 = arith.mulf %1058, %206 : vector<64x8xf32>
    %1060 = arith.addf %1056, %1059 : vector<64x8xf32>
    %1061 = arith.mulf %1032, %1049 : vector<1x1xf32>
    %1062 = vector.broadcast %1061 : vector<1x1xf32> to vector<64x8xf32>
    %1063 = arith.mulf %1062, %207 : vector<64x8xf32>
    %1064 = arith.addf %1060, %1063 : vector<64x8xf32>
    %1065 = arith.mulf %1034, %1049 : vector<1x1xf32>
    %1066 = vector.broadcast %1065 : vector<1x1xf32> to vector<64x8xf32>
    %1067 = arith.mulf %1066, %208 : vector<64x8xf32>
    %1068 = arith.addf %1064, %1067 : vector<64x8xf32>
    %1069 = arith.mulf %1036, %1049 : vector<1x1xf32>
    %1070 = vector.broadcast %1069 : vector<1x1xf32> to vector<64x8xf32>
    %1071 = arith.mulf %1070, %209 : vector<64x8xf32>
    %1072 = arith.addf %1068, %1071 : vector<64x8xf32>
    %1073 = arith.mulf %1038, %1049 : vector<1x1xf32>
    %1074 = vector.broadcast %1073 : vector<1x1xf32> to vector<64x8xf32>
    %1075 = arith.mulf %1074, %210 : vector<64x8xf32>
    %1076 = arith.addf %1072, %1075 : vector<64x8xf32>
    %1077 = arith.mulf %1040, %1049 : vector<1x1xf32>
    %1078 = vector.broadcast %1077 : vector<1x1xf32> to vector<64x8xf32>
    %1079 = arith.mulf %1078, %212 : vector<64x8xf32>
    %1080 = arith.addf %1076, %1079 : vector<64x8xf32>
    %1081 = arith.addf %1080, %183 : vector<64x8xf32>
    %cst_282 = arith.constant dense<0.000000e+00> : vector<64x16xf32>
    %1082 = tpu.matmul %1081, %2, %cst_282 {dimension_numbers = #tpu.dot_dimension_numbers<[1], [0], [0], [1], [0, 0, 1, 1], [], []>} : vector<64x8xf32>, vector<8x16xf32>, vector<64x16xf32> -> vector<64x16xf32>
    %1083 = vector.broadcast %3 : vector<1x16xf32> to vector<64x16xf32>
    %1084 = arith.addf %1082, %1083 : vector<64x16xf32>
    %1085 = arith.negf %1084 : vector<64x16xf32>
    %1086 = math.exp %1085 : vector<64x16xf32>
    %cst_283 = arith.constant 1.000000e+00 : f32
    %1087 = vector.broadcast %cst_283 : f32 to vector<64x16xf32>
    %1088 = arith.addf %1087, %1086 : vector<64x16xf32>
    %1089 = arith.divf %1087, %1088 : vector<64x16xf32>
    %c0_284 = arith.constant 0 : index
    %c7_285 = arith.constant 7 : index
    %c0_286 = arith.constant 0 : index
    %c0_287 = arith.constant 0 : index
    %1090 = vector.load %arg1[%c0_284, %c7_285, %c0_286, %c0_287] : memref<1x8x64x16xf32, #tpu.memory_space<vmem>>, vector<1x1x64x16xf32>
    %1091 = vector.shape_cast %1090 : vector<1x1x64x16xf32> to vector<64x16xf32>
    %1092 = arith.mulf %1089, %1091 : vector<64x16xf32>
    %1093 = arith.addf %1092, %1091 : vector<64x16xf32>
    %c0_288 = arith.constant 0 : index
    %c7_289 = arith.constant 7 : index
    %c0_290 = arith.constant 0 : index
    %c0_291 = arith.constant 0 : index
    %1094 = vector.load %arg6[%c0_288, %c7_289, %c0_290, %c0_291] : memref<1x8x64x16xf32, #tpu.memory_space<vmem>>, vector<1x1x64x16xf32>
    %1095 = vector.shape_cast %1094 : vector<1x1x64x16xf32> to vector<64x16xf32>
    %1096 = vector.shape_cast %1093 : vector<64x16xf32> to vector<1x1x64x16xf32>
    tpu.vector_store %arg6[%c0_288, %c7_289, %c0_290, %c0_291], %1096 {strides = array<i32>} : memref<1x8x64x16xf32, #tpu.memory_space<vmem>>, vector<1x1x64x16xf32>,
    return
  }
  func.func @transform_0(%arg0: i32) -> (i32, i32, i32, i32) {
    %c0_i32 = arith.constant 0 : i32
    %c0_i32_0 = arith.constant 0 : i32
    %c0_i32_1 = arith.constant 0 : i32
    %c0_i32_2 = arith.constant 0 : i32
    return %arg0, %c0_i32, %c0_i32_0, %c0_i32_1 : i32, i32, i32, i32
  }
  func.func @transform_1(%arg0: i32) -> (i32, i32) {
    %c0_i32 = arith.constant 0 : i32
    %c0_i32_0 = arith.constant 0 : i32
    %c0_i32_1 = arith.constant 0 : i32
    return %c0_i32, %c0_i32_0 : i32, i32
  }
  func.func @transform_2(%arg0: i32) -> (i32, i32) {
    %c0_i32 = arith.constant 0 : i32
    %c0_i32_0 = arith.constant 0 : i32
    %c0_i32_1 = arith.constant 0 : i32
    return %c0_i32, %c0_i32_0 : i32, i32
  }
  func.func @transform_3(%arg0: i32) -> (i32, i32) {
    %c0_i32 = arith.constant 0 : i32
    %c0_i32_0 = arith.constant 0 : i32
    %c0_i32_1 = arith.constant 0 : i32
    return %c0_i32, %c0_i32_0 : i32, i32
  }
  func.func @transform_4(%arg0: i32) -> (i32, i32) {
    %c0_i32 = arith.constant 0 : i32
    %c0_i32_0 = arith.constant 0 : i32
    %c0_i32_1 = arith.constant 0 : i32
    return %c0_i32, %c0_i32_0 : i32, i32
  }
  func.func @transform_5(%arg0: i32) -> (i32, i32, i32, i32) {
    %c0_i32 = arith.constant 0 : i32
    %c0_i32_0 = arith.constant 0 : i32
    %c0_i32_1 = arith.constant 0 : i32
    %c0_i32_2 = arith.constant 0 : i32
    return %arg0, %c0_i32, %c0_i32_0, %c0_i32_1 : i32, i32, i32, i32
  }
}

</mosaic_0001>

<llo_original>
// kernel: m2a_3dcnn_forward.1
$region0: #{m2a_3dcnn_forward.1}
  #allocation0 [shape = 'u32[]', space=smem, size = 0x4, offset = 0x4, fixed_abs, tag = 'smem constant byte address 0x4 - core index']
  #allocation1 [shape = 'u32[144,128]{1,0:T(1,128)}', space=vmem, size = 0x12000, scoped, tag = 'internal scratch']
  %s0 = inlined_call_operand.hbm [shape: f32[2,8,64,16], index: 0, kind: input, shape index: {}]
  %s1 = inlined_call_operand.vmem [shape: f32[16,8], index: 1, kind: input, shape index: {}]
  %s2 = inlined_call_operand.vmem [shape: f32[1,8], index: 2, kind: input, shape index: {}]
  %s3 = inlined_call_operand.vmem [shape: f32[8,16], index: 3, kind: input, shape index: {}]
  %s4 = inlined_call_operand.vmem [shape: f32[1,16], index: 4, kind: input, shape index: {}]
  %s5 = inlined_call_operand.hbm [shape: f32[2,8,64,16], index: 5, kind: output, shape index: {}]
  %s6 = sld [smem:[#allocation0]]
  $region57: #{m2a_3dcnn_forward.1} parent=0
    _
  %s8 = ssub.s32 1, %s6
  %s9 = scalar_select 0, %s8, %s6
  $region1: #{m2a_3dcnn_forward.1} parent=0
    #allocation2 [shape = 'u8[524288]{0}', space=vmem, size = 0x80000, scoped, tag = 'input window, operand 0']
    #allocation3 [shape = 's32[2]{0}', space=sflag, size = 0x8, scoped, tag = 'scoped memory for m2a_3dcnn_forward.1']
    #allocation4 [shape = 's32[2]{0}', space=sflag, size = 0x8, scoped, tag = 'scoped memory for m2a_3dcnn_forward.1']
    #allocation5 [shape = 'u8[524288]{0}', space=vmem, size = 0x80000, scoped, tag = 'output window, operand 0']
    %10 = vsyncpa [#allocation3], 0
    %s11 = scalar_lea.sflag [#allocation3], 1
    %12 = vsyncpa %s11, 0
    %13 = vsyncpa [#allocation4], 0
    %s14 = scalar_lea.sflag [#allocation4], 1
    %15 = vsyncpa %s14, 0
    loop: start=0, step=1, limit=4
    $region2: #{m2a_3dcnn_forward.1} parent=1 // loop_pre_header
      _
    $region3: #{m2a_3dcnn_forward.1} parent=1 // loop_header
      %s17 = sphi 0, %s21
      %p18 = scmp.ge.s32.totalorder %s17, 4
      %s27 = sphi 0, %s29
      %s30 = sphi 0, %s27
      %s31 = sphi 0, %s30
      %s47 = sphi 0, %s31
      %s51 = sphi 0, %s51
      %s53 = sphi 0, %s51
      %s54 = sphi 0, %s53
      %s68 = sphi 0, %s54
      %s72 = sphi 0, %s72
      %s74 = sphi 0, %s72
      %s75 = sphi 0, %s74
      %s89 = sphi 0, %s75
      %s93 = sphi 0, %s93
      %s95 = sphi 0, %s93
      %s96 = sphi 0, %s95
      %s110 = sphi 0, %s96
      %s114 = sphi 0, %s114
      %s116 = sphi 0, %s114
      %s117 = sphi 0, %s116
      %s131 = sphi 0, %s117
      %s137 = sphi 0, %s139
      %s140 = sphi 0, %s137
      %s141 = sphi 0, %s140
      %s157 = sphi 0, %s141
    $region4: #{m2a_3dcnn_forward.1} parent=1 // loop_header_branch
      %20 = sbr.rel (%p18) target = $region8
    $region5: #{m2a_3dcnn_forward.1} parent=1 // loop_body
      %s22 = ssub.s32 %s17, 1
      %s23 = ssub.s32 %s17, 2
      %s24 = sadd.s32 %s17, 1
      %s25 = ssub.s32 %s17, %s24
      %p26 = scmp.eq.s32.totalorder %s25, 0
      %s28 = sadd.s32 %s27, 1
      %s29 = scalar_select %p26, %s27, %s28
      %p32 = pneg %p26
      %p33 = scmp.eq.s32.totalorder %s17, 1
      %p34 = por %p32, %p33
      %p35 = scmp.ne.s32.totalorder %s27, %s30
      %p36 = scmp.eq.s32.totalorder %s17, 0
      %p37 = por %p35, %p36
      %p38 = scmp.ne.s32.totalorder %s27, %s30
      %p39 = scmp.eq.s32.totalorder %s22, 1
      %p40 = por %p38, %p39
      %p41 = scmp.ne.s32.totalorder %s30, %s31
      %p42 = scmp.eq.s32.totalorder %s22, 0
      %p43 = por %p41, %p42
      %p44 = scmp.ne.s32.totalorder %s30, %s31
      %p45 = scmp.eq.s32.totalorder %s23, 1
      %p46 = por %p44, %p45
      %p48 = scmp.ne.s32.totalorder %s31, %s47
      %p49 = scmp.eq.s32.totalorder %s23, 0
      %p50 = por %p48, %p49
      %s52 = sadd.s32 %s51, 1
      %p55 = scmp.eq.s32.totalorder %s17, 1
      %p56 = scmp.ne.s32.totalorder %s51, %s53
      %p57 = scmp.eq.s32.totalorder %s17, 0
      %p58 = por %p56, %p57
      %p59 = scmp.ne.s32.totalorder %s51, %s53
      %p60 = scmp.eq.s32.totalorder %s22, 1
      %p61 = por %p59, %p60
      %p62 = scmp.ne.s32.totalorder %s53, %s54
      %p63 = scmp.eq.s32.totalorder %s22, 0
      %p64 = por %p62, %p63
      %p65 = scmp.ne.s32.totalorder %s53, %s54
      %p66 = scmp.eq.s32.totalorder %s23, 1
      %p67 = por %p65, %p66
      %p69 = scmp.ne.s32.totalorder %s54, %s68
      %p70 = scmp.eq.s32.totalorder %s23, 0
      %p71 = por %p69, %p70
      %s73 = sadd.s32 %s72, 1
      %p76 = scmp.eq.s32.totalorder %s17, 1
      %p77 = scmp.ne.s32.totalorder %s72, %s74
      %p78 = scmp.eq.s32.totalorder %s17, 0
      %p79 = por %p77, %p78
      %p80 = scmp.ne.s32.totalorder %s72, %s74
      %p81 = scmp.eq.s32.totalorder %s22, 1
      %p82 = por %p80, %p81
      %p83 = scmp.ne.s32.totalorder %s74, %s75
      %p84 = scmp.eq.s32.totalorder %s22, 0
      %p85 = por %p83, %p84
      %p86 = scmp.ne.s32.totalorder %s74, %s75
      %p87 = scmp.eq.s32.totalorder %s23, 1
      %p88 = por %p86, %p87
      %p90 = scmp.ne.s32.totalorder %s75, %s89
      %p91 = scmp.eq.s32.totalorder %s23, 0
      %p92 = por %p90, %p91
      %s94 = sadd.s32 %s93, 1
      %p97 = scmp.eq.s32.totalorder %s17, 1
      %p98 = scmp.ne.s32.totalorder %s93, %s95
      %p99 = scmp.eq.s32.totalorder %s17, 0
      %p100 = por %p98, %p99
      %p101 = scmp.ne.s32.totalorder %s93, %s95
      %p102 = scmp.eq.s32.totalorder %s22, 1
      %p103 = por %p101, %p102
      %p104 = scmp.ne.s32.totalorder %s95, %s96
      %p105 = scmp.eq.s32.totalorder %s22, 0
      %p106 = por %p104, %p105
      %p107 = scmp.ne.s32.totalorder %s95, %s96
      %p108 = scmp.eq.s32.totalorder %s23, 1
      %p109 = por %p107, %p108
      %p111 = scmp.ne.s32.totalorder %s96, %s110
      %p112 = scmp.eq.s32.totalorder %s23, 0
      %p113 = por %p111, %p112
      %s115 = sadd.s32 %s114, 1
      %p118 = scmp.eq.s32.totalorder %s17, 1
      %p119 = scmp.ne.s32.totalorder %s114, %s116
      %p120 = scmp.eq.s32.totalorder %s17, 0
      %p121 = por %p119, %p120
      %p122 = scmp.ne.s32.totalorder %s114, %s116
      %p123 = scmp.eq.s32.totalorder %s22, 1
      %p124 = por %p122, %p123
      %p125 = scmp.ne.s32.totalorder %s116, %s117
      %p126 = scmp.eq.s32.totalorder %s22, 0
      %p127 = por %p125, %p126
      %p128 = scmp.ne.s32.totalorder %s116, %s117
      %p129 = scmp.eq.s32.totalorder %s23, 1
      %p130 = por %p128, %p129
      %p132 = scmp.ne.s32.totalorder %s117, %s131
      %p133 = scmp.eq.s32.totalorder %s23, 0
      %p134 = por %p132, %p133
      %s135 = ssub.s32 %s17, %s24
      %p136 = scmp.eq.s32.totalorder %s135, 0
      %s138 = sadd.s32 %s137, 1
      %s139 = scalar_select %p136, %s137, %s138
      %p142 = pneg %p136
      %p143 = scmp.eq.s32.totalorder %s17, 1
      %p144 = por %p142, %p143
      %p145 = scmp.ne.s32.totalorder %s137, %s140
      %p146 = scmp.eq.s32.totalorder %s17, 0
      %p147 = por %p145, %p146
      %p148 = scmp.ne.s32.totalorder %s137, %s140
      %p149 = scmp.eq.s32.totalorder %s22, 1
      %p150 = por %p148, %p149
      %p151 = scmp.ne.s32.totalorder %s140, %s141
      %p152 = scmp.eq.s32.totalorder %s22, 0
      %p153 = por %p151, %p152
      %p154 = scmp.ne.s32.totalorder %s140, %s141
      %p155 = scmp.eq.s32.totalorder %s23, 1
      %p156 = por %p154, %p155
      %p158 = scmp.ne.s32.totalorder %s141, %s157
      %p159 = scmp.eq.s32.totalorder %s23, 0
      %p160 = por %p158, %p159
      %p161 = scmp.le.s32.totalorder 1, %s17
      %p162 = scmp.lt.s32.totalorder %s17, 3
      %p163 = pnand %p161, %p162
      %p164 = pneg %p163
      // Predicated region
      $region9: #{m2a_3dcnn_forward.1} parent=5 // pred_check
        _
      $region10: #{m2a_3dcnn_forward.1} parent=5 // pred_check_branch
        %166 = sbr.rel (%p163) target = $region12
      $region11: #{m2a_3dcnn_forward.1} parent=5 // pred_region
        %s167 = ssub.s32 %s17, 1
        // Predicated region
        $region13: #{m2a_3dcnn_forward.1} parent=11 // pred_check
          %p168 = pneg %p64
        $region14: #{m2a_3dcnn_forward.1} parent=11 // pred_check_branch
          %170 = sbr.rel (%p168) target = $region16
        $region15: #{m2a_3dcnn_forward.1} parent=11 // pred_region
          _
        $region16: #{m2a_3dcnn_forward.1} parent=11 // pred_fallthru
          _
        // Predicated region
        $region17: #{m2a_3dcnn_forward.1} parent=11 // pred_check
          %p171 = pneg %p85
        $region18: #{m2a_3dcnn_forward.1} parent=11 // pred_check_branch
          %173 = sbr.rel (%p171) target = $region20
        $region19: #{m2a_3dcnn_forward.1} parent=11 // pred_region
          _
        $region20: #{m2a_3dcnn_forward.1} parent=11 // pred_fallthru
          _
        // Predicated region
        $region21: #{m2a_3dcnn_forward.1} parent=11 // pred_check
          %p174 = pneg %p106
        $region22: #{m2a_3dcnn_forward.1} parent=11 // pred_check_branch
          %176 = sbr.rel (%p174) target = $region24
        $region23: #{m2a_3dcnn_forward.1} parent=11 // pred_region
          _
        $region24: #{m2a_3dcnn_forward.1} parent=11 // pred_fallthru
          _
        // Predicated region
        $region25: #{m2a_3dcnn_forward.1} parent=11 // pred_check
          %p177 = pneg %p127
        $region26: #{m2a_3dcnn_forward.1} parent=11 // pred_check_branch
          %179 = sbr.rel (%p177) target = $region28
        $region27: #{m2a_3dcnn_forward.1} parent=11 // pred_region
          _
        $region28: #{m2a_3dcnn_forward.1} parent=11 // pred_fallthru
          _
      $region12: #{m2a_3dcnn_forward.1} parent=5 // pred_fallthru
        _
      %p180 = scmp.lt.s32.totalorder %s17, 2
      // Predicated region
      $region29: #{m2a_3dcnn_forward.1} parent=5 // pred_check
        %p181 = pneg %p180
      $region30: #{m2a_3dcnn_forward.1} parent=5 // pred_check_branch
        %183 = sbr.rel (%p181) target = $region32
      $region31: #{m2a_3dcnn_forward.1} parent=5 // pred_region
        // Predicated region
        $region33: #{m2a_3dcnn_forward.1} parent=31 // pred_check
          %p184 = pneg %p37
        $region34: #{m2a_3dcnn_forward.1} parent=31 // pred_check_branch
          %186 = sbr.rel (%p184) target = $region36
        $region35: #{m2a_3dcnn_forward.1} parent=31 // pred_region
          %s187 = sand.u32 %s27, 1
          %s188 = scalar_lea.sflag [#allocation3], %s187
          %s189 = sand.u32 %s27, 1
          %s190 = smul.addr %s189, 512
          %s191 = scalar_lea.vmem [#allocation2], %s190
          %s193 = ssub.s32 8192, 8192
          %194 = vsyncadd %s188, %s193
          %s195 = smul.addr %s17, 64
          %s196 = smul.addr %s195, 128
          %s197 = scalar_lea.hbm %s0, %s196
          %s198 = sshll.u32 %s191, 4
          %s199 = int_to_ptr.vmem [resolvable:$true] %s198
          %204 = dma.hbm_to_vmem [thread:$0]  %s197, 8192, %s199, %s188, 128, 128, 8
        $region36: #{m2a_3dcnn_forward.1} parent=31 // pred_fallthru
          _
      $region32: #{m2a_3dcnn_forward.1} parent=5 // pred_fallthru
        _
      %p205 = scmp.le.s32.totalorder 1, %s17
      %p206 = scmp.lt.s32.totalorder %s17, 3
      %p207 = pnand %p205, %p206
      %p208 = pneg %p207
      // Predicated region
      $region37: #{m2a_3dcnn_forward.1} parent=5 // pred_check
        _
      $region38: #{m2a_3dcnn_forward.1} parent=5 // pred_check_branch
        %210 = sbr.rel (%p207) target = $region40
      $region39: #{m2a_3dcnn_forward.1} parent=5 // pred_region
        %s211 = ssub.s32 %s17, 1
        %s212 = sand.u32 %s30, 1
        %s213 = scalar_lea.sflag [#allocation3], %s212
        %s214 = sand.u32 %s30, 1
        %s215 = smul.addr %s214, 512
        %s216 = scalar_lea.vmem [#allocation2], %s215
        // Predicated region
        $region41: #{m2a_3dcnn_forward.1} parent=39 // pred_check
          %p217 = pneg %p43
        $region42: #{m2a_3dcnn_forward.1} parent=39 // pred_check_branch
          %219 = sbr.rel (%p217) target = $region44
        $region43: #{m2a_3dcnn_forward.1} parent=39 // pred_region
          %220 = dma.done %s213, 8192
        $region44: #{m2a_3dcnn_forward.1} parent=39 // pred_fallthru
          _
        %s221 = sand.u32 %s30, 1
        %s222 = scalar_lea.sflag [#allocation3], %s221
        %s223 = sand.u32 %s30, 1
        %s224 = smul.addr %s223, 512
        %s225 = scalar_lea.vmem [#allocation2], %s224
        %p226 = pneg %p43
        %p227 = pneg %p40
        %p228 = pneg %p64
        %p229 = pneg %p61
        %p230 = pneg %p85
        %p231 = pneg %p82
        %p232 = pneg %p106
        %p233 = pneg %p103
        %p234 = pneg %p127
        %p235 = pneg %p124
        %p236 = pneg %p153
        %p237 = pneg %p150
        %s238 = sand.u32 %s140, 1
        %s239 = scalar_lea.sflag [#allocation4], %s238
        %s240 = sand.u32 %s140, 1
        %s241 = smul.addr %s240, 512
        %s242 = scalar_lea.vmem [#allocation5], %s241
        %v243 = vld [vmem:[%s1] sm:$0xff]
        %v244 = vld [vmem:[%s1 + $0x8] sm:$0xff]
        %v245 = vld [vmem:[%s2] sm:$0x1]
        %v246 = vld [vmem:[%s3] sm:$0xff]
        %v247 = vld [vmem:[%s4] sm:$0x1]
        %v248 = vld [vmem:[%s216] sm:$0xff]
        %v249 = vld [vmem:[%s216 + $0x8] sm:$0xff]
        %v250 = vld [vmem:[%s216 + $0x10] sm:$0xff]
        %v251 = vld [vmem:[%s216 + $0x18] sm:$0xff]
        %v252 = vld [vmem:[%s216 + $0x20] sm:$0xff]
        %v253 = vld [vmem:[%s216 + $0x28] sm:$0xff]
        %v254 = vld [vmem:[%s216 + $0x30] sm:$0xff]
        %v255 = vld [vmem:[%s216 + $0x38] sm:$0xff]
        %v257 = vlaneseq
        %v258 = vshrl.u32 %v257, 7
        %v259 = vsub.s32 0, %v258
        %v260 = vrot.slane %v245, %v259
        %vm262 = vcmask 130048
        %v264 = vsel %vm262, %v248, 0
        %v267 = vsel %vm262, %v249, 0
        %v270 = vsel %vm262, %v250, 0
        %v273 = vsel %vm262, %v251, 0
        %v276 = vsel %vm262, %v252, 0
        %v279 = vsel %vm262, %v253, 0
        %v282 = vsel %vm262, %v254, 0
        %v285 = vsel %vm262, %v255, 0
        %287 = vmatprep.subr.mxu0 0.0
        %288 = vmatpush1.msra.mxu0 %v243
        %289 = vmatprep.subr.mxu0 0.0
        %290 = vmatpush1.msra.mxu0 %v244
        %291 = vmatprep.subr.mxu0 0.0
        %292 = vmatpush1.msra.mxu0 0.0
        %293 = vmatprep.subr.mxu0 0.0
        %294 = vmatpush1.msra.mxu0 0.0
        %295 = vmatprep.subr.mxu0 0.0
        %296 = vmatpush1.msra.mxu0 0.0
        %297 = vmatprep.subr.mxu0 0.0
        %298 = vmatpush1.msra.mxu0 0.0
        %299 = vmatprep.subr.mxu0 0.0
        %300 = vmatpush1.msra.mxu0 0.0
        %301 = vmatprep.subr.mxu0 0.0
        %302 = vmatpush1.msra.mxu0 0.0
        %303 = vmatprep.subr.mxu0 0.0
        %304 = vmatpush1.msra.mxu0 0.0
        %305 = vmatprep.subr.mxu0 0.0
        %306 = vmatpush1.msra.mxu0 0.0
        %307 = vmatprep.subr.mxu0 0.0
        %308 = vmatpush1.msra.mxu0 0.0
        %309 = vmatprep.subr.mxu0 0.0
        %310 = vmatpush1.msra.mxu0 0.0
        %311 = vmatprep.subr.mxu0 0.0
        %312 = vmatpush1.msra.mxu0 0.0
        %313 = vmatprep.subr.mxu0 0.0
        %314 = vmatpush1.msra.mxu0 0.0
        %315 = vmatprep.subr.mxu0 0.0
        %316 = vmatpush1.msra.mxu0 0.0
        %317 = vmatprep.subr.mxu0 0.0
        %318 = vmatpush1.msra.mxu0 0.0
        %319 = vmatprep.subr.mxu0 0.0
        %320 = vmatpush1.msra.mxu0 0.0
        %321 = vmatprep.subr.mxu0 0.0
        %322 = vmatpush1.msra.mxu0 0.0
        %323 = vmatprep.subr.mxu0 0.0
        %324 = vmatpush1.msra.mxu0 0.0
        %325 = vmatprep.subr.mxu0 0.0
        %326 = vmatpush1.msra.mxu0 0.0
        %327 = vmatprep.subr.mxu0 0.0
        %328 = vmatpush1.msra.mxu0 0.0
        %329 = vmatprep.subr.mxu0 0.0
        %330 = vmatpush1.msra.mxu0 0.0
        %331 = vmatprep.subr.mxu0 0.0
        %332 = vmatpush1.msra.mxu0 0.0
        %333 = vmatprep.subr.mxu0 0.0
        %334 = vmatpush1.msra.mxu0 0.0
        %335 = vmatprep.subr.mxu0 0.0
        %336 = vmatpush1.msra.mxu0 0.0
        %337 = vmatprep.subr.mxu0 0.0
        %338 = vmatpush1.msra.mxu0 0.0
        %339 = vmatprep.subr.mxu0 0.0
        %340 = vmatpush1.msra.mxu0 0.0
        %341 = vmatprep.subr.mxu0 0.0
        %342 = vmatpush1.msra.mxu0 0.0
        %343 = vmatprep.subr.mxu0 0.0
        %344 = vmatpush1.msra.mxu0 0.0
        %345 = vmatprep.subr.mxu0 0.0
        %346 = vmatpush1.msra.mxu0 0.0
        %347 = vmatprep.subr.mxu0 0.0
        %348 = vmatpush1.msra.mxu0 0.0
        %349 = vmatprep.subr.mxu0 0.0
        %350 = vmatpush1.msra.mxu0 0.0
        %351 = vmatprep.mubr.f32.mxu0 0.0
        %352 = vmatmul.mubr.f32.gmra.mrb[0].mxu0 %v264
        %v353 = vpop.f32.mrb[0].mxu0
        %v354 = vadd.f32 %v260, %v353
        %v355 = vpop.f32.mrb[0].mxu0
        %356 = vmatprep.mubr.f32.mxu0 0.0
        %357 = vmatmul.mubr.f32.gmra.mrb[0].mxu0 %v267
        %v358 = vpop.f32.mrb[0].mxu0
        %v359 = vadd.f32 %v260, %v358
        %v360 = vpop.f32.mrb[0].mxu0
        %361 = vmatprep.mubr.f32.mxu0 0.0
        %362 = vmatmul.mubr.f32.gmra.mrb[0].mxu0 %v270
        %v363 = vpop.f32.mrb[0].mxu0
        %v364 = vadd.f32 %v260, %v363
        %v365 = vpop.f32.mrb[0].mxu0
        %366 = vmatprep.mubr.f32.mxu0 0.0
        %367 = vmatmul.mubr.f32.gmra.mrb[0].mxu0 %v273
        %v368 = vpop.f32.mrb[0].mxu0
        %v369 = vadd.f32 %v260, %v368
        %v370 = vpop.f32.mrb[0].mxu0
        %371 = vmatprep.mubr.f32.mxu0 0.0
        %372 = vmatmul.mubr.f32.gmra.mrb[0].mxu0 %v276
        %v373 = vpop.f32.mrb[0].mxu0
        %v374 = vadd.f32 %v260, %v373
        %v375 = vpop.f32.mrb[0].mxu0
        %376 = vmatprep.mubr.f32.mxu0 0.0
        %377 = vmatmul.mubr.f32.gmra.mrb[0].mxu0 %v279
        %v378 = vpop.f32.mrb[0].mxu0
        %v379 = vadd.f32 %v260, %v378
        %v380 = vpop.f32.mrb[0].mxu0
        %381 = vmatprep.mubr.f32.mxu0 0.0
        %382 = vmatmul.mubr.f32.gmra.mrb[0].mxu0 %v282
        %v383 = vpop.f32.mrb[0].mxu0
        %v384 = vadd.f32 %v260, %v383
        %v385 = vpop.f32.mrb[0].mxu0
        %386 = vmatprep.mubr.f32.mxu0 0.0
        %387 = vmatmul.mubr.f32.gmra.mrb[0].mxu0 %v285
        %v388 = vpop.f32.mrb[0].mxu0
        %v389 = vadd.f32 %v260, %v388
        %v390 = vpop.f32.mrb[0].mxu0
        %391 = vdwg.mxu0
        %vm392 = vcmask 64512
        %v393 = vsel %vm392, %v354, 0.0
        %394 = vadd.xlane.f32.xlu0 %v393
        %v395 = vpop.xlane.xlu0 %394
        %v396 = vsel %vm392, %v359, 0.0
        %397 = vadd.xlane.f32.xlu0 %v396
        %v398 = vpop.xlane.xlu0 %397
        %v399 = vsel %vm392, %v364, 0.0
        %400 = vadd.xlane.f32.xlu0 %v399
        %v401 = vpop.xlane.xlu0 %400
        %v402 = vsel %vm392, %v369, 0.0
        %403 = vadd.xlane.f32.xlu0 %v402
        %v404 = vpop.xlane.xlu0 %403
        %v405 = vsel %vm392, %v374, 0.0
        %406 = vadd.xlane.f32.xlu0 %v405
        %v407 = vpop.xlane.xlu0 %406
        %v408 = vsel %vm392, %v379, 0.0
        %409 = vadd.xlane.f32.xlu0 %v408
        %v410 = vpop.xlane.xlu0 %409
        %v411 = vsel %vm392, %v384, 0.0
        %412 = vadd.xlane.f32.xlu0 %v411
        %v413 = vpop.xlane.xlu0 %412
        %v414 = vsel %vm392, %v389, 0.0
        %415 = vadd.xlane.f32.xlu0 %v414
        %v416 = vpop.xlane.xlu0 %415
        %v417 = vadd.f32 %v395, %v398
        %v418 = vadd.f32 %v417, %v401
        %v419 = vadd.f32 %v418, %v404
        %v420 = vadd.f32 %v419, %v407
        %v421 = vadd.f32 %v420, %v410
        %v422 = vadd.f32 %v421, %v413
        %v423 = vadd.f32 %v422, %v416
        %v424 = vrot.slane %v423, 4
        %v425 = vadd.f32 %v423, %v424
        %v426 = vrot.slane %v425, 2
        %v427 = vadd.f32 %v425, %v426
        %v428 = vrot.slane %v427, 1
        %v429 = vadd.f32 %v427, %v428
        %v430 = vmul.f32 %v429, 0.001953125
        %v431 = vsub.f32 %v354, %v430
        %v432 = vsub.f32 %v359, %v430
        %v433 = vsub.f32 %v364, %v430
        %v434 = vsub.f32 %v369, %v430
        %v435 = vsub.f32 %v374, %v430
        %v436 = vsub.f32 %v379, %v430
        %v437 = vsub.f32 %v384, %v430
        %v438 = vsub.f32 %v389, %v430
        %v439 = vmul.f32 %v431, %v431
        %v440 = vmul.f32 %v432, %v432
        %v441 = vmul.f32 %v433, %v433
        %v442 = vmul.f32 %v434, %v434
        %v443 = vmul.f32 %v435, %v435
        %v444 = vmul.f32 %v436, %v436
        %v445 = vmul.f32 %v437, %v437
        %v446 = vmul.f32 %v438, %v438
        %v447 = vsel %vm392, %v439, 0.0
        %448 = vadd.xlane.f32.xlu0 %v447
        %v449 = vpop.xlane.xlu0 %448
        %v450 = vsel %vm392, %v440, 0.0
        %451 = vadd.xlane.f32.xlu0 %v450
        %v452 = vpop.xlane.xlu0 %451
        %v453 = vsel %vm392, %v441, 0.0
        %454 = vadd.xlane.f32.xlu0 %v453
        %v455 = vpop.xlane.xlu0 %454
        %v456 = vsel %vm392, %v442, 0.0
        %457 = vadd.xlane.f32.xlu0 %v456
        %v458 = vpop.xlane.xlu0 %457
        %v459 = vsel %vm392, %v443, 0.0
        %460 = vadd.xlane.f32.xlu0 %v459
        %v461 = vpop.xlane.xlu0 %460
        %v462 = vsel %vm392, %v444, 0.0
        %463 = vadd.xlane.f32.xlu0 %v462
        %v464 = vpop.xlane.xlu0 %463
        %v465 = vsel %vm392, %v445, 0.0
        %466 = vadd.xlane.f32.xlu0 %v465
        %v467 = vpop.xlane.xlu0 %466
        %v468 = vsel %vm392, %v446, 0.0
        %469 = vadd.xlane.f32.xlu0 %v468
        %v470 = vpop.xlane.xlu0 %469
        %v471 = vadd.f32 %v449, %v452
        %v472 = vadd.f32 %v471, %v455
        %v473 = vadd.f32 %v472, %v458
        %v474 = vadd.f32 %v473, %v461
        %v475 = vadd.f32 %v474, %v464
        %v476 = vadd.f32 %v475, %v467
        %v477 = vadd.f32 %v476, %v470
        %v478 = vrot.slane %v477, 4
        %v479 = vadd.f32 %v477, %v478
        %v480 = vrot.slane %v479, 2
        %v481 = vadd.f32 %v479, %v480
        %v482 = vrot.slane %v481, 1
        %v483 = vadd.f32 %v481, %v482
        %v484 = vmul.f32 %v483, 0.001953125
        %v485 = vadd.f32 %v484, 1e-05
        %v486 = vrsqrt.pop %v485
        %v487 = vmul.f32 %v431, %v486
        %v488 = vmul.f32 %v432, %v486
        %v489 = vmul.f32 %v433, %v486
        %v490 = vmul.f32 %v434, %v486
        %v491 = vmul.f32 %v435, %v486
        %v492 = vmul.f32 %v436, %v486
        %v493 = vmul.f32 %v437, %v486
        %v494 = vmul.f32 %v438, %v486
        %s495 = scalar_lea.vmem %s216, 64 [#allocation2]
        %v496 = vld [vmem:[%s495] sm:$0xff]
        %v497 = vld [vmem:[%s495 + $0x8] sm:$0xff]
        %v498 = vld [vmem:[%s495 + $0x10] sm:$0xff]
        %v499 = vld [vmem:[%s495 + $0x18] sm:$0xff]
        %v500 = vld [vmem:[%s495 + $0x20] sm:$0xff]
        %v501 = vld [vmem:[%s495 + $0x28] sm:$0xff]
        %v502 = vld [vmem:[%s495 + $0x30] sm:$0xff]
        %v503 = vld [vmem:[%s495 + $0x38] sm:$0xff]
        %v505 = vsel %vm262, %v496, 0
        %v508 = vsel %vm262, %v497, 0
        %v511 = vsel %vm262, %v498, 0
        %v514 = vsel %vm262, %v499, 0
        %v517 = vsel %vm262, %v500, 0
        %v520 = vsel %vm262, %v501, 0
        %v523 = vsel %vm262, %v502, 0
        %v526 = vsel %vm262, %v503, 0
        %528 = vmatprep.subr.mxu0 0.0
        %529 = vmatpush1.msra.mxu0 %v243
        %530 = vmatprep.subr.mxu0 0.0
        %531 = vmatpush1.msra.mxu0 %v244
        %532 = vmatprep.subr.mxu0 0.0
        %533 = vmatpush1.msra.mxu0 0.0
        %534 = vmatprep.subr.mxu0 0.0
        %535 = vmatpush1.msra.mxu0 0.0
        %536 = vmatprep.subr.mxu0 0.0
        %537 = vmatpush1.msra.mxu0 0.0
        %538 = vmatprep.subr.mxu0 0.0
        %539 = vmatpush1.msra.mxu0 0.0
        %540 = vmatprep.subr.mxu0 0.0
        %541 = vmatpush1.msra.mxu0 0.0
        %542 = vmatprep.subr.mxu0 0.0
        %543 = vmatpush1.msra.mxu0 0.0
        %544 = vmatprep.subr.mxu0 0.0
        %545 = vmatpush1.msra.mxu0 0.0
        %546 = vmatprep.subr.mxu0 0.0
        %547 = vmatpush1.msra.mxu0 0.0
        %548 = vmatprep.subr.mxu0 0.0
        %549 = vmatpush1.msra.mxu0 0.0
        %550 = vmatprep.subr.mxu0 0.0
        %551 = vmatpush1.msra.mxu0 0.0
        %552 = vmatprep.subr.mxu0 0.0
        %553 = vmatpush1.msra.mxu0 0.0
        %554 = vmatprep.subr.mxu0 0.0
        %555 = vmatpush1.msra.mxu0 0.0
        %556 = vmatprep.subr.mxu0 0.0
        %557 = vmatpush1.msra.mxu0 0.0
        %558 = vmatprep.subr.mxu0 0.0
        %559 = vmatpush1.msra.mxu0 0.0
        %560 = vmatprep.subr.mxu0 0.0
        %561 = vmatpush1.msra.mxu0 0.0
        %562 = vmatprep.subr.mxu0 0.0
        %563 = vmatpush1.msra.mxu0 0.0
        %564 = vmatprep.subr.mxu0 0.0
        %565 = vmatpush1.msra.mxu0 0.0
        %566 = vmatprep.subr.mxu0 0.0
        %567 = vmatpush1.msra.mxu0 0.0
        %568 = vmatprep.subr.mxu0 0.0
        %569 = vmatpush1.msra.mxu0 0.0
        %570 = vmatprep.subr.mxu0 0.0
        %571 = vmatpush1.msra.mxu0 0.0
        %572 = vmatprep.subr.mxu0 0.0
        %573 = vmatpush1.msra.mxu0 0.0
        %574 = vmatprep.subr.mxu0 0.0
        %575 = vmatpush1.msra.mxu0 0.0
        %576 = vmatprep.subr.mxu0 0.0
        %577 = vmatpush1.msra.mxu0 0.0
        %578 = vmatprep.subr.mxu0 0.0
        %579 = vmatpush1.msra.mxu0 0.0
        %580 = vmatprep.subr.mxu0 0.0
        %581 = vmatpush1.msra.mxu0 0.0
        %582 = vmatprep.subr.mxu0 0.0
        %583 = vmatpush1.msra.mxu0 0.0
        %584 = vmatprep.subr.mxu0 0.0
        %585 = vmatpush1.msra.mxu0 0.0
        %586 = vmatprep.subr.mxu0 0.0
        %587 = vmatpush1.msra.mxu0 0.0
        %588 = vmatprep.subr.mxu0 0.0
        %589 = vmatpush1.msra.mxu0 0.0
        %590 = vmatprep.subr.mxu0 0.0
        %591 = vmatpush1.msra.mxu0 0.0
        %592 = vmatprep.mubr.f32.mxu0 0.0
        %593 = vmatmul.mubr.f32.gmra.mrb[0].mxu0 %v505
        %v594 = vpop.f32.mrb[0].mxu0
        %v595 = vadd.f32 %v260, %v594
        %v596 = vpop.f32.mrb[0].mxu0
        %597 = vmatprep.mubr.f32.mxu0 0.0
        %598 = vmatmul.mubr.f32.gmra.mrb[0].mxu0 %v508
        %v599 = vpop.f32.mrb[0].mxu0
        %v600 = vadd.f32 %v260, %v599
        %v601 = vpop.f32.mrb[0].mxu0
        %602 = vmatprep.mubr.f32.mxu0 0.0
        %603 = vmatmul.mubr.f32.gmra.mrb[0].mxu0 %v511
        %v604 = vpop.f32.mrb[0].mxu0
        %v605 = vadd.f32 %v260, %v604
        %v606 = vpop.f32.mrb[0].mxu0
        %607 = vmatprep.mubr.f32.mxu0 0.0
        %608 = vmatmul.mubr.f32.gmra.mrb[0].mxu0 %v514
        %v609 = vpop.f32.mrb[0].mxu0
        %v610 = vadd.f32 %v260, %v609
        %v611 = vpop.f32.mrb[0].mxu0
        %612 = vmatprep.mubr.f32.mxu0 0.0
        %613 = vmatmul.mubr.f32.gmra.mrb[0].mxu0 %v517
        %v614 = vpop.f32.mrb[0].mxu0
        %v615 = vadd.f32 %v260, %v614
        %v616 = vpop.f32.mrb[0].mxu0
        %617 = vmatprep.mubr.f32.mxu0 0.0
        %618 = vmatmul.mubr.f32.gmra.mrb[0].mxu0 %v520
        %v619 = vpop.f32.mrb[0].mxu0
        %v620 = vadd.f32 %v260, %v619
        %v621 = vpop.f32.mrb[0].mxu0
        %622 = vmatprep.mubr.f32.mxu0 0.0
        %623 = vmatmul.mubr.f32.gmra.mrb[0].mxu0 %v523
        %v624 = vpop.f32.mrb[0].mxu0
        %v625 = vadd.f32 %v260, %v624
        %v626 = vpop.f32.mrb[0].mxu0
        %627 = vmatprep.mubr.f32.mxu0 0.0
        %628 = vmatmul.mubr.f32.gmra.mrb[0].mxu0 %v526
        %v629 = vpop.f32.mrb[0].mxu0
        %v630 = vadd.f32 %v260, %v629
        %v631 = vpop.f32.mrb[0].mxu0
        %632 = vdwg.mxu0
        %v633 = vsel %vm392, %v595, 0.0
        %634 = vadd.xlane.f32.xlu0 %v633
        %v635 = vpop.xlane.xlu0 %634
        %v636 = vsel %vm392, %v600, 0.0
        %637 = vadd.xlane.f32.xlu0 %v636
        %v638 = vpop.xlane.xlu0 %637
        %v639 = vsel %vm392, %v605, 0.0
        %640 = vadd.xlane.f32.xlu0 %v639
        %v641 = vpop.xlane.xlu0 %640
        %v642 = vsel %vm392, %v610, 0.0
        %643 = vadd.xlane.f32.xlu0 %v642
        %v644 = vpop.xlane.xlu0 %643
        %v645 = vsel %vm392, %v615, 0.0
        %646 = vadd.xlane.f32.xlu0 %v645
        %v647 = vpop.xlane.xlu0 %646
        %v648 = vsel %vm392, %v620, 0.0
        %649 = vadd.xlane.f32.xlu0 %v648
        %v650 = vpop.xlane.xlu0 %649
        %v651 = vsel %vm392, %v625, 0.0
        %652 = vadd.xlane.f32.xlu0 %v651
        %v653 = vpop.xlane.xlu0 %652
        %v654 = vsel %vm392, %v630, 0.0
        %655 = vadd.xlane.f32.xlu0 %v654
        %v656 = vpop.xlane.xlu0 %655
        %v657 = vadd.f32 %v635, %v638
        %v658 = vadd.f32 %v657, %v641
        %v659 = vadd.f32 %v658, %v644
        %v660 = vadd.f32 %v659, %v647
        %v661 = vadd.f32 %v660, %v650
        %v662 = vadd.f32 %v661, %v653
        %v663 = vadd.f32 %v662, %v656
        %v664 = vrot.slane %v663, 4
        %v665 = vadd.f32 %v663, %v664
        %v666 = vrot.slane %v665, 2
        %v667 = vadd.f32 %v665, %v666
        %v668 = vrot.slane %v667, 1
        %v669 = vadd.f32 %v667, %v668
        %v670 = vmul.f32 %v669, 0.001953125
        %v671 = vsub.f32 %v595, %v670
        %v672 = vsub.f32 %v600, %v670
        %v673 = vsub.f32 %v605, %v670
        %v674 = vsub.f32 %v610, %v670
        %v675 = vsub.f32 %v615, %v670
        %v676 = vsub.f32 %v620, %v670
        %v677 = vsub.f32 %v625, %v670
        %v678 = vsub.f32 %v630, %v670
        %v679 = vmul.f32 %v671, %v671
        %v680 = vmul.f32 %v672, %v672
        %v681 = vmul.f32 %v673, %v673
        %v682 = vmul.f32 %v674, %v674
        %v683 = vmul.f32 %v675, %v675
        %v684 = vmul.f32 %v676, %v676
        %v685 = vmul.f32 %v677, %v677
        %v686 = vmul.f32 %v678, %v678
        %v687 = vsel %vm392, %v679, 0.0
        %688 = vadd.xlane.f32.xlu0 %v687
        %v689 = vpop.xlane.xlu0 %688
        %v690 = vsel %vm392, %v680, 0.0
        %691 = vadd.xlane.f32.xlu0 %v690
        %v692 = vpop.xlane.xlu0 %691
        %v693 = vsel %vm392, %v681, 0.0
        %694 = vadd.xlane.f32.xlu0 %v693
        %v695 = vpop.xlane.xlu0 %694
        %v696 = vsel %vm392, %v682, 0.0
        %697 = vadd.xlane.f32.xlu0 %v696
        %v698 = vpop.xlane.xlu0 %697
        %v699 = vsel %vm392, %v683, 0.0
        %700 = vadd.xlane.f32.xlu0 %v699
        %v701 = vpop.xlane.xlu0 %700
        %v702 = vsel %vm392, %v684, 0.0
        %703 = vadd.xlane.f32.xlu0 %v702
        %v704 = vpop.xlane.xlu0 %703
        %v705 = vsel %vm392, %v685, 0.0
        %706 = vadd.xlane.f32.xlu0 %v705
        %v707 = vpop.xlane.xlu0 %706
        %v708 = vsel %vm392, %v686, 0.0
        %709 = vadd.xlane.f32.xlu0 %v708
        %v710 = vpop.xlane.xlu0 %709
        %v711 = vadd.f32 %v689, %v692
        %v712 = vadd.f32 %v711, %v695
        %v713 = vadd.f32 %v712, %v698
        %v714 = vadd.f32 %v713, %v701
        %v715 = vadd.f32 %v714, %v704
        %v716 = vadd.f32 %v715, %v707
        %v717 = vadd.f32 %v716, %v710
        %v718 = vrot.slane %v717, 4
        %v719 = vadd.f32 %v717, %v718
        %v720 = vrot.slane %v719, 2
        %v721 = vadd.f32 %v719, %v720
        %v722 = vrot.slane %v721, 1
        %v723 = vadd.f32 %v721, %v722
        %v724 = vmul.f32 %v723, 0.001953125
        %v725 = vadd.f32 %v724, 1e-05
        %v726 = vrsqrt.pop %v725
        %v727 = vmul.f32 %v671, %v726
        %v728 = vmul.f32 %v672, %v726
        %v729 = vmul.f32 %v673, %v726
        %v730 = vmul.f32 %v674, %v726
        %v731 = vmul.f32 %v675, %v726
        %v732 = vmul.f32 %v676, %v726
        %v733 = vmul.f32 %v677, %v726
        %v734 = vmul.f32 %v678, %v726
        %s735 = scalar_lea.vmem %s216, 128 [#allocation2]
        %v736 = vld [vmem:[%s735] sm:$0xff]
        %v737 = vld [vmem:[%s735 + $0x8] sm:$0xff]
        %v738 = vld [vmem:[%s735 + $0x10] sm:$0xff]
        %v739 = vld [vmem:[%s735 + $0x18] sm:$0xff]
        %v740 = vld [vmem:[%s735 + $0x20] sm:$0xff]
        %v741 = vld [vmem:[%s735 + $0x28] sm:$0xff]
        %v742 = vld [vmem:[%s735 + $0x30] sm:$0xff]
        %v743 = vld [vmem:[%s735 + $0x38] sm:$0xff]
        %v745 = vsel %vm262, %v736, 0
        %v748 = vsel %vm262, %v737, 0
        %v751 = vsel %vm262, %v738, 0
        %v754 = vsel %vm262, %v739, 0
        %v757 = vsel %vm262, %v740, 0
        %v760 = vsel %vm262, %v741, 0
        %v763 = vsel %vm262, %v742, 0
        %v766 = vsel %vm262, %v743, 0
        %768 = vmatprep.subr.mxu0 0.0
        %769 = vmatpush1.msra.mxu0 %v243
        %770 = vmatprep.subr.mxu0 0.0
        %771 = vmatpush1.msra.mxu0 %v244
        %772 = vmatprep.subr.mxu0 0.0
        %773 = vmatpush1.msra.mxu0 0.0
        %774 = vmatprep.subr.mxu0 0.0
        %775 = vmatpush1.msra.mxu0 0.0
        %776 = vmatprep.subr.mxu0 0.0
        %777 = vmatpush1.msra.mxu0 0.0
        %778 = vmatprep.subr.mxu0 0.0
        %779 = vmatpush1.msra.mxu0 0.0
        %780 = vmatprep.subr.mxu0 0.0
        %781 = vmatpush1.msra.mxu0 0.0
        %782 = vmatprep.subr.mxu0 0.0
        %783 = vmatpush1.msra.mxu0 0.0
        %784 = vmatprep.subr.mxu0 0.0
        %785 = vmatpush1.msra.mxu0 0.0
        %786 = vmatprep.subr.mxu0 0.0
        %787 = vmatpush1.msra.mxu0 0.0
        %788 = vmatprep.subr.mxu0 0.0
        %789 = vmatpush1.msra.mxu0 0.0
        %790 = vmatprep.subr.mxu0 0.0
        %791 = vmatpush1.msra.mxu0 0.0
        %792 = vmatprep.subr.mxu0 0.0
        %793 = vmatpush1.msra.mxu0 0.0
        %794 = vmatprep.subr.mxu0 0.0
        %795 = vmatpush1.msra.mxu0 0.0
        %796 = vmatprep.subr.mxu0 0.0
        %797 = vmatpush1.msra.mxu0 0.0
        %798 = vmatprep.subr.mxu0 0.0
        %799 = vmatpush1.msra.mxu0 0.0
        %800 = vmatprep.subr.mxu0 0.0
        %801 = vmatpush1.msra.mxu0 0.0
        %802 = vmatprep.subr.mxu0 0.0
        %803 = vmatpush1.msra.mxu0 0.0
        %804 = vmatprep.subr.mxu0 0.0
        %805 = vmatpush1.msra.mxu0 0.0
        %806 = vmatprep.subr.mxu0 0.0
        %807 = vmatpush1.msra.mxu0 0.0
        %808 = vmatprep.subr.mxu0 0.0
        %809 = vmatpush1.msra.mxu0 0.0
        %810 = vmatprep.subr.mxu0 0.0
        %811 = vmatpush1.msra.mxu0 0.0
        %812 = vmatprep.subr.mxu0 0.0
        %813 = vmatpush1.msra.mxu0 0.0
        %814 = vmatprep.subr.mxu0 0.0
        %815 = vmatpush1.msra.mxu0 0.0
        %816 = vmatprep.subr.mxu0 0.0
        %817 = vmatpush1.msra.mxu0 0.0
        %818 = vmatprep.subr.mxu0 0.0
        %819 = vmatpush1.msra.mxu0 0.0
        %820 = vmatprep.subr.mxu0 0.0
        %821 = vmatpush1.msra.mxu0 0.0
        %822 = vmatprep.subr.mxu0 0.0
        %823 = vmatpush1.msra.mxu0 0.0
        %824 = vmatprep.subr.mxu0 0.0
        %825 = vmatpush1.msra.mxu0 0.0
        %826 = vmatprep.subr.mxu0 0.0
        %827 = vmatpush1.msra.mxu0 0.0
        %828 = vmatprep.subr.mxu0 0.0
        %829 = vmatpush1.msra.mxu0 0.0
        %830 = vmatprep.subr.mxu0 0.0
        %831 = vmatpush1.msra.mxu0 0.0
        %832 = vmatprep.mubr.f32.mxu0 0.0
        %833 = vmatmul.mubr.f32.gmra.mrb[0].mxu0 %v745
        %v834 = vpop.f32.mrb[0].mxu0
        %v835 = vadd.f32 %v260, %v834
        %v836 = vpop.f32.mrb[0].mxu0
        %837 = vmatprep.mubr.f32.mxu0 0.0
        %838 = vmatmul.mubr.f32.gmra.mrb[0].mxu0 %v748
        %v839 = vpop.f32.mrb[0].mxu0
        %v840 = vadd.f32 %v260, %v839
        %v841 = vpop.f32.mrb[0].mxu0
        %842 = vmatprep.mubr.f32.mxu0 0.0
        %843 = vmatmul.mubr.f32.gmra.mrb[0].mxu0 %v751
        %v844 = vpop.f32.mrb[0].mxu0
        %v845 = vadd.f32 %v260, %v844
        %v846 = vpop.f32.mrb[0].mxu0
        %847 = vmatprep.mubr.f32.mxu0 0.0
        %848 = vmatmul.mubr.f32.gmra.mrb[0].mxu0 %v754
        %v849 = vpop.f32.mrb[0].mxu0
        %v850 = vadd.f32 %v260, %v849
        %v851 = vpop.f32.mrb[0].mxu0
        %852 = vmatprep.mubr.f32.mxu0 0.0
        %853 = vmatmul.mubr.f32.gmra.mrb[0].mxu0 %v757
        %v854 = vpop.f32.mrb[0].mxu0
        %v855 = vadd.f32 %v260, %v854
        %v856 = vpop.f32.mrb[0].mxu0
        %857 = vmatprep.mubr.f32.mxu0 0.0
        %858 = vmatmul.mubr.f32.gmra.mrb[0].mxu0 %v760
        %v859 = vpop.f32.mrb[0].mxu0
        %v860 = vadd.f32 %v260, %v859
        %v861 = vpop.f32.mrb[0].mxu0
        %862 = vmatprep.mubr.f32.mxu0 0.0
        %863 = vmatmul.mubr.f32.gmra.mrb[0].mxu0 %v763
        %v864 = vpop.f32.mrb[0].mxu0
        %v865 = vadd.f32 %v260, %v864
        %v866 = vpop.f32.mrb[0].mxu0
        %867 = vmatprep.mubr.f32.mxu0 0.0
        %868 = vmatmul.mubr.f32.gmra.mrb[0].mxu0 %v766
        %v869 = vpop.f32.mrb[0].mxu0
        %v870 = vadd.f32 %v260, %v869
        %v871 = vpop.f32.mrb[0].mxu0
        %872 = vdwg.mxu0
        %v873 = vsel %vm392, %v835, 0.0
        %874 = vadd.xlane.f32.xlu0 %v873
        %v875 = vpop.xlane.xlu0 %874
        %v876 = vsel %vm392, %v840, 0.0
        %877 = vadd.xlane.f32.xlu0 %v876
        %v878 = vpop.xlane.xlu0 %877
        %v879 = vsel %vm392, %v845, 0.0
        %880 = vadd.xlane.f32.xlu0 %v879
        %v881 = vpop.xlane.xlu0 %880
        %v882 = vsel %vm392, %v850, 0.0
        %883 = vadd.xlane.f32.xlu0 %v882
        %v884 = vpop.xlane.xlu0 %883
        %v885 = vsel %vm392, %v855, 0.0
        %886 = vadd.xlane.f32.xlu0 %v885
        %v887 = vpop.xlane.xlu0 %886
        %v888 = vsel %vm392, %v860, 0.0
        %889 = vadd.xlane.f32.xlu0 %v888
        %v890 = vpop.xlane.xlu0 %889
        %v891 = vsel %vm392, %v865, 0.0
        %892 = vadd.xlane.f32.xlu0 %v891
        %v893 = vpop.xlane.xlu0 %892
        %v894 = vsel %vm392, %v870, 0.0
        %895 = vadd.xlane.f32.xlu0 %v894
        %v896 = vpop.xlane.xlu0 %895
        %v897 = vadd.f32 %v875, %v878
        %v898 = vadd.f32 %v897, %v881
        %v899 = vadd.f32 %v898, %v884
        %v900 = vadd.f32 %v899, %v887
        %v901 = vadd.f32 %v900, %v890
        %v902 = vadd.f32 %v901, %v893
        %v903 = vadd.f32 %v902, %v896
        %v904 = vrot.slane %v903, 4
        %v905 = vadd.f32 %v903, %v904
        %v906 = vrot.slane %v905, 2
        %v907 = vadd.f32 %v905, %v906
        %v908 = vrot.slane %v907, 1
        %v909 = vadd.f32 %v907, %v908
        %v910 = vmul.f32 %v909, 0.001953125
        %v911 = vsub.f32 %v835, %v910
        %v912 = vsub.f32 %v840, %v910
        %v913 = vsub.f32 %v845, %v910
        %v914 = vsub.f32 %v850, %v910
        %v915 = vsub.f32 %v855, %v910
        %v916 = vsub.f32 %v860, %v910
        %v917 = vsub.f32 %v865, %v910
        %v918 = vsub.f32 %v870, %v910
        %v919 = vmul.f32 %v911, %v911
        %v920 = vmul.f32 %v912, %v912
        %v921 = vmul.f32 %v913, %v913
        %v922 = vmul.f32 %v914, %v914
        %v923 = vmul.f32 %v915, %v915
        %v924 = vmul.f32 %v916, %v916
        %v925 = vmul.f32 %v917, %v917
        %v926 = vmul.f32 %v918, %v918
        %v927 = vsel %vm392, %v919, 0.0
        %928 = vadd.xlane.f32.xlu0 %v927
        %v929 = vpop.xlane.xlu0 %928
        %v930 = vsel %vm392, %v920, 0.0
        %931 = vadd.xlane.f32.xlu0 %v930
        %v932 = vpop.xlane.xlu0 %931
        %v933 = vsel %vm392, %v921, 0.0
        %934 = vadd.xlane.f32.xlu0 %v933
        %v935 = vpop.xlane.xlu0 %934
        %v936 = vsel %vm392, %v922, 0.0
        %937 = vadd.xlane.f32.xlu0 %v936
        %v938 = vpop.xlane.xlu0 %937
        %v939 = vsel %vm392, %v923, 0.0
        %940 = vadd.xlane.f32.xlu0 %v939
        %v941 = vpop.xlane.xlu0 %940
        %v942 = vsel %vm392, %v924, 0.0
        %943 = vadd.xlane.f32.xlu0 %v942
        %v944 = vpop.xlane.xlu0 %943
        %v945 = vsel %vm392, %v925, 0.0
        %946 = vadd.xlane.f32.xlu0 %v945
        %v947 = vpop.xlane.xlu0 %946
        %v948 = vsel %vm392, %v926, 0.0
        %949 = vadd.xlane.f32.xlu0 %v948
        %v950 = vpop.xlane.xlu0 %949
        %v951 = vadd.f32 %v929, %v932
        %v952 = vadd.f32 %v951, %v935
        %v953 = vadd.f32 %v952, %v938
        %v954 = vadd.f32 %v953, %v941
        %v955 = vadd.f32 %v954, %v944
        %v956 = vadd.f32 %v955, %v947
        %v957 = vadd.f32 %v956, %v950
        %v958 = vrot.slane %v957, 4
        %v959 = vadd.f32 %v957, %v958
        %v960 = vrot.slane %v959, 2
        %v961 = vadd.f32 %v959, %v960
        %v962 = vrot.slane %v961, 1
        %v963 = vadd.f32 %v961, %v962
        %v964 = vmul.f32 %v963, 0.001953125
        %v965 = vadd.f32 %v964, 1e-05
        %v966 = vrsqrt.pop %v965
        %v967 = vmul.f32 %v911, %v966
        %v968 = vmul.f32 %v912, %v966
        %v969 = vmul.f32 %v913, %v966
        %v970 = vmul.f32 %v914, %v966
        %v971 = vmul.f32 %v915, %v966
        %v972 = vmul.f32 %v916, %v966
        %v973 = vmul.f32 %v917, %v966
        %v974 = vmul.f32 %v918, %v966
        %s975 = scalar_lea.vmem %s216, 192 [#allocation2]
        %v976 = vld [vmem:[%s975] sm:$0xff]
        %v977 = vld [vmem:[%s975 + $0x8] sm:$0xff]
        %v978 = vld [vmem:[%s975 + $0x10] sm:$0xff]
        %v979 = vld [vmem:[%s975 + $0x18] sm:$0xff]
        %v980 = vld [vmem:[%s975 + $0x20] sm:$0xff]
        %v981 = vld [vmem:[%s975 + $0x28] sm:$0xff]
        %v982 = vld [vmem:[%s975 + $0x30] sm:$0xff]
        %v983 = vld [vmem:[%s975 + $0x38] sm:$0xff]
        %v985 = vsel %vm262, %v976, 0
        %v988 = vsel %vm262, %v977, 0
        %v991 = vsel %vm262, %v978, 0
        %v994 = vsel %vm262, %v979, 0
        %v997 = vsel %vm262, %v980, 0
        %v1000 = vsel %vm262, %v981, 0
        %v1003 = vsel %vm262, %v982, 0
        %v1006 = vsel %vm262, %v983, 0
        %1008 = vmatprep.subr.mxu0 0.0
        %1009 = vmatpush1.msra.mxu0 %v243
        %1010 = vmatprep.subr.mxu0 0.0
        %1011 = vmatpush1.msra.mxu0 %v244
        %1012 = vmatprep.subr.mxu0 0.0
        %1013 = vmatpush1.msra.mxu0 0.0
        %1014 = vmatprep.subr.mxu0 0.0
        %1015 = vmatpush1.msra.mxu0 0.0
        %1016 = vmatprep.subr.mxu0 0.0
        %1017 = vmatpush1.msra.mxu0 0.0
        %1018 = vmatprep.subr.mxu0 0.0
        %1019 = vmatpush1.msra.mxu0 0.0
        %1020 = vmatprep.subr.mxu0 0.0
        %1021 = vmatpush1.msra.mxu0 0.0
        %1022 = vmatprep.subr.mxu0 0.0
        %1023 = vmatpush1.msra.mxu0 0.0
        %1024 = vmatprep.subr.mxu0 0.0
        %1025 = vmatpush1.msra.mxu0 0.0
        %1026 = vmatprep.subr.mxu0 0.0
        %1027 = vmatpush1.msra.mxu0 0.0
        %1028 = vmatprep.subr.mxu0 0.0
        %1029 = vmatpush1.msra.mxu0 0.0
        %1030 = vmatprep.subr.mxu0 0.0
        %1031 = vmatpush1.msra.mxu0 0.0
        %1032 = vmatprep.subr.mxu0 0.0
        %1033 = vmatpush1.msra.mxu0 0.0
        %1034 = vmatprep.subr.mxu0 0.0
        %1035 = vmatpush1.msra.mxu0 0.0
        %1036 = vmatprep.subr.mxu0 0.0
        %1037 = vmatpush1.msra.mxu0 0.0
        %1038 = vmatprep.subr.mxu0 0.0
        %1039 = vmatpush1.msra.mxu0 0.0
        %1040 = vmatprep.subr.mxu0 0.0
        %1041 = vmatpush1.msra.mxu0 0.0
        %1042 = vmatprep.subr.mxu0 0.0
        %1043 = vmatpush1.msra.mxu0 0.0
        %1044 = vmatprep.subr.mxu0 0.0
        %1045 = vmatpush1.msra.mxu0 0.0
        %1046 = vmatprep.subr.mxu0 0.0
        %1047 = vmatpush1.msra.mxu0 0.0
        %1048 = vmatprep.subr.mxu0 0.0
        %1049 = vmatpush1.msra.mxu0 0.0
        %1050 = vmatprep.subr.mxu0 0.0
        %1051 = vmatpush1.msra.mxu0 0.0
        %1052 = vmatprep.subr.mxu0 0.0
        %1053 = vmatpush1.msra.mxu0 0.0
        %1054 = vmatprep.subr.mxu0 0.0
        %1055 = vmatpush1.msra.mxu0 0.0
        %1056 = vmatprep.subr.mxu0 0.0
        %1057 = vmatpush1.msra.mxu0 0.0
        %1058 = vmatprep.subr.mxu0 0.0
        %1059 = vmatpush1.msra.mxu0 0.0
        %1060 = vmatprep.subr.mxu0 0.0
        %1061 = vmatpush1.msra.mxu0 0.0
        %1062 = vmatprep.subr.mxu0 0.0
        %1063 = vmatpush1.msra.mxu0 0.0
        %1064 = vmatprep.subr.mxu0 0.0
        %1065 = vmatpush1.msra.mxu0 0.0
        %1066 = vmatprep.subr.mxu0 0.0
        %1067 = vmatpush1.msra.mxu0 0.0
        %1068 = vmatprep.subr.mxu0 0.0
        %1069 = vmatpush1.msra.mxu0 0.0
        %1070 = vmatprep.subr.mxu0 0.0
        %1071 = vmatpush1.msra.mxu0 0.0
        %1072 = vmatprep.mubr.f32.mxu0 0.0
        %1073 = vmatmul.mubr.f32.gmra.mrb[0].mxu0 %v985
        %v1074 = vpop.f32.mrb[0].mxu0
        %v1075 = vadd.f32 %v260, %v1074
        %v1076 = vpop.f32.mrb[0].mxu0
        %1077 = vmatprep.mubr.f32.mxu0 0.0
        %1078 = vmatmul.mubr.f32.gmra.mrb[0].mxu0 %v988
        %v1079 = vpop.f32.mrb[0].mxu0
        %v1080 = vadd.f32 %v260, %v1079
        %v1081 = vpop.f32.mrb[0].mxu0
        %1082 = vmatprep.mubr.f32.mxu0 0.0
        %1083 = vmatmul.mubr.f32.gmra.mrb[0].mxu0 %v991
        %v1084 = vpop.f32.mrb[0].mxu0
        %v1085 = vadd.f32 %v260, %v1084
        %v1086 = vpop.f32.mrb[0].mxu0
        %1087 = vmatprep.mubr.f32.mxu0 0.0
        %1088 = vmatmul.mubr.f32.gmra.mrb[0].mxu0 %v994
        %v1089 = vpop.f32.mrb[0].mxu0
        %v1090 = vadd.f32 %v260, %v1089
        %v1091 = vpop.f32.mrb[0].mxu0
        %1092 = vmatprep.mubr.f32.mxu0 0.0
        %1093 = vmatmul.mubr.f32.gmra.mrb[0].mxu0 %v997
        %v1094 = vpop.f32.mrb[0].mxu0
        %v1095 = vadd.f32 %v260, %v1094
        %v1096 = vpop.f32.mrb[0].mxu0
        %1097 = vmatprep.mubr.f32.mxu0 0.0
        %1098 = vmatmul.mubr.f32.gmra.mrb[0].mxu0 %v1000
        %v1099 = vpop.f32.mrb[0].mxu0
        %v1100 = vadd.f32 %v260, %v1099
        %v1101 = vpop.f32.mrb[0].mxu0
        %1102 = vmatprep.mubr.f32.mxu0 0.0
        %1103 = vmatmul.mubr.f32.gmra.mrb[0].mxu0 %v1003
        %v1104 = vpop.f32.mrb[0].mxu0
        %v1105 = vadd.f32 %v260, %v1104
        %v1106 = vpop.f32.mrb[0].mxu0
        %1107 = vmatprep.mubr.f32.mxu0 0.0
        %1108 = vmatmul.mubr.f32.gmra.mrb[0].mxu0 %v1006
        %v1109 = vpop.f32.mrb[0].mxu0
        %v1110 = vadd.f32 %v260, %v1109
        %v1111 = vpop.f32.mrb[0].mxu0
        %1112 = vdwg.mxu0
        %v1113 = vsel %vm392, %v1075, 0.0
        %1114 = vadd.xlane.f32.xlu0 %v1113
        %v1115 = vpop.xlane.xlu0 %1114
        %v1116 = vsel %vm392, %v1080, 0.0
        %1117 = vadd.xlane.f32.xlu0 %v1116
        %v1118 = vpop.xlane.xlu0 %1117
        %v1119 = vsel %vm392, %v1085, 0.0
        %1120 = vadd.xlane.f32.xlu0 %v1119
        %v1121 = vpop.xlane.xlu0 %1120
        %v1122 = vsel %vm392, %v1090, 0.0
        %1123 = vadd.xlane.f32.xlu0 %v1122
        %v1124 = vpop.xlane.xlu0 %1123
        %v1125 = vsel %vm392, %v1095, 0.0
        %1126 = vadd.xlane.f32.xlu0 %v1125
        %v1127 = vpop.xlane.xlu0 %1126
        %v1128 = vsel %vm392, %v1100, 0.0
        %1129 = vadd.xlane.f32.xlu0 %v1128
        %v1130 = vpop.xlane.xlu0 %1129
        %v1131 = vsel %vm392, %v1105, 0.0
        %1132 = vadd.xlane.f32.xlu0 %v1131
        %v1133 = vpop.xlane.xlu0 %1132
        %v1134 = vsel %vm392, %v1110, 0.0
        %1135 = vadd.xlane.f32.xlu0 %v1134
        %v1136 = vpop.xlane.xlu0 %1135
        %v1137 = vadd.f32 %v1115, %v1118
        %v1138 = vadd.f32 %v1137, %v1121
        %v1139 = vadd.f32 %v1138, %v1124
        %v1140 = vadd.f32 %v1139, %v1127
        %v1141 = vadd.f32 %v1140, %v1130
        %v1142 = vadd.f32 %v1141, %v1133
        %v1143 = vadd.f32 %v1142, %v1136
        %v1144 = vrot.slane %v1143, 4
        %v1145 = vadd.f32 %v1143, %v1144
        %v1146 = vrot.slane %v1145, 2
        %v1147 = vadd.f32 %v1145, %v1146
        %v1148 = vrot.slane %v1147, 1
        %v1149 = vadd.f32 %v1147, %v1148
        %v1150 = vmul.f32 %v1149, 0.001953125
        %v1151 = vsub.f32 %v1075, %v1150
        %v1152 = vsub.f32 %v1080, %v1150
        %v1153 = vsub.f32 %v1085, %v1150
        %v1154 = vsub.f32 %v1090, %v1150
        %v1155 = vsub.f32 %v1095, %v1150
        %v1156 = vsub.f32 %v1100, %v1150
        %v1157 = vsub.f32 %v1105, %v1150
        %v1158 = vsub.f32 %v1110, %v1150
        %v1159 = vmul.f32 %v1151, %v1151
        %v1160 = vmul.f32 %v1152, %v1152
        %v1161 = vmul.f32 %v1153, %v1153
        %v1162 = vmul.f32 %v1154, %v1154
        %v1163 = vmul.f32 %v1155, %v1155
        %v1164 = vmul.f32 %v1156, %v1156
        %v1165 = vmul.f32 %v1157, %v1157
        %v1166 = vmul.f32 %v1158, %v1158
        %v1167 = vsel %vm392, %v1159, 0.0
        %1168 = vadd.xlane.f32.xlu0 %v1167
        %v1169 = vpop.xlane.xlu0 %1168
        %v1170 = vsel %vm392, %v1160, 0.0
        %1171 = vadd.xlane.f32.xlu0 %v1170
        %v1172 = vpop.xlane.xlu0 %1171
        %v1173 = vsel %vm392, %v1161, 0.0
        %1174 = vadd.xlane.f32.xlu0 %v1173
        %v1175 = vpop.xlane.xlu0 %1174
        %v1176 = vsel %vm392, %v1162, 0.0
        %1177 = vadd.xlane.f32.xlu0 %v1176
        %v1178 = vpop.xlane.xlu0 %1177
        %v1179 = vsel %vm392, %v1163, 0.0
        %1180 = vadd.xlane.f32.xlu0 %v1179
        %v1181 = vpop.xlane.xlu0 %1180
        %v1182 = vsel %vm392, %v1164, 0.0
        %1183 = vadd.xlane.f32.xlu0 %v1182
        %v1184 = vpop.xlane.xlu0 %1183
        %v1185 = vsel %vm392, %v1165, 0.0
        %1186 = vadd.xlane.f32.xlu0 %v1185
        %v1187 = vpop.xlane.xlu0 %1186
        %v1188 = vsel %vm392, %v1166, 0.0
        %1189 = vadd.xlane.f32.xlu0 %v1188
        %v1190 = vpop.xlane.xlu0 %1189
        %v1191 = vadd.f32 %v1169, %v1172
        %v1192 = vadd.f32 %v1191, %v1175
        %v1193 = vadd.f32 %v1192, %v1178
        %v1194 = vadd.f32 %v1193, %v1181
        %v1195 = vadd.f32 %v1194, %v1184
        %v1196 = vadd.f32 %v1195, %v1187
        %v1197 = vadd.f32 %v1196, %v1190
        %v1198 = vrot.slane %v1197, 4
        %v1199 = vadd.f32 %v1197, %v1198
        %v1200 = vrot.slane %v1199, 2
        %v1201 = vadd.f32 %v1199, %v1200
        %v1202 = vrot.slane %v1201, 1
        %v1203 = vadd.f32 %v1201, %v1202
        %v1204 = vmul.f32 %v1203, 0.001953125
        %v1205 = vadd.f32 %v1204, 1e-05
        %v1206 = vrsqrt.pop %v1205
        %v1207 = vmul.f32 %v1151, %v1206
        %v1208 = vmul.f32 %v1152, %v1206
        %v1209 = vmul.f32 %v1153, %v1206
        %v1210 = vmul.f32 %v1154, %v1206
        %v1211 = vmul.f32 %v1155, %v1206
        %v1212 = vmul.f32 %v1156, %v1206
        %v1213 = vmul.f32 %v1157, %v1206
        %v1214 = vmul.f32 %v1158, %v1206
        %s1215 = scalar_lea.vmem %s216, 256 [#allocation2]
        %v1216 = vld [vmem:[%s1215] sm:$0xff]
        %v1217 = vld [vmem:[%s1215 + $0x8] sm:$0xff]
        %v1218 = vld [vmem:[%s1215 + $0x10] sm:$0xff]
        %v1219 = vld [vmem:[%s1215 + $0x18] sm:$0xff]
        %v1220 = vld [vmem:[%s1215 + $0x20] sm:$0xff]
        %v1221 = vld [vmem:[%s1215 + $0x28] sm:$0xff]
        %v1222 = vld [vmem:[%s1215 + $0x30] sm:$0xff]
        %v1223 = vld [vmem:[%s1215 + $0x38] sm:$0xff]
        %v1225 = vsel %vm262, %v1216, 0
        %v1228 = vsel %vm262, %v1217, 0
        %v1231 = vsel %vm262, %v1218, 0
        %v1234 = vsel %vm262, %v1219, 0
        %v1237 = vsel %vm262, %v1220, 0
        %v1240 = vsel %vm262, %v1221, 0
        %v1243 = vsel %vm262, %v1222, 0
        %v1246 = vsel %vm262, %v1223, 0
        %1248 = vmatprep.subr.mxu0 0.0
        %1249 = vmatpush1.msra.mxu0 %v243
        %1250 = vmatprep.subr.mxu0 0.0
        %1251 = vmatpush1.msra.mxu0 %v244
        %1252 = vmatprep.subr.mxu0 0.0
        %1253 = vmatpush1.msra.mxu0 0.0
        %1254 = vmatprep.subr.mxu0 0.0
        %1255 = vmatpush1.msra.mxu0 0.0
        %1256 = vmatprep.subr.mxu0 0.0
        %1257 = vmatpush1.msra.mxu0 0.0
        %1258 = vmatprep.subr.mxu0 0.0
        %1259 = vmatpush1.msra.mxu0 0.0
        %1260 = vmatprep.subr.mxu0 0.0
        %1261 = vmatpush1.msra.mxu0 0.0
        %1262 = vmatprep.subr.mxu0 0.0
        %1263 = vmatpush1.msra.mxu0 0.0
        %1264 = vmatprep.subr.mxu0 0.0
        %1265 = vmatpush1.msra.mxu0 0.0
        %1266 = vmatprep.subr.mxu0 0.0
        %1267 = vmatpush1.msra.mxu0 0.0
        %1268 = vmatprep.subr.mxu0 0.0
        %1269 = vmatpush1.msra.mxu0 0.0
        %1270 = vmatprep.subr.mxu0 0.0
        %1271 = vmatpush1.msra.mxu0 0.0
        %1272 = vmatprep.subr.mxu0 0.0
        %1273 = vmatpush1.msra.mxu0 0.0
        %1274 = vmatprep.subr.mxu0 0.0
        %1275 = vmatpush1.msra.mxu0 0.0
        %1276 = vmatprep.subr.mxu0 0.0
        %1277 = vmatpush1.msra.mxu0 0.0
        %1278 = vmatprep.subr.mxu0 0.0
        %1279 = vmatpush1.msra.mxu0 0.0
        %1280 = vmatprep.subr.mxu0 0.0
        %1281 = vmatpush1.msra.mxu0 0.0
        %1282 = vmatprep.subr.mxu0 0.0
        %1283 = vmatpush1.msra.mxu0 0.0
        %1284 = vmatprep.subr.mxu0 0.0
        %1285 = vmatpush1.msra.mxu0 0.0
        %1286 = vmatprep.subr.mxu0 0.0
        %1287 = vmatpush1.msra.mxu0 0.0
        %1288 = vmatprep.subr.mxu0 0.0
        %1289 = vmatpush1.msra.mxu0 0.0
        %1290 = vmatprep.subr.mxu0 0.0
        %1291 = vmatpush1.msra.mxu0 0.0
        %1292 = vmatprep.subr.mxu0 0.0
        %1293 = vmatpush1.msra.mxu0 0.0
        %1294 = vmatprep.subr.mxu0 0.0
        %1295 = vmatpush1.msra.mxu0 0.0
        %1296 = vmatprep.subr.mxu0 0.0
        %1297 = vmatpush1.msra.mxu0 0.0
        %1298 = vmatprep.subr.mxu0 0.0
        %1299 = vmatpush1.msra.mxu0 0.0
        %1300 = vmatprep.subr.mxu0 0.0
        %1301 = vmatpush1.msra.mxu0 0.0
        %1302 = vmatprep.subr.mxu0 0.0
        %1303 = vmatpush1.msra.mxu0 0.0
        %1304 = vmatprep.subr.mxu0 0.0
        %1305 = vmatpush1.msra.mxu0 0.0
        %1306 = vmatprep.subr.mxu0 0.0
        %1307 = vmatpush1.msra.mxu0 0.0
        %1308 = vmatprep.subr.mxu0 0.0
        %1309 = vmatpush1.msra.mxu0 0.0
        %1310 = vmatprep.subr.mxu0 0.0
        %1311 = vmatpush1.msra.mxu0 0.0
        %1312 = vmatprep.mubr.f32.mxu0 0.0
        %1313 = vmatmul.mubr.f32.gmra.mrb[0].mxu0 %v1225
        %v1314 = vpop.f32.mrb[0].mxu0
        %v1315 = vadd.f32 %v260, %v1314
        %v1316 = vpop.f32.mrb[0].mxu0
        %1317 = vmatprep.mubr.f32.mxu0 0.0
        %1318 = vmatmul.mubr.f32.gmra.mrb[0].mxu0 %v1228
        %v1319 = vpop.f32.mrb[0].mxu0
        %v1320 = vadd.f32 %v260, %v1319
        %v1321 = vpop.f32.mrb[0].mxu0
        %1322 = vmatprep.mubr.f32.mxu0 0.0
        %1323 = vmatmul.mubr.f32.gmra.mrb[0].mxu0 %v1231
        %v1324 = vpop.f32.mrb[0].mxu0
        %v1325 = vadd.f32 %v260, %v1324
        %v1326 = vpop.f32.mrb[0].mxu0
        %1327 = vmatprep.mubr.f32.mxu0 0.0
        %1328 = vmatmul.mubr.f32.gmra.mrb[0].mxu0 %v1234
        %v1329 = vpop.f32.mrb[0].mxu0
        %v1330 = vadd.f32 %v260, %v1329
        %v1331 = vpop.f32.mrb[0].mxu0
        %1332 = vmatprep.mubr.f32.mxu0 0.0
        %1333 = vmatmul.mubr.f32.gmra.mrb[0].mxu0 %v1237
        %v1334 = vpop.f32.mrb[0].mxu0
        %v1335 = vadd.f32 %v260, %v1334
        %v1336 = vpop.f32.mrb[0].mxu0
        %1337 = vmatprep.mubr.f32.mxu0 0.0
        %1338 = vmatmul.mubr.f32.gmra.mrb[0].mxu0 %v1240
        %v1339 = vpop.f32.mrb[0].mxu0
        %v1340 = vadd.f32 %v260, %v1339
        %v1341 = vpop.f32.mrb[0].mxu0
        %1342 = vmatprep.mubr.f32.mxu0 0.0
        %1343 = vmatmul.mubr.f32.gmra.mrb[0].mxu0 %v1243
        %v1344 = vpop.f32.mrb[0].mxu0
        %v1345 = vadd.f32 %v260, %v1344
        %v1346 = vpop.f32.mrb[0].mxu0
        %1347 = vmatprep.mubr.f32.mxu0 0.0
        %1348 = vmatmul.mubr.f32.gmra.mrb[0].mxu0 %v1246
        %v1349 = vpop.f32.mrb[0].mxu0
        %v1350 = vadd.f32 %v260, %v1349
        %v1351 = vpop.f32.mrb[0].mxu0
        %1352 = vdwg.mxu0
        %v1353 = vsel %vm392, %v1315, 0.0
        %1354 = vadd.xlane.f32.xlu0 %v1353
        %v1355 = vpop.xlane.xlu0 %1354
        %v1356 = vsel %vm392, %v1320, 0.0
        %1357 = vadd.xlane.f32.xlu0 %v1356
        %v1358 = vpop.xlane.xlu0 %1357
        %v1359 = vsel %vm392, %v1325, 0.0
        %1360 = vadd.xlane.f32.xlu0 %v1359
        %v1361 = vpop.xlane.xlu0 %1360
        %v1362 = vsel %vm392, %v1330, 0.0
        %1363 = vadd.xlane.f32.xlu0 %v1362
        %v1364 = vpop.xlane.xlu0 %1363
        %v1365 = vsel %vm392, %v1335, 0.0
        %1366 = vadd.xlane.f32.xlu0 %v1365
        %v1367 = vpop.xlane.xlu0 %1366
        %v1368 = vsel %vm392, %v1340, 0.0
        %1369 = vadd.xlane.f32.xlu0 %v1368
        %v1370 = vpop.xlane.xlu0 %1369
        %v1371 = vsel %vm392, %v1345, 0.0
        %1372 = vadd.xlane.f32.xlu0 %v1371
        %v1373 = vpop.xlane.xlu0 %1372
        %v1374 = vsel %vm392, %v1350, 0.0
        %1375 = vadd.xlane.f32.xlu0 %v1374
        %v1376 = vpop.xlane.xlu0 %1375
        %v1377 = vadd.f32 %v1355, %v1358
        %v1378 = vadd.f32 %v1377, %v1361
        %v1379 = vadd.f32 %v1378, %v1364
        %v1380 = vadd.f32 %v1379, %v1367
        %v1381 = vadd.f32 %v1380, %v1370
        %v1382 = vadd.f32 %v1381, %v1373
        %v1383 = vadd.f32 %v1382, %v1376
        %v1384 = vrot.slane %v1383, 4
        %v1385 = vadd.f32 %v1383, %v1384
        %v1386 = vrot.slane %v1385, 2
        %v1387 = vadd.f32 %v1385, %v1386
        %v1388 = vrot.slane %v1387, 1
        %v1389 = vadd.f32 %v1387, %v1388
        %v1390 = vmul.f32 %v1389, 0.001953125
        %v1391 = vsub.f32 %v1315, %v1390
        %v1392 = vsub.f32 %v1320, %v1390
        %v1393 = vsub.f32 %v1325, %v1390
        %v1394 = vsub.f32 %v1330, %v1390
        %v1395 = vsub.f32 %v1335, %v1390
        %v1396 = vsub.f32 %v1340, %v1390
        %v1397 = vsub.f32 %v1345, %v1390
        %v1398 = vsub.f32 %v1350, %v1390
        %v1399 = vmul.f32 %v1391, %v1391
        %v1400 = vmul.f32 %v1392, %v1392
        %v1401 = vmul.f32 %v1393, %v1393
        %v1402 = vmul.f32 %v1394, %v1394
        %v1403 = vmul.f32 %v1395, %v1395
        %v1404 = vmul.f32 %v1396, %v1396
        %v1405 = vmul.f32 %v1397, %v1397
        %v1406 = vmul.f32 %v1398, %v1398
        %v1407 = vsel %vm392, %v1399, 0.0
        %1408 = vadd.xlane.f32.xlu0 %v1407
        %v1409 = vpop.xlane.xlu0 %1408
        %v1410 = vsel %vm392, %v1400, 0.0
        %1411 = vadd.xlane.f32.xlu0 %v1410
        %v1412 = vpop.xlane.xlu0 %1411
        %v1413 = vsel %vm392, %v1401, 0.0
        %1414 = vadd.xlane.f32.xlu0 %v1413
        %v1415 = vpop.xlane.xlu0 %1414
        %v1416 = vsel %vm392, %v1402, 0.0
        %1417 = vadd.xlane.f32.xlu0 %v1416
        %v1418 = vpop.xlane.xlu0 %1417
        %v1419 = vsel %vm392, %v1403, 0.0
        %1420 = vadd.xlane.f32.xlu0 %v1419
        %v1421 = vpop.xlane.xlu0 %1420
        %v1422 = vsel %vm392, %v1404, 0.0
        %1423 = vadd.xlane.f32.xlu0 %v1422
        %v1424 = vpop.xlane.xlu0 %1423
        %v1425 = vsel %vm392, %v1405, 0.0
        %1426 = vadd.xlane.f32.xlu0 %v1425
        %v1427 = vpop.xlane.xlu0 %1426
        %v1428 = vsel %vm392, %v1406, 0.0
        %1429 = vadd.xlane.f32.xlu0 %v1428
        %v1430 = vpop.xlane.xlu0 %1429
        %v1431 = vadd.f32 %v1409, %v1412
        %v1432 = vadd.f32 %v1431, %v1415
        %v1433 = vadd.f32 %v1432, %v1418
        %v1434 = vadd.f32 %v1433, %v1421
        %v1435 = vadd.f32 %v1434, %v1424
        %v1436 = vadd.f32 %v1435, %v1427
        %v1437 = vadd.f32 %v1436, %v1430
        %v1438 = vrot.slane %v1437, 4
        %v1439 = vadd.f32 %v1437, %v1438
        %v1440 = vrot.slane %v1439, 2
        %v1441 = vadd.f32 %v1439, %v1440
        %v1442 = vrot.slane %v1441, 1
        %v1443 = vadd.f32 %v1441, %v1442
        %v1444 = vmul.f32 %v1443, 0.001953125
        %v1445 = vadd.f32 %v1444, 1e-05
        %v1446 = vrsqrt.pop %v1445
        %v1447 = vmul.f32 %v1391, %v1446
        %v1448 = vmul.f32 %v1392, %v1446
        %v1449 = vmul.f32 %v1393, %v1446
        %v1450 = vmul.f32 %v1394, %v1446
        %v1451 = vmul.f32 %v1395, %v1446
        %v1452 = vmul.f32 %v1396, %v1446
        %v1453 = vmul.f32 %v1397, %v1446
        %v1454 = vmul.f32 %v1398, %v1446
        %s1455 = scalar_lea.vmem %s216, 320 [#allocation2]
        %v1456 = vld [vmem:[%s1455] sm:$0xff]
        %v1457 = vld [vmem:[%s1455 + $0x8] sm:$0xff]
        %v1458 = vld [vmem:[%s1455 + $0x10] sm:$0xff]
        %v1459 = vld [vmem:[%s1455 + $0x18] sm:$0xff]
        %v1460 = vld [vmem:[%s1455 + $0x20] sm:$0xff]
        %v1461 = vld [vmem:[%s1455 + $0x28] sm:$0xff]
        %v1462 = vld [vmem:[%s1455 + $0x30] sm:$0xff]
        %v1463 = vld [vmem:[%s1455 + $0x38] sm:$0xff]
        %v1465 = vsel %vm262, %v1456, 0
        %v1468 = vsel %vm262, %v1457, 0
        %v1471 = vsel %vm262, %v1458, 0
        %v1474 = vsel %vm262, %v1459, 0
        %v1477 = vsel %vm262, %v1460, 0
        %v1480 = vsel %vm262, %v1461, 0
        %v1483 = vsel %vm262, %v1462, 0
        %v1486 = vsel %vm262, %v1463, 0
        %1488 = vmatprep.subr.mxu0 0.0
        %1489 = vmatpush1.msra.mxu0 %v243
        %1490 = vmatprep.subr.mxu0 0.0
        %1491 = vmatpush1.msra.mxu0 %v244
        %1492 = vmatprep.subr.mxu0 0.0
        %1493 = vmatpush1.msra.mxu0 0.0
        %1494 = vmatprep.subr.mxu0 0.0
        %1495 = vmatpush1.msra.mxu0 0.0
        %1496 = vmatprep.subr.mxu0 0.0
        %1497 = vmatpush1.msra.mxu0 0.0
        %1498 = vmatprep.subr.mxu0 0.0
        %1499 = vmatpush1.msra.mxu0 0.0
        %1500 = vmatprep.subr.mxu0 0.0
        %1501 = vmatpush1.msra.mxu0 0.0
        %1502 = vmatprep.subr.mxu0 0.0
        %1503 = vmatpush1.msra.mxu0 0.0
        %1504 = vmatprep.subr.mxu0 0.0
        %1505 = vmatpush1.msra.mxu0 0.0
        %1506 = vmatprep.subr.mxu0 0.0
        %1507 = vmatpush1.msra.mxu0 0.0
        %1508 = vmatprep.subr.mxu0 0.0
        %1509 = vmatpush1.msra.mxu0 0.0
        %1510 = vmatprep.subr.mxu0 0.0
        %1511 = vmatpush1.msra.mxu0 0.0
        %1512 = vmatprep.subr.mxu0 0.0
        %1513 = vmatpush1.msra.mxu0 0.0
        %1514 = vmatprep.subr.mxu0 0.0
        %1515 = vmatpush1.msra.mxu0 0.0
        %1516 = vmatprep.subr.mxu0 0.0
        %1517 = vmatpush1.msra.mxu0 0.0
        %1518 = vmatprep.subr.mxu0 0.0
        %1519 = vmatpush1.msra.mxu0 0.0
        %1520 = vmatprep.subr.mxu0 0.0
        %1521 = vmatpush1.msra.mxu0 0.0
        %1522 = vmatprep.subr.mxu0 0.0
        %1523 = vmatpush1.msra.mxu0 0.0
        %1524 = vmatprep.subr.mxu0 0.0
        %1525 = vmatpush1.msra.mxu0 0.0
        %1526 = vmatprep.subr.mxu0 0.0
        %1527 = vmatpush1.msra.mxu0 0.0
        %1528 = vmatprep.subr.mxu0 0.0
        %1529 = vmatpush1.msra.mxu0 0.0
        %1530 = vmatprep.subr.mxu0 0.0
        %1531 = vmatpush1.msra.mxu0 0.0
        %1532 = vmatprep.subr.mxu0 0.0
        %1533 = vmatpush1.msra.mxu0 0.0
        %1534 = vmatprep.subr.mxu0 0.0
        %1535 = vmatpush1.msra.mxu0 0.0
        %1536 = vmatprep.subr.mxu0 0.0
        %1537 = vmatpush1.msra.mxu0 0.0
        %1538 = vmatprep.subr.mxu0 0.0
        %1539 = vmatpush1.msra.mxu0 0.0
        %1540 = vmatprep.subr.mxu0 0.0
        %1541 = vmatpush1.msra.mxu0 0.0
        %1542 = vmatprep.subr.mxu0 0.0
        %1543 = vmatpush1.msra.mxu0 0.0
        %1544 = vmatprep.subr.mxu0 0.0
        %1545 = vmatpush1.msra.mxu0 0.0
        %1546 = vmatprep.subr.mxu0 0.0
        %1547 = vmatpush1.msra.mxu0 0.0
        %1548 = vmatprep.subr.mxu0 0.0
        %1549 = vmatpush1.msra.mxu0 0.0
        %1550 = vmatprep.subr.mxu0 0.0
        %1551 = vmatpush1.msra.mxu0 0.0
        %1552 = vmatprep.mubr.f32.mxu0 0.0
        %1553 = vmatmul.mubr.f32.gmra.mrb[0].mxu0 %v1465
        %v1554 = vpop.f32.mrb[0].mxu0
        %v1555 = vadd.f32 %v260, %v1554
        %v1556 = vpop.f32.mrb[0].mxu0
        %1557 = vmatprep.mubr.f32.mxu0 0.0
        %1558 = vmatmul.mubr.f32.gmra.mrb[0].mxu0 %v1468
        %v1559 = vpop.f32.mrb[0].mxu0
        %v1560 = vadd.f32 %v260, %v1559
        %v1561 = vpop.f32.mrb[0].mxu0
        %1562 = vmatprep.mubr.f32.mxu0 0.0
        %1563 = vmatmul.mubr.f32.gmra.mrb[0].mxu0 %v1471
        %v1564 = vpop.f32.mrb[0].mxu0
        %v1565 = vadd.f32 %v260, %v1564
        %v1566 = vpop.f32.mrb[0].mxu0
        %1567 = vmatprep.mubr.f32.mxu0 0.0
        %1568 = vmatmul.mubr.f32.gmra.mrb[0].mxu0 %v1474
        %v1569 = vpop.f32.mrb[0].mxu0
        %v1570 = vadd.f32 %v260, %v1569
        %v1571 = vpop.f32.mrb[0].mxu0
        %1572 = vmatprep.mubr.f32.mxu0 0.0
        %1573 = vmatmul.mubr.f32.gmra.mrb[0].mxu0 %v1477
        %v1574 = vpop.f32.mrb[0].mxu0
        %v1575 = vadd.f32 %v260, %v1574
        %v1576 = vpop.f32.mrb[0].mxu0
        %1577 = vmatprep.mubr.f32.mxu0 0.0
        %1578 = vmatmul.mubr.f32.gmra.mrb[0].mxu0 %v1480
        %v1579 = vpop.f32.mrb[0].mxu0
        %v1580 = vadd.f32 %v260, %v1579
        %v1581 = vpop.f32.mrb[0].mxu0
        %1582 = vmatprep.mubr.f32.mxu0 0.0
        %1583 = vmatmul.mubr.f32.gmra.mrb[0].mxu0 %v1483
        %v1584 = vpop.f32.mrb[0].mxu0
        %v1585 = vadd.f32 %v260, %v1584
        %v1586 = vpop.f32.mrb[0].mxu0
        %1587 = vmatprep.mubr.f32.mxu0 0.0
        %1588 = vmatmul.mubr.f32.gmra.mrb[0].mxu0 %v1486
        %v1589 = vpop.f32.mrb[0].mxu0
        %v1590 = vadd.f32 %v260, %v1589
        %v1591 = vpop.f32.mrb[0].mxu0
        %1592 = vdwg.mxu0
        %v1593 = vsel %vm392, %v1555, 0.0
        %1594 = vadd.xlane.f32.xlu0 %v1593
        %v1595 = vpop.xlane.xlu0 %1594
        %v1596 = vsel %vm392, %v1560, 0.0
        %1597 = vadd.xlane.f32.xlu0 %v1596
        %v1598 = vpop.xlane.xlu0 %1597
        %v1599 = vsel %vm392, %v1565, 0.0
        %1600 = vadd.xlane.f32.xlu0 %v1599
        %v1601 = vpop.xlane.xlu0 %1600
        %v1602 = vsel %vm392, %v1570, 0.0
        %1603 = vadd.xlane.f32.xlu0 %v1602
        %v1604 = vpop.xlane.xlu0 %1603
        %v1605 = vsel %vm392, %v1575, 0.0
        %1606 = vadd.xlane.f32.xlu0 %v1605
        %v1607 = vpop.xlane.xlu0 %1606
        %v1608 = vsel %vm392, %v1580, 0.0
        %1609 = vadd.xlane.f32.xlu0 %v1608
        %v1610 = vpop.xlane.xlu0 %1609
        %v1611 = vsel %vm392, %v1585, 0.0
        %1612 = vadd.xlane.f32.xlu0 %v1611
        %v1613 = vpop.xlane.xlu0 %1612
        %v1614 = vsel %vm392, %v1590, 0.0
        %1615 = vadd.xlane.f32.xlu0 %v1614
        %v1616 = vpop.xlane.xlu0 %1615
        %v1617 = vadd.f32 %v1595, %v1598
        %v1618 = vadd.f32 %v1617, %v1601
        %v1619 = vadd.f32 %v1618, %v1604
        %v1620 = vadd.f32 %v1619, %v1607
        %v1621 = vadd.f32 %v1620, %v1610
        %v1622 = vadd.f32 %v1621, %v1613
        %v1623 = vadd.f32 %v1622, %v1616
        %v1624 = vrot.slane %v1623, 4
        %v1625 = vadd.f32 %v1623, %v1624
        %v1626 = vrot.slane %v1625, 2
        %v1627 = vadd.f32 %v1625, %v1626
        %v1628 = vrot.slane %v1627, 1
        %v1629 = vadd.f32 %v1627, %v1628
        %v1630 = vmul.f32 %v1629, 0.001953125
        %v1631 = vsub.f32 %v1555, %v1630
        %v1632 = vsub.f32 %v1560, %v1630
        %v1633 = vsub.f32 %v1565, %v1630
        %v1634 = vsub.f32 %v1570, %v1630
        %v1635 = vsub.f32 %v1575, %v1630
        %v1636 = vsub.f32 %v1580, %v1630
        %v1637 = vsub.f32 %v1585, %v1630
        %v1638 = vsub.f32 %v1590, %v1630
        %v1639 = vmul.f32 %v1631, %v1631
        %v1640 = vmul.f32 %v1632, %v1632
        %v1641 = vmul.f32 %v1633, %v1633
        %v1642 = vmul.f32 %v1634, %v1634
        %v1643 = vmul.f32 %v1635, %v1635
        %v1644 = vmul.f32 %v1636, %v1636
        %v1645 = vmul.f32 %v1637, %v1637
        %v1646 = vmul.f32 %v1638, %v1638
        %v1647 = vsel %vm392, %v1639, 0.0
        %1648 = vadd.xlane.f32.xlu0 %v1647
        %v1649 = vpop.xlane.xlu0 %1648
        %v1650 = vsel %vm392, %v1640, 0.0
        %1651 = vadd.xlane.f32.xlu0 %v1650
        %v1652 = vpop.xlane.xlu0 %1651
        %v1653 = vsel %vm392, %v1641, 0.0
        %1654 = vadd.xlane.f32.xlu0 %v1653
        %v1655 = vpop.xlane.xlu0 %1654
        %v1656 = vsel %vm392, %v1642, 0.0
        %1657 = vadd.xlane.f32.xlu0 %v1656
        %v1658 = vpop.xlane.xlu0 %1657
        %v1659 = vsel %vm392, %v1643, 0.0
        %1660 = vadd.xlane.f32.xlu0 %v1659
        %v1661 = vpop.xlane.xlu0 %1660
        %v1662 = vsel %vm392, %v1644, 0.0
        %1663 = vadd.xlane.f32.xlu0 %v1662
        %v1664 = vpop.xlane.xlu0 %1663
        %v1665 = vsel %vm392, %v1645, 0.0
        %1666 = vadd.xlane.f32.xlu0 %v1665
        %v1667 = vpop.xlane.xlu0 %1666
        %v1668 = vsel %vm392, %v1646, 0.0
        %1669 = vadd.xlane.f32.xlu0 %v1668
        %v1670 = vpop.xlane.xlu0 %1669
        %v1671 = vadd.f32 %v1649, %v1652
        %v1672 = vadd.f32 %v1671, %v1655
        %v1673 = vadd.f32 %v1672, %v1658
        %v1674 = vadd.f32 %v1673, %v1661
        %v1675 = vadd.f32 %v1674, %v1664
        %v1676 = vadd.f32 %v1675, %v1667
        %v1677 = vadd.f32 %v1676, %v1670
        %v1678 = vrot.slane %v1677, 4
        %v1679 = vadd.f32 %v1677, %v1678
        %v1680 = vrot.slane %v1679, 2
        %v1681 = vadd.f32 %v1679, %v1680
        %v1682 = vrot.slane %v1681, 1
        %v1683 = vadd.f32 %v1681, %v1682
        %v1684 = vmul.f32 %v1683, 0.001953125
        %v1685 = vadd.f32 %v1684, 1e-05
        %v1686 = vrsqrt.pop %v1685
        %v1687 = vmul.f32 %v1631, %v1686
        %v1688 = vmul.f32 %v1632, %v1686
        %v1689 = vmul.f32 %v1633, %v1686
        %v1690 = vmul.f32 %v1634, %v1686
        %v1691 = vmul.f32 %v1635, %v1686
        %v1692 = vmul.f32 %v1636, %v1686
        %v1693 = vmul.f32 %v1637, %v1686
        %v1694 = vmul.f32 %v1638, %v1686
        %s1695 = scalar_lea.vmem %s216, 384 [#allocation2]
        %v1696 = vld [vmem:[%s1695] sm:$0xff]
        %v1697 = vld [vmem:[%s1695 + $0x8] sm:$0xff]
        %v1698 = vld [vmem:[%s1695 + $0x10] sm:$0xff]
        %v1699 = vld [vmem:[%s1695 + $0x18] sm:$0xff]
        %v1700 = vld [vmem:[%s1695 + $0x20] sm:$0xff]
        %v1701 = vld [vmem:[%s1695 + $0x28] sm:$0xff]
        %v1702 = vld [vmem:[%s1695 + $0x30] sm:$0xff]
        %v1703 = vld [vmem:[%s1695 + $0x38] sm:$0xff]
        %v1705 = vsel %vm262, %v1696, 0
        %v1708 = vsel %vm262, %v1697, 0
        %v1711 = vsel %vm262, %v1698, 0
        %v1714 = vsel %vm262, %v1699, 0
        %v1717 = vsel %vm262, %v1700, 0
        %v1720 = vsel %vm262, %v1701, 0
        %v1723 = vsel %vm262, %v1702, 0
        %v1726 = vsel %vm262, %v1703, 0
        %1728 = vmatprep.subr.mxu0 0.0
        %1729 = vmatpush1.msra.mxu0 %v243
        %1730 = vmatprep.subr.mxu0 0.0
        %1731 = vmatpush1.msra.mxu0 %v244
        %1732 = vmatprep.subr.mxu0 0.0
        %1733 = vmatpush1.msra.mxu0 0.0
        %1734 = vmatprep.subr.mxu0 0.0
        %1735 = vmatpush1.msra.mxu0 0.0
        %1736 = vmatprep.subr.mxu0 0.0
        %1737 = vmatpush1.msra.mxu0 0.0
        %1738 = vmatprep.subr.mxu0 0.0
        %1739 = vmatpush1.msra.mxu0 0.0
        %1740 = vmatprep.subr.mxu0 0.0
        %1741 = vmatpush1.msra.mxu0 0.0
        %1742 = vmatprep.subr.mxu0 0.0
        %1743 = vmatpush1.msra.mxu0 0.0
        %1744 = vmatprep.subr.mxu0 0.0
        %1745 = vmatpush1.msra.mxu0 0.0
        %1746 = vmatprep.subr.mxu0 0.0
        %1747 = vmatpush1.msra.mxu0 0.0
        %1748 = vmatprep.subr.mxu0 0.0
        %1749 = vmatpush1.msra.mxu0 0.0
        %1750 = vmatprep.subr.mxu0 0.0
        %1751 = vmatpush1.msra.mxu0 0.0
        %1752 = vmatprep.subr.mxu0 0.0
        %1753 = vmatpush1.msra.mxu0 0.0
        %1754 = vmatprep.subr.mxu0 0.0
        %1755 = vmatpush1.msra.mxu0 0.0
        %1756 = vmatprep.subr.mxu0 0.0
        %1757 = vmatpush1.msra.mxu0 0.0
        %1758 = vmatprep.subr.mxu0 0.0
        %1759 = vmatpush1.msra.mxu0 0.0
        %1760 = vmatprep.subr.mxu0 0.0
        %1761 = vmatpush1.msra.mxu0 0.0
        %1762 = vmatprep.subr.mxu0 0.0
        %1763 = vmatpush1.msra.mxu0 0.0
        %1764 = vmatprep.subr.mxu0 0.0
        %1765 = vmatpush1.msra.mxu0 0.0
        %1766 = vmatprep.subr.mxu0 0.0
        %1767 = vmatpush1.msra.mxu0 0.0
        %1768 = vmatprep.subr.mxu0 0.0
        %1769 = vmatpush1.msra.mxu0 0.0
        %1770 = vmatprep.subr.mxu0 0.0
        %1771 = vmatpush1.msra.mxu0 0.0
        %1772 = vmatprep.subr.mxu0 0.0
        %1773 = vmatpush1.msra.mxu0 0.0
        %1774 = vmatprep.subr.mxu0 0.0
        %1775 = vmatpush1.msra.mxu0 0.0
        %1776 = vmatprep.subr.mxu0 0.0
        %1777 = vmatpush1.msra.mxu0 0.0
        %1778 = vmatprep.subr.mxu0 0.0
        %1779 = vmatpush1.msra.mxu0 0.0
        %1780 = vmatprep.subr.mxu0 0.0
        %1781 = vmatpush1.msra.mxu0 0.0
        %1782 = vmatprep.subr.mxu0 0.0
        %1783 = vmatpush1.msra.mxu0 0.0
        %1784 = vmatprep.subr.mxu0 0.0
        %1785 = vmatpush1.msra.mxu0 0.0
        %1786 = vmatprep.subr.mxu0 0.0
        %1787 = vmatpush1.msra.mxu0 0.0
        %1788 = vmatprep.subr.mxu0 0.0
        %1789 = vmatpush1.msra.mxu0 0.0
        %1790 = vmatprep.subr.mxu0 0.0
        %1791 = vmatpush1.msra.mxu0 0.0
        %1792 = vmatprep.mubr.f32.mxu0 0.0
        %1793 = vmatmul.mubr.f32.gmra.mrb[0].mxu0 %v1705
        %v1794 = vpop.f32.mrb[0].mxu0
        %v1795 = vadd.f32 %v260, %v1794
        %v1796 = vpop.f32.mrb[0].mxu0
        %1797 = vmatprep.mubr.f32.mxu0 0.0
        %1798 = vmatmul.mubr.f32.gmra.mrb[0].mxu0 %v1708
        %v1799 = vpop.f32.mrb[0].mxu0
        %v1800 = vadd.f32 %v260, %v1799
        %v1801 = vpop.f32.mrb[0].mxu0
        %1802 = vmatprep.mubr.f32.mxu0 0.0
        %1803 = vmatmul.mubr.f32.gmra.mrb[0].mxu0 %v1711
        %v1804 = vpop.f32.mrb[0].mxu0
        %v1805 = vadd.f32 %v260, %v1804
        %v1806 = vpop.f32.mrb[0].mxu0
        %1807 = vmatprep.mubr.f32.mxu0 0.0
        %1808 = vmatmul.mubr.f32.gmra.mrb[0].mxu0 %v1714
        %v1809 = vpop.f32.mrb[0].mxu0
        %v1810 = vadd.f32 %v260, %v1809
        %v1811 = vpop.f32.mrb[0].mxu0
        %1812 = vmatprep.mubr.f32.mxu0 0.0
        %1813 = vmatmul.mubr.f32.gmra.mrb[0].mxu0 %v1717
        %v1814 = vpop.f32.mrb[0].mxu0
        %v1815 = vadd.f32 %v260, %v1814
        %v1816 = vpop.f32.mrb[0].mxu0
        %1817 = vmatprep.mubr.f32.mxu0 0.0
        %1818 = vmatmul.mubr.f32.gmra.mrb[0].mxu0 %v1720
        %v1819 = vpop.f32.mrb[0].mxu0
        %v1820 = vadd.f32 %v260, %v1819
        %v1821 = vpop.f32.mrb[0].mxu0
        %1822 = vmatprep.mubr.f32.mxu0 0.0
        %1823 = vmatmul.mubr.f32.gmra.mrb[0].mxu0 %v1723
        %v1824 = vpop.f32.mrb[0].mxu0
        %v1825 = vadd.f32 %v260, %v1824
        %v1826 = vpop.f32.mrb[0].mxu0
        %1827 = vmatprep.mubr.f32.mxu0 0.0
        %1828 = vmatmul.mubr.f32.gmra.mrb[0].mxu0 %v1726
        %v1829 = vpop.f32.mrb[0].mxu0
        %v1830 = vadd.f32 %v260, %v1829
        %v1831 = vpop.f32.mrb[0].mxu0
        %1832 = vdwg.mxu0
        %v1833 = vsel %vm392, %v1795, 0.0
        %1834 = vadd.xlane.f32.xlu0 %v1833
        %v1835 = vpop.xlane.xlu0 %1834
        %v1836 = vsel %vm392, %v1800, 0.0
        %1837 = vadd.xlane.f32.xlu0 %v1836
        %v1838 = vpop.xlane.xlu0 %1837
        %v1839 = vsel %vm392, %v1805, 0.0
        %1840 = vadd.xlane.f32.xlu0 %v1839
        %v1841 = vpop.xlane.xlu0 %1840
        %v1842 = vsel %vm392, %v1810, 0.0
        %1843 = vadd.xlane.f32.xlu0 %v1842
        %v1844 = vpop.xlane.xlu0 %1843
        %v1845 = vsel %vm392, %v1815, 0.0
        %1846 = vadd.xlane.f32.xlu0 %v1845
        %v1847 = vpop.xlane.xlu0 %1846
        %v1848 = vsel %vm392, %v1820, 0.0
        %1849 = vadd.xlane.f32.xlu0 %v1848
        %v1850 = vpop.xlane.xlu0 %1849
        %v1851 = vsel %vm392, %v1825, 0.0
        %1852 = vadd.xlane.f32.xlu0 %v1851
        %v1853 = vpop.xlane.xlu0 %1852
        %v1854 = vsel %vm392, %v1830, 0.0
        %1855 = vadd.xlane.f32.xlu0 %v1854
        %v1856 = vpop.xlane.xlu0 %1855
        %v1857 = vadd.f32 %v1835, %v1838
        %v1858 = vadd.f32 %v1857, %v1841
        %v1859 = vadd.f32 %v1858, %v1844
        %v1860 = vadd.f32 %v1859, %v1847
        %v1861 = vadd.f32 %v1860, %v1850
        %v1862 = vadd.f32 %v1861, %v1853
        %v1863 = vadd.f32 %v1862, %v1856
        %v1864 = vrot.slane %v1863, 4
        %v1865 = vadd.f32 %v1863, %v1864
        %v1866 = vrot.slane %v1865, 2
        %v1867 = vadd.f32 %v1865, %v1866
        %v1868 = vrot.slane %v1867, 1
        %v1869 = vadd.f32 %v1867, %v1868
        %v1870 = vmul.f32 %v1869, 0.001953125
        %v1871 = vsub.f32 %v1795, %v1870
        %v1872 = vsub.f32 %v1800, %v1870
        %v1873 = vsub.f32 %v1805, %v1870
        %v1874 = vsub.f32 %v1810, %v1870
        %v1875 = vsub.f32 %v1815, %v1870
        %v1876 = vsub.f32 %v1820, %v1870
        %v1877 = vsub.f32 %v1825, %v1870
        %v1878 = vsub.f32 %v1830, %v1870
        %v1879 = vmul.f32 %v1871, %v1871
        %v1880 = vmul.f32 %v1872, %v1872
        %v1881 = vmul.f32 %v1873, %v1873
        %v1882 = vmul.f32 %v1874, %v1874
        %v1883 = vmul.f32 %v1875, %v1875
        %v1884 = vmul.f32 %v1876, %v1876
        %v1885 = vmul.f32 %v1877, %v1877
        %v1886 = vmul.f32 %v1878, %v1878
        %v1887 = vsel %vm392, %v1879, 0.0
        %1888 = vadd.xlane.f32.xlu0 %v1887
        %v1889 = vpop.xlane.xlu0 %1888
        %v1890 = vsel %vm392, %v1880, 0.0
        %1891 = vadd.xlane.f32.xlu0 %v1890
        %v1892 = vpop.xlane.xlu0 %1891
        %v1893 = vsel %vm392, %v1881, 0.0
        %1894 = vadd.xlane.f32.xlu0 %v1893
        %v1895 = vpop.xlane.xlu0 %1894
        %v1896 = vsel %vm392, %v1882, 0.0
        %1897 = vadd.xlane.f32.xlu0 %v1896
        %v1898 = vpop.xlane.xlu0 %1897
        %v1899 = vsel %vm392, %v1883, 0.0
        %1900 = vadd.xlane.f32.xlu0 %v1899
        %v1901 = vpop.xlane.xlu0 %1900
        %v1902 = vsel %vm392, %v1884, 0.0
        %1903 = vadd.xlane.f32.xlu0 %v1902
        %v1904 = vpop.xlane.xlu0 %1903
        %v1905 = vsel %vm392, %v1885, 0.0
        %1906 = vadd.xlane.f32.xlu0 %v1905
        %v1907 = vpop.xlane.xlu0 %1906
        %v1908 = vsel %vm392, %v1886, 0.0
        %1909 = vadd.xlane.f32.xlu0 %v1908
        %v1910 = vpop.xlane.xlu0 %1909
        %v1911 = vadd.f32 %v1889, %v1892
        %v1912 = vadd.f32 %v1911, %v1895
        %v1913 = vadd.f32 %v1912, %v1898
        %v1914 = vadd.f32 %v1913, %v1901
        %v1915 = vadd.f32 %v1914, %v1904
        %v1916 = vadd.f32 %v1915, %v1907
        %v1917 = vadd.f32 %v1916, %v1910
        %v1918 = vrot.slane %v1917, 4
        %v1919 = vadd.f32 %v1917, %v1918
        %v1920 = vrot.slane %v1919, 2
        %v1921 = vadd.f32 %v1919, %v1920
        %v1922 = vrot.slane %v1921, 1
        %v1923 = vadd.f32 %v1921, %v1922
        %v1924 = vmul.f32 %v1923, 0.001953125
        %v1925 = vadd.f32 %v1924, 1e-05
        %v1926 = vrsqrt.pop %v1925
        %v1927 = vmul.f32 %v1871, %v1926
        %v1928 = vmul.f32 %v1872, %v1926
        %v1929 = vmul.f32 %v1873, %v1926
        %v1930 = vmul.f32 %v1874, %v1926
        %v1931 = vmul.f32 %v1875, %v1926
        %v1932 = vmul.f32 %v1876, %v1926
        %v1933 = vmul.f32 %v1877, %v1926
        %v1934 = vmul.f32 %v1878, %v1926
        %s1935 = scalar_lea.vmem %s216, 448 [#allocation2]
        %v1936 = vld [vmem:[%s1935] sm:$0xff]
        %v1937 = vld [vmem:[%s1935 + $0x8] sm:$0xff]
        %v1938 = vld [vmem:[%s1935 + $0x10] sm:$0xff]
        %v1939 = vld [vmem:[%s1935 + $0x18] sm:$0xff]
        %v1940 = vld [vmem:[%s1935 + $0x20] sm:$0xff]
        %v1941 = vld [vmem:[%s1935 + $0x28] sm:$0xff]
        %v1942 = vld [vmem:[%s1935 + $0x30] sm:$0xff]
        %v1943 = vld [vmem:[%s1935 + $0x38] sm:$0xff]
        %v1945 = vsel %vm262, %v1936, 0
        %v1948 = vsel %vm262, %v1937, 0
        %v1951 = vsel %vm262, %v1938, 0
        %v1954 = vsel %vm262, %v1939, 0
        %v1957 = vsel %vm262, %v1940, 0
        %v1960 = vsel %vm262, %v1941, 0
        %v1963 = vsel %vm262, %v1942, 0
        %v1966 = vsel %vm262, %v1943, 0
        %1968 = vmatprep.subr.mxu0 0.0
        %1969 = vmatpush1.msra.mxu0 %v243
        %1970 = vmatprep.subr.mxu0 0.0
        %1971 = vmatpush1.msra.mxu0 %v244
        %1972 = vmatprep.subr.mxu0 0.0
        %1973 = vmatpush1.msra.mxu0 0.0
        %1974 = vmatprep.subr.mxu0 0.0
        %1975 = vmatpush1.msra.mxu0 0.0
        %1976 = vmatprep.subr.mxu0 0.0
        %1977 = vmatpush1.msra.mxu0 0.0
        %1978 = vmatprep.subr.mxu0 0.0
        %1979 = vmatpush1.msra.mxu0 0.0
        %1980 = vmatprep.subr.mxu0 0.0
        %1981 = vmatpush1.msra.mxu0 0.0
        %1982 = vmatprep.subr.mxu0 0.0
        %1983 = vmatpush1.msra.mxu0 0.0
        %1984 = vmatprep.subr.mxu0 0.0
        %1985 = vmatpush1.msra.mxu0 0.0
        %1986 = vmatprep.subr.mxu0 0.0
        %1987 = vmatpush1.msra.mxu0 0.0
        %1988 = vmatprep.subr.mxu0 0.0
        %1989 = vmatpush1.msra.mxu0 0.0
        %1990 = vmatprep.subr.mxu0 0.0
        %1991 = vmatpush1.msra.mxu0 0.0
        %1992 = vmatprep.subr.mxu0 0.0
        %1993 = vmatpush1.msra.mxu0 0.0
        %1994 = vmatprep.subr.mxu0 0.0
        %1995 = vmatpush1.msra.mxu0 0.0
        %1996 = vmatprep.subr.mxu0 0.0
        %1997 = vmatpush1.msra.mxu0 0.0
        %1998 = vmatprep.subr.mxu0 0.0
        %1999 = vmatpush1.msra.mxu0 0.0
        %2000 = vmatprep.subr.mxu0 0.0
        %2001 = vmatpush1.msra.mxu0 0.0
        %2002 = vmatprep.subr.mxu0 0.0
        %2003 = vmatpush1.msra.mxu0 0.0
        %2004 = vmatprep.subr.mxu0 0.0
        %2005 = vmatpush1.msra.mxu0 0.0
        %2006 = vmatprep.subr.mxu0 0.0
        %2007 = vmatpush1.msra.mxu0 0.0
        %2008 = vmatprep.subr.mxu0 0.0
        %2009 = vmatpush1.msra.mxu0 0.0
        %2010 = vmatprep.subr.mxu0 0.0
        %2011 = vmatpush1.msra.mxu0 0.0
        %2012 = vmatprep.subr.mxu0 0.0
        %2013 = vmatpush1.msra.mxu0 0.0
        %2014 = vmatprep.subr.mxu0 0.0
        %2015 = vmatpush1.msra.mxu0 0.0
        %2016 = vmatprep.subr.mxu0 0.0
        %2017 = vmatpush1.msra.mxu0 0.0
        %2018 = vmatprep.subr.mxu0 0.0
        %2019 = vmatpush1.msra.mxu0 0.0
        %2020 = vmatprep.subr.mxu0 0.0
        %2021 = vmatpush1.msra.mxu0 0.0
        %2022 = vmatprep.subr.mxu0 0.0
        %2023 = vmatpush1.msra.mxu0 0.0
        %2024 = vmatprep.subr.mxu0 0.0
        %2025 = vmatpush1.msra.mxu0 0.0
        %2026 = vmatprep.subr.mxu0 0.0
        %2027 = vmatpush1.msra.mxu0 0.0
        %2028 = vmatprep.subr.mxu0 0.0
        %2029 = vmatpush1.msra.mxu0 0.0
        %2030 = vmatprep.subr.mxu0 0.0
        %2031 = vmatpush1.msra.mxu0 0.0
        %2032 = vmatprep.mubr.f32.mxu0 0.0
        %2033 = vmatmul.mubr.f32.gmra.mrb[0].mxu0 %v1945
        %v2034 = vpop.f32.mrb[0].mxu0
        %v2035 = vadd.f32 %v260, %v2034
        %v2036 = vpop.f32.mrb[0].mxu0
        %2037 = vmatprep.mubr.f32.mxu0 0.0
        %2038 = vmatmul.mubr.f32.gmra.mrb[0].mxu0 %v1948
        %v2039 = vpop.f32.mrb[0].mxu0
        %v2040 = vadd.f32 %v260, %v2039
        %v2041 = vpop.f32.mrb[0].mxu0
        %2042 = vmatprep.mubr.f32.mxu0 0.0
        %2043 = vmatmul.mubr.f32.gmra.mrb[0].mxu0 %v1951
        %v2044 = vpop.f32.mrb[0].mxu0
        %v2045 = vadd.f32 %v260, %v2044
        %v2046 = vpop.f32.mrb[0].mxu0
        %2047 = vmatprep.mubr.f32.mxu0 0.0
        %2048 = vmatmul.mubr.f32.gmra.mrb[0].mxu0 %v1954
        %v2049 = vpop.f32.mrb[0].mxu0
        %v2050 = vadd.f32 %v260, %v2049
        %v2051 = vpop.f32.mrb[0].mxu0
        %2052 = vmatprep.mubr.f32.mxu0 0.0
        %2053 = vmatmul.mubr.f32.gmra.mrb[0].mxu0 %v1957
        %v2054 = vpop.f32.mrb[0].mxu0
        %v2055 = vadd.f32 %v260, %v2054
        %v2056 = vpop.f32.mrb[0].mxu0
        %2057 = vmatprep.mubr.f32.mxu0 0.0
        %2058 = vmatmul.mubr.f32.gmra.mrb[0].mxu0 %v1960
        %v2059 = vpop.f32.mrb[0].mxu0
        %v2060 = vadd.f32 %v260, %v2059
        %v2061 = vpop.f32.mrb[0].mxu0
        %2062 = vmatprep.mubr.f32.mxu0 0.0
        %2063 = vmatmul.mubr.f32.gmra.mrb[0].mxu0 %v1963
        %v2064 = vpop.f32.mrb[0].mxu0
        %v2065 = vadd.f32 %v260, %v2064
        %v2066 = vpop.f32.mrb[0].mxu0
        %2067 = vmatprep.mubr.f32.mxu0 0.0
        %2068 = vmatmul.mubr.f32.gmra.mrb[0].mxu0 %v1966
        %v2069 = vpop.f32.mrb[0].mxu0
        %v2070 = vadd.f32 %v260, %v2069
        %v2071 = vpop.f32.mrb[0].mxu0
        %2072 = vdwg.mxu0
        %v2073 = vsel %vm392, %v2035, 0.0
        %2074 = vadd.xlane.f32.xlu0 %v2073
        %v2075 = vpop.xlane.xlu0 %2074
        %v2076 = vsel %vm392, %v2040, 0.0
        %2077 = vadd.xlane.f32.xlu0 %v2076
        %v2078 = vpop.xlane.xlu0 %2077
        %v2079 = vsel %vm392, %v2045, 0.0
        %2080 = vadd.xlane.f32.xlu0 %v2079
        %v2081 = vpop.xlane.xlu0 %2080
        %v2082 = vsel %vm392, %v2050, 0.0
        %2083 = vadd.xlane.f32.xlu0 %v2082
        %v2084 = vpop.xlane.xlu0 %2083
        %v2085 = vsel %vm392, %v2055, 0.0
        %2086 = vadd.xlane.f32.xlu0 %v2085
        %v2087 = vpop.xlane.xlu0 %2086
        %v2088 = vsel %vm392, %v2060, 0.0
        %2089 = vadd.xlane.f32.xlu0 %v2088
        %v2090 = vpop.xlane.xlu0 %2089
        %v2091 = vsel %vm392, %v2065, 0.0
        %2092 = vadd.xlane.f32.xlu0 %v2091
        %v2093 = vpop.xlane.xlu0 %2092
        %v2094 = vsel %vm392, %v2070, 0.0
        %2095 = vadd.xlane.f32.xlu0 %v2094
        %v2096 = vpop.xlane.xlu0 %2095
        %v2097 = vadd.f32 %v2075, %v2078
        %v2098 = vadd.f32 %v2097, %v2081
        %v2099 = vadd.f32 %v2098, %v2084
        %v2100 = vadd.f32 %v2099, %v2087
        %v2101 = vadd.f32 %v2100, %v2090
        %v2102 = vadd.f32 %v2101, %v2093
        %v2103 = vadd.f32 %v2102, %v2096
        %v2104 = vrot.slane %v2103, 4
        %v2105 = vadd.f32 %v2103, %v2104
        %v2106 = vrot.slane %v2105, 2
        %v2107 = vadd.f32 %v2105, %v2106
        %v2108 = vrot.slane %v2107, 1
        %v2109 = vadd.f32 %v2107, %v2108
        %v2110 = vmul.f32 %v2109, 0.001953125
        %v2111 = vsub.f32 %v2035, %v2110
        %v2112 = vsub.f32 %v2040, %v2110
        %v2113 = vsub.f32 %v2045, %v2110
        %v2114 = vsub.f32 %v2050, %v2110
        %v2115 = vsub.f32 %v2055, %v2110
        %v2116 = vsub.f32 %v2060, %v2110
        %v2117 = vsub.f32 %v2065, %v2110
        %v2118 = vsub.f32 %v2070, %v2110
        %v2119 = vmul.f32 %v2111, %v2111
        %v2120 = vmul.f32 %v2112, %v2112
        %v2121 = vmul.f32 %v2113, %v2113
        %v2122 = vmul.f32 %v2114, %v2114
        %v2123 = vmul.f32 %v2115, %v2115
        %v2124 = vmul.f32 %v2116, %v2116
        %v2125 = vmul.f32 %v2117, %v2117
        %v2126 = vmul.f32 %v2118, %v2118
        %v2127 = vsel %vm392, %v2119, 0.0
        %2128 = vadd.xlane.f32.xlu0 %v2127
        %v2129 = vpop.xlane.xlu0 %2128
        %v2130 = vsel %vm392, %v2120, 0.0
        %2131 = vadd.xlane.f32.xlu0 %v2130
        %v2132 = vpop.xlane.xlu0 %2131
        %v2133 = vsel %vm392, %v2121, 0.0
        %2134 = vadd.xlane.f32.xlu0 %v2133
        %v2135 = vpop.xlane.xlu0 %2134
        %v2136 = vsel %vm392, %v2122, 0.0
        %2137 = vadd.xlane.f32.xlu0 %v2136
        %v2138 = vpop.xlane.xlu0 %2137
        %v2139 = vsel %vm392, %v2123, 0.0
        %2140 = vadd.xlane.f32.xlu0 %v2139
        %v2141 = vpop.xlane.xlu0 %2140
        %v2142 = vsel %vm392, %v2124, 0.0
        %2143 = vadd.xlane.f32.xlu0 %v2142
        %v2144 = vpop.xlane.xlu0 %2143
        %v2145 = vsel %vm392, %v2125, 0.0
        %2146 = vadd.xlane.f32.xlu0 %v2145
        %v2147 = vpop.xlane.xlu0 %2146
        %v2148 = vsel %vm392, %v2126, 0.0
        %2149 = vadd.xlane.f32.xlu0 %v2148
        %v2150 = vpop.xlane.xlu0 %2149
        %v2151 = vadd.f32 %v2129, %v2132
        %v2152 = vadd.f32 %v2151, %v2135
        %v2153 = vadd.f32 %v2152, %v2138
        %v2154 = vadd.f32 %v2153, %v2141
        %v2155 = vadd.f32 %v2154, %v2144
        %v2156 = vadd.f32 %v2155, %v2147
        %v2157 = vadd.f32 %v2156, %v2150
        %v2158 = vrot.slane %v2157, 4
        %v2159 = vadd.f32 %v2157, %v2158
        %v2160 = vrot.slane %v2159, 2
        %v2161 = vadd.f32 %v2159, %v2160
        %v2162 = vrot.slane %v2161, 1
        %v2163 = vadd.f32 %v2161, %v2162
        %v2164 = vmul.f32 %v2163, 0.001953125
        %v2165 = vadd.f32 %v2164, 1e-05
        %v2166 = vrsqrt.pop %v2165
        %v2167 = vmul.f32 %v2111, %v2166
        %v2168 = vmul.f32 %v2112, %v2166
        %v2169 = vmul.f32 %v2113, %v2166
        %v2170 = vmul.f32 %v2114, %v2166
        %v2171 = vmul.f32 %v2115, %v2166
        %v2172 = vmul.f32 %v2116, %v2166
        %v2173 = vmul.f32 %v2117, %v2166
        %v2174 = vmul.f32 %v2118, %v2166
        %v2175 = vsub.f32 %v727, %v487
        %v2176 = vsub.f32 %v728, %v488
        %v2177 = vsub.f32 %v729, %v489
        %v2178 = vsub.f32 %v730, %v490
        %v2179 = vsub.f32 %v731, %v491
        %v2180 = vsub.f32 %v732, %v492
        %v2181 = vsub.f32 %v733, %v493
        %v2182 = vsub.f32 %v734, %v494
        %v2183 = vsub.f32 %v967, %v727
        %v2184 = vsub.f32 %v968, %v728
        %v2185 = vsub.f32 %v969, %v729
        %v2186 = vsub.f32 %v970, %v730
        %v2187 = vsub.f32 %v971, %v731
        %v2188 = vsub.f32 %v972, %v732
        %v2189 = vsub.f32 %v973, %v733
        %v2190 = vsub.f32 %v974, %v734
        %v2191 = vsub.f32 %v1207, %v967
        %v2192 = vsub.f32 %v1208, %v968
        %v2193 = vsub.f32 %v1209, %v969
        %v2194 = vsub.f32 %v1210, %v970
        %v2195 = vsub.f32 %v1211, %v971
        %v2196 = vsub.f32 %v1212, %v972
        %v2197 = vsub.f32 %v1213, %v973
        %v2198 = vsub.f32 %v1214, %v974
        %v2199 = vsub.f32 %v1447, %v1207
        %v2200 = vsub.f32 %v1448, %v1208
        %v2201 = vsub.f32 %v1449, %v1209
        %v2202 = vsub.f32 %v1450, %v1210
        %v2203 = vsub.f32 %v1451, %v1211
        %v2204 = vsub.f32 %v1452, %v1212
        %v2205 = vsub.f32 %v1453, %v1213
        %v2206 = vsub.f32 %v1454, %v1214
        %v2207 = vsub.f32 %v1687, %v1447
        %v2208 = vsub.f32 %v1688, %v1448
        %v2209 = vsub.f32 %v1689, %v1449
        %v2210 = vsub.f32 %v1690, %v1450
        %v2211 = vsub.f32 %v1691, %v1451
        %v2212 = vsub.f32 %v1692, %v1452
        %v2213 = vsub.f32 %v1693, %v1453
        %v2214 = vsub.f32 %v1694, %v1454
        %v2215 = vsub.f32 %v1927, %v1687
        %v2216 = vsub.f32 %v1928, %v1688
        %v2217 = vsub.f32 %v1929, %v1689
        %v2218 = vsub.f32 %v1930, %v1690
        %v2219 = vsub.f32 %v1931, %v1691
        %v2220 = vsub.f32 %v1932, %v1692
        %v2221 = vsub.f32 %v1933, %v1693
        %v2222 = vsub.f32 %v1934, %v1694
        %v2223 = vsub.f32 %v2167, %v1927
        %v2224 = vsub.f32 %v2168, %v1928
        %v2225 = vsub.f32 %v2169, %v1929
        %v2226 = vsub.f32 %v2170, %v1930
        %v2227 = vsub.f32 %v2171, %v1931
        %v2228 = vsub.f32 %v2172, %v1932
        %v2229 = vsub.f32 %v2173, %v1933
        %v2230 = vsub.f32 %v2174, %v1934
        %v2231 = vsub.f32 0.0, %v2167
        %v2232 = vsub.f32 0.0, %v2168
        %v2233 = vsub.f32 0.0, %v2169
        %v2234 = vsub.f32 0.0, %v2170
        %v2235 = vsub.f32 0.0, %v2171
        %v2236 = vsub.f32 0.0, %v2172
        %v2237 = vsub.f32 0.0, %v2173
        %v2238 = vsub.f32 0.0, %v2174
        %v2239 = vmul.f32 %v2175, %v2175
        %v2240 = vmul.f32 %v2176, %v2176
        %v2241 = vmul.f32 %v2177, %v2177
        %v2242 = vmul.f32 %v2178, %v2178
        %v2243 = vmul.f32 %v2179, %v2179
        %v2244 = vmul.f32 %v2180, %v2180
        %v2245 = vmul.f32 %v2181, %v2181
        %v2246 = vmul.f32 %v2182, %v2182
        %v2247 = vsel %vm392, %v2239, 0.0
        %2248 = vadd.xlane.f32.xlu0 %v2247
        %v2249 = vpop.xlane.xlu0 %2248
        %v2250 = vsel %vm392, %v2240, 0.0
        %2251 = vadd.xlane.f32.xlu0 %v2250
        %v2252 = vpop.xlane.xlu0 %2251
        %v2253 = vsel %vm392, %v2241, 0.0
        %2254 = vadd.xlane.f32.xlu0 %v2253
        %v2255 = vpop.xlane.xlu0 %2254
        %v2256 = vsel %vm392, %v2242, 0.0
        %2257 = vadd.xlane.f32.xlu0 %v2256
        %v2258 = vpop.xlane.xlu0 %2257
        %v2259 = vsel %vm392, %v2243, 0.0
        %2260 = vadd.xlane.f32.xlu0 %v2259
        %v2261 = vpop.xlane.xlu0 %2260
        %v2262 = vsel %vm392, %v2244, 0.0
        %2263 = vadd.xlane.f32.xlu0 %v2262
        %v2264 = vpop.xlane.xlu0 %2263
        %v2265 = vsel %vm392, %v2245, 0.0
        %2266 = vadd.xlane.f32.xlu0 %v2265
        %v2267 = vpop.xlane.xlu0 %2266
        %v2268 = vsel %vm392, %v2246, 0.0
        %2269 = vadd.xlane.f32.xlu0 %v2268
        %v2270 = vpop.xlane.xlu0 %2269
        %v2271 = vadd.f32 %v2249, %v2252
        %v2272 = vadd.f32 %v2271, %v2255
        %v2273 = vadd.f32 %v2272, %v2258
        %v2274 = vadd.f32 %v2273, %v2261
        %v2275 = vadd.f32 %v2274, %v2264
        %v2276 = vadd.f32 %v2275, %v2267
        %v2277 = vadd.f32 %v2276, %v2270
        %v2278 = vrot.slane %v2277, 4
        %v2279 = vadd.f32 %v2277, %v2278
        %v2280 = vrot.slane %v2279, 2
        %v2281 = vadd.f32 %v2279, %v2280
        %v2282 = vrot.slane %v2281, 1
        %v2283 = vadd.f32 %v2281, %v2282
        %v2284 = vmul.f32 %v2283, 0.044194173
        %v2285 = vmul.f32 %v2175, %v2183
        %v2286 = vmul.f32 %v2176, %v2184
        %v2287 = vmul.f32 %v2177, %v2185
        %v2288 = vmul.f32 %v2178, %v2186
        %v2289 = vmul.f32 %v2179, %v2187
        %v2290 = vmul.f32 %v2180, %v2188
        %v2291 = vmul.f32 %v2181, %v2189
        %v2292 = vmul.f32 %v2182, %v2190
        %v2293 = vsel %vm392, %v2285, 0.0
        %2294 = vadd.xlane.f32.xlu0 %v2293
        %v2295 = vpop.xlane.xlu0 %2294
        %v2296 = vsel %vm392, %v2286, 0.0
        %2297 = vadd.xlane.f32.xlu0 %v2296
        %v2298 = vpop.xlane.xlu0 %2297
        %v2299 = vsel %vm392, %v2287, 0.0
        %2300 = vadd.xlane.f32.xlu0 %v2299
        %v2301 = vpop.xlane.xlu0 %2300
        %v2302 = vsel %vm392, %v2288, 0.0
        %2303 = vadd.xlane.f32.xlu0 %v2302
        %v2304 = vpop.xlane.xlu0 %2303
        %v2305 = vsel %vm392, %v2289, 0.0
        %2306 = vadd.xlane.f32.xlu0 %v2305
        %v2307 = vpop.xlane.xlu0 %2306
        %v2308 = vsel %vm392, %v2290, 0.0
        %2309 = vadd.xlane.f32.xlu0 %v2308
        %v2310 = vpop.xlane.xlu0 %2309
        %v2311 = vsel %vm392, %v2291, 0.0
        %2312 = vadd.xlane.f32.xlu0 %v2311
        %v2313 = vpop.xlane.xlu0 %2312
        %v2314 = vsel %vm392, %v2292, 0.0
        %2315 = vadd.xlane.f32.xlu0 %v2314
        %v2316 = vpop.xlane.xlu0 %2315
        %v2317 = vadd.f32 %v2295, %v2298
        %v2318 = vadd.f32 %v2317, %v2301
        %v2319 = vadd.f32 %v2318, %v2304
        %v2320 = vadd.f32 %v2319, %v2307
        %v2321 = vadd.f32 %v2320, %v2310
        %v2322 = vadd.f32 %v2321, %v2313
        %v2323 = vadd.f32 %v2322, %v2316
        %v2324 = vrot.slane %v2323, 4
        %v2325 = vadd.f32 %v2323, %v2324
        %v2326 = vrot.slane %v2325, 2
        %v2327 = vadd.f32 %v2325, %v2326
        %v2328 = vrot.slane %v2327, 1
        %v2329 = vadd.f32 %v2327, %v2328
        %v2330 = vmul.f32 %v2329, 0.044194173
        %v2331 = vmul.f32 %v2175, %v2191
        %v2332 = vmul.f32 %v2176, %v2192
        %v2333 = vmul.f32 %v2177, %v2193
        %v2334 = vmul.f32 %v2178, %v2194
        %v2335 = vmul.f32 %v2179, %v2195
        %v2336 = vmul.f32 %v2180, %v2196
        %v2337 = vmul.f32 %v2181, %v2197
        %v2338 = vmul.f32 %v2182, %v2198
        %v2339 = vsel %vm392, %v2331, 0.0
        %2340 = vadd.xlane.f32.xlu0 %v2339
        %v2341 = vpop.xlane.xlu0 %2340
        %v2342 = vsel %vm392, %v2332, 0.0
        %2343 = vadd.xlane.f32.xlu0 %v2342
        %v2344 = vpop.xlane.xlu0 %2343
        %v2345 = vsel %vm392, %v2333, 0.0
        %2346 = vadd.xlane.f32.xlu0 %v2345
        %v2347 = vpop.xlane.xlu0 %2346
        %v2348 = vsel %vm392, %v2334, 0.0
        %2349 = vadd.xlane.f32.xlu0 %v2348
        %v2350 = vpop.xlane.xlu0 %2349
        %v2351 = vsel %vm392, %v2335, 0.0
        %2352 = vadd.xlane.f32.xlu0 %v2351
        %v2353 = vpop.xlane.xlu0 %2352
        %v2354 = vsel %vm392, %v2336, 0.0
        %2355 = vadd.xlane.f32.xlu0 %v2354
        %v2356 = vpop.xlane.xlu0 %2355
        %v2357 = vsel %vm392, %v2337, 0.0
        %2358 = vadd.xlane.f32.xlu0 %v2357
        %v2359 = vpop.xlane.xlu0 %2358
        %v2360 = vsel %vm392, %v2338, 0.0
        %2361 = vadd.xlane.f32.xlu0 %v2360
        %v2362 = vpop.xlane.xlu0 %2361
        %v2363 = vadd.f32 %v2341, %v2344
        %v2364 = vadd.f32 %v2363, %v2347
        %v2365 = vadd.f32 %v2364, %v2350
        %v2366 = vadd.f32 %v2365, %v2353
        %v2367 = vadd.f32 %v2366, %v2356
        %v2368 = vadd.f32 %v2367, %v2359
        %v2369 = vadd.f32 %v2368, %v2362
        %v2370 = vrot.slane %v2369, 4
        %v2371 = vadd.f32 %v2369, %v2370
        %v2372 = vrot.slane %v2371, 2
        %v2373 = vadd.f32 %v2371, %v2372
        %v2374 = vrot.slane %v2373, 1
        %v2375 = vadd.f32 %v2373, %v2374
        %v2376 = vmul.f32 %v2375, 0.044194173
        %v2377 = vmul.f32 %v2175, %v2199
        %v2378 = vmul.f32 %v2176, %v2200
        %v2379 = vmul.f32 %v2177, %v2201
        %v2380 = vmul.f32 %v2178, %v2202
        %v2381 = vmul.f32 %v2179, %v2203
        %v2382 = vmul.f32 %v2180, %v2204
        %v2383 = vmul.f32 %v2181, %v2205
        %v2384 = vmul.f32 %v2182, %v2206
        %v2385 = vsel %vm392, %v2377, 0.0
        %2386 = vadd.xlane.f32.xlu0 %v2385
        %v2387 = vpop.xlane.xlu0 %2386
        %v2388 = vsel %vm392, %v2378, 0.0
        %2389 = vadd.xlane.f32.xlu0 %v2388
        %v2390 = vpop.xlane.xlu0 %2389
        %v2391 = vsel %vm392, %v2379, 0.0
        %2392 = vadd.xlane.f32.xlu0 %v2391
        %v2393 = vpop.xlane.xlu0 %2392
        %v2394 = vsel %vm392, %v2380, 0.0
        %2395 = vadd.xlane.f32.xlu0 %v2394
        %v2396 = vpop.xlane.xlu0 %2395
        %v2397 = vsel %vm392, %v2381, 0.0
        %2398 = vadd.xlane.f32.xlu0 %v2397
        %v2399 = vpop.xlane.xlu0 %2398
        %v2400 = vsel %vm392, %v2382, 0.0
        %2401 = vadd.xlane.f32.xlu0 %v2400
        %v2402 = vpop.xlane.xlu0 %2401
        %v2403 = vsel %vm392, %v2383, 0.0
        %2404 = vadd.xlane.f32.xlu0 %v2403
        %v2405 = vpop.xlane.xlu0 %2404
        %v2406 = vsel %vm392, %v2384, 0.0
        %2407 = vadd.xlane.f32.xlu0 %v2406
        %v2408 = vpop.xlane.xlu0 %2407
        %v2409 = vadd.f32 %v2387, %v2390
        %v2410 = vadd.f32 %v2409, %v2393
        %v2411 = vadd.f32 %v2410, %v2396
        %v2412 = vadd.f32 %v2411, %v2399
        %v2413 = vadd.f32 %v2412, %v2402
        %v2414 = vadd.f32 %v2413, %v2405
        %v2415 = vadd.f32 %v2414, %v2408
        %v2416 = vrot.slane %v2415, 4
        %v2417 = vadd.f32 %v2415, %v2416
        %v2418 = vrot.slane %v2417, 2
        %v2419 = vadd.f32 %v2417, %v2418
        %v2420 = vrot.slane %v2419, 1
        %v2421 = vadd.f32 %v2419, %v2420
        %v2422 = vmul.f32 %v2421, 0.044194173
        %v2423 = vmul.f32 %v2175, %v2207
        %v2424 = vmul.f32 %v2176, %v2208
        %v2425 = vmul.f32 %v2177, %v2209
        %v2426 = vmul.f32 %v2178, %v2210
        %v2427 = vmul.f32 %v2179, %v2211
        %v2428 = vmul.f32 %v2180, %v2212
        %v2429 = vmul.f32 %v2181, %v2213
        %v2430 = vmul.f32 %v2182, %v2214
        %v2431 = vsel %vm392, %v2423, 0.0
        %2432 = vadd.xlane.f32.xlu0 %v2431
        %v2433 = vpop.xlane.xlu0 %2432
        %v2434 = vsel %vm392, %v2424, 0.0
        %2435 = vadd.xlane.f32.xlu0 %v2434
        %v2436 = vpop.xlane.xlu0 %2435
        %v2437 = vsel %vm392, %v2425, 0.0
        %2438 = vadd.xlane.f32.xlu0 %v2437
        %v2439 = vpop.xlane.xlu0 %2438
        %v2440 = vsel %vm392, %v2426, 0.0
        %2441 = vadd.xlane.f32.xlu0 %v2440
        %v2442 = vpop.xlane.xlu0 %2441
        %v2443 = vsel %vm392, %v2427, 0.0
        %2444 = vadd.xlane.f32.xlu0 %v2443
        %v2445 = vpop.xlane.xlu0 %2444
        %v2446 = vsel %vm392, %v2428, 0.0
        %2447 = vadd.xlane.f32.xlu0 %v2446
        %v2448 = vpop.xlane.xlu0 %2447
        %v2449 = vsel %vm392, %v2429, 0.0
        %2450 = vadd.xlane.f32.xlu0 %v2449
        %v2451 = vpop.xlane.xlu0 %2450
        %v2452 = vsel %vm392, %v2430, 0.0
        %2453 = vadd.xlane.f32.xlu0 %v2452
        %v2454 = vpop.xlane.xlu0 %2453
        %v2455 = vadd.f32 %v2433, %v2436
        %v2456 = vadd.f32 %v2455, %v2439
        %v2457 = vadd.f32 %v2456, %v2442
        %v2458 = vadd.f32 %v2457, %v2445
        %v2459 = vadd.f32 %v2458, %v2448
        %v2460 = vadd.f32 %v2459, %v2451
        %v2461 = vadd.f32 %v2460, %v2454
        %v2462 = vrot.slane %v2461, 4
        %v2463 = vadd.f32 %v2461, %v2462
        %v2464 = vrot.slane %v2463, 2
        %v2465 = vadd.f32 %v2463, %v2464
        %v2466 = vrot.slane %v2465, 1
        %v2467 = vadd.f32 %v2465, %v2466
        %v2468 = vmul.f32 %v2467, 0.044194173
        %v2469 = vmul.f32 %v2175, %v2215
        %v2470 = vmul.f32 %v2176, %v2216
        %v2471 = vmul.f32 %v2177, %v2217
        %v2472 = vmul.f32 %v2178, %v2218
        %v2473 = vmul.f32 %v2179, %v2219
        %v2474 = vmul.f32 %v2180, %v2220
        %v2475 = vmul.f32 %v2181, %v2221
        %v2476 = vmul.f32 %v2182, %v2222
        %v2477 = vsel %vm392, %v2469, 0.0
        %2478 = vadd.xlane.f32.xlu0 %v2477
        %v2479 = vpop.xlane.xlu0 %2478
        %v2480 = vsel %vm392, %v2470, 0.0
        %2481 = vadd.xlane.f32.xlu0 %v2480
        %v2482 = vpop.xlane.xlu0 %2481
        %v2483 = vsel %vm392, %v2471, 0.0
        %2484 = vadd.xlane.f32.xlu0 %v2483
        %v2485 = vpop.xlane.xlu0 %2484
        %v2486 = vsel %vm392, %v2472, 0.0
        %2487 = vadd.xlane.f32.xlu0 %v2486
        %v2488 = vpop.xlane.xlu0 %2487
        %v2489 = vsel %vm392, %v2473, 0.0
        %2490 = vadd.xlane.f32.xlu0 %v2489
        %v2491 = vpop.xlane.xlu0 %2490
        %v2492 = vsel %vm392, %v2474, 0.0
        %2493 = vadd.xlane.f32.xlu0 %v2492
        %v2494 = vpop.xlane.xlu0 %2493
        %v2495 = vsel %vm392, %v2475, 0.0
        %2496 = vadd.xlane.f32.xlu0 %v2495
        %v2497 = vpop.xlane.xlu0 %2496
        %v2498 = vsel %vm392, %v2476, 0.0
        %2499 = vadd.xlane.f32.xlu0 %v2498
        %v2500 = vpop.xlane.xlu0 %2499
        %v2501 = vadd.f32 %v2479, %v2482
        %v2502 = vadd.f32 %v2501, %v2485
        %v2503 = vadd.f32 %v2502, %v2488
        %v2504 = vadd.f32 %v2503, %v2491
        %v2505 = vadd.f32 %v2504, %v2494
        %v2506 = vadd.f32 %v2505, %v2497
        %v2507 = vadd.f32 %v2506, %v2500
        %v2508 = vrot.slane %v2507, 4
        %v2509 = vadd.f32 %v2507, %v2508
        %v2510 = vrot.slane %v2509, 2
        %v2511 = vadd.f32 %v2509, %v2510
        %v2512 = vrot.slane %v2511, 1
        %v2513 = vadd.f32 %v2511, %v2512
        %v2514 = vmul.f32 %v2513, 0.044194173
        %v2515 = vmul.f32 %v2175, %v2223
        %v2516 = vmul.f32 %v2176, %v2224
        %v2517 = vmul.f32 %v2177, %v2225
        %v2518 = vmul.f32 %v2178, %v2226
        %v2519 = vmul.f32 %v2179, %v2227
        %v2520 = vmul.f32 %v2180, %v2228
        %v2521 = vmul.f32 %v2181, %v2229
        %v2522 = vmul.f32 %v2182, %v2230
        %v2523 = vsel %vm392, %v2515, 0.0
        %2524 = vadd.xlane.f32.xlu0 %v2523
        %v2525 = vpop.xlane.xlu0 %2524
        %v2526 = vsel %vm392, %v2516, 0.0
        %2527 = vadd.xlane.f32.xlu0 %v2526
        %v2528 = vpop.xlane.xlu0 %2527
        %v2529 = vsel %vm392, %v2517, 0.0
        %2530 = vadd.xlane.f32.xlu0 %v2529
        %v2531 = vpop.xlane.xlu0 %2530
        %v2532 = vsel %vm392, %v2518, 0.0
        %2533 = vadd.xlane.f32.xlu0 %v2532
        %v2534 = vpop.xlane.xlu0 %2533
        %v2535 = vsel %vm392, %v2519, 0.0
        %2536 = vadd.xlane.f32.xlu0 %v2535
        %v2537 = vpop.xlane.xlu0 %2536
        %v2538 = vsel %vm392, %v2520, 0.0
        %2539 = vadd.xlane.f32.xlu0 %v2538
        %v2540 = vpop.xlane.xlu0 %2539
        %v2541 = vsel %vm392, %v2521, 0.0
        %2542 = vadd.xlane.f32.xlu0 %v2541
        %v2543 = vpop.xlane.xlu0 %2542
        %v2544 = vsel %vm392, %v2522, 0.0
        %2545 = vadd.xlane.f32.xlu0 %v2544
        %v2546 = vpop.xlane.xlu0 %2545
        %v2547 = vadd.f32 %v2525, %v2528
        %v2548 = vadd.f32 %v2547, %v2531
        %v2549 = vadd.f32 %v2548, %v2534
        %v2550 = vadd.f32 %v2549, %v2537
        %v2551 = vadd.f32 %v2550, %v2540
        %v2552 = vadd.f32 %v2551, %v2543
        %v2553 = vadd.f32 %v2552, %v2546
        %v2554 = vrot.slane %v2553, 4
        %v2555 = vadd.f32 %v2553, %v2554
        %v2556 = vrot.slane %v2555, 2
        %v2557 = vadd.f32 %v2555, %v2556
        %v2558 = vrot.slane %v2557, 1
        %v2559 = vadd.f32 %v2557, %v2558
        %v2560 = vmul.f32 %v2559, 0.044194173
        %v2561 = vmul.f32 %v2175, %v2231
        %v2562 = vmul.f32 %v2176, %v2232
        %v2563 = vmul.f32 %v2177, %v2233
        %v2564 = vmul.f32 %v2178, %v2234
        %v2565 = vmul.f32 %v2179, %v2235
        %v2566 = vmul.f32 %v2180, %v2236
        %v2567 = vmul.f32 %v2181, %v2237
        %v2568 = vmul.f32 %v2182, %v2238
        %v2569 = vsel %vm392, %v2561, 0.0
        %2570 = vadd.xlane.f32.xlu0 %v2569
        %v2571 = vpop.xlane.xlu0 %2570
        %v2572 = vsel %vm392, %v2562, 0.0
        %2573 = vadd.xlane.f32.xlu0 %v2572
        %v2574 = vpop.xlane.xlu0 %2573
        %v2575 = vsel %vm392, %v2563, 0.0
        %2576 = vadd.xlane.f32.xlu0 %v2575
        %v2577 = vpop.xlane.xlu0 %2576
        %v2578 = vsel %vm392, %v2564, 0.0
        %2579 = vadd.xlane.f32.xlu0 %v2578
        %v2580 = vpop.xlane.xlu0 %2579
        %v2581 = vsel %vm392, %v2565, 0.0
        %2582 = vadd.xlane.f32.xlu0 %v2581
        %v2583 = vpop.xlane.xlu0 %2582
        %v2584 = vsel %vm392, %v2566, 0.0
        %2585 = vadd.xlane.f32.xlu0 %v2584
        %v2586 = vpop.xlane.xlu0 %2585
        %v2587 = vsel %vm392, %v2567, 0.0
        %2588 = vadd.xlane.f32.xlu0 %v2587
        %v2589 = vpop.xlane.xlu0 %2588
        %v2590 = vsel %vm392, %v2568, 0.0
        %2591 = vadd.xlane.f32.xlu0 %v2590
        %v2592 = vpop.xlane.xlu0 %2591
        %v2593 = vadd.f32 %v2571, %v2574
        %v2594 = vadd.f32 %v2593, %v2577
        %v2595 = vadd.f32 %v2594, %v2580
        %v2596 = vadd.f32 %v2595, %v2583
        %v2597 = vadd.f32 %v2596, %v2586
        %v2598 = vadd.f32 %v2597, %v2589
        %v2599 = vadd.f32 %v2598, %v2592
        %v2600 = vrot.slane %v2599, 4
        %v2601 = vadd.f32 %v2599, %v2600
        %v2602 = vrot.slane %v2601, 2
        %v2603 = vadd.f32 %v2601, %v2602
        %v2604 = vrot.slane %v2603, 1
        %v2605 = vadd.f32 %v2603, %v2604
        %v2606 = vmul.f32 %v2605, 0.044194173
        %v2607 = vmul.f32 %v2183, %v2183
        %v2608 = vmul.f32 %v2184, %v2184
        %v2609 = vmul.f32 %v2185, %v2185
        %v2610 = vmul.f32 %v2186, %v2186
        %v2611 = vmul.f32 %v2187, %v2187
        %v2612 = vmul.f32 %v2188, %v2188
        %v2613 = vmul.f32 %v2189, %v2189
        %v2614 = vmul.f32 %v2190, %v2190
        %v2615 = vsel %vm392, %v2607, 0.0
        %2616 = vadd.xlane.f32.xlu0 %v2615
        %v2617 = vpop.xlane.xlu0 %2616
        %v2618 = vsel %vm392, %v2608, 0.0
        %2619 = vadd.xlane.f32.xlu0 %v2618
        %v2620 = vpop.xlane.xlu0 %2619
        %v2621 = vsel %vm392, %v2609, 0.0
        %2622 = vadd.xlane.f32.xlu0 %v2621
        %v2623 = vpop.xlane.xlu0 %2622
        %v2624 = vsel %vm392, %v2610, 0.0
        %2625 = vadd.xlane.f32.xlu0 %v2624
        %v2626 = vpop.xlane.xlu0 %2625
        %v2627 = vsel %vm392, %v2611, 0.0
        %2628 = vadd.xlane.f32.xlu0 %v2627
        %v2629 = vpop.xlane.xlu0 %2628
        %v2630 = vsel %vm392, %v2612, 0.0
        %2631 = vadd.xlane.f32.xlu0 %v2630
        %v2632 = vpop.xlane.xlu0 %2631
        %v2633 = vsel %vm392, %v2613, 0.0
        %2634 = vadd.xlane.f32.xlu0 %v2633
        %v2635 = vpop.xlane.xlu0 %2634
        %v2636 = vsel %vm392, %v2614, 0.0
        %2637 = vadd.xlane.f32.xlu0 %v2636
        %v2638 = vpop.xlane.xlu0 %2637
        %v2639 = vadd.f32 %v2617, %v2620
        %v2640 = vadd.f32 %v2639, %v2623
        %v2641 = vadd.f32 %v2640, %v2626
        %v2642 = vadd.f32 %v2641, %v2629
        %v2643 = vadd.f32 %v2642, %v2632
        %v2644 = vadd.f32 %v2643, %v2635
        %v2645 = vadd.f32 %v2644, %v2638
        %v2646 = vrot.slane %v2645, 4
        %v2647 = vadd.f32 %v2645, %v2646
        %v2648 = vrot.slane %v2647, 2
        %v2649 = vadd.f32 %v2647, %v2648
        %v2650 = vrot.slane %v2649, 1
        %v2651 = vadd.f32 %v2649, %v2650
        %v2652 = vmul.f32 %v2651, 0.044194173
        %v2653 = vmul.f32 %v2183, %v2191
        %v2654 = vmul.f32 %v2184, %v2192
        %v2655 = vmul.f32 %v2185, %v2193
        %v2656 = vmul.f32 %v2186, %v2194
        %v2657 = vmul.f32 %v2187, %v2195
        %v2658 = vmul.f32 %v2188, %v2196
        %v2659 = vmul.f32 %v2189, %v2197
        %v2660 = vmul.f32 %v2190, %v2198
        %v2661 = vsel %vm392, %v2653, 0.0
        %2662 = vadd.xlane.f32.xlu0 %v2661
        %v2663 = vpop.xlane.xlu0 %2662
        %v2664 = vsel %vm392, %v2654, 0.0
        %2665 = vadd.xlane.f32.xlu0 %v2664
        %v2666 = vpop.xlane.xlu0 %2665
        %v2667 = vsel %vm392, %v2655, 0.0
        %2668 = vadd.xlane.f32.xlu0 %v2667
        %v2669 = vpop.xlane.xlu0 %2668
        %v2670 = vsel %vm392, %v2656, 0.0
        %2671 = vadd.xlane.f32.xlu0 %v2670
        %v2672 = vpop.xlane.xlu0 %2671
        %v2673 = vsel %vm392, %v2657, 0.0
        %2674 = vadd.xlane.f32.xlu0 %v2673
        %v2675 = vpop.xlane.xlu0 %2674
        %v2676 = vsel %vm392, %v2658, 0.0
        %2677 = vadd.xlane.f32.xlu0 %v2676
        %v2678 = vpop.xlane.xlu0 %2677
        %v2679 = vsel %vm392, %v2659, 0.0
        %2680 = vadd.xlane.f32.xlu0 %v2679
        %v2681 = vpop.xlane.xlu0 %2680
        %v2682 = vsel %vm392, %v2660, 0.0
        %2683 = vadd.xlane.f32.xlu0 %v2682
        %v2684 = vpop.xlane.xlu0 %2683
        %v2685 = vadd.f32 %v2663, %v2666
        %v2686 = vadd.f32 %v2685, %v2669
        %v2687 = vadd.f32 %v2686, %v2672
        %v2688 = vadd.f32 %v2687, %v2675
        %v2689 = vadd.f32 %v2688, %v2678
        %v2690 = vadd.f32 %v2689, %v2681
        %v2691 = vadd.f32 %v2690, %v2684
        %v2692 = vrot.slane %v2691, 4
        %v2693 = vadd.f32 %v2691, %v2692
        %v2694 = vrot.slane %v2693, 2
        %v2695 = vadd.f32 %v2693, %v2694
        %v2696 = vrot.slane %v2695, 1
        %v2697 = vadd.f32 %v2695, %v2696
        %v2698 = vmul.f32 %v2697, 0.044194173
        %v2699 = vmul.f32 %v2183, %v2199
        %v2700 = vmul.f32 %v2184, %v2200
        %v2701 = vmul.f32 %v2185, %v2201
        %v2702 = vmul.f32 %v2186, %v2202
        %v2703 = vmul.f32 %v2187, %v2203
        %v2704 = vmul.f32 %v2188, %v2204
        %v2705 = vmul.f32 %v2189, %v2205
        %v2706 = vmul.f32 %v2190, %v2206
        %v2707 = vsel %vm392, %v2699, 0.0
        %2708 = vadd.xlane.f32.xlu0 %v2707
        %v2709 = vpop.xlane.xlu0 %2708
        %v2710 = vsel %vm392, %v2700, 0.0
        %2711 = vadd.xlane.f32.xlu0 %v2710
        %v2712 = vpop.xlane.xlu0 %2711
        %v2713 = vsel %vm392, %v2701, 0.0
        %2714 = vadd.xlane.f32.xlu0 %v2713
        %v2715 = vpop.xlane.xlu0 %2714
        %v2716 = vsel %vm392, %v2702, 0.0
        %2717 = vadd.xlane.f32.xlu0 %v2716
        %v2718 = vpop.xlane.xlu0 %2717
        %v2719 = vsel %vm392, %v2703, 0.0
        %2720 = vadd.xlane.f32.xlu0 %v2719
        %v2721 = vpop.xlane.xlu0 %2720
        %v2722 = vsel %vm392, %v2704, 0.0
        %2723 = vadd.xlane.f32.xlu0 %v2722
        %v2724 = vpop.xlane.xlu0 %2723
        %v2725 = vsel %vm392, %v2705, 0.0
        %2726 = vadd.xlane.f32.xlu0 %v2725
        %v2727 = vpop.xlane.xlu0 %2726
        %v2728 = vsel %vm392, %v2706, 0.0
        %2729 = vadd.xlane.f32.xlu0 %v2728
        %v2730 = vpop.xlane.xlu0 %2729
        %v2731 = vadd.f32 %v2709, %v2712
        %v2732 = vadd.f32 %v2731, %v2715
        %v2733 = vadd.f32 %v2732, %v2718
        %v2734 = vadd.f32 %v2733, %v2721
        %v2735 = vadd.f32 %v2734, %v2724
        %v2736 = vadd.f32 %v2735, %v2727
        %v2737 = vadd.f32 %v2736, %v2730
        %v2738 = vrot.slane %v2737, 4
        %v2739 = vadd.f32 %v2737, %v2738
        %v2740 = vrot.slane %v2739, 2
        %v2741 = vadd.f32 %v2739, %v2740
        %v2742 = vrot.slane %v2741, 1
        %v2743 = vadd.f32 %v2741, %v2742
        %v2744 = vmul.f32 %v2743, 0.044194173
        %v2745 = vmul.f32 %v2183, %v2207
        %v2746 = vmul.f32 %v2184, %v2208
        %v2747 = vmul.f32 %v2185, %v2209
        %v2748 = vmul.f32 %v2186, %v2210
        %v2749 = vmul.f32 %v2187, %v2211
        %v2750 = vmul.f32 %v2188, %v2212
        %v2751 = vmul.f32 %v2189, %v2213
        %v2752 = vmul.f32 %v2190, %v2214
        %v2753 = vsel %vm392, %v2745, 0.0
        %2754 = vadd.xlane.f32.xlu0 %v2753
        %v2755 = vpop.xlane.xlu0 %2754
        %v2756 = vsel %vm392, %v2746, 0.0
        %2757 = vadd.xlane.f32.xlu0 %v2756
        %v2758 = vpop.xlane.xlu0 %2757
        %v2759 = vsel %vm392, %v2747, 0.0
        %2760 = vadd.xlane.f32.xlu0 %v2759
        %v2761 = vpop.xlane.xlu0 %2760
        %v2762 = vsel %vm392, %v2748, 0.0
        %2763 = vadd.xlane.f32.xlu0 %v2762
        %v2764 = vpop.xlane.xlu0 %2763
        %v2765 = vsel %vm392, %v2749, 0.0
        %2766 = vadd.xlane.f32.xlu0 %v2765
        %v2767 = vpop.xlane.xlu0 %2766
        %v2768 = vsel %vm392, %v2750, 0.0
        %2769 = vadd.xlane.f32.xlu0 %v2768
        %v2770 = vpop.xlane.xlu0 %2769
        %v2771 = vsel %vm392, %v2751, 0.0
        %2772 = vadd.xlane.f32.xlu0 %v2771
        %v2773 = vpop.xlane.xlu0 %2772
        %v2774 = vsel %vm392, %v2752, 0.0
        %2775 = vadd.xlane.f32.xlu0 %v2774
        %v2776 = vpop.xlane.xlu0 %2775
        %v2777 = vadd.f32 %v2755, %v2758
        %v2778 = vadd.f32 %v2777, %v2761
        %v2779 = vadd.f32 %v2778, %v2764
        %v2780 = vadd.f32 %v2779, %v2767
        %v2781 = vadd.f32 %v2780, %v2770
        %v2782 = vadd.f32 %v2781, %v2773
        %v2783 = vadd.f32 %v2782, %v2776
        %v2784 = vrot.slane %v2783, 4
        %v2785 = vadd.f32 %v2783, %v2784
        %v2786 = vrot.slane %v2785, 2
        %v2787 = vadd.f32 %v2785, %v2786
        %v2788 = vrot.slane %v2787, 1
        %v2789 = vadd.f32 %v2787, %v2788
        %v2790 = vmul.f32 %v2789, 0.044194173
        %v2791 = vmul.f32 %v2183, %v2215
        %v2792 = vmul.f32 %v2184, %v2216
        %v2793 = vmul.f32 %v2185, %v2217
        %v2794 = vmul.f32 %v2186, %v2218
        %v2795 = vmul.f32 %v2187, %v2219
        %v2796 = vmul.f32 %v2188, %v2220
        %v2797 = vmul.f32 %v2189, %v2221
        %v2798 = vmul.f32 %v2190, %v2222
        %v2799 = vsel %vm392, %v2791, 0.0
        %2800 = vadd.xlane.f32.xlu0 %v2799
        %v2801 = vpop.xlane.xlu0 %2800
        %v2802 = vsel %vm392, %v2792, 0.0
        %2803 = vadd.xlane.f32.xlu0 %v2802
        %v2804 = vpop.xlane.xlu0 %2803
        %v2805 = vsel %vm392, %v2793, 0.0
        %2806 = vadd.xlane.f32.xlu0 %v2805
        %v2807 = vpop.xlane.xlu0 %2806
        %v2808 = vsel %vm392, %v2794, 0.0
        %2809 = vadd.xlane.f32.xlu0 %v2808
        %v2810 = vpop.xlane.xlu0 %2809
        %v2811 = vsel %vm392, %v2795, 0.0
        %2812 = vadd.xlane.f32.xlu0 %v2811
        %v2813 = vpop.xlane.xlu0 %2812
        %v2814 = vsel %vm392, %v2796, 0.0
        %2815 = vadd.xlane.f32.xlu0 %v2814
        %v2816 = vpop.xlane.xlu0 %2815
        %v2817 = vsel %vm392, %v2797, 0.0
        %2818 = vadd.xlane.f32.xlu0 %v2817
        %v2819 = vpop.xlane.xlu0 %2818
        %v2820 = vsel %vm392, %v2798, 0.0
        %2821 = vadd.xlane.f32.xlu0 %v2820
        %v2822 = vpop.xlane.xlu0 %2821
        %v2823 = vadd.f32 %v2801, %v2804
        %v2824 = vadd.f32 %v2823, %v2807
        %v2825 = vadd.f32 %v2824, %v2810
        %v2826 = vadd.f32 %v2825, %v2813
        %v2827 = vadd.f32 %v2826, %v2816
        %v2828 = vadd.f32 %v2827, %v2819
        %v2829 = vadd.f32 %v2828, %v2822
        %v2830 = vrot.slane %v2829, 4
        %v2831 = vadd.f32 %v2829, %v2830
        %v2832 = vrot.slane %v2831, 2
        %v2833 = vadd.f32 %v2831, %v2832
        %v2834 = vrot.slane %v2833, 1
        %v2835 = vadd.f32 %v2833, %v2834
        %v2836 = vmul.f32 %v2835, 0.044194173
        %v2837 = vmul.f32 %v2183, %v2223
        %v2838 = vmul.f32 %v2184, %v2224
        %v2839 = vmul.f32 %v2185, %v2225
        %v2840 = vmul.f32 %v2186, %v2226
        %v2841 = vmul.f32 %v2187, %v2227
        %v2842 = vmul.f32 %v2188, %v2228
        %v2843 = vmul.f32 %v2189, %v2229
        %v2844 = vmul.f32 %v2190, %v2230
        %v2845 = vsel %vm392, %v2837, 0.0
        %2846 = vadd.xlane.f32.xlu0 %v2845
        %v2847 = vpop.xlane.xlu0 %2846
        %v2848 = vsel %vm392, %v2838, 0.0
        %2849 = vadd.xlane.f32.xlu0 %v2848
        %v2850 = vpop.xlane.xlu0 %2849
        %v2851 = vsel %vm392, %v2839, 0.0
        %2852 = vadd.xlane.f32.xlu0 %v2851
        %v2853 = vpop.xlane.xlu0 %2852
        %v2854 = vsel %vm392, %v2840, 0.0
        %2855 = vadd.xlane.f32.xlu0 %v2854
        %v2856 = vpop.xlane.xlu0 %2855
        %v2857 = vsel %vm392, %v2841, 0.0
        %2858 = vadd.xlane.f32.xlu0 %v2857
        %v2859 = vpop.xlane.xlu0 %2858
        %v2860 = vsel %vm392, %v2842, 0.0
        %2861 = vadd.xlane.f32.xlu0 %v2860
        %v2862 = vpop.xlane.xlu0 %2861
        %v2863 = vsel %vm392, %v2843, 0.0
        %2864 = vadd.xlane.f32.xlu0 %v2863
        %v2865 = vpop.xlane.xlu0 %2864
        %v2866 = vsel %vm392, %v2844, 0.0
        %2867 = vadd.xlane.f32.xlu0 %v2866
        %v2868 = vpop.xlane.xlu0 %2867
        %v2869 = vadd.f32 %v2847, %v2850
        %v2870 = vadd.f32 %v2869, %v2853
        %v2871 = vadd.f32 %v2870, %v2856
        %v2872 = vadd.f32 %v2871, %v2859
        %v2873 = vadd.f32 %v2872, %v2862
        %v2874 = vadd.f32 %v2873, %v2865
        %v2875 = vadd.f32 %v2874, %v2868
        %v2876 = vrot.slane %v2875, 4
        %v2877 = vadd.f32 %v2875, %v2876
        %v2878 = vrot.slane %v2877, 2
        %v2879 = vadd.f32 %v2877, %v2878
        %v2880 = vrot.slane %v2879, 1
        %v2881 = vadd.f32 %v2879, %v2880
        %v2882 = vmul.f32 %v2881, 0.044194173
        %v2883 = vmul.f32 %v2183, %v2231
        %v2884 = vmul.f32 %v2184, %v2232
        %v2885 = vmul.f32 %v2185, %v2233
        %v2886 = vmul.f32 %v2186, %v2234
        %v2887 = vmul.f32 %v2187, %v2235
        %v2888 = vmul.f32 %v2188, %v2236
        %v2889 = vmul.f32 %v2189, %v2237
        %v2890 = vmul.f32 %v2190, %v2238
        %v2891 = vsel %vm392, %v2883, 0.0
        %2892 = vadd.xlane.f32.xlu0 %v2891
        %v2893 = vpop.xlane.xlu0 %2892
        %v2894 = vsel %vm392, %v2884, 0.0
        %2895 = vadd.xlane.f32.xlu0 %v2894
        %v2896 = vpop.xlane.xlu0 %2895
        %v2897 = vsel %vm392, %v2885, 0.0
        %2898 = vadd.xlane.f32.xlu0 %v2897
        %v2899 = vpop.xlane.xlu0 %2898
        %v2900 = vsel %vm392, %v2886, 0.0
        %2901 = vadd.xlane.f32.xlu0 %v2900
        %v2902 = vpop.xlane.xlu0 %2901
        %v2903 = vsel %vm392, %v2887, 0.0
        %2904 = vadd.xlane.f32.xlu0 %v2903
        %v2905 = vpop.xlane.xlu0 %2904
        %v2906 = vsel %vm392, %v2888, 0.0
        %2907 = vadd.xlane.f32.xlu0 %v2906
        %v2908 = vpop.xlane.xlu0 %2907
        %v2909 = vsel %vm392, %v2889, 0.0
        %2910 = vadd.xlane.f32.xlu0 %v2909
        %v2911 = vpop.xlane.xlu0 %2910
        %v2912 = vsel %vm392, %v2890, 0.0
        %2913 = vadd.xlane.f32.xlu0 %v2912
        %v2914 = vpop.xlane.xlu0 %2913
        %v2915 = vadd.f32 %v2893, %v2896
        %v2916 = vadd.f32 %v2915, %v2899
        %v2917 = vadd.f32 %v2916, %v2902
        %v2918 = vadd.f32 %v2917, %v2905
        %v2919 = vadd.f32 %v2918, %v2908
        %v2920 = vadd.f32 %v2919, %v2911
        %v2921 = vadd.f32 %v2920, %v2914
        %v2922 = vrot.slane %v2921, 4
        %v2923 = vadd.f32 %v2921, %v2922
        %v2924 = vrot.slane %v2923, 2
        %v2925 = vadd.f32 %v2923, %v2924
        %v2926 = vrot.slane %v2925, 1
        %v2927 = vadd.f32 %v2925, %v2926
        %v2928 = vmul.f32 %v2927, 0.044194173
        %v2929 = vmul.f32 %v2191, %v2191
        %v2930 = vmul.f32 %v2192, %v2192
        %v2931 = vmul.f32 %v2193, %v2193
        %v2932 = vmul.f32 %v2194, %v2194
        %v2933 = vmul.f32 %v2195, %v2195
        %v2934 = vmul.f32 %v2196, %v2196
        %v2935 = vmul.f32 %v2197, %v2197
        %v2936 = vmul.f32 %v2198, %v2198
        %v2937 = vsel %vm392, %v2929, 0.0
        %2938 = vadd.xlane.f32.xlu0 %v2937
        %v2939 = vpop.xlane.xlu0 %2938
        %v2940 = vsel %vm392, %v2930, 0.0
        %2941 = vadd.xlane.f32.xlu0 %v2940
        %v2942 = vpop.xlane.xlu0 %2941
        %v2943 = vsel %vm392, %v2931, 0.0
        %2944 = vadd.xlane.f32.xlu0 %v2943
        %v2945 = vpop.xlane.xlu0 %2944
        %v2946 = vsel %vm392, %v2932, 0.0
        %2947 = vadd.xlane.f32.xlu0 %v2946
        %v2948 = vpop.xlane.xlu0 %2947
        %v2949 = vsel %vm392, %v2933, 0.0
        %2950 = vadd.xlane.f32.xlu0 %v2949
        %v2951 = vpop.xlane.xlu0 %2950
        %v2952 = vsel %vm392, %v2934, 0.0
        %2953 = vadd.xlane.f32.xlu0 %v2952
        %v2954 = vpop.xlane.xlu0 %2953
        %v2955 = vsel %vm392, %v2935, 0.0
        %2956 = vadd.xlane.f32.xlu0 %v2955
        %v2957 = vpop.xlane.xlu0 %2956
        %v2958 = vsel %vm392, %v2936, 0.0
        %2959 = vadd.xlane.f32.xlu0 %v2958
        %v2960 = vpop.xlane.xlu0 %2959
        %v2961 = vadd.f32 %v2939, %v2942
        %v2962 = vadd.f32 %v2961, %v2945
        %v2963 = vadd.f32 %v2962, %v2948
        %v2964 = vadd.f32 %v2963, %v2951
        %v2965 = vadd.f32 %v2964, %v2954
        %v2966 = vadd.f32 %v2965, %v2957
        %v2967 = vadd.f32 %v2966, %v2960
        %v2968 = vrot.slane %v2967, 4
        %v2969 = vadd.f32 %v2967, %v2968
        %v2970 = vrot.slane %v2969, 2
        %v2971 = vadd.f32 %v2969, %v2970
        %v2972 = vrot.slane %v2971, 1
        %v2973 = vadd.f32 %v2971, %v2972
        %v2974 = vmul.f32 %v2973, 0.044194173
        %v2975 = vmul.f32 %v2191, %v2199
        %v2976 = vmul.f32 %v2192, %v2200
        %v2977 = vmul.f32 %v2193, %v2201
        %v2978 = vmul.f32 %v2194, %v2202
        %v2979 = vmul.f32 %v2195, %v2203
        %v2980 = vmul.f32 %v2196, %v2204
        %v2981 = vmul.f32 %v2197, %v2205
        %v2982 = vmul.f32 %v2198, %v2206
        %v2983 = vsel %vm392, %v2975, 0.0
        %2984 = vadd.xlane.f32.xlu0 %v2983
        %v2985 = vpop.xlane.xlu0 %2984
        %v2986 = vsel %vm392, %v2976, 0.0
        %2987 = vadd.xlane.f32.xlu0 %v2986
        %v2988 = vpop.xlane.xlu0 %2987
        %v2989 = vsel %vm392, %v2977, 0.0
        %2990 = vadd.xlane.f32.xlu0 %v2989
        %v2991 = vpop.xlane.xlu0 %2990
        %v2992 = vsel %vm392, %v2978, 0.0
        %2993 = vadd.xlane.f32.xlu0 %v2992
        %v2994 = vpop.xlane.xlu0 %2993
        %v2995 = vsel %vm392, %v2979, 0.0
        %2996 = vadd.xlane.f32.xlu0 %v2995
        %v2997 = vpop.xlane.xlu0 %2996
        %v2998 = vsel %vm392, %v2980, 0.0
        %2999 = vadd.xlane.f32.xlu0 %v2998
        %v3000 = vpop.xlane.xlu0 %2999
        %v3001 = vsel %vm392, %v2981, 0.0
        %3002 = vadd.xlane.f32.xlu0 %v3001
        %v3003 = vpop.xlane.xlu0 %3002
        %v3004 = vsel %vm392, %v2982, 0.0
        %3005 = vadd.xlane.f32.xlu0 %v3004
        %v3006 = vpop.xlane.xlu0 %3005
        %v3007 = vadd.f32 %v2985, %v2988
        %v3008 = vadd.f32 %v3007, %v2991
        %v3009 = vadd.f32 %v3008, %v2994
        %v3010 = vadd.f32 %v3009, %v2997
        %v3011 = vadd.f32 %v3010, %v3000
        %v3012 = vadd.f32 %v3011, %v3003
        %v3013 = vadd.f32 %v3012, %v3006
        %v3014 = vrot.slane %v3013, 4
        %v3015 = vadd.f32 %v3013, %v3014
        %v3016 = vrot.slane %v3015, 2
        %v3017 = vadd.f32 %v3015, %v3016
        %v3018 = vrot.slane %v3017, 1
        %v3019 = vadd.f32 %v3017, %v3018
        %v3020 = vmul.f32 %v3019, 0.044194173
        %v3021 = vmul.f32 %v2191, %v2207
        %v3022 = vmul.f32 %v2192, %v2208
        %v3023 = vmul.f32 %v2193, %v2209
        %v3024 = vmul.f32 %v2194, %v2210
        %v3025 = vmul.f32 %v2195, %v2211
        %v3026 = vmul.f32 %v2196, %v2212
        %v3027 = vmul.f32 %v2197, %v2213
        %v3028 = vmul.f32 %v2198, %v2214
        %v3029 = vsel %vm392, %v3021, 0.0
        %3030 = vadd.xlane.f32.xlu0 %v3029
        %v3031 = vpop.xlane.xlu0 %3030
        %v3032 = vsel %vm392, %v3022, 0.0
        %3033 = vadd.xlane.f32.xlu0 %v3032
        %v3034 = vpop.xlane.xlu0 %3033
        %v3035 = vsel %vm392, %v3023, 0.0
        %3036 = vadd.xlane.f32.xlu0 %v3035
        %v3037 = vpop.xlane.xlu0 %3036
        %v3038 = vsel %vm392, %v3024, 0.0
        %3039 = vadd.xlane.f32.xlu0 %v3038
        %v3040 = vpop.xlane.xlu0 %3039
        %v3041 = vsel %vm392, %v3025, 0.0
        %3042 = vadd.xlane.f32.xlu0 %v3041
        %v3043 = vpop.xlane.xlu0 %3042
        %v3044 = vsel %vm392, %v3026, 0.0
        %3045 = vadd.xlane.f32.xlu0 %v3044
        %v3046 = vpop.xlane.xlu0 %3045
        %v3047 = vsel %vm392, %v3027, 0.0
        %3048 = vadd.xlane.f32.xlu0 %v3047
        %v3049 = vpop.xlane.xlu0 %3048
        %v3050 = vsel %vm392, %v3028, 0.0
        %3051 = vadd.xlane.f32.xlu0 %v3050
        %v3052 = vpop.xlane.xlu0 %3051
        %v3053 = vadd.f32 %v3031, %v3034
        %v3054 = vadd.f32 %v3053, %v3037
        %v3055 = vadd.f32 %v3054, %v3040
        %v3056 = vadd.f32 %v3055, %v3043
        %v3057 = vadd.f32 %v3056, %v3046
        %v3058 = vadd.f32 %v3057, %v3049
        %v3059 = vadd.f32 %v3058, %v3052
        %v3060 = vrot.slane %v3059, 4
        %v3061 = vadd.f32 %v3059, %v3060
        %v3062 = vrot.slane %v3061, 2
        %v3063 = vadd.f32 %v3061, %v3062
        %v3064 = vrot.slane %v3063, 1
        %v3065 = vadd.f32 %v3063, %v3064
        %v3066 = vmul.f32 %v3065, 0.044194173
        %v3067 = vmul.f32 %v2191, %v2215
        %v3068 = vmul.f32 %v2192, %v2216
        %v3069 = vmul.f32 %v2193, %v2217
        %v3070 = vmul.f32 %v2194, %v2218
        %v3071 = vmul.f32 %v2195, %v2219
        %v3072 = vmul.f32 %v2196, %v2220
        %v3073 = vmul.f32 %v2197, %v2221
        %v3074 = vmul.f32 %v2198, %v2222
        %v3075 = vsel %vm392, %v3067, 0.0
        %3076 = vadd.xlane.f32.xlu0 %v3075
        %v3077 = vpop.xlane.xlu0 %3076
        %v3078 = vsel %vm392, %v3068, 0.0
        %3079 = vadd.xlane.f32.xlu0 %v3078
        %v3080 = vpop.xlane.xlu0 %3079
        %v3081 = vsel %vm392, %v3069, 0.0
        %3082 = vadd.xlane.f32.xlu0 %v3081
        %v3083 = vpop.xlane.xlu0 %3082
        %v3084 = vsel %vm392, %v3070, 0.0
        %3085 = vadd.xlane.f32.xlu0 %v3084
        %v3086 = vpop.xlane.xlu0 %3085
        %v3087 = vsel %vm392, %v3071, 0.0
        %3088 = vadd.xlane.f32.xlu0 %v3087
        %v3089 = vpop.xlane.xlu0 %3088
        %v3090 = vsel %vm392, %v3072, 0.0
        %3091 = vadd.xlane.f32.xlu0 %v3090
        %v3092 = vpop.xlane.xlu0 %3091
        %v3093 = vsel %vm392, %v3073, 0.0
        %3094 = vadd.xlane.f32.xlu0 %v3093
        %v3095 = vpop.xlane.xlu0 %3094
        %v3096 = vsel %vm392, %v3074, 0.0
        %3097 = vadd.xlane.f32.xlu0 %v3096
        %v3098 = vpop.xlane.xlu0 %3097
        %v3099 = vadd.f32 %v3077, %v3080
        %v3100 = vadd.f32 %v3099, %v3083
        %v3101 = vadd.f32 %v3100, %v3086
        %v3102 = vadd.f32 %v3101, %v3089
        %v3103 = vadd.f32 %v3102, %v3092
        %v3104 = vadd.f32 %v3103, %v3095
        %v3105 = vadd.f32 %v3104, %v3098
        %v3106 = vrot.slane %v3105, 4
        %v3107 = vadd.f32 %v3105, %v3106
        %v3108 = vrot.slane %v3107, 2
        %v3109 = vadd.f32 %v3107, %v3108
        %v3110 = vrot.slane %v3109, 1
        %v3111 = vadd.f32 %v3109, %v3110
        %v3112 = vmul.f32 %v3111, 0.044194173
        %v3113 = vmul.f32 %v2191, %v2223
        %v3114 = vmul.f32 %v2192, %v2224
        %v3115 = vmul.f32 %v2193, %v2225
        %v3116 = vmul.f32 %v2194, %v2226
        %v3117 = vmul.f32 %v2195, %v2227
        %v3118 = vmul.f32 %v2196, %v2228
        %v3119 = vmul.f32 %v2197, %v2229
        %v3120 = vmul.f32 %v2198, %v2230
        %v3121 = vsel %vm392, %v3113, 0.0
        %3122 = vadd.xlane.f32.xlu0 %v3121
        %v3123 = vpop.xlane.xlu0 %3122
        %v3124 = vsel %vm392, %v3114, 0.0
        %3125 = vadd.xlane.f32.xlu0 %v3124
        %v3126 = vpop.xlane.xlu0 %3125
        %v3127 = vsel %vm392, %v3115, 0.0
        %3128 = vadd.xlane.f32.xlu0 %v3127
        %v3129 = vpop.xlane.xlu0 %3128
        %v3130 = vsel %vm392, %v3116, 0.0
        %3131 = vadd.xlane.f32.xlu0 %v3130
        %v3132 = vpop.xlane.xlu0 %3131
        %v3133 = vsel %vm392, %v3117, 0.0
        %3134 = vadd.xlane.f32.xlu0 %v3133
        %v3135 = vpop.xlane.xlu0 %3134
        %v3136 = vsel %vm392, %v3118, 0.0
        %3137 = vadd.xlane.f32.xlu0 %v3136
        %v3138 = vpop.xlane.xlu0 %3137
        %v3139 = vsel %vm392, %v3119, 0.0
        %3140 = vadd.xlane.f32.xlu0 %v3139
        %v3141 = vpop.xlane.xlu0 %3140
        %v3142 = vsel %vm392, %v3120, 0.0
        %3143 = vadd.xlane.f32.xlu0 %v3142
        %v3144 = vpop.xlane.xlu0 %3143
        %v3145 = vadd.f32 %v3123, %v3126
        %v3146 = vadd.f32 %v3145, %v3129
        %v3147 = vadd.f32 %v3146, %v3132
        %v3148 = vadd.f32 %v3147, %v3135
        %v3149 = vadd.f32 %v3148, %v3138
        %v3150 = vadd.f32 %v3149, %v3141
        %v3151 = vadd.f32 %v3150, %v3144
        %v3152 = vrot.slane %v3151, 4
        %v3153 = vadd.f32 %v3151, %v3152
        %v3154 = vrot.slane %v3153, 2
        %v3155 = vadd.f32 %v3153, %v3154
        %v3156 = vrot.slane %v3155, 1
        %v3157 = vadd.f32 %v3155, %v3156
        %v3158 = vmul.f32 %v3157, 0.044194173
        %v3159 = vmul.f32 %v2191, %v2231
        %v3160 = vmul.f32 %v2192, %v2232
        %v3161 = vmul.f32 %v2193, %v2233
        %v3162 = vmul.f32 %v2194, %v2234
        %v3163 = vmul.f32 %v2195, %v2235
        %v3164 = vmul.f32 %v2196, %v2236
        %v3165 = vmul.f32 %v2197, %v2237
        %v3166 = vmul.f32 %v2198, %v2238
        %v3167 = vsel %vm392, %v3159, 0.0
        %3168 = vadd.xlane.f32.xlu0 %v3167
        %v3169 = vpop.xlane.xlu0 %3168
        %v3170 = vsel %vm392, %v3160, 0.0
        %3171 = vadd.xlane.f32.xlu0 %v3170
        %v3172 = vpop.xlane.xlu0 %3171
        %v3173 = vsel %vm392, %v3161, 0.0
        %3174 = vadd.xlane.f32.xlu0 %v3173
        %v3175 = vpop.xlane.xlu0 %3174
        %v3176 = vsel %vm392, %v3162, 0.0
        %3177 = vadd.xlane.f32.xlu0 %v3176
        %v3178 = vpop.xlane.xlu0 %3177
        %v3179 = vsel %vm392, %v3163, 0.0
        %3180 = vadd.xlane.f32.xlu0 %v3179
        %v3181 = vpop.xlane.xlu0 %3180
        %v3182 = vsel %vm392, %v3164, 0.0
        %3183 = vadd.xlane.f32.xlu0 %v3182
        %v3184 = vpop.xlane.xlu0 %3183
        %v3185 = vsel %vm392, %v3165, 0.0
        %3186 = vadd.xlane.f32.xlu0 %v3185
        %v3187 = vpop.xlane.xlu0 %3186
        %v3188 = vsel %vm392, %v3166, 0.0
        %3189 = vadd.xlane.f32.xlu0 %v3188
        %v3190 = vpop.xlane.xlu0 %3189
        %v3191 = vadd.f32 %v3169, %v3172
        %v3192 = vadd.f32 %v3191, %v3175
        %v3193 = vadd.f32 %v3192, %v3178
        %v3194 = vadd.f32 %v3193, %v3181
        %v3195 = vadd.f32 %v3194, %v3184
        %v3196 = vadd.f32 %v3195, %v3187
        %v3197 = vadd.f32 %v3196, %v3190
        %v3198 = vrot.slane %v3197, 4
        %v3199 = vadd.f32 %v3197, %v3198
        %v3200 = vrot.slane %v3199, 2
        %v3201 = vadd.f32 %v3199, %v3200
        %v3202 = vrot.slane %v3201, 1
        %v3203 = vadd.f32 %v3201, %v3202
        %v3204 = vmul.f32 %v3203, 0.044194173
        %v3205 = vmul.f32 %v2199, %v2199
        %v3206 = vmul.f32 %v2200, %v2200
        %v3207 = vmul.f32 %v2201, %v2201
        %v3208 = vmul.f32 %v2202, %v2202
        %v3209 = vmul.f32 %v2203, %v2203
        %v3210 = vmul.f32 %v2204, %v2204
        %v3211 = vmul.f32 %v2205, %v2205
        %v3212 = vmul.f32 %v2206, %v2206
        %v3213 = vsel %vm392, %v3205, 0.0
        %3214 = vadd.xlane.f32.xlu0 %v3213
        %v3215 = vpop.xlane.xlu0 %3214
        %v3216 = vsel %vm392, %v3206, 0.0
        %3217 = vadd.xlane.f32.xlu0 %v3216
        %v3218 = vpop.xlane.xlu0 %3217
        %v3219 = vsel %vm392, %v3207, 0.0
        %3220 = vadd.xlane.f32.xlu0 %v3219
        %v3221 = vpop.xlane.xlu0 %3220
        %v3222 = vsel %vm392, %v3208, 0.0
        %3223 = vadd.xlane.f32.xlu0 %v3222
        %v3224 = vpop.xlane.xlu0 %3223
        %v3225 = vsel %vm392, %v3209, 0.0
        %3226 = vadd.xlane.f32.xlu0 %v3225
        %v3227 = vpop.xlane.xlu0 %3226
        %v3228 = vsel %vm392, %v3210, 0.0
        %3229 = vadd.xlane.f32.xlu0 %v3228
        %v3230 = vpop.xlane.xlu0 %3229
        %v3231 = vsel %vm392, %v3211, 0.0
        %3232 = vadd.xlane.f32.xlu0 %v3231
        %v3233 = vpop.xlane.xlu0 %3232
        %v3234 = vsel %vm392, %v3212, 0.0
        %3235 = vadd.xlane.f32.xlu0 %v3234
        %v3236 = vpop.xlane.xlu0 %3235
        %v3237 = vadd.f32 %v3215, %v3218
        %v3238 = vadd.f32 %v3237, %v3221
        %v3239 = vadd.f32 %v3238, %v3224
        %v3240 = vadd.f32 %v3239, %v3227
        %v3241 = vadd.f32 %v3240, %v3230
        %v3242 = vadd.f32 %v3241, %v3233
        %v3243 = vadd.f32 %v3242, %v3236
        %v3244 = vrot.slane %v3243, 4
        %v3245 = vadd.f32 %v3243, %v3244
        %v3246 = vrot.slane %v3245, 2
        %v3247 = vadd.f32 %v3245, %v3246
        %v3248 = vrot.slane %v3247, 1
        %v3249 = vadd.f32 %v3247, %v3248
        %v3250 = vmul.f32 %v3249, 0.044194173
        %v3251 = vmul.f32 %v2199, %v2207
        %v3252 = vmul.f32 %v2200, %v2208
        %v3253 = vmul.f32 %v2201, %v2209
        %v3254 = vmul.f32 %v2202, %v2210
        %v3255 = vmul.f32 %v2203, %v2211
        %v3256 = vmul.f32 %v2204, %v2212
        %v3257 = vmul.f32 %v2205, %v2213
        %v3258 = vmul.f32 %v2206, %v2214
        %v3259 = vsel %vm392, %v3251, 0.0
        %3260 = vadd.xlane.f32.xlu0 %v3259
        %v3261 = vpop.xlane.xlu0 %3260
        %v3262 = vsel %vm392, %v3252, 0.0
        %3263 = vadd.xlane.f32.xlu0 %v3262
        %v3264 = vpop.xlane.xlu0 %3263
        %v3265 = vsel %vm392, %v3253, 0.0
        %3266 = vadd.xlane.f32.xlu0 %v3265
        %v3267 = vpop.xlane.xlu0 %3266
        %v3268 = vsel %vm392, %v3254, 0.0
        %3269 = vadd.xlane.f32.xlu0 %v3268
        %v3270 = vpop.xlane.xlu0 %3269
        %v3271 = vsel %vm392, %v3255, 0.0
        %3272 = vadd.xlane.f32.xlu0 %v3271
        %v3273 = vpop.xlane.xlu0 %3272
        %v3274 = vsel %vm392, %v3256, 0.0
        %3275 = vadd.xlane.f32.xlu0 %v3274
        %v3276 = vpop.xlane.xlu0 %3275
        %v3277 = vsel %vm392, %v3257, 0.0
        %3278 = vadd.xlane.f32.xlu0 %v3277
        %v3279 = vpop.xlane.xlu0 %3278
        %v3280 = vsel %vm392, %v3258, 0.0
        %3281 = vadd.xlane.f32.xlu0 %v3280
        %v3282 = vpop.xlane.xlu0 %3281
        %v3283 = vadd.f32 %v3261, %v3264
        %v3284 = vadd.f32 %v3283, %v3267
        %v3285 = vadd.f32 %v3284, %v3270
        %v3286 = vadd.f32 %v3285, %v3273
        %v3287 = vadd.f32 %v3286, %v3276
        %v3288 = vadd.f32 %v3287, %v3279
        %v3289 = vadd.f32 %v3288, %v3282
        %v3290 = vrot.slane %v3289, 4
        %v3291 = vadd.f32 %v3289, %v3290
        %v3292 = vrot.slane %v3291, 2
        %v3293 = vadd.f32 %v3291, %v3292
        %v3294 = vrot.slane %v3293, 1
        %v3295 = vadd.f32 %v3293, %v3294
        %v3296 = vmul.f32 %v3295, 0.044194173
        %v3297 = vmul.f32 %v2199, %v2215
        %v3298 = vmul.f32 %v2200, %v2216
        %v3299 = vmul.f32 %v2201, %v2217
        %v3300 = vmul.f32 %v2202, %v2218
        %v3301 = vmul.f32 %v2203, %v2219
        %v3302 = vmul.f32 %v2204, %v2220
        %v3303 = vmul.f32 %v2205, %v2221
        %v3304 = vmul.f32 %v2206, %v2222
        %v3305 = vsel %vm392, %v3297, 0.0
        %3306 = vadd.xlane.f32.xlu0 %v3305
        %v3307 = vpop.xlane.xlu0 %3306
        %v3308 = vsel %vm392, %v3298, 0.0
        %3309 = vadd.xlane.f32.xlu0 %v3308
        %v3310 = vpop.xlane.xlu0 %3309
        %v3311 = vsel %vm392, %v3299, 0.0
        %3312 = vadd.xlane.f32.xlu0 %v3311
        %v3313 = vpop.xlane.xlu0 %3312
        %v3314 = vsel %vm392, %v3300, 0.0
        %3315 = vadd.xlane.f32.xlu0 %v3314
        %v3316 = vpop.xlane.xlu0 %3315
        %v3317 = vsel %vm392, %v3301, 0.0
        %3318 = vadd.xlane.f32.xlu0 %v3317
        %v3319 = vpop.xlane.xlu0 %3318
        %v3320 = vsel %vm392, %v3302, 0.0
        %3321 = vadd.xlane.f32.xlu0 %v3320
        %v3322 = vpop.xlane.xlu0 %3321
        %v3323 = vsel %vm392, %v3303, 0.0
        %3324 = vadd.xlane.f32.xlu0 %v3323
        %v3325 = vpop.xlane.xlu0 %3324
        %v3326 = vsel %vm392, %v3304, 0.0
        %3327 = vadd.xlane.f32.xlu0 %v3326
        %v3328 = vpop.xlane.xlu0 %3327
        %v3329 = vadd.f32 %v3307, %v3310
        %v3330 = vadd.f32 %v3329, %v3313
        %v3331 = vadd.f32 %v3330, %v3316
        %v3332 = vadd.f32 %v3331, %v3319
        %v3333 = vadd.f32 %v3332, %v3322
        %v3334 = vadd.f32 %v3333, %v3325
        %v3335 = vadd.f32 %v3334, %v3328
        %v3336 = vrot.slane %v3335, 4
        %v3337 = vadd.f32 %v3335, %v3336
        %v3338 = vrot.slane %v3337, 2
        %v3339 = vadd.f32 %v3337, %v3338
        %v3340 = vrot.slane %v3339, 1
        %v3341 = vadd.f32 %v3339, %v3340
        %v3342 = vmul.f32 %v3341, 0.044194173
        %v3343 = vmul.f32 %v2199, %v2223
        %v3344 = vmul.f32 %v2200, %v2224
        %v3345 = vmul.f32 %v2201, %v2225
        %v3346 = vmul.f32 %v2202, %v2226
        %v3347 = vmul.f32 %v2203, %v2227
        %v3348 = vmul.f32 %v2204, %v2228
        %v3349 = vmul.f32 %v2205, %v2229
        %v3350 = vmul.f32 %v2206, %v2230
        %v3351 = vsel %vm392, %v3343, 0.0
        %3352 = vadd.xlane.f32.xlu0 %v3351
        %v3353 = vpop.xlane.xlu0 %3352
        %v3354 = vsel %vm392, %v3344, 0.0
        %3355 = vadd.xlane.f32.xlu0 %v3354
        %v3356 = vpop.xlane.xlu0 %3355
        %v3357 = vsel %vm392, %v3345, 0.0
        %3358 = vadd.xlane.f32.xlu0 %v3357
        %v3359 = vpop.xlane.xlu0 %3358
        %v3360 = vsel %vm392, %v3346, 0.0
        %3361 = vadd.xlane.f32.xlu0 %v3360
        %v3362 = vpop.xlane.xlu0 %3361
        %v3363 = vsel %vm392, %v3347, 0.0
        %3364 = vadd.xlane.f32.xlu0 %v3363
        %v3365 = vpop.xlane.xlu0 %3364
        %v3366 = vsel %vm392, %v3348, 0.0
        %3367 = vadd.xlane.f32.xlu0 %v3366
        %v3368 = vpop.xlane.xlu0 %3367
        %v3369 = vsel %vm392, %v3349, 0.0
        %3370 = vadd.xlane.f32.xlu0 %v3369
        %v3371 = vpop.xlane.xlu0 %3370
        %v3372 = vsel %vm392, %v3350, 0.0
        %3373 = vadd.xlane.f32.xlu0 %v3372
        %v3374 = vpop.xlane.xlu0 %3373
        %v3375 = vadd.f32 %v3353, %v3356
        %v3376 = vadd.f32 %v3375, %v3359
        %v3377 = vadd.f32 %v3376, %v3362
        %v3378 = vadd.f32 %v3377, %v3365
        %v3379 = vadd.f32 %v3378, %v3368
        %v3380 = vadd.f32 %v3379, %v3371
        %v3381 = vadd.f32 %v3380, %v3374
        %v3382 = vrot.slane %v3381, 4
        %v3383 = vadd.f32 %v3381, %v3382
        %v3384 = vrot.slane %v3383, 2
        %v3385 = vadd.f32 %v3383, %v3384
        %v3386 = vrot.slane %v3385, 1
        %v3387 = vadd.f32 %v3385, %v3386
        %v3388 = vmul.f32 %v3387, 0.044194173
        %v3389 = vmul.f32 %v2199, %v2231
        %v3390 = vmul.f32 %v2200, %v2232
        %v3391 = vmul.f32 %v2201, %v2233
        %v3392 = vmul.f32 %v2202, %v2234
        %v3393 = vmul.f32 %v2203, %v2235
        %v3394 = vmul.f32 %v2204, %v2236
        %v3395 = vmul.f32 %v2205, %v2237
        %v3396 = vmul.f32 %v2206, %v2238
        %v3397 = vsel %vm392, %v3389, 0.0
        %3398 = vadd.xlane.f32.xlu0 %v3397
        %v3399 = vpop.xlane.xlu0 %3398
        %v3400 = vsel %vm392, %v3390, 0.0
        %3401 = vadd.xlane.f32.xlu0 %v3400
        %v3402 = vpop.xlane.xlu0 %3401
        %v3403 = vsel %vm392, %v3391, 0.0
        %3404 = vadd.xlane.f32.xlu0 %v3403
        %v3405 = vpop.xlane.xlu0 %3404
        %v3406 = vsel %vm392, %v3392, 0.0
        %3407 = vadd.xlane.f32.xlu0 %v3406
        %v3408 = vpop.xlane.xlu0 %3407
        %v3409 = vsel %vm392, %v3393, 0.0
        %3410 = vadd.xlane.f32.xlu0 %v3409
        %v3411 = vpop.xlane.xlu0 %3410
        %v3412 = vsel %vm392, %v3394, 0.0
        %3413 = vadd.xlane.f32.xlu0 %v3412
        %v3414 = vpop.xlane.xlu0 %3413
        %v3415 = vsel %vm392, %v3395, 0.0
        %3416 = vadd.xlane.f32.xlu0 %v3415
        %v3417 = vpop.xlane.xlu0 %3416
        %v3418 = vsel %vm392, %v3396, 0.0
        %3419 = vadd.xlane.f32.xlu0 %v3418
        %v3420 = vpop.xlane.xlu0 %3419
        %v3421 = vadd.f32 %v3399, %v3402
        %v3422 = vadd.f32 %v3421, %v3405
        %v3423 = vadd.f32 %v3422, %v3408
        %v3424 = vadd.f32 %v3423, %v3411
        %v3425 = vadd.f32 %v3424, %v3414
        %v3426 = vadd.f32 %v3425, %v3417
        %v3427 = vadd.f32 %v3426, %v3420
        %v3428 = vrot.slane %v3427, 4
        %v3429 = vadd.f32 %v3427, %v3428
        %v3430 = vrot.slane %v3429, 2
        %v3431 = vadd.f32 %v3429, %v3430
        %v3432 = vrot.slane %v3431, 1
        %v3433 = vadd.f32 %v3431, %v3432
        %v3434 = vmul.f32 %v3433, 0.044194173
        %v3435 = vmul.f32 %v2207, %v2207
        %v3436 = vmul.f32 %v2208, %v2208
        %v3437 = vmul.f32 %v2209, %v2209
        %v3438 = vmul.f32 %v2210, %v2210
        %v3439 = vmul.f32 %v2211, %v2211
        %v3440 = vmul.f32 %v2212, %v2212
        %v3441 = vmul.f32 %v2213, %v2213
        %v3442 = vmul.f32 %v2214, %v2214
        %v3443 = vsel %vm392, %v3435, 0.0
        %3444 = vadd.xlane.f32.xlu0 %v3443
        %v3445 = vpop.xlane.xlu0 %3444
        %v3446 = vsel %vm392, %v3436, 0.0
        %3447 = vadd.xlane.f32.xlu0 %v3446
        %v3448 = vpop.xlane.xlu0 %3447
        %v3449 = vsel %vm392, %v3437, 0.0
        %3450 = vadd.xlane.f32.xlu0 %v3449
        %v3451 = vpop.xlane.xlu0 %3450
        %v3452 = vsel %vm392, %v3438, 0.0
        %3453 = vadd.xlane.f32.xlu0 %v3452
        %v3454 = vpop.xlane.xlu0 %3453
        %v3455 = vsel %vm392, %v3439, 0.0
        %3456 = vadd.xlane.f32.xlu0 %v3455
        %v3457 = vpop.xlane.xlu0 %3456
        %v3458 = vsel %vm392, %v3440, 0.0
        %3459 = vadd.xlane.f32.xlu0 %v3458
        %v3460 = vpop.xlane.xlu0 %3459
        %v3461 = vsel %vm392, %v3441, 0.0
        %3462 = vadd.xlane.f32.xlu0 %v3461
        %v3463 = vpop.xlane.xlu0 %3462
        %v3464 = vsel %vm392, %v3442, 0.0
        %3465 = vadd.xlane.f32.xlu0 %v3464
        %v3466 = vpop.xlane.xlu0 %3465
        %v3467 = vadd.f32 %v3445, %v3448
        %v3468 = vadd.f32 %v3467, %v3451
        %v3469 = vadd.f32 %v3468, %v3454
        %v3470 = vadd.f32 %v3469, %v3457
        %v3471 = vadd.f32 %v3470, %v3460
        %v3472 = vadd.f32 %v3471, %v3463
        %v3473 = vadd.f32 %v3472, %v3466
        %v3474 = vrot.slane %v3473, 4
        %v3475 = vadd.f32 %v3473, %v3474
        %v3476 = vrot.slane %v3475, 2
        %v3477 = vadd.f32 %v3475, %v3476
        %v3478 = vrot.slane %v3477, 1
        %v3479 = vadd.f32 %v3477, %v3478
        %v3480 = vmul.f32 %v3479, 0.044194173
        %v3481 = vmul.f32 %v2207, %v2215
        %v3482 = vmul.f32 %v2208, %v2216
        %v3483 = vmul.f32 %v2209, %v2217
        %v3484 = vmul.f32 %v2210, %v2218
        %v3485 = vmul.f32 %v2211, %v2219
        %v3486 = vmul.f32 %v2212, %v2220
        %v3487 = vmul.f32 %v2213, %v2221
        %v3488 = vmul.f32 %v2214, %v2222
        %v3489 = vsel %vm392, %v3481, 0.0
        %3490 = vadd.xlane.f32.xlu0 %v3489
        %v3491 = vpop.xlane.xlu0 %3490
        %v3492 = vsel %vm392, %v3482, 0.0
        %3493 = vadd.xlane.f32.xlu0 %v3492
        %v3494 = vpop.xlane.xlu0 %3493
        %v3495 = vsel %vm392, %v3483, 0.0
        %3496 = vadd.xlane.f32.xlu0 %v3495
        %v3497 = vpop.xlane.xlu0 %3496
        %v3498 = vsel %vm392, %v3484, 0.0
        %3499 = vadd.xlane.f32.xlu0 %v3498
        %v3500 = vpop.xlane.xlu0 %3499
        %v3501 = vsel %vm392, %v3485, 0.0
        %3502 = vadd.xlane.f32.xlu0 %v3501
        %v3503 = vpop.xlane.xlu0 %3502
        %v3504 = vsel %vm392, %v3486, 0.0
        %3505 = vadd.xlane.f32.xlu0 %v3504
        %v3506 = vpop.xlane.xlu0 %3505
        %v3507 = vsel %vm392, %v3487, 0.0
        %3508 = vadd.xlane.f32.xlu0 %v3507
        %v3509 = vpop.xlane.xlu0 %3508
        %v3510 = vsel %vm392, %v3488, 0.0
        %3511 = vadd.xlane.f32.xlu0 %v3510
        %v3512 = vpop.xlane.xlu0 %3511
        %v3513 = vadd.f32 %v3491, %v3494
        %v3514 = vadd.f32 %v3513, %v3497
        %v3515 = vadd.f32 %v3514, %v3500
        %v3516 = vadd.f32 %v3515, %v3503
        %v3517 = vadd.f32 %v3516, %v3506
        %v3518 = vadd.f32 %v3517, %v3509
        %v3519 = vadd.f32 %v3518, %v3512
        %v3520 = vrot.slane %v3519, 4
        %v3521 = vadd.f32 %v3519, %v3520
        %v3522 = vrot.slane %v3521, 2
        %v3523 = vadd.f32 %v3521, %v3522
        %v3524 = vrot.slane %v3523, 1
        %v3525 = vadd.f32 %v3523, %v3524
        %v3526 = vmul.f32 %v3525, 0.044194173
        %v3527 = vmul.f32 %v2207, %v2223
        %v3528 = vmul.f32 %v2208, %v2224
        %v3529 = vmul.f32 %v2209, %v2225
        %v3530 = vmul.f32 %v2210, %v2226
        %v3531 = vmul.f32 %v2211, %v2227
        %v3532 = vmul.f32 %v2212, %v2228
        %v3533 = vmul.f32 %v2213, %v2229
        %v3534 = vmul.f32 %v2214, %v2230
        %v3535 = vsel %vm392, %v3527, 0.0
        %3536 = vadd.xlane.f32.xlu0 %v3535
        %v3537 = vpop.xlane.xlu0 %3536
        %v3538 = vsel %vm392, %v3528, 0.0
        %3539 = vadd.xlane.f32.xlu0 %v3538
        %v3540 = vpop.xlane.xlu0 %3539
        %v3541 = vsel %vm392, %v3529, 0.0
        %3542 = vadd.xlane.f32.xlu0 %v3541
        %v3543 = vpop.xlane.xlu0 %3542
        %v3544 = vsel %vm392, %v3530, 0.0
        %3545 = vadd.xlane.f32.xlu0 %v3544
        %v3546 = vpop.xlane.xlu0 %3545
        %v3547 = vsel %vm392, %v3531, 0.0
        %3548 = vadd.xlane.f32.xlu0 %v3547
        %v3549 = vpop.xlane.xlu0 %3548
        %v3550 = vsel %vm392, %v3532, 0.0
        %3551 = vadd.xlane.f32.xlu0 %v3550
        %v3552 = vpop.xlane.xlu0 %3551
        %v3553 = vsel %vm392, %v3533, 0.0
        %3554 = vadd.xlane.f32.xlu0 %v3553
        %v3555 = vpop.xlane.xlu0 %3554
        %v3556 = vsel %vm392, %v3534, 0.0
        %3557 = vadd.xlane.f32.xlu0 %v3556
        %v3558 = vpop.xlane.xlu0 %3557
        %v3559 = vadd.f32 %v3537, %v3540
        %v3560 = vadd.f32 %v3559, %v3543
        %v3561 = vadd.f32 %v3560, %v3546
        %v3562 = vadd.f32 %v3561, %v3549
        %v3563 = vadd.f32 %v3562, %v3552
        %v3564 = vadd.f32 %v3563, %v3555
        %v3565 = vadd.f32 %v3564, %v3558
        %v3566 = vrot.slane %v3565, 4
        %v3567 = vadd.f32 %v3565, %v3566
        %v3568 = vrot.slane %v3567, 2
        %v3569 = vadd.f32 %v3567, %v3568
        %v3570 = vrot.slane %v3569, 1
        %v3571 = vadd.f32 %v3569, %v3570
        %v3572 = vmul.f32 %v3571, 0.044194173
        %v3573 = vmul.f32 %v2207, %v2231
        %v3574 = vmul.f32 %v2208, %v2232
        %v3575 = vmul.f32 %v2209, %v2233
        %v3576 = vmul.f32 %v2210, %v2234
        %v3577 = vmul.f32 %v2211, %v2235
        %v3578 = vmul.f32 %v2212, %v2236
        %v3579 = vmul.f32 %v2213, %v2237
        %v3580 = vmul.f32 %v2214, %v2238
        %v3581 = vsel %vm392, %v3573, 0.0
        %3582 = vadd.xlane.f32.xlu0 %v3581
        %v3583 = vpop.xlane.xlu0 %3582
        %v3584 = vsel %vm392, %v3574, 0.0
        %3585 = vadd.xlane.f32.xlu0 %v3584
        %v3586 = vpop.xlane.xlu0 %3585
        %v3587 = vsel %vm392, %v3575, 0.0
        %3588 = vadd.xlane.f32.xlu0 %v3587
        %v3589 = vpop.xlane.xlu0 %3588
        %v3590 = vsel %vm392, %v3576, 0.0
        %3591 = vadd.xlane.f32.xlu0 %v3590
        %v3592 = vpop.xlane.xlu0 %3591
        %v3593 = vsel %vm392, %v3577, 0.0
        %3594 = vadd.xlane.f32.xlu0 %v3593
        %v3595 = vpop.xlane.xlu0 %3594
        %v3596 = vsel %vm392, %v3578, 0.0
        %3597 = vadd.xlane.f32.xlu0 %v3596
        %v3598 = vpop.xlane.xlu0 %3597
        %v3599 = vsel %vm392, %v3579, 0.0
        %3600 = vadd.xlane.f32.xlu0 %v3599
        %v3601 = vpop.xlane.xlu0 %3600
        %v3602 = vsel %vm392, %v3580, 0.0
        %3603 = vadd.xlane.f32.xlu0 %v3602
        %v3604 = vpop.xlane.xlu0 %3603
        %v3605 = vadd.f32 %v3583, %v3586
        %v3606 = vadd.f32 %v3605, %v3589
        %v3607 = vadd.f32 %v3606, %v3592
        %v3608 = vadd.f32 %v3607, %v3595
        %v3609 = vadd.f32 %v3608, %v3598
        %v3610 = vadd.f32 %v3609, %v3601
        %v3611 = vadd.f32 %v3610, %v3604
        %v3612 = vrot.slane %v3611, 4
        %v3613 = vadd.f32 %v3611, %v3612
        %v3614 = vrot.slane %v3613, 2
        %v3615 = vadd.f32 %v3613, %v3614
        %v3616 = vrot.slane %v3615, 1
        %v3617 = vadd.f32 %v3615, %v3616
        %v3618 = vmul.f32 %v3617, 0.044194173
        %v3619 = vmul.f32 %v2215, %v2215
        %v3620 = vmul.f32 %v2216, %v2216
        %v3621 = vmul.f32 %v2217, %v2217
        %v3622 = vmul.f32 %v2218, %v2218
        %v3623 = vmul.f32 %v2219, %v2219
        %v3624 = vmul.f32 %v2220, %v2220
        %v3625 = vmul.f32 %v2221, %v2221
        %v3626 = vmul.f32 %v2222, %v2222
        %v3627 = vsel %vm392, %v3619, 0.0
        %3628 = vadd.xlane.f32.xlu0 %v3627
        %v3629 = vpop.xlane.xlu0 %3628
        %v3630 = vsel %vm392, %v3620, 0.0
        %3631 = vadd.xlane.f32.xlu0 %v3630
        %v3632 = vpop.xlane.xlu0 %3631
        %v3633 = vsel %vm392, %v3621, 0.0
        %3634 = vadd.xlane.f32.xlu0 %v3633
        %v3635 = vpop.xlane.xlu0 %3634
        %v3636 = vsel %vm392, %v3622, 0.0
        %3637 = vadd.xlane.f32.xlu0 %v3636
        %v3638 = vpop.xlane.xlu0 %3637
        %v3639 = vsel %vm392, %v3623, 0.0
        %3640 = vadd.xlane.f32.xlu0 %v3639
        %v3641 = vpop.xlane.xlu0 %3640
        %v3642 = vsel %vm392, %v3624, 0.0
        %3643 = vadd.xlane.f32.xlu0 %v3642
        %v3644 = vpop.xlane.xlu0 %3643
        %v3645 = vsel %vm392, %v3625, 0.0
        %3646 = vadd.xlane.f32.xlu0 %v3645
        %v3647 = vpop.xlane.xlu0 %3646
        %v3648 = vsel %vm392, %v3626, 0.0
        %3649 = vadd.xlane.f32.xlu0 %v3648
        %v3650 = vpop.xlane.xlu0 %3649
        %v3651 = vadd.f32 %v3629, %v3632
        %v3652 = vadd.f32 %v3651, %v3635
        %v3653 = vadd.f32 %v3652, %v3638
        %v3654 = vadd.f32 %v3653, %v3641
        %v3655 = vadd.f32 %v3654, %v3644
        %v3656 = vadd.f32 %v3655, %v3647
        %v3657 = vadd.f32 %v3656, %v3650
        %v3658 = vrot.slane %v3657, 4
        %v3659 = vadd.f32 %v3657, %v3658
        %v3660 = vrot.slane %v3659, 2
        %v3661 = vadd.f32 %v3659, %v3660
        %v3662 = vrot.slane %v3661, 1
        %v3663 = vadd.f32 %v3661, %v3662
        %v3664 = vmul.f32 %v3663, 0.044194173
        %v3665 = vmul.f32 %v2215, %v2223
        %v3666 = vmul.f32 %v2216, %v2224
        %v3667 = vmul.f32 %v2217, %v2225
        %v3668 = vmul.f32 %v2218, %v2226
        %v3669 = vmul.f32 %v2219, %v2227
        %v3670 = vmul.f32 %v2220, %v2228
        %v3671 = vmul.f32 %v2221, %v2229
        %v3672 = vmul.f32 %v2222, %v2230
        %v3673 = vsel %vm392, %v3665, 0.0
        %3674 = vadd.xlane.f32.xlu0 %v3673
        %v3675 = vpop.xlane.xlu0 %3674
        %v3676 = vsel %vm392, %v3666, 0.0
        %3677 = vadd.xlane.f32.xlu0 %v3676
        %v3678 = vpop.xlane.xlu0 %3677
        %v3679 = vsel %vm392, %v3667, 0.0
        %3680 = vadd.xlane.f32.xlu0 %v3679
        %v3681 = vpop.xlane.xlu0 %3680
        %v3682 = vsel %vm392, %v3668, 0.0
        %3683 = vadd.xlane.f32.xlu0 %v3682
        %v3684 = vpop.xlane.xlu0 %3683
        %v3685 = vsel %vm392, %v3669, 0.0
        %3686 = vadd.xlane.f32.xlu0 %v3685
        %v3687 = vpop.xlane.xlu0 %3686
        %v3688 = vsel %vm392, %v3670, 0.0
        %3689 = vadd.xlane.f32.xlu0 %v3688
        %v3690 = vpop.xlane.xlu0 %3689
        %v3691 = vsel %vm392, %v3671, 0.0
        %3692 = vadd.xlane.f32.xlu0 %v3691
        %v3693 = vpop.xlane.xlu0 %3692
        %v3694 = vsel %vm392, %v3672, 0.0
        %3695 = vadd.xlane.f32.xlu0 %v3694
        %v3696 = vpop.xlane.xlu0 %3695
        %v3697 = vadd.f32 %v3675, %v3678
        %v3698 = vadd.f32 %v3697, %v3681
        %v3699 = vadd.f32 %v3698, %v3684
        %v3700 = vadd.f32 %v3699, %v3687
        %v3701 = vadd.f32 %v3700, %v3690
        %v3702 = vadd.f32 %v3701, %v3693
        %v3703 = vadd.f32 %v3702, %v3696
        %v3704 = vrot.slane %v3703, 4
        %v3705 = vadd.f32 %v3703, %v3704
        %v3706 = vrot.slane %v3705, 2
        %v3707 = vadd.f32 %v3705, %v3706
        %v3708 = vrot.slane %v3707, 1
        %v3709 = vadd.f32 %v3707, %v3708
        %v3710 = vmul.f32 %v3709, 0.044194173
        %v3711 = vmul.f32 %v2215, %v2231
        %v3712 = vmul.f32 %v2216, %v2232
        %v3713 = vmul.f32 %v2217, %v2233
        %v3714 = vmul.f32 %v2218, %v2234
        %v3715 = vmul.f32 %v2219, %v2235
        %v3716 = vmul.f32 %v2220, %v2236
        %v3717 = vmul.f32 %v2221, %v2237
        %v3718 = vmul.f32 %v2222, %v2238
        %v3719 = vsel %vm392, %v3711, 0.0
        %3720 = vadd.xlane.f32.xlu0 %v3719
        %v3721 = vpop.xlane.xlu0 %3720
        %v3722 = vsel %vm392, %v3712, 0.0
        %3723 = vadd.xlane.f32.xlu0 %v3722
        %v3724 = vpop.xlane.xlu0 %3723
        %v3725 = vsel %vm392, %v3713, 0.0
        %3726 = vadd.xlane.f32.xlu0 %v3725
        %v3727 = vpop.xlane.xlu0 %3726
        %v3728 = vsel %vm392, %v3714, 0.0
        %3729 = vadd.xlane.f32.xlu0 %v3728
        %v3730 = vpop.xlane.xlu0 %3729
        %v3731 = vsel %vm392, %v3715, 0.0
        %3732 = vadd.xlane.f32.xlu0 %v3731
        %v3733 = vpop.xlane.xlu0 %3732
        %v3734 = vsel %vm392, %v3716, 0.0
        %3735 = vadd.xlane.f32.xlu0 %v3734
        %v3736 = vpop.xlane.xlu0 %3735
        %v3737 = vsel %vm392, %v3717, 0.0
        %3738 = vadd.xlane.f32.xlu0 %v3737
        %v3739 = vpop.xlane.xlu0 %3738
        %v3740 = vsel %vm392, %v3718, 0.0
        %3741 = vadd.xlane.f32.xlu0 %v3740
        %v3742 = vpop.xlane.xlu0 %3741
        %v3743 = vadd.f32 %v3721, %v3724
        %v3744 = vadd.f32 %v3743, %v3727
        %v3745 = vadd.f32 %v3744, %v3730
        %v3746 = vadd.f32 %v3745, %v3733
        %v3747 = vadd.f32 %v3746, %v3736
        %v3748 = vadd.f32 %v3747, %v3739
        %v3749 = vadd.f32 %v3748, %v3742
        %v3750 = vrot.slane %v3749, 4
        %v3751 = vadd.f32 %v3749, %v3750
        %v3752 = vrot.slane %v3751, 2
        %v3753 = vadd.f32 %v3751, %v3752
        %v3754 = vrot.slane %v3753, 1
        %v3755 = vadd.f32 %v3753, %v3754
        %v3756 = vmul.f32 %v3755, 0.044194173
        %v3757 = vmul.f32 %v2223, %v2223
        %v3758 = vmul.f32 %v2224, %v2224
        %v3759 = vmul.f32 %v2225, %v2225
        %v3760 = vmul.f32 %v2226, %v2226
        %v3761 = vmul.f32 %v2227, %v2227
        %v3762 = vmul.f32 %v2228, %v2228
        %v3763 = vmul.f32 %v2229, %v2229
        %v3764 = vmul.f32 %v2230, %v2230
        %v3765 = vsel %vm392, %v3757, 0.0
        %3766 = vadd.xlane.f32.xlu0 %v3765
        %v3767 = vpop.xlane.xlu0 %3766
        %v3768 = vsel %vm392, %v3758, 0.0
        %3769 = vadd.xlane.f32.xlu0 %v3768
        %v3770 = vpop.xlane.xlu0 %3769
        %v3771 = vsel %vm392, %v3759, 0.0
        %3772 = vadd.xlane.f32.xlu0 %v3771
        %v3773 = vpop.xlane.xlu0 %3772
        %v3774 = vsel %vm392, %v3760, 0.0
        %3775 = vadd.xlane.f32.xlu0 %v3774
        %v3776 = vpop.xlane.xlu0 %3775
        %v3777 = vsel %vm392, %v3761, 0.0
        %3778 = vadd.xlane.f32.xlu0 %v3777
        %v3779 = vpop.xlane.xlu0 %3778
        %v3780 = vsel %vm392, %v3762, 0.0
        %3781 = vadd.xlane.f32.xlu0 %v3780
        %v3782 = vpop.xlane.xlu0 %3781
        %v3783 = vsel %vm392, %v3763, 0.0
        %3784 = vadd.xlane.f32.xlu0 %v3783
        %v3785 = vpop.xlane.xlu0 %3784
        %v3786 = vsel %vm392, %v3764, 0.0
        %3787 = vadd.xlane.f32.xlu0 %v3786
        %v3788 = vpop.xlane.xlu0 %3787
        %v3789 = vadd.f32 %v3767, %v3770
        %v3790 = vadd.f32 %v3789, %v3773
        %v3791 = vadd.f32 %v3790, %v3776
        %v3792 = vadd.f32 %v3791, %v3779
        %v3793 = vadd.f32 %v3792, %v3782
        %v3794 = vadd.f32 %v3793, %v3785
        %v3795 = vadd.f32 %v3794, %v3788
        %v3796 = vrot.slane %v3795, 4
        %v3797 = vadd.f32 %v3795, %v3796
        %v3798 = vrot.slane %v3797, 2
        %v3799 = vadd.f32 %v3797, %v3798
        %v3800 = vrot.slane %v3799, 1
        %v3801 = vadd.f32 %v3799, %v3800
        %v3802 = vmul.f32 %v3801, 0.044194173
        %v3803 = vmul.f32 %v2223, %v2231
        %v3804 = vmul.f32 %v2224, %v2232
        %v3805 = vmul.f32 %v2225, %v2233
        %v3806 = vmul.f32 %v2226, %v2234
        %v3807 = vmul.f32 %v2227, %v2235
        %v3808 = vmul.f32 %v2228, %v2236
        %v3809 = vmul.f32 %v2229, %v2237
        %v3810 = vmul.f32 %v2230, %v2238
        %v3811 = vsel %vm392, %v3803, 0.0
        %3812 = vadd.xlane.f32.xlu0 %v3811
        %v3813 = vpop.xlane.xlu0 %3812
        %v3814 = vsel %vm392, %v3804, 0.0
        %3815 = vadd.xlane.f32.xlu0 %v3814
        %v3816 = vpop.xlane.xlu0 %3815
        %v3817 = vsel %vm392, %v3805, 0.0
        %3818 = vadd.xlane.f32.xlu0 %v3817
        %v3819 = vpop.xlane.xlu0 %3818
        %v3820 = vsel %vm392, %v3806, 0.0
        %3821 = vadd.xlane.f32.xlu0 %v3820
        %v3822 = vpop.xlane.xlu0 %3821
        %v3823 = vsel %vm392, %v3807, 0.0
        %3824 = vadd.xlane.f32.xlu0 %v3823
        %v3825 = vpop.xlane.xlu0 %3824
        %v3826 = vsel %vm392, %v3808, 0.0
        %3827 = vadd.xlane.f32.xlu0 %v3826
        %v3828 = vpop.xlane.xlu0 %3827
        %v3829 = vsel %vm392, %v3809, 0.0
        %3830 = vadd.xlane.f32.xlu0 %v3829
        %v3831 = vpop.xlane.xlu0 %3830
        %v3832 = vsel %vm392, %v3810, 0.0
        %3833 = vadd.xlane.f32.xlu0 %v3832
        %v3834 = vpop.xlane.xlu0 %3833
        %v3835 = vadd.f32 %v3813, %v3816
        %v3836 = vadd.f32 %v3835, %v3819
        %v3837 = vadd.f32 %v3836, %v3822
        %v3838 = vadd.f32 %v3837, %v3825
        %v3839 = vadd.f32 %v3838, %v3828
        %v3840 = vadd.f32 %v3839, %v3831
        %v3841 = vadd.f32 %v3840, %v3834
        %v3842 = vrot.slane %v3841, 4
        %v3843 = vadd.f32 %v3841, %v3842
        %v3844 = vrot.slane %v3843, 2
        %v3845 = vadd.f32 %v3843, %v3844
        %v3846 = vrot.slane %v3845, 1
        %v3847 = vadd.f32 %v3845, %v3846
        %v3848 = vmul.f32 %v3847, 0.044194173
        %v3849 = vmul.f32 %v2231, %v2231
        %v3850 = vmul.f32 %v2232, %v2232
        %v3851 = vmul.f32 %v2233, %v2233
        %v3852 = vmul.f32 %v2234, %v2234
        %v3853 = vmul.f32 %v2235, %v2235
        %v3854 = vmul.f32 %v2236, %v2236
        %v3855 = vmul.f32 %v2237, %v2237
        %v3856 = vmul.f32 %v2238, %v2238
        %v3857 = vsel %vm392, %v3849, 0.0
        %3858 = vadd.xlane.f32.xlu0 %v3857
        %v3859 = vpop.xlane.xlu0 %3858
        %v3860 = vsel %vm392, %v3850, 0.0
        %3861 = vadd.xlane.f32.xlu0 %v3860
        %v3862 = vpop.xlane.xlu0 %3861
        %v3863 = vsel %vm392, %v3851, 0.0
        %3864 = vadd.xlane.f32.xlu0 %v3863
        %v3865 = vpop.xlane.xlu0 %3864
        %v3866 = vsel %vm392, %v3852, 0.0
        %3867 = vadd.xlane.f32.xlu0 %v3866
        %v3868 = vpop.xlane.xlu0 %3867
        %v3869 = vsel %vm392, %v3853, 0.0
        %3870 = vadd.xlane.f32.xlu0 %v3869
        %v3871 = vpop.xlane.xlu0 %3870
        %v3872 = vsel %vm392, %v3854, 0.0
        %3873 = vadd.xlane.f32.xlu0 %v3872
        %v3874 = vpop.xlane.xlu0 %3873
        %v3875 = vsel %vm392, %v3855, 0.0
        %3876 = vadd.xlane.f32.xlu0 %v3875
        %v3877 = vpop.xlane.xlu0 %3876
        %v3878 = vsel %vm392, %v3856, 0.0
        %3879 = vadd.xlane.f32.xlu0 %v3878
        %v3880 = vpop.xlane.xlu0 %3879
        %v3881 = vadd.f32 %v3859, %v3862
        %v3882 = vadd.f32 %v3881, %v3865
        %v3883 = vadd.f32 %v3882, %v3868
        %v3884 = vadd.f32 %v3883, %v3871
        %v3885 = vadd.f32 %v3884, %v3874
        %v3886 = vadd.f32 %v3885, %v3877
        %v3887 = vadd.f32 %v3886, %v3880
        %v3888 = vrot.slane %v3887, 4
        %v3889 = vadd.f32 %v3887, %v3888
        %v3890 = vrot.slane %v3889, 2
        %v3891 = vadd.f32 %v3889, %v3890
        %v3892 = vrot.slane %v3891, 1
        %v3893 = vadd.f32 %v3891, %v3892
        %v3894 = vmul.f32 %v3893, 0.044194173
        %v3895 = vmax.f32 %v2284, %v2330
        %v3896 = vmax.f32 %v3895, %v2376
        %v3897 = vmax.f32 %v3896, %v2422
        %v3898 = vmax.f32 %v3897, %v2468
        %v3899 = vmax.f32 %v3898, %v2514
        %v3900 = vmax.f32 %v3899, %v2560
        %v3901 = vmax.f32 %v3900, %v2606
        %v3902 = vsub.f32 %v2284, %v3901
        %v3903 = vmul.f32 %v3902, 1.442695
        %v3904 = vpow.pop %v3903
        %v3905 = vsub.f32 %v2330, %v3901
        %v3906 = vmul.f32 %v3905, 1.442695
        %v3907 = vpow.pop %v3906
        %v3908 = vsub.f32 %v2376, %v3901
        %v3909 = vmul.f32 %v3908, 1.442695
        %v3910 = vpow.pop %v3909
        %v3911 = vsub.f32 %v2422, %v3901
        %v3912 = vmul.f32 %v3911, 1.442695
        %v3913 = vpow.pop %v3912
        %v3914 = vsub.f32 %v2468, %v3901
        %v3915 = vmul.f32 %v3914, 1.442695
        %v3916 = vpow.pop %v3915
        %v3917 = vsub.f32 %v2514, %v3901
        %v3918 = vmul.f32 %v3917, 1.442695
        %v3919 = vpow.pop %v3918
        %v3920 = vsub.f32 %v2560, %v3901
        %v3921 = vmul.f32 %v3920, 1.442695
        %v3922 = vpow.pop %v3921
        %v3923 = vsub.f32 %v2606, %v3901
        %v3924 = vmul.f32 %v3923, 1.442695
        %v3925 = vpow.pop %v3924
        %v3926 = vadd.f32 %v3904, %v3907
        %v3927 = vadd.f32 %v3926, %v3910
        %v3928 = vadd.f32 %v3927, %v3913
        %v3929 = vadd.f32 %v3928, %v3916
        %v3930 = vadd.f32 %v3929, %v3919
        %v3931 = vadd.f32 %v3930, %v3922
        %v3932 = vadd.f32 %v3931, %v3925
        %v3933 = vrcp.pop %v3932
        %v3934 = vmul.f32 1.0, %v3933
        %v3935 = vmul.f32 %v3904, %v3934
        %v3936 = vmul.f32 %v3935, %v2175
        %v3937 = vmul.f32 %v3935, %v2176
        %v3938 = vmul.f32 %v3935, %v2177
        %v3939 = vmul.f32 %v3935, %v2178
        %v3940 = vmul.f32 %v3935, %v2179
        %v3941 = vmul.f32 %v3935, %v2180
        %v3942 = vmul.f32 %v3935, %v2181
        %v3943 = vmul.f32 %v3935, %v2182
        %v3944 = vmul.f32 %v3907, %v3934
        %v3945 = vmul.f32 %v3944, %v2183
        %v3946 = vmul.f32 %v3944, %v2184
        %v3947 = vmul.f32 %v3944, %v2185
        %v3948 = vmul.f32 %v3944, %v2186
        %v3949 = vmul.f32 %v3944, %v2187
        %v3950 = vmul.f32 %v3944, %v2188
        %v3951 = vmul.f32 %v3944, %v2189
        %v3952 = vmul.f32 %v3944, %v2190
        %v3953 = vadd.f32 %v3936, %v3945
        %v3954 = vadd.f32 %v3937, %v3946
        %v3955 = vadd.f32 %v3938, %v3947
        %v3956 = vadd.f32 %v3939, %v3948
        %v3957 = vadd.f32 %v3940, %v3949
        %v3958 = vadd.f32 %v3941, %v3950
        %v3959 = vadd.f32 %v3942, %v3951
        %v3960 = vadd.f32 %v3943, %v3952
        %v3961 = vmul.f32 %v3910, %v3934
        %v3962 = vmul.f32 %v3961, %v2191
        %v3963 = vmul.f32 %v3961, %v2192
        %v3964 = vmul.f32 %v3961, %v2193
        %v3965 = vmul.f32 %v3961, %v2194
        %v3966 = vmul.f32 %v3961, %v2195
        %v3967 = vmul.f32 %v3961, %v2196
        %v3968 = vmul.f32 %v3961, %v2197
        %v3969 = vmul.f32 %v3961, %v2198
        %v3970 = vadd.f32 %v3953, %v3962
        %v3971 = vadd.f32 %v3954, %v3963
        %v3972 = vadd.f32 %v3955, %v3964
        %v3973 = vadd.f32 %v3956, %v3965
        %v3974 = vadd.f32 %v3957, %v3966
        %v3975 = vadd.f32 %v3958, %v3967
        %v3976 = vadd.f32 %v3959, %v3968
        %v3977 = vadd.f32 %v3960, %v3969
        %v3978 = vmul.f32 %v3913, %v3934
        %v3979 = vmul.f32 %v3978, %v2199
        %v3980 = vmul.f32 %v3978, %v2200
        %v3981 = vmul.f32 %v3978, %v2201
        %v3982 = vmul.f32 %v3978, %v2202
        %v3983 = vmul.f32 %v3978, %v2203
        %v3984 = vmul.f32 %v3978, %v2204
        %v3985 = vmul.f32 %v3978, %v2205
        %v3986 = vmul.f32 %v3978, %v2206
        %v3987 = vadd.f32 %v3970, %v3979
        %v3988 = vadd.f32 %v3971, %v3980
        %v3989 = vadd.f32 %v3972, %v3981
        %v3990 = vadd.f32 %v3973, %v3982
        %v3991 = vadd.f32 %v3974, %v3983
        %v3992 = vadd.f32 %v3975, %v3984
        %v3993 = vadd.f32 %v3976, %v3985
        %v3994 = vadd.f32 %v3977, %v3986
        %v3995 = vmul.f32 %v3916, %v3934
        %v3996 = vmul.f32 %v3995, %v2207
        %v3997 = vmul.f32 %v3995, %v2208
        %v3998 = vmul.f32 %v3995, %v2209
        %v3999 = vmul.f32 %v3995, %v2210
        %v4000 = vmul.f32 %v3995, %v2211
        %v4001 = vmul.f32 %v3995, %v2212
        %v4002 = vmul.f32 %v3995, %v2213
        %v4003 = vmul.f32 %v3995, %v2214
        %v4004 = vadd.f32 %v3987, %v3996
        %v4005 = vadd.f32 %v3988, %v3997
        %v4006 = vadd.f32 %v3989, %v3998
        %v4007 = vadd.f32 %v3990, %v3999
        %v4008 = vadd.f32 %v3991, %v4000
        %v4009 = vadd.f32 %v3992, %v4001
        %v4010 = vadd.f32 %v3993, %v4002
        %v4011 = vadd.f32 %v3994, %v4003
        %v4012 = vmul.f32 %v3919, %v3934
        %v4013 = vmul.f32 %v4012, %v2215
        %v4014 = vmul.f32 %v4012, %v2216
        %v4015 = vmul.f32 %v4012, %v2217
        %v4016 = vmul.f32 %v4012, %v2218
        %v4017 = vmul.f32 %v4012, %v2219
        %v4018 = vmul.f32 %v4012, %v2220
        %v4019 = vmul.f32 %v4012, %v2221
        %v4020 = vmul.f32 %v4012, %v2222
        %v4021 = vadd.f32 %v4004, %v4013
        %v4022 = vadd.f32 %v4005, %v4014
        %v4023 = vadd.f32 %v4006, %v4015
        %v4024 = vadd.f32 %v4007, %v4016
        %v4025 = vadd.f32 %v4008, %v4017
        %v4026 = vadd.f32 %v4009, %v4018
        %v4027 = vadd.f32 %v4010, %v4019
        %v4028 = vadd.f32 %v4011, %v4020
        %v4029 = vmul.f32 %v3922, %v3934
        %v4030 = vmul.f32 %v4029, %v2223
        %v4031 = vmul.f32 %v4029, %v2224
        %v4032 = vmul.f32 %v4029, %v2225
        %v4033 = vmul.f32 %v4029, %v2226
        %v4034 = vmul.f32 %v4029, %v2227
        %v4035 = vmul.f32 %v4029, %v2228
        %v4036 = vmul.f32 %v4029, %v2229
        %v4037 = vmul.f32 %v4029, %v2230
        %v4038 = vadd.f32 %v4021, %v4030
        %v4039 = vadd.f32 %v4022, %v4031
        %v4040 = vadd.f32 %v4023, %v4032
        %v4041 = vadd.f32 %v4024, %v4033
        %v4042 = vadd.f32 %v4025, %v4034
        %v4043 = vadd.f32 %v4026, %v4035
        %v4044 = vadd.f32 %v4027, %v4036
        %v4045 = vadd.f32 %v4028, %v4037
        %v4046 = vmul.f32 %v3925, %v3934
        %v4047 = vmul.f32 %v4046, %v2231
        %v4048 = vmul.f32 %v4046, %v2232
        %v4049 = vmul.f32 %v4046, %v2233
        %v4050 = vmul.f32 %v4046, %v2234
        %v4051 = vmul.f32 %v4046, %v2235
        %v4052 = vmul.f32 %v4046, %v2236
        %v4053 = vmul.f32 %v4046, %v2237
        %v4054 = vmul.f32 %v4046, %v2238
        %v4055 = vadd.f32 %v4038, %v4047
        %v4056 = vadd.f32 %v4039, %v4048
        %v4057 = vadd.f32 %v4040, %v4049
        %v4058 = vadd.f32 %v4041, %v4050
        %v4059 = vadd.f32 %v4042, %v4051
        %v4060 = vadd.f32 %v4043, %v4052
        %v4061 = vadd.f32 %v4044, %v4053
        %v4062 = vadd.f32 %v4045, %v4054
        %v4063 = vadd.f32 %v4055, %v354
        %v4064 = vadd.f32 %v4056, %v359
        %v4065 = vadd.f32 %v4057, %v364
        %v4066 = vadd.f32 %v4058, %v369
        %v4067 = vadd.f32 %v4059, %v374
        %v4068 = vadd.f32 %v4060, %v379
        %v4069 = vadd.f32 %v4061, %v384
        %v4070 = vadd.f32 %v4062, %v389
        %v4072 = vlaneseq
        %v4073 = vshrl.u32 %v4072, 7
        %v4074 = vsub.s32 0, %v4073
        %v4075 = vrot.slane %v247, %v4074
        %v4078 = vsel %vm392, %v4063, 0
        %v4081 = vsel %vm392, %v4064, 0
        %v4084 = vsel %vm392, %v4065, 0
        %v4087 = vsel %vm392, %v4066, 0
        %v4090 = vsel %vm392, %v4067, 0
        %v4093 = vsel %vm392, %v4068, 0
        %v4096 = vsel %vm392, %v4069, 0
        %v4099 = vsel %vm392, %v4070, 0
        %4101 = vmatprep.subr.mxu0 0.0
        %4102 = vmatpush1.msra.mxu0 %v246
        %4103 = vmatprep.subr.mxu0 0.0
        %4104 = vmatpush1.msra.mxu0 0.0
        %4105 = vmatprep.subr.mxu0 0.0
        %4106 = vmatpush1.msra.mxu0 0.0
        %4107 = vmatprep.subr.mxu0 0.0
        %4108 = vmatpush1.msra.mxu0 0.0
        %4109 = vmatprep.subr.mxu0 0.0
        %4110 = vmatpush1.msra.mxu0 0.0
        %4111 = vmatprep.subr.mxu0 0.0
        %4112 = vmatpush1.msra.mxu0 0.0
        %4113 = vmatprep.subr.mxu0 0.0
        %4114 = vmatpush1.msra.mxu0 0.0
        %4115 = vmatprep.subr.mxu0 0.0
        %4116 = vmatpush1.msra.mxu0 0.0
        %4117 = vmatprep.subr.mxu0 0.0
        %4118 = vmatpush1.msra.mxu0 0.0
        %4119 = vmatprep.subr.mxu0 0.0
        %4120 = vmatpush1.msra.mxu0 0.0
        %4121 = vmatprep.subr.mxu0 0.0
        %4122 = vmatpush1.msra.mxu0 0.0
        %4123 = vmatprep.subr.mxu0 0.0
        %4124 = vmatpush1.msra.mxu0 0.0
        %4125 = vmatprep.subr.mxu0 0.0
        %4126 = vmatpush1.msra.mxu0 0.0
        %4127 = vmatprep.subr.mxu0 0.0
        %4128 = vmatpush1.msra.mxu0 0.0
        %4129 = vmatprep.subr.mxu0 0.0
        %4130 = vmatpush1.msra.mxu0 0.0
        %4131 = vmatprep.subr.mxu0 0.0
        %4132 = vmatpush1.msra.mxu0 0.0
        %4133 = vmatprep.subr.mxu0 0.0
        %4134 = vmatpush1.msra.mxu0 0.0
        %4135 = vmatprep.subr.mxu0 0.0
        %4136 = vmatpush1.msra.mxu0 0.0
        %4137 = vmatprep.subr.mxu0 0.0
        %4138 = vmatpush1.msra.mxu0 0.0
        %4139 = vmatprep.subr.mxu0 0.0
        %4140 = vmatpush1.msra.mxu0 0.0
        %4141 = vmatprep.subr.mxu0 0.0
        %4142 = vmatpush1.msra.mxu0 0.0
        %4143 = vmatprep.subr.mxu0 0.0
        %4144 = vmatpush1.msra.mxu0 0.0
        %4145 = vmatprep.subr.mxu0 0.0
        %4146 = vmatpush1.msra.mxu0 0.0
        %4147 = vmatprep.subr.mxu0 0.0
        %4148 = vmatpush1.msra.mxu0 0.0
        %4149 = vmatprep.subr.mxu0 0.0
        %4150 = vmatpush1.msra.mxu0 0.0
        %4151 = vmatprep.subr.mxu0 0.0
        %4152 = vmatpush1.msra.mxu0 0.0
        %4153 = vmatprep.subr.mxu0 0.0
        %4154 = vmatpush1.msra.mxu0 0.0
        %4155 = vmatprep.subr.mxu0 0.0
        %4156 = vmatpush1.msra.mxu0 0.0
        %4157 = vmatprep.subr.mxu0 0.0
        %4158 = vmatpush1.msra.mxu0 0.0
        %4159 = vmatprep.subr.mxu0 0.0
        %4160 = vmatpush1.msra.mxu0 0.0
        %4161 = vmatprep.subr.mxu0 0.0
        %4162 = vmatpush1.msra.mxu0 0.0
        %4163 = vmatprep.subr.mxu0 0.0
        %4164 = vmatpush1.msra.mxu0 0.0
        %4165 = vmatprep.mubr.f32.mxu0 0.0
        %4166 = vmatmul.mubr.f32.gmra.mrb[0].mxu0 %v4078
        %v4167 = vpop.f32.mrb[0].mxu0
        %v4168 = vadd.f32 %v4075, %v4167
        %v4169 = vpop.f32.mrb[0].mxu0
        %4170 = vmatprep.mubr.f32.mxu0 0.0
        %4171 = vmatmul.mubr.f32.gmra.mrb[0].mxu0 %v4081
        %v4172 = vpop.f32.mrb[0].mxu0
        %v4173 = vadd.f32 %v4075, %v4172
        %v4174 = vpop.f32.mrb[0].mxu0
        %4175 = vmatprep.mubr.f32.mxu0 0.0
        %4176 = vmatmul.mubr.f32.gmra.mrb[0].mxu0 %v4084
        %v4177 = vpop.f32.mrb[0].mxu0
        %v4178 = vadd.f32 %v4075, %v4177
        %v4179 = vpop.f32.mrb[0].mxu0
        %4180 = vmatprep.mubr.f32.mxu0 0.0
        %4181 = vmatmul.mubr.f32.gmra.mrb[0].mxu0 %v4087
        %v4182 = vpop.f32.mrb[0].mxu0
        %v4183 = vadd.f32 %v4075, %v4182
        %v4184 = vpop.f32.mrb[0].mxu0
        %4185 = vmatprep.mubr.f32.mxu0 0.0
        %4186 = vmatmul.mubr.f32.gmra.mrb[0].mxu0 %v4090
        %v4187 = vpop.f32.mrb[0].mxu0
        %v4188 = vadd.f32 %v4075, %v4187
        %v4189 = vpop.f32.mrb[0].mxu0
        %4190 = vmatprep.mubr.f32.mxu0 0.0
        %4191 = vmatmul.mubr.f32.gmra.mrb[0].mxu0 %v4093
        %v4192 = vpop.f32.mrb[0].mxu0
        %v4193 = vadd.f32 %v4075, %v4192
        %v4194 = vpop.f32.mrb[0].mxu0
        %4195 = vmatprep.mubr.f32.mxu0 0.0
        %4196 = vmatmul.mubr.f32.gmra.mrb[0].mxu0 %v4096
        %v4197 = vpop.f32.mrb[0].mxu0
        %v4198 = vadd.f32 %v4075, %v4197
        %v4199 = vpop.f32.mrb[0].mxu0
        %4200 = vmatprep.mubr.f32.mxu0 0.0
        %4201 = vmatmul.mubr.f32.gmra.mrb[0].mxu0 %v4099
        %v4202 = vpop.f32.mrb[0].mxu0
        %v4203 = vadd.f32 %v4075, %v4202
        %v4204 = vpop.f32.mrb[0].mxu0
        %4205 = vdwg.mxu0
        %v4206 = vxor.u32 %v4168, 2147483648
        %v4207 = vxor.u32 %v4173, 2147483648
        %v4208 = vxor.u32 %v4178, 2147483648
        %v4209 = vxor.u32 %v4183, 2147483648
        %v4210 = vxor.u32 %v4188, 2147483648
        %v4211 = vxor.u32 %v4193, 2147483648
        %v4212 = vxor.u32 %v4198, 2147483648
        %v4213 = vxor.u32 %v4203, 2147483648
        %v4214 = vmul.f32 %v4206, 1.442695
        %v4215 = vpow.pop %v4214
        %v4216 = vmul.f32 %v4207, 1.442695
        %v4217 = vpow.pop %v4216
        %v4218 = vmul.f32 %v4208, 1.442695
        %v4219 = vpow.pop %v4218
        %v4220 = vmul.f32 %v4209, 1.442695
        %v4221 = vpow.pop %v4220
        %v4222 = vmul.f32 %v4210, 1.442695
        %v4223 = vpow.pop %v4222
        %v4224 = vmul.f32 %v4211, 1.442695
        %v4225 = vpow.pop %v4224
        %v4226 = vmul.f32 %v4212, 1.442695
        %v4227 = vpow.pop %v4226
        %v4228 = vmul.f32 %v4213, 1.442695
        %v4229 = vpow.pop %v4228
        %v4230 = vadd.f32 %v4215, 1.0
        %v4231 = vadd.f32 %v4217, 1.0
        %v4232 = vadd.f32 %v4219, 1.0
        %v4233 = vadd.f32 %v4221, 1.0
        %v4234 = vadd.f32 %v4223, 1.0
        %v4235 = vadd.f32 %v4225, 1.0
        %v4236 = vadd.f32 %v4227, 1.0
        %v4237 = vadd.f32 %v4229, 1.0
        %v4238 = vrcp.pop %v4230
        %v4239 = vmul.f32 1.0, %v4238
        %v4240 = vrcp.pop %v4231
        %v4241 = vmul.f32 1.0, %v4240
        %v4242 = vrcp.pop %v4232
        %v4243 = vmul.f32 1.0, %v4242
        %v4244 = vrcp.pop %v4233
        %v4245 = vmul.f32 1.0, %v4244
        %v4246 = vrcp.pop %v4234
        %v4247 = vmul.f32 1.0, %v4246
        %v4248 = vrcp.pop %v4235
        %v4249 = vmul.f32 1.0, %v4248
        %v4250 = vrcp.pop %v4236
        %v4251 = vmul.f32 1.0, %v4250
        %v4252 = vrcp.pop %v4237
        %v4253 = vmul.f32 1.0, %v4252
        %v4254 = vmul.f32 %v4239, %v248
        %v4255 = vmul.f32 %v4241, %v249
        %v4256 = vmul.f32 %v4243, %v250
        %v4257 = vmul.f32 %v4245, %v251
        %v4258 = vmul.f32 %v4247, %v252
        %v4259 = vmul.f32 %v4249, %v253
        %v4260 = vmul.f32 %v4251, %v254
        %v4261 = vmul.f32 %v4253, %v255
        %v4262 = vadd.f32 %v4254, %v248
        %v4263 = vadd.f32 %v4255, %v249
        %v4264 = vadd.f32 %v4256, %v250
        %v4265 = vadd.f32 %v4257, %v251
        %v4266 = vadd.f32 %v4258, %v252
        %v4267 = vadd.f32 %v4259, %v253
        %v4268 = vadd.f32 %v4260, %v254
        %v4269 = vadd.f32 %v4261, %v255
        %4270 = vst.msk [vmem:[%s242] sm:$0xff] %vm262, %v4262
        %4271 = vst.msk [vmem:[%s242 + $0x8] sm:$0xff] %vm262, %v4263
        %4272 = vst.msk [vmem:[%s242 + $0x10] sm:$0xff] %vm262, %v4264
        %4273 = vst.msk [vmem:[%s242 + $0x18] sm:$0xff] %vm262, %v4265
        %4274 = vst.msk [vmem:[%s242 + $0x20] sm:$0xff] %vm262, %v4266
        %4275 = vst.msk [vmem:[%s242 + $0x28] sm:$0xff] %vm262, %v4267
        %4276 = vst.msk [vmem:[%s242 + $0x30] sm:$0xff] %vm262, %v4268
        %4277 = vst.msk [vmem:[%s242 + $0x38] sm:$0xff] %vm262, %v4269
        %v4278 = vmax.f32 %v2330, %v2652
        %v4279 = vmax.f32 %v4278, %v2698
        %v4280 = vmax.f32 %v4279, %v2744
        %v4281 = vmax.f32 %v4280, %v2790
        %v4282 = vmax.f32 %v4281, %v2836
        %v4283 = vmax.f32 %v4282, %v2882
        %v4284 = vmax.f32 %v4283, %v2928
        %v4285 = vsub.f32 %v2330, %v4284
        %v4286 = vmul.f32 %v4285, 1.442695
        %v4287 = vpow.pop %v4286
        %v4288 = vsub.f32 %v2652, %v4284
        %v4289 = vmul.f32 %v4288, 1.442695
        %v4290 = vpow.pop %v4289
        %v4291 = vsub.f32 %v2698, %v4284
        %v4292 = vmul.f32 %v4291, 1.442695
        %v4293 = vpow.pop %v4292
        %v4294 = vsub.f32 %v2744, %v4284
        %v4295 = vmul.f32 %v4294, 1.442695
        %v4296 = vpow.pop %v4295
        %v4297 = vsub.f32 %v2790, %v4284
        %v4298 = vmul.f32 %v4297, 1.442695
        %v4299 = vpow.pop %v4298
        %v4300 = vsub.f32 %v2836, %v4284
        %v4301 = vmul.f32 %v4300, 1.442695
        %v4302 = vpow.pop %v4301
        %v4303 = vsub.f32 %v2882, %v4284
        %v4304 = vmul.f32 %v4303, 1.442695
        %v4305 = vpow.pop %v4304
        %v4306 = vsub.f32 %v2928, %v4284
        %v4307 = vmul.f32 %v4306, 1.442695
        %v4308 = vpow.pop %v4307
        %v4309 = vadd.f32 %v4287, %v4290
        %v4310 = vadd.f32 %v4309, %v4293
        %v4311 = vadd.f32 %v4310, %v4296
        %v4312 = vadd.f32 %v4311, %v4299
        %v4313 = vadd.f32 %v4312, %v4302
        %v4314 = vadd.f32 %v4313, %v4305
        %v4315 = vadd.f32 %v4314, %v4308
        %v4316 = vrcp.pop %v4315
        %v4317 = vmul.f32 1.0, %v4316
        %v4318 = vmul.f32 %v4287, %v4317
        %v4319 = vmul.f32 %v4318, %v2175
        %v4320 = vmul.f32 %v4318, %v2176
        %v4321 = vmul.f32 %v4318, %v2177
        %v4322 = vmul.f32 %v4318, %v2178
        %v4323 = vmul.f32 %v4318, %v2179
        %v4324 = vmul.f32 %v4318, %v2180
        %v4325 = vmul.f32 %v4318, %v2181
        %v4326 = vmul.f32 %v4318, %v2182
        %v4327 = vmul.f32 %v4290, %v4317
        %v4328 = vmul.f32 %v4327, %v2183
        %v4329 = vmul.f32 %v4327, %v2184
        %v4330 = vmul.f32 %v4327, %v2185
        %v4331 = vmul.f32 %v4327, %v2186
        %v4332 = vmul.f32 %v4327, %v2187
        %v4333 = vmul.f32 %v4327, %v2188
        %v4334 = vmul.f32 %v4327, %v2189
        %v4335 = vmul.f32 %v4327, %v2190
        %v4336 = vadd.f32 %v4319, %v4328
        %v4337 = vadd.f32 %v4320, %v4329
        %v4338 = vadd.f32 %v4321, %v4330
        %v4339 = vadd.f32 %v4322, %v4331
        %v4340 = vadd.f32 %v4323, %v4332
        %v4341 = vadd.f32 %v4324, %v4333
        %v4342 = vadd.f32 %v4325, %v4334
        %v4343 = vadd.f32 %v4326, %v4335
        %v4344 = vmul.f32 %v4293, %v4317
        %v4345 = vmul.f32 %v4344, %v2191
        %v4346 = vmul.f32 %v4344, %v2192
        %v4347 = vmul.f32 %v4344, %v2193
        %v4348 = vmul.f32 %v4344, %v2194
        %v4349 = vmul.f32 %v4344, %v2195
        %v4350 = vmul.f32 %v4344, %v2196
        %v4351 = vmul.f32 %v4344, %v2197
        %v4352 = vmul.f32 %v4344, %v2198
        %v4353 = vadd.f32 %v4336, %v4345
        %v4354 = vadd.f32 %v4337, %v4346
        %v4355 = vadd.f32 %v4338, %v4347
        %v4356 = vadd.f32 %v4339, %v4348
        %v4357 = vadd.f32 %v4340, %v4349
        %v4358 = vadd.f32 %v4341, %v4350
        %v4359 = vadd.f32 %v4342, %v4351
        %v4360 = vadd.f32 %v4343, %v4352
        %v4361 = vmul.f32 %v4296, %v4317
        %v4362 = vmul.f32 %v4361, %v2199
        %v4363 = vmul.f32 %v4361, %v2200
        %v4364 = vmul.f32 %v4361, %v2201
        %v4365 = vmul.f32 %v4361, %v2202
        %v4366 = vmul.f32 %v4361, %v2203
        %v4367 = vmul.f32 %v4361, %v2204
        %v4368 = vmul.f32 %v4361, %v2205
        %v4369 = vmul.f32 %v4361, %v2206
        %v4370 = vadd.f32 %v4353, %v4362
        %v4371 = vadd.f32 %v4354, %v4363
        %v4372 = vadd.f32 %v4355, %v4364
        %v4373 = vadd.f32 %v4356, %v4365
        %v4374 = vadd.f32 %v4357, %v4366
        %v4375 = vadd.f32 %v4358, %v4367
        %v4376 = vadd.f32 %v4359, %v4368
        %v4377 = vadd.f32 %v4360, %v4369
        %v4378 = vmul.f32 %v4299, %v4317
        %v4379 = vmul.f32 %v4378, %v2207
        %v4380 = vmul.f32 %v4378, %v2208
        %v4381 = vmul.f32 %v4378, %v2209
        %v4382 = vmul.f32 %v4378, %v2210
        %v4383 = vmul.f32 %v4378, %v2211
        %v4384 = vmul.f32 %v4378, %v2212
        %v4385 = vmul.f32 %v4378, %v2213
        %v4386 = vmul.f32 %v4378, %v2214
        %v4387 = vadd.f32 %v4370, %v4379
        %v4388 = vadd.f32 %v4371, %v4380
        %v4389 = vadd.f32 %v4372, %v4381
        %v4390 = vadd.f32 %v4373, %v4382
        %v4391 = vadd.f32 %v4374, %v4383
        %v4392 = vadd.f32 %v4375, %v4384
        %v4393 = vadd.f32 %v4376, %v4385
        %v4394 = vadd.f32 %v4377, %v4386
        %v4395 = vmul.f32 %v4302, %v4317
        %v4396 = vmul.f32 %v4395, %v2215
        %v4397 = vmul.f32 %v4395, %v2216
        %v4398 = vmul.f32 %v4395, %v2217
        %v4399 = vmul.f32 %v4395, %v2218
        %v4400 = vmul.f32 %v4395, %v2219
        %v4401 = vmul.f32 %v4395, %v2220
        %v4402 = vmul.f32 %v4395, %v2221
        %v4403 = vmul.f32 %v4395, %v2222
        %v4404 = vadd.f32 %v4387, %v4396
        %v4405 = vadd.f32 %v4388, %v4397
        %v4406 = vadd.f32 %v4389, %v4398
        %v4407 = vadd.f32 %v4390, %v4399
        %v4408 = vadd.f32 %v4391, %v4400
        %v4409 = vadd.f32 %v4392, %v4401
        %v4410 = vadd.f32 %v4393, %v4402
        %v4411 = vadd.f32 %v4394, %v4403
        %v4412 = vmul.f32 %v4305, %v4317
        %v4413 = vmul.f32 %v4412, %v2223
        %v4414 = vmul.f32 %v4412, %v2224
        %v4415 = vmul.f32 %v4412, %v2225
        %v4416 = vmul.f32 %v4412, %v2226
        %v4417 = vmul.f32 %v4412, %v2227
        %v4418 = vmul.f32 %v4412, %v2228
        %v4419 = vmul.f32 %v4412, %v2229
        %v4420 = vmul.f32 %v4412, %v2230
        %v4421 = vadd.f32 %v4404, %v4413
        %v4422 = vadd.f32 %v4405, %v4414
        %v4423 = vadd.f32 %v4406, %v4415
        %v4424 = vadd.f32 %v4407, %v4416
        %v4425 = vadd.f32 %v4408, %v4417
        %v4426 = vadd.f32 %v4409, %v4418
        %v4427 = vadd.f32 %v4410, %v4419
        %v4428 = vadd.f32 %v4411, %v4420
        %v4429 = vmul.f32 %v4308, %v4317
        %v4430 = vmul.f32 %v4429, %v2231
        %v4431 = vmul.f32 %v4429, %v2232
        %v4432 = vmul.f32 %v4429, %v2233
        %v4433 = vmul.f32 %v4429, %v2234
        %v4434 = vmul.f32 %v4429, %v2235
        %v4435 = vmul.f32 %v4429, %v2236
        %v4436 = vmul.f32 %v4429, %v2237
        %v4437 = vmul.f32 %v4429, %v2238
        %v4438 = vadd.f32 %v4421, %v4430
        %v4439 = vadd.f32 %v4422, %v4431
        %v4440 = vadd.f32 %v4423, %v4432
        %v4441 = vadd.f32 %v4424, %v4433
        %v4442 = vadd.f32 %v4425, %v4434
        %v4443 = vadd.f32 %v4426, %v4435
        %v4444 = vadd.f32 %v4427, %v4436
        %v4445 = vadd.f32 %v4428, %v4437
        %v4446 = vadd.f32 %v4438, %v595
        %v4447 = vadd.f32 %v4439, %v600
        %v4448 = vadd.f32 %v4440, %v605
        %v4449 = vadd.f32 %v4441, %v610
        %v4450 = vadd.f32 %v4442, %v615
        %v4451 = vadd.f32 %v4443, %v620
        %v4452 = vadd.f32 %v4444, %v625
        %v4453 = vadd.f32 %v4445, %v630
        %v4455 = vsel %vm392, %v4446, 0
        %v4458 = vsel %vm392, %v4447, 0
        %v4461 = vsel %vm392, %v4448, 0
        %v4464 = vsel %vm392, %v4449, 0
        %v4467 = vsel %vm392, %v4450, 0
        %v4470 = vsel %vm392, %v4451, 0
        %v4473 = vsel %vm392, %v4452, 0
        %v4476 = vsel %vm392, %v4453, 0
        %4478 = vmatprep.subr.mxu0 0.0
        %4479 = vmatpush1.msra.mxu0 %v246
        %4480 = vmatprep.subr.mxu0 0.0
        %4481 = vmatpush1.msra.mxu0 0.0
        %4482 = vmatprep.subr.mxu0 0.0
        %4483 = vmatpush1.msra.mxu0 0.0
        %4484 = vmatprep.subr.mxu0 0.0
        %4485 = vmatpush1.msra.mxu0 0.0
        %4486 = vmatprep.subr.mxu0 0.0
        %4487 = vmatpush1.msra.mxu0 0.0
        %4488 = vmatprep.subr.mxu0 0.0
        %4489 = vmatpush1.msra.mxu0 0.0
        %4490 = vmatprep.subr.mxu0 0.0
        %4491 = vmatpush1.msra.mxu0 0.0
        %4492 = vmatprep.subr.mxu0 0.0
        %4493 = vmatpush1.msra.mxu0 0.0
        %4494 = vmatprep.subr.mxu0 0.0
        %4495 = vmatpush1.msra.mxu0 0.0
        %4496 = vmatprep.subr.mxu0 0.0
        %4497 = vmatpush1.msra.mxu0 0.0
        %4498 = vmatprep.subr.mxu0 0.0
        %4499 = vmatpush1.msra.mxu0 0.0
        %4500 = vmatprep.subr.mxu0 0.0
        %4501 = vmatpush1.msra.mxu0 0.0
        %4502 = vmatprep.subr.mxu0 0.0
        %4503 = vmatpush1.msra.mxu0 0.0
        %4504 = vmatprep.subr.mxu0 0.0
        %4505 = vmatpush1.msra.mxu0 0.0
        %4506 = vmatprep.subr.mxu0 0.0
        %4507 = vmatpush1.msra.mxu0 0.0
        %4508 = vmatprep.subr.mxu0 0.0
        %4509 = vmatpush1.msra.mxu0 0.0
        %4510 = vmatprep.subr.mxu0 0.0
        %4511 = vmatpush1.msra.mxu0 0.0
        %4512 = vmatprep.subr.mxu0 0.0
        %4513 = vmatpush1.msra.mxu0 0.0
        %4514 = vmatprep.subr.mxu0 0.0
        %4515 = vmatpush1.msra.mxu0 0.0
        %4516 = vmatprep.subr.mxu0 0.0
        %4517 = vmatpush1.msra.mxu0 0.0
        %4518 = vmatprep.subr.mxu0 0.0
        %4519 = vmatpush1.msra.mxu0 0.0
        %4520 = vmatprep.subr.mxu0 0.0
        %4521 = vmatpush1.msra.mxu0 0.0
        %4522 = vmatprep.subr.mxu0 0.0
        %4523 = vmatpush1.msra.mxu0 0.0
        %4524 = vmatprep.subr.mxu0 0.0
        %4525 = vmatpush1.msra.mxu0 0.0
        %4526 = vmatprep.subr.mxu0 0.0
        %4527 = vmatpush1.msra.mxu0 0.0
        %4528 = vmatprep.subr.mxu0 0.0
        %4529 = vmatpush1.msra.mxu0 0.0
        %4530 = vmatprep.subr.mxu0 0.0
        %4531 = vmatpush1.msra.mxu0 0.0
        %4532 = vmatprep.subr.mxu0 0.0
        %4533 = vmatpush1.msra.mxu0 0.0
        %4534 = vmatprep.subr.mxu0 0.0
        %4535 = vmatpush1.msra.mxu0 0.0
        %4536 = vmatprep.subr.mxu0 0.0
        %4537 = vmatpush1.msra.mxu0 0.0
        %4538 = vmatprep.subr.mxu0 0.0
        %4539 = vmatpush1.msra.mxu0 0.0
        %4540 = vmatprep.subr.mxu0 0.0
        %4541 = vmatpush1.msra.mxu0 0.0
        %4542 = vmatprep.mubr.f32.mxu0 0.0
        %4543 = vmatmul.mubr.f32.gmra.mrb[0].mxu0 %v4455
        %v4544 = vpop.f32.mrb[0].mxu0
        %v4545 = vadd.f32 %v4075, %v4544
        %v4546 = vpop.f32.mrb[0].mxu0
        %4547 = vmatprep.mubr.f32.mxu0 0.0
        %4548 = vmatmul.mubr.f32.gmra.mrb[0].mxu0 %v4458
        %v4549 = vpop.f32.mrb[0].mxu0
        %v4550 = vadd.f32 %v4075, %v4549
        %v4551 = vpop.f32.mrb[0].mxu0
        %4552 = vmatprep.mubr.f32.mxu0 0.0
        %4553 = vmatmul.mubr.f32.gmra.mrb[0].mxu0 %v4461
        %v4554 = vpop.f32.mrb[0].mxu0
        %v4555 = vadd.f32 %v4075, %v4554
        %v4556 = vpop.f32.mrb[0].mxu0
        %4557 = vmatprep.mubr.f32.mxu0 0.0
        %4558 = vmatmul.mubr.f32.gmra.mrb[0].mxu0 %v4464
        %v4559 = vpop.f32.mrb[0].mxu0
        %v4560 = vadd.f32 %v4075, %v4559
        %v4561 = vpop.f32.mrb[0].mxu0
        %4562 = vmatprep.mubr.f32.mxu0 0.0
        %4563 = vmatmul.mubr.f32.gmra.mrb[0].mxu0 %v4467
        %v4564 = vpop.f32.mrb[0].mxu0
        %v4565 = vadd.f32 %v4075, %v4564
        %v4566 = vpop.f32.mrb[0].mxu0
        %4567 = vmatprep.mubr.f32.mxu0 0.0
        %4568 = vmatmul.mubr.f32.gmra.mrb[0].mxu0 %v4470
        %v4569 = vpop.f32.mrb[0].mxu0
        %v4570 = vadd.f32 %v4075, %v4569
        %v4571 = vpop.f32.mrb[0].mxu0
        %4572 = vmatprep.mubr.f32.mxu0 0.0
        %4573 = vmatmul.mubr.f32.gmra.mrb[0].mxu0 %v4473
        %v4574 = vpop.f32.mrb[0].mxu0
        %v4575 = vadd.f32 %v4075, %v4574
        %v4576 = vpop.f32.mrb[0].mxu0
        %4577 = vmatprep.mubr.f32.mxu0 0.0
        %4578 = vmatmul.mubr.f32.gmra.mrb[0].mxu0 %v4476
        %v4579 = vpop.f32.mrb[0].mxu0
        %v4580 = vadd.f32 %v4075, %v4579
        %v4581 = vpop.f32.mrb[0].mxu0
        %4582 = vdwg.mxu0
        %v4583 = vxor.u32 %v4545, 2147483648
        %v4584 = vxor.u32 %v4550, 2147483648
        %v4585 = vxor.u32 %v4555, 2147483648
        %v4586 = vxor.u32 %v4560, 2147483648
        %v4587 = vxor.u32 %v4565, 2147483648
        %v4588 = vxor.u32 %v4570, 2147483648
        %v4589 = vxor.u32 %v4575, 2147483648
        %v4590 = vxor.u32 %v4580, 2147483648
        %v4591 = vmul.f32 %v4583, 1.442695
        %v4592 = vpow.pop %v4591
        %v4593 = vmul.f32 %v4584, 1.442695
        %v4594 = vpow.pop %v4593
        %v4595 = vmul.f32 %v4585, 1.442695
        %v4596 = vpow.pop %v4595
        %v4597 = vmul.f32 %v4586, 1.442695
        %v4598 = vpow.pop %v4597
        %v4599 = vmul.f32 %v4587, 1.442695
        %v4600 = vpow.pop %v4599
        %v4601 = vmul.f32 %v4588, 1.442695
        %v4602 = vpow.pop %v4601
        %v4603 = vmul.f32 %v4589, 1.442695
        %v4604 = vpow.pop %v4603
        %v4605 = vmul.f32 %v4590, 1.442695
        %v4606 = vpow.pop %v4605
        %v4607 = vadd.f32 %v4592, 1.0
        %v4608 = vadd.f32 %v4594, 1.0
        %v4609 = vadd.f32 %v4596, 1.0
        %v4610 = vadd.f32 %v4598, 1.0
        %v4611 = vadd.f32 %v4600, 1.0
        %v4612 = vadd.f32 %v4602, 1.0
        %v4613 = vadd.f32 %v4604, 1.0
        %v4614 = vadd.f32 %v4606, 1.0
        %v4615 = vrcp.pop %v4607
        %v4616 = vmul.f32 1.0, %v4615
        %v4617 = vrcp.pop %v4608
        %v4618 = vmul.f32 1.0, %v4617
        %v4619 = vrcp.pop %v4609
        %v4620 = vmul.f32 1.0, %v4619
        %v4621 = vrcp.pop %v4610
        %v4622 = vmul.f32 1.0, %v4621
        %v4623 = vrcp.pop %v4611
        %v4624 = vmul.f32 1.0, %v4623
        %v4625 = vrcp.pop %v4612
        %v4626 = vmul.f32 1.0, %v4625
        %v4627 = vrcp.pop %v4613
        %v4628 = vmul.f32 1.0, %v4627
        %v4629 = vrcp.pop %v4614
        %v4630 = vmul.f32 1.0, %v4629
        %v4631 = vld [vmem:[%s495] sm:$0xff]
        %v4632 = vld [vmem:[%s495 + $0x8] sm:$0xff]
        %v4633 = vld [vmem:[%s495 + $0x10] sm:$0xff]
        %v4634 = vld [vmem:[%s495 + $0x18] sm:$0xff]
        %v4635 = vld [vmem:[%s495 + $0x20] sm:$0xff]
        %v4636 = vld [vmem:[%s495 + $0x28] sm:$0xff]
        %v4637 = vld [vmem:[%s495 + $0x30] sm:$0xff]
        %v4638 = vld [vmem:[%s495 + $0x38] sm:$0xff]
        %v4639 = vmul.f32 %v4616, %v4631
        %v4640 = vmul.f32 %v4618, %v4632
        %v4641 = vmul.f32 %v4620, %v4633
        %v4642 = vmul.f32 %v4622, %v4634
        %v4643 = vmul.f32 %v4624, %v4635
        %v4644 = vmul.f32 %v4626, %v4636
        %v4645 = vmul.f32 %v4628, %v4637
        %v4646 = vmul.f32 %v4630, %v4638
        %v4647 = vadd.f32 %v4639, %v4631
        %v4648 = vadd.f32 %v4640, %v4632
        %v4649 = vadd.f32 %v4641, %v4633
        %v4650 = vadd.f32 %v4642, %v4634
        %v4651 = vadd.f32 %v4643, %v4635
        %v4652 = vadd.f32 %v4644, %v4636
        %v4653 = vadd.f32 %v4645, %v4637
        %v4654 = vadd.f32 %v4646, %v4638
        %s4655 = scalar_lea.vmem %s242, 64 [#allocation5]
        %4656 = vst.msk [vmem:[%s4655] sm:$0xff] %vm262, %v4647
        %4657 = vst.msk [vmem:[%s4655 + $0x8] sm:$0xff] %vm262, %v4648
        %4658 = vst.msk [vmem:[%s4655 + $0x10] sm:$0xff] %vm262, %v4649
        %4659 = vst.msk [vmem:[%s4655 + $0x18] sm:$0xff] %vm262, %v4650
        %4660 = vst.msk [vmem:[%s4655 + $0x20] sm:$0xff] %vm262, %v4651
        %4661 = vst.msk [vmem:[%s4655 + $0x28] sm:$0xff] %vm262, %v4652
        %4662 = vst.msk [vmem:[%s4655 + $0x30] sm:$0xff] %vm262, %v4653
        %4663 = vst.msk [vmem:[%s4655 + $0x38] sm:$0xff] %vm262, %v4654
        %v4664 = vmax.f32 %v2376, %v2698
        %v4665 = vmax.f32 %v4664, %v2974
        %v4666 = vmax.f32 %v4665, %v3020
        %v4667 = vmax.f32 %v4666, %v3066
        %v4668 = vmax.f32 %v4667, %v3112
        %v4669 = vmax.f32 %v4668, %v3158
        %v4670 = vmax.f32 %v4669, %v3204
        %v4671 = vsub.f32 %v2376, %v4670
        %v4672 = vmul.f32 %v4671, 1.442695
        %v4673 = vpow.pop %v4672
        %v4674 = vsub.f32 %v2698, %v4670
        %v4675 = vmul.f32 %v4674, 1.442695
        %v4676 = vpow.pop %v4675
        %v4677 = vsub.f32 %v2974, %v4670
        %v4678 = vmul.f32 %v4677, 1.442695
        %v4679 = vpow.pop %v4678
        %v4680 = vsub.f32 %v3020, %v4670
        %v4681 = vmul.f32 %v4680, 1.442695
        %v4682 = vpow.pop %v4681
        %v4683 = vsub.f32 %v3066, %v4670
        %v4684 = vmul.f32 %v4683, 1.442695
        %v4685 = vpow.pop %v4684
        %v4686 = vsub.f32 %v3112, %v4670
        %v4687 = vmul.f32 %v4686, 1.442695
        %v4688 = vpow.pop %v4687
        %v4689 = vsub.f32 %v3158, %v4670
        %v4690 = vmul.f32 %v4689, 1.442695
        %v4691 = vpow.pop %v4690
        %v4692 = vsub.f32 %v3204, %v4670
        %v4693 = vmul.f32 %v4692, 1.442695
        %v4694 = vpow.pop %v4693
        %v4695 = vadd.f32 %v4673, %v4676
        %v4696 = vadd.f32 %v4695, %v4679
        %v4697 = vadd.f32 %v4696, %v4682
        %v4698 = vadd.f32 %v4697, %v4685
        %v4699 = vadd.f32 %v4698, %v4688
        %v4700 = vadd.f32 %v4699, %v4691
        %v4701 = vadd.f32 %v4700, %v4694
        %v4702 = vrcp.pop %v4701
        %v4703 = vmul.f32 1.0, %v4702
        %v4704 = vmul.f32 %v4673, %v4703
        %v4705 = vmul.f32 %v4704, %v2175
        %v4706 = vmul.f32 %v4704, %v2176
        %v4707 = vmul.f32 %v4704, %v2177
        %v4708 = vmul.f32 %v4704, %v2178
        %v4709 = vmul.f32 %v4704, %v2179
        %v4710 = vmul.f32 %v4704, %v2180
        %v4711 = vmul.f32 %v4704, %v2181
        %v4712 = vmul.f32 %v4704, %v2182
        %v4713 = vmul.f32 %v4676, %v4703
        %v4714 = vmul.f32 %v4713, %v2183
        %v4715 = vmul.f32 %v4713, %v2184
        %v4716 = vmul.f32 %v4713, %v2185
        %v4717 = vmul.f32 %v4713, %v2186
        %v4718 = vmul.f32 %v4713, %v2187
        %v4719 = vmul.f32 %v4713, %v2188
        %v4720 = vmul.f32 %v4713, %v2189
        %v4721 = vmul.f32 %v4713, %v2190
        %v4722 = vadd.f32 %v4705, %v4714
        %v4723 = vadd.f32 %v4706, %v4715
        %v4724 = vadd.f32 %v4707, %v4716
        %v4725 = vadd.f32 %v4708, %v4717
        %v4726 = vadd.f32 %v4709, %v4718
        %v4727 = vadd.f32 %v4710, %v4719
        %v4728 = vadd.f32 %v4711, %v4720
        %v4729 = vadd.f32 %v4712, %v4721
        %v4730 = vmul.f32 %v4679, %v4703
        %v4731 = vmul.f32 %v4730, %v2191
        %v4732 = vmul.f32 %v4730, %v2192
        %v4733 = vmul.f32 %v4730, %v2193
        %v4734 = vmul.f32 %v4730, %v2194
        %v4735 = vmul.f32 %v4730, %v2195
        %v4736 = vmul.f32 %v4730, %v2196
        %v4737 = vmul.f32 %v4730, %v2197
        %v4738 = vmul.f32 %v4730, %v2198
        %v4739 = vadd.f32 %v4722, %v4731
        %v4740 = vadd.f32 %v4723, %v4732
        %v4741 = vadd.f32 %v4724, %v4733
        %v4742 = vadd.f32 %v4725, %v4734
        %v4743 = vadd.f32 %v4726, %v4735
        %v4744 = vadd.f32 %v4727, %v4736
        %v4745 = vadd.f32 %v4728, %v4737
        %v4746 = vadd.f32 %v4729, %v4738
        %v4747 = vmul.f32 %v4682, %v4703
        %v4748 = vmul.f32 %v4747, %v2199
        %v4749 = vmul.f32 %v4747, %v2200
        %v4750 = vmul.f32 %v4747, %v2201
        %v4751 = vmul.f32 %v4747, %v2202
        %v4752 = vmul.f32 %v4747, %v2203
        %v4753 = vmul.f32 %v4747, %v2204
        %v4754 = vmul.f32 %v4747, %v2205
        %v4755 = vmul.f32 %v4747, %v2206
        %v4756 = vadd.f32 %v4739, %v4748
        %v4757 = vadd.f32 %v4740, %v4749
        %v4758 = vadd.f32 %v4741, %v4750
        %v4759 = vadd.f32 %v4742, %v4751
        %v4760 = vadd.f32 %v4743, %v4752
        %v4761 = vadd.f32 %v4744, %v4753
        %v4762 = vadd.f32 %v4745, %v4754
        %v4763 = vadd.f32 %v4746, %v4755
        %v4764 = vmul.f32 %v4685, %v4703
        %v4765 = vmul.f32 %v4764, %v2207
        %v4766 = vmul.f32 %v4764, %v2208
        %v4767 = vmul.f32 %v4764, %v2209
        %v4768 = vmul.f32 %v4764, %v2210
        %v4769 = vmul.f32 %v4764, %v2211
        %v4770 = vmul.f32 %v4764, %v2212
        %v4771 = vmul.f32 %v4764, %v2213
        %v4772 = vmul.f32 %v4764, %v2214
        %v4773 = vadd.f32 %v4756, %v4765
        %v4774 = vadd.f32 %v4757, %v4766
        %v4775 = vadd.f32 %v4758, %v4767
        %v4776 = vadd.f32 %v4759, %v4768
        %v4777 = vadd.f32 %v4760, %v4769
        %v4778 = vadd.f32 %v4761, %v4770
        %v4779 = vadd.f32 %v4762, %v4771
        %v4780 = vadd.f32 %v4763, %v4772
        %v4781 = vmul.f32 %v4688, %v4703
        %v4782 = vmul.f32 %v4781, %v2215
        %v4783 = vmul.f32 %v4781, %v2216
        %v4784 = vmul.f32 %v4781, %v2217
        %v4785 = vmul.f32 %v4781, %v2218
        %v4786 = vmul.f32 %v4781, %v2219
        %v4787 = vmul.f32 %v4781, %v2220
        %v4788 = vmul.f32 %v4781, %v2221
        %v4789 = vmul.f32 %v4781, %v2222
        %v4790 = vadd.f32 %v4773, %v4782
        %v4791 = vadd.f32 %v4774, %v4783
        %v4792 = vadd.f32 %v4775, %v4784
        %v4793 = vadd.f32 %v4776, %v4785
        %v4794 = vadd.f32 %v4777, %v4786
        %v4795 = vadd.f32 %v4778, %v4787
        %v4796 = vadd.f32 %v4779, %v4788
        %v4797 = vadd.f32 %v4780, %v4789
        %v4798 = vmul.f32 %v4691, %v4703
        %v4799 = vmul.f32 %v4798, %v2223
        %v4800 = vmul.f32 %v4798, %v2224
        %v4801 = vmul.f32 %v4798, %v2225
        %v4802 = vmul.f32 %v4798, %v2226
        %v4803 = vmul.f32 %v4798, %v2227
        %v4804 = vmul.f32 %v4798, %v2228
        %v4805 = vmul.f32 %v4798, %v2229
        %v4806 = vmul.f32 %v4798, %v2230
        %v4807 = vadd.f32 %v4790, %v4799
        %v4808 = vadd.f32 %v4791, %v4800
        %v4809 = vadd.f32 %v4792, %v4801
        %v4810 = vadd.f32 %v4793, %v4802
        %v4811 = vadd.f32 %v4794, %v4803
        %v4812 = vadd.f32 %v4795, %v4804
        %v4813 = vadd.f32 %v4796, %v4805
        %v4814 = vadd.f32 %v4797, %v4806
        %v4815 = vmul.f32 %v4694, %v4703
        %v4816 = vmul.f32 %v4815, %v2231
        %v4817 = vmul.f32 %v4815, %v2232
        %v4818 = vmul.f32 %v4815, %v2233
        %v4819 = vmul.f32 %v4815, %v2234
        %v4820 = vmul.f32 %v4815, %v2235
        %v4821 = vmul.f32 %v4815, %v2236
        %v4822 = vmul.f32 %v4815, %v2237
        %v4823 = vmul.f32 %v4815, %v2238
        %v4824 = vadd.f32 %v4807, %v4816
        %v4825 = vadd.f32 %v4808, %v4817
        %v4826 = vadd.f32 %v4809, %v4818
        %v4827 = vadd.f32 %v4810, %v4819
        %v4828 = vadd.f32 %v4811, %v4820
        %v4829 = vadd.f32 %v4812, %v4821
        %v4830 = vadd.f32 %v4813, %v4822
        %v4831 = vadd.f32 %v4814, %v4823
        %v4832 = vadd.f32 %v4824, %v835
        %v4833 = vadd.f32 %v4825, %v840
        %v4834 = vadd.f32 %v4826, %v845
        %v4835 = vadd.f32 %v4827, %v850
        %v4836 = vadd.f32 %v4828, %v855
        %v4837 = vadd.f32 %v4829, %v860
        %v4838 = vadd.f32 %v4830, %v865
        %v4839 = vadd.f32 %v4831, %v870
        %v4841 = vsel %vm392, %v4832, 0
        %v4844 = vsel %vm392, %v4833, 0
        %v4847 = vsel %vm392, %v4834, 0
        %v4850 = vsel %vm392, %v4835, 0
        %v4853 = vsel %vm392, %v4836, 0
        %v4856 = vsel %vm392, %v4837, 0
        %v4859 = vsel %vm392, %v4838, 0
        %v4862 = vsel %vm392, %v4839, 0
        %4864 = vmatprep.subr.mxu0 0.0
        %4865 = vmatpush1.msra.mxu0 %v246
        %4866 = vmatprep.subr.mxu0 0.0
        %4867 = vmatpush1.msra.mxu0 0.0
        %4868 = vmatprep.subr.mxu0 0.0
        %4869 = vmatpush1.msra.mxu0 0.0
        %4870 = vmatprep.subr.mxu0 0.0
        %4871 = vmatpush1.msra.mxu0 0.0
        %4872 = vmatprep.subr.mxu0 0.0
        %4873 = vmatpush1.msra.mxu0 0.0
        %4874 = vmatprep.subr.mxu0 0.0
        %4875 = vmatpush1.msra.mxu0 0.0
        %4876 = vmatprep.subr.mxu0 0.0
        %4877 = vmatpush1.msra.mxu0 0.0
        %4878 = vmatprep.subr.mxu0 0.0
        %4879 = vmatpush1.msra.mxu0 0.0
        %4880 = vmatprep.subr.mxu0 0.0
        %4881 = vmatpush1.msra.mxu0 0.0
        %4882 = vmatprep.subr.mxu0 0.0
        %4883 = vmatpush1.msra.mxu0 0.0
        %4884 = vmatprep.subr.mxu0 0.0
        %4885 = vmatpush1.msra.mxu0 0.0
        %4886 = vmatprep.subr.mxu0 0.0
        %4887 = vmatpush1.msra.mxu0 0.0
        %4888 = vmatprep.subr.mxu0 0.0
        %4889 = vmatpush1.msra.mxu0 0.0
        %4890 = vmatprep.subr.mxu0 0.0
        %4891 = vmatpush1.msra.mxu0 0.0
        %4892 = vmatprep.subr.mxu0 0.0
        %4893 = vmatpush1.msra.mxu0 0.0
        %4894 = vmatprep.subr.mxu0 0.0
        %4895 = vmatpush1.msra.mxu0 0.0
        %4896 = vmatprep.subr.mxu0 0.0
        %4897 = vmatpush1.msra.mxu0 0.0
        %4898 = vmatprep.subr.mxu0 0.0
        %4899 = vmatpush1.msra.mxu0 0.0
        %4900 = vmatprep.subr.mxu0 0.0
        %4901 = vmatpush1.msra.mxu0 0.0
        %4902 = vmatprep.subr.mxu0 0.0
        %4903 = vmatpush1.msra.mxu0 0.0
        %4904 = vmatprep.subr.mxu0 0.0
        %4905 = vmatpush1.msra.mxu0 0.0
        %4906 = vmatprep.subr.mxu0 0.0
        %4907 = vmatpush1.msra.mxu0 0.0
        %4908 = vmatprep.subr.mxu0 0.0
        %4909 = vmatpush1.msra.mxu0 0.0
        %4910 = vmatprep.subr.mxu0 0.0
        %4911 = vmatpush1.msra.mxu0 0.0
        %4912 = vmatprep.subr.mxu0 0.0
        %4913 = vmatpush1.msra.mxu0 0.0
        %4914 = vmatprep.subr.mxu0 0.0
        %4915 = vmatpush1.msra.mxu0 0.0
        %4916 = vmatprep.subr.mxu0 0.0
        %4917 = vmatpush1.msra.mxu0 0.0
        %4918 = vmatprep.subr.mxu0 0.0
        %4919 = vmatpush1.msra.mxu0 0.0
        %4920 = vmatprep.subr.mxu0 0.0
        %4921 = vmatpush1.msra.mxu0 0.0
        %4922 = vmatprep.subr.mxu0 0.0
        %4923 = vmatpush1.msra.mxu0 0.0
        %4924 = vmatprep.subr.mxu0 0.0
        %4925 = vmatpush1.msra.mxu0 0.0
        %4926 = vmatprep.subr.mxu0 0.0
        %4927 = vmatpush1.msra.mxu0 0.0
        %4928 = vmatprep.mubr.f32.mxu0 0.0
        %4929 = vmatmul.mubr.f32.gmra.mrb[0].mxu0 %v4841
        %v4930 = vpop.f32.mrb[0].mxu0
        %v4931 = vadd.f32 %v4075, %v4930
        %v4932 = vpop.f32.mrb[0].mxu0
        %4933 = vmatprep.mubr.f32.mxu0 0.0
        %4934 = vmatmul.mubr.f32.gmra.mrb[0].mxu0 %v4844
        %v4935 = vpop.f32.mrb[0].mxu0
        %v4936 = vadd.f32 %v4075, %v4935
        %v4937 = vpop.f32.mrb[0].mxu0
        %4938 = vmatprep.mubr.f32.mxu0 0.0
        %4939 = vmatmul.mubr.f32.gmra.mrb[0].mxu0 %v4847
        %v4940 = vpop.f32.mrb[0].mxu0
        %v4941 = vadd.f32 %v4075, %v4940
        %v4942 = vpop.f32.mrb[0].mxu0
        %4943 = vmatprep.mubr.f32.mxu0 0.0
        %4944 = vmatmul.mubr.f32.gmra.mrb[0].mxu0 %v4850
        %v4945 = vpop.f32.mrb[0].mxu0
        %v4946 = vadd.f32 %v4075, %v4945
        %v4947 = vpop.f32.mrb[0].mxu0
        %4948 = vmatprep.mubr.f32.mxu0 0.0
        %4949 = vmatmul.mubr.f32.gmra.mrb[0].mxu0 %v4853
        %v4950 = vpop.f32.mrb[0].mxu0
        %v4951 = vadd.f32 %v4075, %v4950
        %v4952 = vpop.f32.mrb[0].mxu0
        %4953 = vmatprep.mubr.f32.mxu0 0.0
        %4954 = vmatmul.mubr.f32.gmra.mrb[0].mxu0 %v4856
        %v4955 = vpop.f32.mrb[0].mxu0
        %v4956 = vadd.f32 %v4075, %v4955
        %v4957 = vpop.f32.mrb[0].mxu0
        %4958 = vmatprep.mubr.f32.mxu0 0.0
        %4959 = vmatmul.mubr.f32.gmra.mrb[0].mxu0 %v4859
        %v4960 = vpop.f32.mrb[0].mxu0
        %v4961 = vadd.f32 %v4075, %v4960
        %v4962 = vpop.f32.mrb[0].mxu0
        %4963 = vmatprep.mubr.f32.mxu0 0.0
        %4964 = vmatmul.mubr.f32.gmra.mrb[0].mxu0 %v4862
        %v4965 = vpop.f32.mrb[0].mxu0
        %v4966 = vadd.f32 %v4075, %v4965
        %v4967 = vpop.f32.mrb[0].mxu0
        %4968 = vdwg.mxu0
        %v4969 = vxor.u32 %v4931, 2147483648
        %v4970 = vxor.u32 %v4936, 2147483648
        %v4971 = vxor.u32 %v4941, 2147483648
        %v4972 = vxor.u32 %v4946, 2147483648
        %v4973 = vxor.u32 %v4951, 2147483648
        %v4974 = vxor.u32 %v4956, 2147483648
        %v4975 = vxor.u32 %v4961, 2147483648
        %v4976 = vxor.u32 %v4966, 2147483648
        %v4977 = vmul.f32 %v4969, 1.442695
        %v4978 = vpow.pop %v4977
        %v4979 = vmul.f32 %v4970, 1.442695
        %v4980 = vpow.pop %v4979
        %v4981 = vmul.f32 %v4971, 1.442695
        %v4982 = vpow.pop %v4981
        %v4983 = vmul.f32 %v4972, 1.442695
        %v4984 = vpow.pop %v4983
        %v4985 = vmul.f32 %v4973, 1.442695
        %v4986 = vpow.pop %v4985
        %v4987 = vmul.f32 %v4974, 1.442695
        %v4988 = vpow.pop %v4987
        %v4989 = vmul.f32 %v4975, 1.442695
        %v4990 = vpow.pop %v4989
        %v4991 = vmul.f32 %v4976, 1.442695
        %v4992 = vpow.pop %v4991
        %v4993 = vadd.f32 %v4978, 1.0
        %v4994 = vadd.f32 %v4980, 1.0
        %v4995 = vadd.f32 %v4982, 1.0
        %v4996 = vadd.f32 %v4984, 1.0
        %v4997 = vadd.f32 %v4986, 1.0
        %v4998 = vadd.f32 %v4988, 1.0
        %v4999 = vadd.f32 %v4990, 1.0
        %v5000 = vadd.f32 %v4992, 1.0
        %v5001 = vrcp.pop %v4993
        %v5002 = vmul.f32 1.0, %v5001
        %v5003 = vrcp.pop %v4994
        %v5004 = vmul.f32 1.0, %v5003
        %v5005 = vrcp.pop %v4995
        %v5006 = vmul.f32 1.0, %v5005
        %v5007 = vrcp.pop %v4996
        %v5008 = vmul.f32 1.0, %v5007
        %v5009 = vrcp.pop %v4997
        %v5010 = vmul.f32 1.0, %v5009
        %v5011 = vrcp.pop %v4998
        %v5012 = vmul.f32 1.0, %v5011
        %v5013 = vrcp.pop %v4999
        %v5014 = vmul.f32 1.0, %v5013
        %v5015 = vrcp.pop %v5000
        %v5016 = vmul.f32 1.0, %v5015
        %v5017 = vld [vmem:[%s735] sm:$0xff]
        %v5018 = vld [vmem:[%s735 + $0x8] sm:$0xff]
        %v5019 = vld [vmem:[%s735 + $0x10] sm:$0xff]
        %v5020 = vld [vmem:[%s735 + $0x18] sm:$0xff]
        %v5021 = vld [vmem:[%s735 + $0x20] sm:$0xff]
        %v5022 = vld [vmem:[%s735 + $0x28] sm:$0xff]
        %v5023 = vld [vmem:[%s735 + $0x30] sm:$0xff]
        %v5024 = vld [vmem:[%s735 + $0x38] sm:$0xff]
        %v5025 = vmul.f32 %v5002, %v5017
        %v5026 = vmul.f32 %v5004, %v5018
        %v5027 = vmul.f32 %v5006, %v5019
        %v5028 = vmul.f32 %v5008, %v5020
        %v5029 = vmul.f32 %v5010, %v5021
        %v5030 = vmul.f32 %v5012, %v5022
        %v5031 = vmul.f32 %v5014, %v5023
        %v5032 = vmul.f32 %v5016, %v5024
        %v5033 = vadd.f32 %v5025, %v5017
        %v5034 = vadd.f32 %v5026, %v5018
        %v5035 = vadd.f32 %v5027, %v5019
        %v5036 = vadd.f32 %v5028, %v5020
        %v5037 = vadd.f32 %v5029, %v5021
        %v5038 = vadd.f32 %v5030, %v5022
        %v5039 = vadd.f32 %v5031, %v5023
        %v5040 = vadd.f32 %v5032, %v5024
        %s5041 = scalar_lea.vmem %s242, 128 [#allocation5]
        %5042 = vst.msk [vmem:[%s5041] sm:$0xff] %vm262, %v5033
        %5043 = vst.msk [vmem:[%s5041 + $0x8] sm:$0xff] %vm262, %v5034
        %5044 = vst.msk [vmem:[%s5041 + $0x10] sm:$0xff] %vm262, %v5035
        %5045 = vst.msk [vmem:[%s5041 + $0x18] sm:$0xff] %vm262, %v5036
        %5046 = vst.msk [vmem:[%s5041 + $0x20] sm:$0xff] %vm262, %v5037
        %5047 = vst.msk [vmem:[%s5041 + $0x28] sm:$0xff] %vm262, %v5038
        %5048 = vst.msk [vmem:[%s5041 + $0x30] sm:$0xff] %vm262, %v5039
        %5049 = vst.msk [vmem:[%s5041 + $0x38] sm:$0xff] %vm262, %v5040
        %v5050 = vmax.f32 %v2422, %v2744
        %v5051 = vmax.f32 %v5050, %v3020
        %v5052 = vmax.f32 %v5051, %v3250
        %v5053 = vmax.f32 %v5052, %v3296
        %v5054 = vmax.f32 %v5053, %v3342
        %v5055 = vmax.f32 %v5054, %v3388
        %v5056 = vmax.f32 %v5055, %v3434
        %v5057 = vsub.f32 %v2422, %v5056
        %v5058 = vmul.f32 %v5057, 1.442695
        %v5059 = vpow.pop %v5058
        %v5060 = vsub.f32 %v2744, %v5056
        %v5061 = vmul.f32 %v5060, 1.442695
        %v5062 = vpow.pop %v5061
        %v5063 = vsub.f32 %v3020, %v5056
        %v5064 = vmul.f32 %v5063, 1.442695
        %v5065 = vpow.pop %v5064
        %v5066 = vsub.f32 %v3250, %v5056
        %v5067 = vmul.f32 %v5066, 1.442695
        %v5068 = vpow.pop %v5067
        %v5069 = vsub.f32 %v3296, %v5056
        %v5070 = vmul.f32 %v5069, 1.442695
        %v5071 = vpow.pop %v5070
        %v5072 = vsub.f32 %v3342, %v5056
        %v5073 = vmul.f32 %v5072, 1.442695
        %v5074 = vpow.pop %v5073
        %v5075 = vsub.f32 %v3388, %v5056
        %v5076 = vmul.f32 %v5075, 1.442695
        %v5077 = vpow.pop %v5076
        %v5078 = vsub.f32 %v3434, %v5056
        %v5079 = vmul.f32 %v5078, 1.442695
        %v5080 = vpow.pop %v5079
        %v5081 = vadd.f32 %v5059, %v5062
        %v5082 = vadd.f32 %v5081, %v5065
        %v5083 = vadd.f32 %v5082, %v5068
        %v5084 = vadd.f32 %v5083, %v5071
        %v5085 = vadd.f32 %v5084, %v5074
        %v5086 = vadd.f32 %v5085, %v5077
        %v5087 = vadd.f32 %v5086, %v5080
        %v5088 = vrcp.pop %v5087
        %v5089 = vmul.f32 1.0, %v5088
        %v5090 = vmul.f32 %v5059, %v5089
        %v5091 = vmul.f32 %v5090, %v2175
        %v5092 = vmul.f32 %v5090, %v2176
        %v5093 = vmul.f32 %v5090, %v2177
        %v5094 = vmul.f32 %v5090, %v2178
        %v5095 = vmul.f32 %v5090, %v2179
        %v5096 = vmul.f32 %v5090, %v2180
        %v5097 = vmul.f32 %v5090, %v2181
        %v5098 = vmul.f32 %v5090, %v2182
        %v5099 = vmul.f32 %v5062, %v5089
        %v5100 = vmul.f32 %v5099, %v2183
        %v5101 = vmul.f32 %v5099, %v2184
        %v5102 = vmul.f32 %v5099, %v2185
        %v5103 = vmul.f32 %v5099, %v2186
        %v5104 = vmul.f32 %v5099, %v2187
        %v5105 = vmul.f32 %v5099, %v2188
        %v5106 = vmul.f32 %v5099, %v2189
        %v5107 = vmul.f32 %v5099, %v2190
        %v5108 = vadd.f32 %v5091, %v5100
        %v5109 = vadd.f32 %v5092, %v5101
        %v5110 = vadd.f32 %v5093, %v5102
        %v5111 = vadd.f32 %v5094, %v5103
        %v5112 = vadd.f32 %v5095, %v5104
        %v5113 = vadd.f32 %v5096, %v5105
        %v5114 = vadd.f32 %v5097, %v5106
        %v5115 = vadd.f32 %v5098, %v5107
        %v5116 = vmul.f32 %v5065, %v5089
        %v5117 = vmul.f32 %v5116, %v2191
        %v5118 = vmul.f32 %v5116, %v2192
        %v5119 = vmul.f32 %v5116, %v2193
        %v5120 = vmul.f32 %v5116, %v2194
        %v5121 = vmul.f32 %v5116, %v2195
        %v5122 = vmul.f32 %v5116, %v2196
        %v5123 = vmul.f32 %v5116, %v2197
        %v5124 = vmul.f32 %v5116, %v2198
        %v5125 = vadd.f32 %v5108, %v5117
        %v5126 = vadd.f32 %v5109, %v5118
        %v5127 = vadd.f32 %v5110, %v5119
        %v5128 = vadd.f32 %v5111, %v5120
        %v5129 = vadd.f32 %v5112, %v5121
        %v5130 = vadd.f32 %v5113, %v5122
        %v5131 = vadd.f32 %v5114, %v5123
        %v5132 = vadd.f32 %v5115, %v5124
        %v5133 = vmul.f32 %v5068, %v5089
        %v5134 = vmul.f32 %v5133, %v2199
        %v5135 = vmul.f32 %v5133, %v2200
        %v5136 = vmul.f32 %v5133, %v2201
        %v5137 = vmul.f32 %v5133, %v2202
        %v5138 = vmul.f32 %v5133, %v2203
        %v5139 = vmul.f32 %v5133, %v2204
        %v5140 = vmul.f32 %v5133, %v2205
        %v5141 = vmul.f32 %v5133, %v2206
        %v5142 = vadd.f32 %v5125, %v5134
        %v5143 = vadd.f32 %v5126, %v5135
        %v5144 = vadd.f32 %v5127, %v5136
        %v5145 = vadd.f32 %v5128, %v5137
        %v5146 = vadd.f32 %v5129, %v5138
        %v5147 = vadd.f32 %v5130, %v5139
        %v5148 = vadd.f32 %v5131, %v5140
        %v5149 = vadd.f32 %v5132, %v5141
        %v5150 = vmul.f32 %v5071, %v5089
        %v5151 = vmul.f32 %v5150, %v2207
        %v5152 = vmul.f32 %v5150, %v2208
        %v5153 = vmul.f32 %v5150, %v2209
        %v5154 = vmul.f32 %v5150, %v2210
        %v5155 = vmul.f32 %v5150, %v2211
        %v5156 = vmul.f32 %v5150, %v2212
        %v5157 = vmul.f32 %v5150, %v2213
        %v5158 = vmul.f32 %v5150, %v2214
        %v5159 = vadd.f32 %v5142, %v5151
        %v5160 = vadd.f32 %v5143, %v5152
        %v5161 = vadd.f32 %v5144, %v5153
        %v5162 = vadd.f32 %v5145, %v5154
        %v5163 = vadd.f32 %v5146, %v5155
        %v5164 = vadd.f32 %v5147, %v5156
        %v5165 = vadd.f32 %v5148, %v5157
        %v5166 = vadd.f32 %v5149, %v5158
        %v5167 = vmul.f32 %v5074, %v5089
        %v5168 = vmul.f32 %v5167, %v2215
        %v5169 = vmul.f32 %v5167, %v2216
        %v5170 = vmul.f32 %v5167, %v2217
        %v5171 = vmul.f32 %v5167, %v2218
        %v5172 = vmul.f32 %v5167, %v2219
        %v5173 = vmul.f32 %v5167, %v2220
        %v5174 = vmul.f32 %v5167, %v2221
        %v5175 = vmul.f32 %v5167, %v2222
        %v5176 = vadd.f32 %v5159, %v5168
        %v5177 = vadd.f32 %v5160, %v5169
        %v5178 = vadd.f32 %v5161, %v5170
        %v5179 = vadd.f32 %v5162, %v5171
        %v5180 = vadd.f32 %v5163, %v5172
        %v5181 = vadd.f32 %v5164, %v5173
        %v5182 = vadd.f32 %v5165, %v5174
        %v5183 = vadd.f32 %v5166, %v5175
        %v5184 = vmul.f32 %v5077, %v5089
        %v5185 = vmul.f32 %v5184, %v2223
        %v5186 = vmul.f32 %v5184, %v2224
        %v5187 = vmul.f32 %v5184, %v2225
        %v5188 = vmul.f32 %v5184, %v2226
        %v5189 = vmul.f32 %v5184, %v2227
        %v5190 = vmul.f32 %v5184, %v2228
        %v5191 = vmul.f32 %v5184, %v2229
        %v5192 = vmul.f32 %v5184, %v2230
        %v5193 = vadd.f32 %v5176, %v5185
        %v5194 = vadd.f32 %v5177, %v5186
        %v5195 = vadd.f32 %v5178, %v5187
        %v5196 = vadd.f32 %v5179, %v5188
        %v5197 = vadd.f32 %v5180, %v5189
        %v5198 = vadd.f32 %v5181, %v5190
        %v5199 = vadd.f32 %v5182, %v5191
        %v5200 = vadd.f32 %v5183, %v5192
        %v5201 = vmul.f32 %v5080, %v5089
        %v5202 = vmul.f32 %v5201, %v2231
        %v5203 = vmul.f32 %v5201, %v2232
        %v5204 = vmul.f32 %v5201, %v2233
        %v5205 = vmul.f32 %v5201, %v2234
        %v5206 = vmul.f32 %v5201, %v2235
        %v5207 = vmul.f32 %v5201, %v2236
        %v5208 = vmul.f32 %v5201, %v2237
        %v5209 = vmul.f32 %v5201, %v2238
        %v5210 = vadd.f32 %v5193, %v5202
        %v5211 = vadd.f32 %v5194, %v5203
        %v5212 = vadd.f32 %v5195, %v5204
        %v5213 = vadd.f32 %v5196, %v5205
        %v5214 = vadd.f32 %v5197, %v5206
        %v5215 = vadd.f32 %v5198, %v5207
        %v5216 = vadd.f32 %v5199, %v5208
        %v5217 = vadd.f32 %v5200, %v5209
        %v5218 = vadd.f32 %v5210, %v1075
        %v5219 = vadd.f32 %v5211, %v1080
        %v5220 = vadd.f32 %v5212, %v1085
        %v5221 = vadd.f32 %v5213, %v1090
        %v5222 = vadd.f32 %v5214, %v1095
        %v5223 = vadd.f32 %v5215, %v1100
        %v5224 = vadd.f32 %v5216, %v1105
        %v5225 = vadd.f32 %v5217, %v1110
        %v5227 = vsel %vm392, %v5218, 0
        %v5230 = vsel %vm392, %v5219, 0
        %v5233 = vsel %vm392, %v5220, 0
        %v5236 = vsel %vm392, %v5221, 0
        %v5239 = vsel %vm392, %v5222, 0
        %v5242 = vsel %vm392, %v5223, 0
        %v5245 = vsel %vm392, %v5224, 0
        %v5248 = vsel %vm392, %v5225, 0
        %5250 = vmatprep.subr.mxu0 0.0
        %5251 = vmatpush1.msra.mxu0 %v246
        %5252 = vmatprep.subr.mxu0 0.0
        %5253 = vmatpush1.msra.mxu0 0.0
        %5254 = vmatprep.subr.mxu0 0.0
        %5255 = vmatpush1.msra.mxu0 0.0
        %5256 = vmatprep.subr.mxu0 0.0
        %5257 = vmatpush1.msra.mxu0 0.0
        %5258 = vmatprep.subr.mxu0 0.0
        %5259 = vmatpush1.msra.mxu0 0.0
        %5260 = vmatprep.subr.mxu0 0.0
        %5261 = vmatpush1.msra.mxu0 0.0
        %5262 = vmatprep.subr.mxu0 0.0
        %5263 = vmatpush1.msra.mxu0 0.0
        %5264 = vmatprep.subr.mxu0 0.0
        %5265 = vmatpush1.msra.mxu0 0.0
        %5266 = vmatprep.subr.mxu0 0.0
        %5267 = vmatpush1.msra.mxu0 0.0
        %5268 = vmatprep.subr.mxu0 0.0
        %5269 = vmatpush1.msra.mxu0 0.0
        %5270 = vmatprep.subr.mxu0 0.0
        %5271 = vmatpush1.msra.mxu0 0.0
        %5272 = vmatprep.subr.mxu0 0.0
        %5273 = vmatpush1.msra.mxu0 0.0
        %5274 = vmatprep.subr.mxu0 0.0
        %5275 = vmatpush1.msra.mxu0 0.0
        %5276 = vmatprep.subr.mxu0 0.0
        %5277 = vmatpush1.msra.mxu0 0.0
        %5278 = vmatprep.subr.mxu0 0.0
        %5279 = vmatpush1.msra.mxu0 0.0
        %5280 = vmatprep.subr.mxu0 0.0
        %5281 = vmatpush1.msra.mxu0 0.0
        %5282 = vmatprep.subr.mxu0 0.0
        %5283 = vmatpush1.msra.mxu0 0.0
        %5284 = vmatprep.subr.mxu0 0.0
        %5285 = vmatpush1.msra.mxu0 0.0
        %5286 = vmatprep.subr.mxu0 0.0
        %5287 = vmatpush1.msra.mxu0 0.0
        %5288 = vmatprep.subr.mxu0 0.0
        %5289 = vmatpush1.msra.mxu0 0.0
        %5290 = vmatprep.subr.mxu0 0.0
        %5291 = vmatpush1.msra.mxu0 0.0
        %5292 = vmatprep.subr.mxu0 0.0
        %5293 = vmatpush1.msra.mxu0 0.0
        %5294 = vmatprep.subr.mxu0 0.0
        %5295 = vmatpush1.msra.mxu0 0.0
        %5296 = vmatprep.subr.mxu0 0.0
        %5297 = vmatpush1.msra.mxu0 0.0
        %5298 = vmatprep.subr.mxu0 0.0
        %5299 = vmatpush1.msra.mxu0 0.0
        %5300 = vmatprep.subr.mxu0 0.0
        %5301 = vmatpush1.msra.mxu0 0.0
        %5302 = vmatprep.subr.mxu0 0.0
        %5303 = vmatpush1.msra.mxu0 0.0
        %5304 = vmatprep.subr.mxu0 0.0
        %5305 = vmatpush1.msra.mxu0 0.0
        %5306 = vmatprep.subr.mxu0 0.0
        %5307 = vmatpush1.msra.mxu0 0.0
        %5308 = vmatprep.subr.mxu0 0.0
        %5309 = vmatpush1.msra.mxu0 0.0
        %5310 = vmatprep.subr.mxu0 0.0
        %5311 = vmatpush1.msra.mxu0 0.0
        %5312 = vmatprep.subr.mxu0 0.0
        %5313 = vmatpush1.msra.mxu0 0.0
        %5314 = vmatprep.mubr.f32.mxu0 0.0
        %5315 = vmatmul.mubr.f32.gmra.mrb[0].mxu0 %v5227
        %v5316 = vpop.f32.mrb[0].mxu0
        %v5317 = vadd.f32 %v4075, %v5316
        %v5318 = vpop.f32.mrb[0].mxu0
        %5319 = vmatprep.mubr.f32.mxu0 0.0
        %5320 = vmatmul.mubr.f32.gmra.mrb[0].mxu0 %v5230
        %v5321 = vpop.f32.mrb[0].mxu0
        %v5322 = vadd.f32 %v4075, %v5321
        %v5323 = vpop.f32.mrb[0].mxu0
        %5324 = vmatprep.mubr.f32.mxu0 0.0
        %5325 = vmatmul.mubr.f32.gmra.mrb[0].mxu0 %v5233
        %v5326 = vpop.f32.mrb[0].mxu0
        %v5327 = vadd.f32 %v4075, %v5326
        %v5328 = vpop.f32.mrb[0].mxu0
        %5329 = vmatprep.mubr.f32.mxu0 0.0
        %5330 = vmatmul.mubr.f32.gmra.mrb[0].mxu0 %v5236
        %v5331 = vpop.f32.mrb[0].mxu0
        %v5332 = vadd.f32 %v4075, %v5331
        %v5333 = vpop.f32.mrb[0].mxu0
        %5334 = vmatprep.mubr.f32.mxu0 0.0
        %5335 = vmatmul.mubr.f32.gmra.mrb[0].mxu0 %v5239
        %v5336 = vpop.f32.mrb[0].mxu0
        %v5337 = vadd.f32 %v4075, %v5336
        %v5338 = vpop.f32.mrb[0].mxu0
        %5339 = vmatprep.mubr.f32.mxu0 0.0
        %5340 = vmatmul.mubr.f32.gmra.mrb[0].mxu0 %v5242
        %v5341 = vpop.f32.mrb[0].mxu0
        %v5342 = vadd.f32 %v4075, %v5341
        %v5343 = vpop.f32.mrb[0].mxu0
        %5344 = vmatprep.mubr.f32.mxu0 0.0
        %5345 = vmatmul.mubr.f32.gmra.mrb[0].mxu0 %v5245
        %v5346 = vpop.f32.mrb[0].mxu0
        %v5347 = vadd.f32 %v4075, %v5346
        %v5348 = vpop.f32.mrb[0].mxu0
        %5349 = vmatprep.mubr.f32.mxu0 0.0
        %5350 = vmatmul.mubr.f32.gmra.mrb[0].mxu0 %v5248
        %v5351 = vpop.f32.mrb[0].mxu0
        %v5352 = vadd.f32 %v4075, %v5351
        %v5353 = vpop.f32.mrb[0].mxu0
        %5354 = vdwg.mxu0
        %v5355 = vxor.u32 %v5317, 2147483648
        %v5356 = vxor.u32 %v5322, 2147483648
        %v5357 = vxor.u32 %v5327, 2147483648
        %v5358 = vxor.u32 %v5332, 2147483648
        %v5359 = vxor.u32 %v5337, 2147483648
        %v5360 = vxor.u32 %v5342, 2147483648
        %v5361 = vxor.u32 %v5347, 2147483648
        %v5362 = vxor.u32 %v5352, 2147483648
        %v5363 = vmul.f32 %v5355, 1.442695
        %v5364 = vpow.pop %v5363
        %v5365 = vmul.f32 %v5356, 1.442695
        %v5366 = vpow.pop %v5365
        %v5367 = vmul.f32 %v5357, 1.442695
        %v5368 = vpow.pop %v5367
        %v5369 = vmul.f32 %v5358, 1.442695
        %v5370 = vpow.pop %v5369
        %v5371 = vmul.f32 %v5359, 1.442695
        %v5372 = vpow.pop %v5371
        %v5373 = vmul.f32 %v5360, 1.442695
        %v5374 = vpow.pop %v5373
        %v5375 = vmul.f32 %v5361, 1.442695
        %v5376 = vpow.pop %v5375
        %v5377 = vmul.f32 %v5362, 1.442695
        %v5378 = vpow.pop %v5377
        %v5379 = vadd.f32 %v5364, 1.0
        %v5380 = vadd.f32 %v5366, 1.0
        %v5381 = vadd.f32 %v5368, 1.0
        %v5382 = vadd.f32 %v5370, 1.0
        %v5383 = vadd.f32 %v5372, 1.0
        %v5384 = vadd.f32 %v5374, 1.0
        %v5385 = vadd.f32 %v5376, 1.0
        %v5386 = vadd.f32 %v5378, 1.0
        %v5387 = vrcp.pop %v5379
        %v5388 = vmul.f32 1.0, %v5387
        %v5389 = vrcp.pop %v5380
        %v5390 = vmul.f32 1.0, %v5389
        %v5391 = vrcp.pop %v5381
        %v5392 = vmul.f32 1.0, %v5391
        %v5393 = vrcp.pop %v5382
        %v5394 = vmul.f32 1.0, %v5393
        %v5395 = vrcp.pop %v5383
        %v5396 = vmul.f32 1.0, %v5395
        %v5397 = vrcp.pop %v5384
        %v5398 = vmul.f32 1.0, %v5397
        %v5399 = vrcp.pop %v5385
        %v5400 = vmul.f32 1.0, %v5399
        %v5401 = vrcp.pop %v5386
        %v5402 = vmul.f32 1.0, %v5401
        %v5403 = vld [vmem:[%s975] sm:$0xff]
        %v5404 = vld [vmem:[%s975 + $0x8] sm:$0xff]
        %v5405 = vld [vmem:[%s975 + $0x10] sm:$0xff]
        %v5406 = vld [vmem:[%s975 + $0x18] sm:$0xff]
        %v5407 = vld [vmem:[%s975 + $0x20] sm:$0xff]
        %v5408 = vld [vmem:[%s975 + $0x28] sm:$0xff]
        %v5409 = vld [vmem:[%s975 + $0x30] sm:$0xff]
        %v5410 = vld [vmem:[%s975 + $0x38] sm:$0xff]
        %v5411 = vmul.f32 %v5388, %v5403
        %v5412 = vmul.f32 %v5390, %v5404
        %v5413 = vmul.f32 %v5392, %v5405
        %v5414 = vmul.f32 %v5394, %v5406
        %v5415 = vmul.f32 %v5396, %v5407
        %v5416 = vmul.f32 %v5398, %v5408
        %v5417 = vmul.f32 %v5400, %v5409
        %v5418 = vmul.f32 %v5402, %v5410
        %v5419 = vadd.f32 %v5411, %v5403
        %v5420 = vadd.f32 %v5412, %v5404
        %v5421 = vadd.f32 %v5413, %v5405
        %v5422 = vadd.f32 %v5414, %v5406
        %v5423 = vadd.f32 %v5415, %v5407
        %v5424 = vadd.f32 %v5416, %v5408
        %v5425 = vadd.f32 %v5417, %v5409
        %v5426 = vadd.f32 %v5418, %v5410
        %s5427 = scalar_lea.vmem %s242, 192 [#allocation5]
        %5428 = vst.msk [vmem:[%s5427] sm:$0xff] %vm262, %v5419
        %5429 = vst.msk [vmem:[%s5427 + $0x8] sm:$0xff] %vm262, %v5420
        %5430 = vst.msk [vmem:[%s5427 + $0x10] sm:$0xff] %vm262, %v5421
        %5431 = vst.msk [vmem:[%s5427 + $0x18] sm:$0xff] %vm262, %v5422
        %5432 = vst.msk [vmem:[%s5427 + $0x20] sm:$0xff] %vm262, %v5423
        %5433 = vst.msk [vmem:[%s5427 + $0x28] sm:$0xff] %vm262, %v5424
        %5434 = vst.msk [vmem:[%s5427 + $0x30] sm:$0xff] %vm262, %v5425
        %5435 = vst.msk [vmem:[%s5427 + $0x38] sm:$0xff] %vm262, %v5426
        %v5436 = vmax.f32 %v2468, %v2790
        %v5437 = vmax.f32 %v5436, %v3066
        %v5438 = vmax.f32 %v5437, %v3296
        %v5439 = vmax.f32 %v5438, %v3480
        %v5440 = vmax.f32 %v5439, %v3526
        %v5441 = vmax.f32 %v5440, %v3572
        %v5442 = vmax.f32 %v5441, %v3618
        %v5443 = vsub.f32 %v2468, %v5442
        %v5444 = vmul.f32 %v5443, 1.442695
        %v5445 = vpow.pop %v5444
        %v5446 = vsub.f32 %v2790, %v5442
        %v5447 = vmul.f32 %v5446, 1.442695
        %v5448 = vpow.pop %v5447
        %v5449 = vsub.f32 %v3066, %v5442
        %v5450 = vmul.f32 %v5449, 1.442695
        %v5451 = vpow.pop %v5450
        %v5452 = vsub.f32 %v3296, %v5442
        %v5453 = vmul.f32 %v5452, 1.442695
        %v5454 = vpow.pop %v5453
        %v5455 = vsub.f32 %v3480, %v5442
        %v5456 = vmul.f32 %v5455, 1.442695
        %v5457 = vpow.pop %v5456
        %v5458 = vsub.f32 %v3526, %v5442
        %v5459 = vmul.f32 %v5458, 1.442695
        %v5460 = vpow.pop %v5459
        %v5461 = vsub.f32 %v3572, %v5442
        %v5462 = vmul.f32 %v5461, 1.442695
        %v5463 = vpow.pop %v5462
        %v5464 = vsub.f32 %v3618, %v5442
        %v5465 = vmul.f32 %v5464, 1.442695
        %v5466 = vpow.pop %v5465
        %v5467 = vadd.f32 %v5445, %v5448
        %v5468 = vadd.f32 %v5467, %v5451
        %v5469 = vadd.f32 %v5468, %v5454
        %v5470 = vadd.f32 %v5469, %v5457
        %v5471 = vadd.f32 %v5470, %v5460
        %v5472 = vadd.f32 %v5471, %v5463
        %v5473 = vadd.f32 %v5472, %v5466
        %v5474 = vrcp.pop %v5473
        %v5475 = vmul.f32 1.0, %v5474
        %v5476 = vmul.f32 %v5445, %v5475
        %v5477 = vmul.f32 %v5476, %v2175
        %v5478 = vmul.f32 %v5476, %v2176
        %v5479 = vmul.f32 %v5476, %v2177
        %v5480 = vmul.f32 %v5476, %v2178
        %v5481 = vmul.f32 %v5476, %v2179
        %v5482 = vmul.f32 %v5476, %v2180
        %v5483 = vmul.f32 %v5476, %v2181
        %v5484 = vmul.f32 %v5476, %v2182
        %v5485 = vmul.f32 %v5448, %v5475
        %v5486 = vmul.f32 %v5485, %v2183
        %v5487 = vmul.f32 %v5485, %v2184
        %v5488 = vmul.f32 %v5485, %v2185
        %v5489 = vmul.f32 %v5485, %v2186
        %v5490 = vmul.f32 %v5485, %v2187
        %v5491 = vmul.f32 %v5485, %v2188
        %v5492 = vmul.f32 %v5485, %v2189
        %v5493 = vmul.f32 %v5485, %v2190
        %v5494 = vadd.f32 %v5477, %v5486
        %v5495 = vadd.f32 %v5478, %v5487
        %v5496 = vadd.f32 %v5479, %v5488
        %v5497 = vadd.f32 %v5480, %v5489
        %v5498 = vadd.f32 %v5481, %v5490
        %v5499 = vadd.f32 %v5482, %v5491
        %v5500 = vadd.f32 %v5483, %v5492
        %v5501 = vadd.f32 %v5484, %v5493
        %v5502 = vmul.f32 %v5451, %v5475
        %v5503 = vmul.f32 %v5502, %v2191
        %v5504 = vmul.f32 %v5502, %v2192
        %v5505 = vmul.f32 %v5502, %v2193
        %v5506 = vmul.f32 %v5502, %v2194
        %v5507 = vmul.f32 %v5502, %v2195
        %v5508 = vmul.f32 %v5502, %v2196
        %v5509 = vmul.f32 %v5502, %v2197
        %v5510 = vmul.f32 %v5502, %v2198
        %v5511 = vadd.f32 %v5494, %v5503
        %v5512 = vadd.f32 %v5495, %v5504
        %v5513 = vadd.f32 %v5496, %v5505
        %v5514 = vadd.f32 %v5497, %v5506
        %v5515 = vadd.f32 %v5498, %v5507
        %v5516 = vadd.f32 %v5499, %v5508
        %v5517 = vadd.f32 %v5500, %v5509
        %v5518 = vadd.f32 %v5501, %v5510
        %v5519 = vmul.f32 %v5454, %v5475
        %v5520 = vmul.f32 %v5519, %v2199
        %v5521 = vmul.f32 %v5519, %v2200
        %v5522 = vmul.f32 %v5519, %v2201
        %v5523 = vmul.f32 %v5519, %v2202
        %v5524 = vmul.f32 %v5519, %v2203
        %v5525 = vmul.f32 %v5519, %v2204
        %v5526 = vmul.f32 %v5519, %v2205
        %v5527 = vmul.f32 %v5519, %v2206
        %v5528 = vadd.f32 %v5511, %v5520
        %v5529 = vadd.f32 %v5512, %v5521
        %v5530 = vadd.f32 %v5513, %v5522
        %v5531 = vadd.f32 %v5514, %v5523
        %v5532 = vadd.f32 %v5515, %v5524
        %v5533 = vadd.f32 %v5516, %v5525
        %v5534 = vadd.f32 %v5517, %v5526
        %v5535 = vadd.f32 %v5518, %v5527
        %v5536 = vmul.f32 %v5457, %v5475
        %v5537 = vmul.f32 %v5536, %v2207
        %v5538 = vmul.f32 %v5536, %v2208
        %v5539 = vmul.f32 %v5536, %v2209
        %v5540 = vmul.f32 %v5536, %v2210
        %v5541 = vmul.f32 %v5536, %v2211
        %v5542 = vmul.f32 %v5536, %v2212
        %v5543 = vmul.f32 %v5536, %v2213
        %v5544 = vmul.f32 %v5536, %v2214
        %v5545 = vadd.f32 %v5528, %v5537
        %v5546 = vadd.f32 %v5529, %v5538
        %v5547 = vadd.f32 %v5530, %v5539
        %v5548 = vadd.f32 %v5531, %v5540
        %v5549 = vadd.f32 %v5532, %v5541
        %v5550 = vadd.f32 %v5533, %v5542
        %v5551 = vadd.f32 %v5534, %v5543
        %v5552 = vadd.f32 %v5535, %v5544
        %v5553 = vmul.f32 %v5460, %v5475
        %v5554 = vmul.f32 %v5553, %v2215
        %v5555 = vmul.f32 %v5553, %v2216
        %v5556 = vmul.f32 %v5553, %v2217
        %v5557 = vmul.f32 %v5553, %v2218
        %v5558 = vmul.f32 %v5553, %v2219
        %v5559 = vmul.f32 %v5553, %v2220
        %v5560 = vmul.f32 %v5553, %v2221
        %v5561 = vmul.f32 %v5553, %v2222
        %v5562 = vadd.f32 %v5545, %v5554
        %v5563 = vadd.f32 %v5546, %v5555
        %v5564 = vadd.f32 %v5547, %v5556
        %v5565 = vadd.f32 %v5548, %v5557
        %v5566 = vadd.f32 %v5549, %v5558
        %v5567 = vadd.f32 %v5550, %v5559
        %v5568 = vadd.f32 %v5551, %v5560
        %v5569 = vadd.f32 %v5552, %v5561
        %v5570 = vmul.f32 %v5463, %v5475
        %v5571 = vmul.f32 %v5570, %v2223
        %v5572 = vmul.f32 %v5570, %v2224
        %v5573 = vmul.f32 %v5570, %v2225
        %v5574 = vmul.f32 %v5570, %v2226
        %v5575 = vmul.f32 %v5570, %v2227
        %v5576 = vmul.f32 %v5570, %v2228
        %v5577 = vmul.f32 %v5570, %v2229
        %v5578 = vmul.f32 %v5570, %v2230
        %v5579 = vadd.f32 %v5562, %v5571
        %v5580 = vadd.f32 %v5563, %v5572
        %v5581 = vadd.f32 %v5564, %v5573
        %v5582 = vadd.f32 %v5565, %v5574
        %v5583 = vadd.f32 %v5566, %v5575
        %v5584 = vadd.f32 %v5567, %v5576
        %v5585 = vadd.f32 %v5568, %v5577
        %v5586 = vadd.f32 %v5569, %v5578
        %v5587 = vmul.f32 %v5466, %v5475
        %v5588 = vmul.f32 %v5587, %v2231
        %v5589 = vmul.f32 %v5587, %v2232
        %v5590 = vmul.f32 %v5587, %v2233
        %v5591 = vmul.f32 %v5587, %v2234
        %v5592 = vmul.f32 %v5587, %v2235
        %v5593 = vmul.f32 %v5587, %v2236
        %v5594 = vmul.f32 %v5587, %v2237
        %v5595 = vmul.f32 %v5587, %v2238
        %v5596 = vadd.f32 %v5579, %v5588
        %v5597 = vadd.f32 %v5580, %v5589
        %v5598 = vadd.f32 %v5581, %v5590
        %v5599 = vadd.f32 %v5582, %v5591
        %v5600 = vadd.f32 %v5583, %v5592
        %v5601 = vadd.f32 %v5584, %v5593
        %v5602 = vadd.f32 %v5585, %v5594
        %v5603 = vadd.f32 %v5586, %v5595
        %v5604 = vadd.f32 %v5596, %v1315
        %v5605 = vadd.f32 %v5597, %v1320
        %v5606 = vadd.f32 %v5598, %v1325
        %v5607 = vadd.f32 %v5599, %v1330
        %v5608 = vadd.f32 %v5600, %v1335
        %v5609 = vadd.f32 %v5601, %v1340
        %v5610 = vadd.f32 %v5602, %v1345
        %v5611 = vadd.f32 %v5603, %v1350
        %v5613 = vsel %vm392, %v5604, 0
        %v5616 = vsel %vm392, %v5605, 0
        %v5619 = vsel %vm392, %v5606, 0
        %v5622 = vsel %vm392, %v5607, 0
        %v5625 = vsel %vm392, %v5608, 0
        %v5628 = vsel %vm392, %v5609, 0
        %v5631 = vsel %vm392, %v5610, 0
        %v5634 = vsel %vm392, %v5611, 0
        %5636 = vmatprep.subr.mxu0 0.0
        %5637 = vmatpush1.msra.mxu0 %v246
        %5638 = vmatprep.subr.mxu0 0.0
        %5639 = vmatpush1.msra.mxu0 0.0
        %5640 = vmatprep.subr.mxu0 0.0
        %5641 = vmatpush1.msra.mxu0 0.0
        %5642 = vmatprep.subr.mxu0 0.0
        %5643 = vmatpush1.msra.mxu0 0.0
        %5644 = vmatprep.subr.mxu0 0.0
        %5645 = vmatpush1.msra.mxu0 0.0
        %5646 = vmatprep.subr.mxu0 0.0
        %5647 = vmatpush1.msra.mxu0 0.0
        %5648 = vmatprep.subr.mxu0 0.0
        %5649 = vmatpush1.msra.mxu0 0.0
        %5650 = vmatprep.subr.mxu0 0.0
        %5651 = vmatpush1.msra.mxu0 0.0
        %5652 = vmatprep.subr.mxu0 0.0
        %5653 = vmatpush1.msra.mxu0 0.0
        %5654 = vmatprep.subr.mxu0 0.0
        %5655 = vmatpush1.msra.mxu0 0.0
        %5656 = vmatprep.subr.mxu0 0.0
        %5657 = vmatpush1.msra.mxu0 0.0
        %5658 = vmatprep.subr.mxu0 0.0
        %5659 = vmatpush1.msra.mxu0 0.0
        %5660 = vmatprep.subr.mxu0 0.0
        %5661 = vmatpush1.msra.mxu0 0.0
        %5662 = vmatprep.subr.mxu0 0.0
        %5663 = vmatpush1.msra.mxu0 0.0
        %5664 = vmatprep.subr.mxu0 0.0
        %5665 = vmatpush1.msra.mxu0 0.0
        %5666 = vmatprep.subr.mxu0 0.0
        %5667 = vmatpush1.msra.mxu0 0.0
        %5668 = vmatprep.subr.mxu0 0.0
        %5669 = vmatpush1.msra.mxu0 0.0
        %5670 = vmatprep.subr.mxu0 0.0
        %5671 = vmatpush1.msra.mxu0 0.0
        %5672 = vmatprep.subr.mxu0 0.0
        %5673 = vmatpush1.msra.mxu0 0.0
        %5674 = vmatprep.subr.mxu0 0.0
        %5675 = vmatpush1.msra.mxu0 0.0
        %5676 = vmatprep.subr.mxu0 0.0
        %5677 = vmatpush1.msra.mxu0 0.0
        %5678 = vmatprep.subr.mxu0 0.0
        %5679 = vmatpush1.msra.mxu0 0.0
        %5680 = vmatprep.subr.mxu0 0.0
        %5681 = vmatpush1.msra.mxu0 0.0
        %5682 = vmatprep.subr.mxu0 0.0
        %5683 = vmatpush1.msra.mxu0 0.0
        %5684 = vmatprep.subr.mxu0 0.0
        %5685 = vmatpush1.msra.mxu0 0.0
        %5686 = vmatprep.subr.mxu0 0.0
        %5687 = vmatpush1.msra.mxu0 0.0
        %5688 = vmatprep.subr.mxu0 0.0
        %5689 = vmatpush1.msra.mxu0 0.0
        %5690 = vmatprep.subr.mxu0 0.0
        %5691 = vmatpush1.msra.mxu0 0.0
        %5692 = vmatprep.subr.mxu0 0.0
        %5693 = vmatpush1.msra.mxu0 0.0
        %5694 = vmatprep.subr.mxu0 0.0
        %5695 = vmatpush1.msra.mxu0 0.0
        %5696 = vmatprep.subr.mxu0 0.0
        %5697 = vmatpush1.msra.mxu0 0.0
        %5698 = vmatprep.subr.mxu0 0.0
        %5699 = vmatpush1.msra.mxu0 0.0
        %5700 = vmatprep.mubr.f32.mxu0 0.0
        %5701 = vmatmul.mubr.f32.gmra.mrb[0].mxu0 %v5613
        %v5702 = vpop.f32.mrb[0].mxu0
        %v5703 = vadd.f32 %v4075, %v5702
        %v5704 = vpop.f32.mrb[0].mxu0
        %5705 = vmatprep.mubr.f32.mxu0 0.0
        %5706 = vmatmul.mubr.f32.gmra.mrb[0].mxu0 %v5616
        %v5707 = vpop.f32.mrb[0].mxu0
        %v5708 = vadd.f32 %v4075, %v5707
        %v5709 = vpop.f32.mrb[0].mxu0
        %5710 = vmatprep.mubr.f32.mxu0 0.0
        %5711 = vmatmul.mubr.f32.gmra.mrb[0].mxu0 %v5619
        %v5712 = vpop.f32.mrb[0].mxu0
        %v5713 = vadd.f32 %v4075, %v5712
        %v5714 = vpop.f32.mrb[0].mxu0
        %5715 = vmatprep.mubr.f32.mxu0 0.0
        %5716 = vmatmul.mubr.f32.gmra.mrb[0].mxu0 %v5622
        %v5717 = vpop.f32.mrb[0].mxu0
        %v5718 = vadd.f32 %v4075, %v5717
        %v5719 = vpop.f32.mrb[0].mxu0
        %5720 = vmatprep.mubr.f32.mxu0 0.0
        %5721 = vmatmul.mubr.f32.gmra.mrb[0].mxu0 %v5625
        %v5722 = vpop.f32.mrb[0].mxu0
        %v5723 = vadd.f32 %v4075, %v5722
        %v5724 = vpop.f32.mrb[0].mxu0
        %5725 = vmatprep.mubr.f32.mxu0 0.0
        %5726 = vmatmul.mubr.f32.gmra.mrb[0].mxu0 %v5628
        %v5727 = vpop.f32.mrb[0].mxu0
        %v5728 = vadd.f32 %v4075, %v5727
        %v5729 = vpop.f32.mrb[0].mxu0
        %5730 = vmatprep.mubr.f32.mxu0 0.0
        %5731 = vmatmul.mubr.f32.gmra.mrb[0].mxu0 %v5631
        %v5732 = vpop.f32.mrb[0].mxu0
        %v5733 = vadd.f32 %v4075, %v5732
        %v5734 = vpop.f32.mrb[0].mxu0
        %5735 = vmatprep.mubr.f32.mxu0 0.0
        %5736 = vmatmul.mubr.f32.gmra.mrb[0].mxu0 %v5634
        %v5737 = vpop.f32.mrb[0].mxu0
        %v5738 = vadd.f32 %v4075, %v5737
        %v5739 = vpop.f32.mrb[0].mxu0
        %5740 = vdwg.mxu0
        %v5741 = vxor.u32 %v5703, 2147483648
        %v5742 = vxor.u32 %v5708, 2147483648
        %v5743 = vxor.u32 %v5713, 2147483648
        %v5744 = vxor.u32 %v5718, 2147483648
        %v5745 = vxor.u32 %v5723, 2147483648
        %v5746 = vxor.u32 %v5728, 2147483648
        %v5747 = vxor.u32 %v5733, 2147483648
        %v5748 = vxor.u32 %v5738, 2147483648
        %v5749 = vmul.f32 %v5741, 1.442695
        %v5750 = vpow.pop %v5749
        %v5751 = vmul.f32 %v5742, 1.442695
        %v5752 = vpow.pop %v5751
        %v5753 = vmul.f32 %v5743, 1.442695
        %v5754 = vpow.pop %v5753
        %v5755 = vmul.f32 %v5744, 1.442695
        %v5756 = vpow.pop %v5755
        %v5757 = vmul.f32 %v5745, 1.442695
        %v5758 = vpow.pop %v5757
        %v5759 = vmul.f32 %v5746, 1.442695
        %v5760 = vpow.pop %v5759
        %v5761 = vmul.f32 %v5747, 1.442695
        %v5762 = vpow.pop %v5761
        %v5763 = vmul.f32 %v5748, 1.442695
        %v5764 = vpow.pop %v5763
        %v5765 = vadd.f32 %v5750, 1.0
        %v5766 = vadd.f32 %v5752, 1.0
        %v5767 = vadd.f32 %v5754, 1.0
        %v5768 = vadd.f32 %v5756, 1.0
        %v5769 = vadd.f32 %v5758, 1.0
        %v5770 = vadd.f32 %v5760, 1.0
        %v5771 = vadd.f32 %v5762, 1.0
        %v5772 = vadd.f32 %v5764, 1.0
        %v5773 = vrcp.pop %v5765
        %v5774 = vmul.f32 1.0, %v5773
        %v5775 = vrcp.pop %v5766
        %v5776 = vmul.f32 1.0, %v5775
        %v5777 = vrcp.pop %v5767
        %v5778 = vmul.f32 1.0, %v5777
        %v5779 = vrcp.pop %v5768
        %v5780 = vmul.f32 1.0, %v5779
        %v5781 = vrcp.pop %v5769
        %v5782 = vmul.f32 1.0, %v5781
        %v5783 = vrcp.pop %v5770
        %v5784 = vmul.f32 1.0, %v5783
        %v5785 = vrcp.pop %v5771
        %v5786 = vmul.f32 1.0, %v5785
        %v5787 = vrcp.pop %v5772
        %v5788 = vmul.f32 1.0, %v5787
        %v5789 = vld [vmem:[%s1215] sm:$0xff]
        %v5790 = vld [vmem:[%s1215 + $0x8] sm:$0xff]
        %v5791 = vld [vmem:[%s1215 + $0x10] sm:$0xff]
        %v5792 = vld [vmem:[%s1215 + $0x18] sm:$0xff]
        %v5793 = vld [vmem:[%s1215 + $0x20] sm:$0xff]
        %v5794 = vld [vmem:[%s1215 + $0x28] sm:$0xff]
        %v5795 = vld [vmem:[%s1215 + $0x30] sm:$0xff]
        %v5796 = vld [vmem:[%s1215 + $0x38] sm:$0xff]
        %v5797 = vmul.f32 %v5774, %v5789
        %v5798 = vmul.f32 %v5776, %v5790
        %v5799 = vmul.f32 %v5778, %v5791
        %v5800 = vmul.f32 %v5780, %v5792
        %v5801 = vmul.f32 %v5782, %v5793
        %v5802 = vmul.f32 %v5784, %v5794
        %v5803 = vmul.f32 %v5786, %v5795
        %v5804 = vmul.f32 %v5788, %v5796
        %v5805 = vadd.f32 %v5797, %v5789
        %v5806 = vadd.f32 %v5798, %v5790
        %v5807 = vadd.f32 %v5799, %v5791
        %v5808 = vadd.f32 %v5800, %v5792
        %v5809 = vadd.f32 %v5801, %v5793
        %v5810 = vadd.f32 %v5802, %v5794
        %v5811 = vadd.f32 %v5803, %v5795
        %v5812 = vadd.f32 %v5804, %v5796
        %s5813 = scalar_lea.vmem %s242, 256 [#allocation5]
        %5814 = vst.msk [vmem:[%s5813] sm:$0xff] %vm262, %v5805
        %5815 = vst.msk [vmem:[%s5813 + $0x8] sm:$0xff] %vm262, %v5806
        %5816 = vst.msk [vmem:[%s5813 + $0x10] sm:$0xff] %vm262, %v5807
        %5817 = vst.msk [vmem:[%s5813 + $0x18] sm:$0xff] %vm262, %v5808
        %5818 = vst.msk [vmem:[%s5813 + $0x20] sm:$0xff] %vm262, %v5809
        %5819 = vst.msk [vmem:[%s5813 + $0x28] sm:$0xff] %vm262, %v5810
        %5820 = vst.msk [vmem:[%s5813 + $0x30] sm:$0xff] %vm262, %v5811
        %5821 = vst.msk [vmem:[%s5813 + $0x38] sm:$0xff] %vm262, %v5812
        %v5822 = vmax.f32 %v2514, %v2836
        %v5823 = vmax.f32 %v5822, %v3112
        %v5824 = vmax.f32 %v5823, %v3342
        %v5825 = vmax.f32 %v5824, %v3526
        %v5826 = vmax.f32 %v5825, %v3664
        %v5827 = vmax.f32 %v5826, %v3710
        %v5828 = vmax.f32 %v5827, %v3756
        %v5829 = vsub.f32 %v2514, %v5828
        %v5830 = vmul.f32 %v5829, 1.442695
        %v5831 = vpow.pop %v5830
        %v5832 = vsub.f32 %v2836, %v5828
        %v5833 = vmul.f32 %v5832, 1.442695
        %v5834 = vpow.pop %v5833
        %v5835 = vsub.f32 %v3112, %v5828
        %v5836 = vmul.f32 %v5835, 1.442695
        %v5837 = vpow.pop %v5836
        %v5838 = vsub.f32 %v3342, %v5828
        %v5839 = vmul.f32 %v5838, 1.442695
        %v5840 = vpow.pop %v5839
        %v5841 = vsub.f32 %v3526, %v5828
        %v5842 = vmul.f32 %v5841, 1.442695
        %v5843 = vpow.pop %v5842
        %v5844 = vsub.f32 %v3664, %v5828
        %v5845 = vmul.f32 %v5844, 1.442695
        %v5846 = vpow.pop %v5845
        %v5847 = vsub.f32 %v3710, %v5828
        %v5848 = vmul.f32 %v5847, 1.442695
        %v5849 = vpow.pop %v5848
        %v5850 = vsub.f32 %v3756, %v5828
        %v5851 = vmul.f32 %v5850, 1.442695
        %v5852 = vpow.pop %v5851
        %v5853 = vadd.f32 %v5831, %v5834
        %v5854 = vadd.f32 %v5853, %v5837
        %v5855 = vadd.f32 %v5854, %v5840
        %v5856 = vadd.f32 %v5855, %v5843
        %v5857 = vadd.f32 %v5856, %v5846
        %v5858 = vadd.f32 %v5857, %v5849
        %v5859 = vadd.f32 %v5858, %v5852
        %v5860 = vrcp.pop %v5859
        %v5861 = vmul.f32 1.0, %v5860
        %v5862 = vmul.f32 %v5831, %v5861
        %v5863 = vmul.f32 %v5862, %v2175
        %v5864 = vmul.f32 %v5862, %v2176
        %v5865 = vmul.f32 %v5862, %v2177
        %v5866 = vmul.f32 %v5862, %v2178
        %v5867 = vmul.f32 %v5862, %v2179
        %v5868 = vmul.f32 %v5862, %v2180
        %v5869 = vmul.f32 %v5862, %v2181
        %v5870 = vmul.f32 %v5862, %v2182
        %v5871 = vmul.f32 %v5834, %v5861
        %v5872 = vmul.f32 %v5871, %v2183
        %v5873 = vmul.f32 %v5871, %v2184
        %v5874 = vmul.f32 %v5871, %v2185
        %v5875 = vmul.f32 %v5871, %v2186
        %v5876 = vmul.f32 %v5871, %v2187
        %v5877 = vmul.f32 %v5871, %v2188
        %v5878 = vmul.f32 %v5871, %v2189
        %v5879 = vmul.f32 %v5871, %v2190
        %v5880 = vadd.f32 %v5863, %v5872
        %v5881 = vadd.f32 %v5864, %v5873
        %v5882 = vadd.f32 %v5865, %v5874
        %v5883 = vadd.f32 %v5866, %v5875
        %v5884 = vadd.f32 %v5867, %v5876
        %v5885 = vadd.f32 %v5868, %v5877
        %v5886 = vadd.f32 %v5869, %v5878
        %v5887 = vadd.f32 %v5870, %v5879
        %v5888 = vmul.f32 %v5837, %v5861
        %v5889 = vmul.f32 %v5888, %v2191
        %v5890 = vmul.f32 %v5888, %v2192
        %v5891 = vmul.f32 %v5888, %v2193
        %v5892 = vmul.f32 %v5888, %v2194
        %v5893 = vmul.f32 %v5888, %v2195
        %v5894 = vmul.f32 %v5888, %v2196
        %v5895 = vmul.f32 %v5888, %v2197
        %v5896 = vmul.f32 %v5888, %v2198
        %v5897 = vadd.f32 %v5880, %v5889
        %v5898 = vadd.f32 %v5881, %v5890
        %v5899 = vadd.f32 %v5882, %v5891
        %v5900 = vadd.f32 %v5883, %v5892
        %v5901 = vadd.f32 %v5884, %v5893
        %v5902 = vadd.f32 %v5885, %v5894
        %v5903 = vadd.f32 %v5886, %v5895
        %v5904 = vadd.f32 %v5887, %v5896
        %v5905 = vmul.f32 %v5840, %v5861
        %v5906 = vmul.f32 %v5905, %v2199
        %v5907 = vmul.f32 %v5905, %v2200
        %v5908 = vmul.f32 %v5905, %v2201
        %v5909 = vmul.f32 %v5905, %v2202
        %v5910 = vmul.f32 %v5905, %v2203
        %v5911 = vmul.f32 %v5905, %v2204
        %v5912 = vmul.f32 %v5905, %v2205
        %v5913 = vmul.f32 %v5905, %v2206
        %v5914 = vadd.f32 %v5897, %v5906
        %v5915 = vadd.f32 %v5898, %v5907
        %v5916 = vadd.f32 %v5899, %v5908
        %v5917 = vadd.f32 %v5900, %v5909
        %v5918 = vadd.f32 %v5901, %v5910
        %v5919 = vadd.f32 %v5902, %v5911
        %v5920 = vadd.f32 %v5903, %v5912
        %v5921 = vadd.f32 %v5904, %v5913
        %v5922 = vmul.f32 %v5843, %v5861
        %v5923 = vmul.f32 %v5922, %v2207
        %v5924 = vmul.f32 %v5922, %v2208
        %v5925 = vmul.f32 %v5922, %v2209
        %v5926 = vmul.f32 %v5922, %v2210
        %v5927 = vmul.f32 %v5922, %v2211
        %v5928 = vmul.f32 %v5922, %v2212
        %v5929 = vmul.f32 %v5922, %v2213
        %v5930 = vmul.f32 %v5922, %v2214
        %v5931 = vadd.f32 %v5914, %v5923
        %v5932 = vadd.f32 %v5915, %v5924
        %v5933 = vadd.f32 %v5916, %v5925
        %v5934 = vadd.f32 %v5917, %v5926
        %v5935 = vadd.f32 %v5918, %v5927
        %v5936 = vadd.f32 %v5919, %v5928
        %v5937 = vadd.f32 %v5920, %v5929
        %v5938 = vadd.f32 %v5921, %v5930
        %v5939 = vmul.f32 %v5846, %v5861
        %v5940 = vmul.f32 %v5939, %v2215
        %v5941 = vmul.f32 %v5939, %v2216
        %v5942 = vmul.f32 %v5939, %v2217
        %v5943 = vmul.f32 %v5939, %v2218
        %v5944 = vmul.f32 %v5939, %v2219
        %v5945 = vmul.f32 %v5939, %v2220
        %v5946 = vmul.f32 %v5939, %v2221
        %v5947 = vmul.f32 %v5939, %v2222
        %v5948 = vadd.f32 %v5931, %v5940
        %v5949 = vadd.f32 %v5932, %v5941
        %v5950 = vadd.f32 %v5933, %v5942
        %v5951 = vadd.f32 %v5934, %v5943
        %v5952 = vadd.f32 %v5935, %v5944
        %v5953 = vadd.f32 %v5936, %v5945
        %v5954 = vadd.f32 %v5937, %v5946
        %v5955 = vadd.f32 %v5938, %v5947
        %v5956 = vmul.f32 %v5849, %v5861
        %v5957 = vmul.f32 %v5956, %v2223
        %v5958 = vmul.f32 %v5956, %v2224
        %v5959 = vmul.f32 %v5956, %v2225
        %v5960 = vmul.f32 %v5956, %v2226
        %v5961 = vmul.f32 %v5956, %v2227
        %v5962 = vmul.f32 %v5956, %v2228
        %v5963 = vmul.f32 %v5956, %v2229
        %v5964 = vmul.f32 %v5956, %v2230
        %v5965 = vadd.f32 %v5948, %v5957
        %v5966 = vadd.f32 %v5949, %v5958
        %v5967 = vadd.f32 %v5950, %v5959
        %v5968 = vadd.f32 %v5951, %v5960
        %v5969 = vadd.f32 %v5952, %v5961
        %v5970 = vadd.f32 %v5953, %v5962
        %v5971 = vadd.f32 %v5954, %v5963
        %v5972 = vadd.f32 %v5955, %v5964
        %v5973 = vmul.f32 %v5852, %v5861
        %v5974 = vmul.f32 %v5973, %v2231
        %v5975 = vmul.f32 %v5973, %v2232
        %v5976 = vmul.f32 %v5973, %v2233
        %v5977 = vmul.f32 %v5973, %v2234
        %v5978 = vmul.f32 %v5973, %v2235
        %v5979 = vmul.f32 %v5973, %v2236
        %v5980 = vmul.f32 %v5973, %v2237
        %v5981 = vmul.f32 %v5973, %v2238
        %v5982 = vadd.f32 %v5965, %v5974
        %v5983 = vadd.f32 %v5966, %v5975
        %v5984 = vadd.f32 %v5967, %v5976
        %v5985 = vadd.f32 %v5968, %v5977
        %v5986 = vadd.f32 %v5969, %v5978
        %v5987 = vadd.f32 %v5970, %v5979
        %v5988 = vadd.f32 %v5971, %v5980
        %v5989 = vadd.f32 %v5972, %v5981
        %v5990 = vadd.f32 %v5982, %v1555
        %v5991 = vadd.f32 %v5983, %v1560
        %v5992 = vadd.f32 %v5984, %v1565
        %v5993 = vadd.f32 %v5985, %v1570
        %v5994 = vadd.f32 %v5986, %v1575
        %v5995 = vadd.f32 %v5987, %v1580
        %v5996 = vadd.f32 %v5988, %v1585
        %v5997 = vadd.f32 %v5989, %v1590
        %v5999 = vsel %vm392, %v5990, 0
        %v6002 = vsel %vm392, %v5991, 0
        %v6005 = vsel %vm392, %v5992, 0
        %v6008 = vsel %vm392, %v5993, 0
        %v6011 = vsel %vm392, %v5994, 0
        %v6014 = vsel %vm392, %v5995, 0
        %v6017 = vsel %vm392, %v5996, 0
        %v6020 = vsel %vm392, %v5997, 0
        %6022 = vmatprep.subr.mxu0 0.0
        %6023 = vmatpush1.msra.mxu0 %v246
        %6024 = vmatprep.subr.mxu0 0.0
        %6025 = vmatpush1.msra.mxu0 0.0
        %6026 = vmatprep.subr.mxu0 0.0
        %6027 = vmatpush1.msra.mxu0 0.0
        %6028 = vmatprep.subr.mxu0 0.0
        %6029 = vmatpush1.msra.mxu0 0.0
        %6030 = vmatprep.subr.mxu0 0.0
        %6031 = vmatpush1.msra.mxu0 0.0
        %6032 = vmatprep.subr.mxu0 0.0
        %6033 = vmatpush1.msra.mxu0 0.0
        %6034 = vmatprep.subr.mxu0 0.0
        %6035 = vmatpush1.msra.mxu0 0.0
        %6036 = vmatprep.subr.mxu0 0.0
        %6037 = vmatpush1.msra.mxu0 0.0
        %6038 = vmatprep.subr.mxu0 0.0
        %6039 = vmatpush1.msra.mxu0 0.0
        %6040 = vmatprep.subr.mxu0 0.0
        %6041 = vmatpush1.msra.mxu0 0.0
        %6042 = vmatprep.subr.mxu0 0.0
        %6043 = vmatpush1.msra.mxu0 0.0
        %6044 = vmatprep.subr.mxu0 0.0
        %6045 = vmatpush1.msra.mxu0 0.0
        %6046 = vmatprep.subr.mxu0 0.0
        %6047 = vmatpush1.msra.mxu0 0.0
        %6048 = vmatprep.subr.mxu0 0.0
        %6049 = vmatpush1.msra.mxu0 0.0
        %6050 = vmatprep.subr.mxu0 0.0
        %6051 = vmatpush1.msra.mxu0 0.0
        %6052 = vmatprep.subr.mxu0 0.0
        %6053 = vmatpush1.msra.mxu0 0.0
        %6054 = vmatprep.subr.mxu0 0.0
        %6055 = vmatpush1.msra.mxu0 0.0
        %6056 = vmatprep.subr.mxu0 0.0
        %6057 = vmatpush1.msra.mxu0 0.0
        %6058 = vmatprep.subr.mxu0 0.0
        %6059 = vmatpush1.msra.mxu0 0.0
        %6060 = vmatprep.subr.mxu0 0.0
        %6061 = vmatpush1.msra.mxu0 0.0
        %6062 = vmatprep.subr.mxu0 0.0
        %6063 = vmatpush1.msra.mxu0 0.0
        %6064 = vmatprep.subr.mxu0 0.0
        %6065 = vmatpush1.msra.mxu0 0.0
        %6066 = vmatprep.subr.mxu0 0.0
        %6067 = vmatpush1.msra.mxu0 0.0
        %6068 = vmatprep.subr.mxu0 0.0
        %6069 = vmatpush1.msra.mxu0 0.0
        %6070 = vmatprep.subr.mxu0 0.0
        %6071 = vmatpush1.msra.mxu0 0.0
        %6072 = vmatprep.subr.mxu0 0.0
        %6073 = vmatpush1.msra.mxu0 0.0
        %6074 = vmatprep.subr.mxu0 0.0
        %6075 = vmatpush1.msra.mxu0 0.0
        %6076 = vmatprep.subr.mxu0 0.0
        %6077 = vmatpush1.msra.mxu0 0.0
        %6078 = vmatprep.subr.mxu0 0.0
        %6079 = vmatpush1.msra.mxu0 0.0
        %6080 = vmatprep.subr.mxu0 0.0
        %6081 = vmatpush1.msra.mxu0 0.0
        %6082 = vmatprep.subr.mxu0 0.0
        %6083 = vmatpush1.msra.mxu0 0.0
        %6084 = vmatprep.subr.mxu0 0.0
        %6085 = vmatpush1.msra.mxu0 0.0
        %6086 = vmatprep.mubr.f32.mxu0 0.0
        %6087 = vmatmul.mubr.f32.gmra.mrb[0].mxu0 %v5999
        %v6088 = vpop.f32.mrb[0].mxu0
        %v6089 = vadd.f32 %v4075, %v6088
        %v6090 = vpop.f32.mrb[0].mxu0
        %6091 = vmatprep.mubr.f32.mxu0 0.0
        %6092 = vmatmul.mubr.f32.gmra.mrb[0].mxu0 %v6002
        %v6093 = vpop.f32.mrb[0].mxu0
        %v6094 = vadd.f32 %v4075, %v6093
        %v6095 = vpop.f32.mrb[0].mxu0
        %6096 = vmatprep.mubr.f32.mxu0 0.0
        %6097 = vmatmul.mubr.f32.gmra.mrb[0].mxu0 %v6005
        %v6098 = vpop.f32.mrb[0].mxu0
        %v6099 = vadd.f32 %v4075, %v6098
        %v6100 = vpop.f32.mrb[0].mxu0
        %6101 = vmatprep.mubr.f32.mxu0 0.0
        %6102 = vmatmul.mubr.f32.gmra.mrb[0].mxu0 %v6008
        %v6103 = vpop.f32.mrb[0].mxu0
        %v6104 = vadd.f32 %v4075, %v6103
        %v6105 = vpop.f32.mrb[0].mxu0
        %6106 = vmatprep.mubr.f32.mxu0 0.0
        %6107 = vmatmul.mubr.f32.gmra.mrb[0].mxu0 %v6011
        %v6108 = vpop.f32.mrb[0].mxu0
        %v6109 = vadd.f32 %v4075, %v6108
        %v6110 = vpop.f32.mrb[0].mxu0
        %6111 = vmatprep.mubr.f32.mxu0 0.0
        %6112 = vmatmul.mubr.f32.gmra.mrb[0].mxu0 %v6014
        %v6113 = vpop.f32.mrb[0].mxu0
        %v6114 = vadd.f32 %v4075, %v6113
        %v6115 = vpop.f32.mrb[0].mxu0
        %6116 = vmatprep.mubr.f32.mxu0 0.0
        %6117 = vmatmul.mubr.f32.gmra.mrb[0].mxu0 %v6017
        %v6118 = vpop.f32.mrb[0].mxu0
        %v6119 = vadd.f32 %v4075, %v6118
        %v6120 = vpop.f32.mrb[0].mxu0
        %6121 = vmatprep.mubr.f32.mxu0 0.0
        %6122 = vmatmul.mubr.f32.gmra.mrb[0].mxu0 %v6020
        %v6123 = vpop.f32.mrb[0].mxu0
        %v6124 = vadd.f32 %v4075, %v6123
        %v6125 = vpop.f32.mrb[0].mxu0
        %6126 = vdwg.mxu0
        %v6127 = vxor.u32 %v6089, 2147483648
        %v6128 = vxor.u32 %v6094, 2147483648
        %v6129 = vxor.u32 %v6099, 2147483648
        %v6130 = vxor.u32 %v6104, 2147483648
        %v6131 = vxor.u32 %v6109, 2147483648
        %v6132 = vxor.u32 %v6114, 2147483648
        %v6133 = vxor.u32 %v6119, 2147483648
        %v6134 = vxor.u32 %v6124, 2147483648
        %v6135 = vmul.f32 %v6127, 1.442695
        %v6136 = vpow.pop %v6135
        %v6137 = vmul.f32 %v6128, 1.442695
        %v6138 = vpow.pop %v6137
        %v6139 = vmul.f32 %v6129, 1.442695
        %v6140 = vpow.pop %v6139
        %v6141 = vmul.f32 %v6130, 1.442695
        %v6142 = vpow.pop %v6141
        %v6143 = vmul.f32 %v6131, 1.442695
        %v6144 = vpow.pop %v6143
        %v6145 = vmul.f32 %v6132, 1.442695
        %v6146 = vpow.pop %v6145
        %v6147 = vmul.f32 %v6133, 1.442695
        %v6148 = vpow.pop %v6147
        %v6149 = vmul.f32 %v6134, 1.442695
        %v6150 = vpow.pop %v6149
        %v6151 = vadd.f32 %v6136, 1.0
        %v6152 = vadd.f32 %v6138, 1.0
        %v6153 = vadd.f32 %v6140, 1.0
        %v6154 = vadd.f32 %v6142, 1.0
        %v6155 = vadd.f32 %v6144, 1.0
        %v6156 = vadd.f32 %v6146, 1.0
        %v6157 = vadd.f32 %v6148, 1.0
        %v6158 = vadd.f32 %v6150, 1.0
        %v6159 = vrcp.pop %v6151
        %v6160 = vmul.f32 1.0, %v6159
        %v6161 = vrcp.pop %v6152
        %v6162 = vmul.f32 1.0, %v6161
        %v6163 = vrcp.pop %v6153
        %v6164 = vmul.f32 1.0, %v6163
        %v6165 = vrcp.pop %v6154
        %v6166 = vmul.f32 1.0, %v6165
        %v6167 = vrcp.pop %v6155
        %v6168 = vmul.f32 1.0, %v6167
        %v6169 = vrcp.pop %v6156
        %v6170 = vmul.f32 1.0, %v6169
        %v6171 = vrcp.pop %v6157
        %v6172 = vmul.f32 1.0, %v6171
        %v6173 = vrcp.pop %v6158
        %v6174 = vmul.f32 1.0, %v6173
        %v6175 = vld [vmem:[%s1455] sm:$0xff]
        %v6176 = vld [vmem:[%s1455 + $0x8] sm:$0xff]
        %v6177 = vld [vmem:[%s1455 + $0x10] sm:$0xff]
        %v6178 = vld [vmem:[%s1455 + $0x18] sm:$0xff]
        %v6179 = vld [vmem:[%s1455 + $0x20] sm:$0xff]
        %v6180 = vld [vmem:[%s1455 + $0x28] sm:$0xff]
        %v6181 = vld [vmem:[%s1455 + $0x30] sm:$0xff]
        %v6182 = vld [vmem:[%s1455 + $0x38] sm:$0xff]
        %v6183 = vmul.f32 %v6160, %v6175
        %v6184 = vmul.f32 %v6162, %v6176
        %v6185 = vmul.f32 %v6164, %v6177
        %v6186 = vmul.f32 %v6166, %v6178
        %v6187 = vmul.f32 %v6168, %v6179
        %v6188 = vmul.f32 %v6170, %v6180
        %v6189 = vmul.f32 %v6172, %v6181
        %v6190 = vmul.f32 %v6174, %v6182
        %v6191 = vadd.f32 %v6183, %v6175
        %v6192 = vadd.f32 %v6184, %v6176
        %v6193 = vadd.f32 %v6185, %v6177
        %v6194 = vadd.f32 %v6186, %v6178
        %v6195 = vadd.f32 %v6187, %v6179
        %v6196 = vadd.f32 %v6188, %v6180
        %v6197 = vadd.f32 %v6189, %v6181
        %v6198 = vadd.f32 %v6190, %v6182
        %s6199 = scalar_lea.vmem %s242, 320 [#allocation5]
        %6200 = vst.msk [vmem:[%s6199] sm:$0xff] %vm262, %v6191
        %6201 = vst.msk [vmem:[%s6199 + $0x8] sm:$0xff] %vm262, %v6192
        %6202 = vst.msk [vmem:[%s6199 + $0x10] sm:$0xff] %vm262, %v6193
        %6203 = vst.msk [vmem:[%s6199 + $0x18] sm:$0xff] %vm262, %v6194
        %6204 = vst.msk [vmem:[%s6199 + $0x20] sm:$0xff] %vm262, %v6195
        %6205 = vst.msk [vmem:[%s6199 + $0x28] sm:$0xff] %vm262, %v6196
        %6206 = vst.msk [vmem:[%s6199 + $0x30] sm:$0xff] %vm262, %v6197
        %6207 = vst.msk [vmem:[%s6199 + $0x38] sm:$0xff] %vm262, %v6198
        %v6208 = vmax.f32 %v2560, %v2882
        %v6209 = vmax.f32 %v6208, %v3158
        %v6210 = vmax.f32 %v6209, %v3388
        %v6211 = vmax.f32 %v6210, %v3572
        %v6212 = vmax.f32 %v6211, %v3710
        %v6213 = vmax.f32 %v6212, %v3802
        %v6214 = vmax.f32 %v6213, %v3848
        %v6215 = vsub.f32 %v2560, %v6214
        %v6216 = vmul.f32 %v6215, 1.442695
        %v6217 = vpow.pop %v6216
        %v6218 = vsub.f32 %v2882, %v6214
        %v6219 = vmul.f32 %v6218, 1.442695
        %v6220 = vpow.pop %v6219
        %v6221 = vsub.f32 %v3158, %v6214
        %v6222 = vmul.f32 %v6221, 1.442695
        %v6223 = vpow.pop %v6222
        %v6224 = vsub.f32 %v3388, %v6214
        %v6225 = vmul.f32 %v6224, 1.442695
        %v6226 = vpow.pop %v6225
        %v6227 = vsub.f32 %v3572, %v6214
        %v6228 = vmul.f32 %v6227, 1.442695
        %v6229 = vpow.pop %v6228
        %v6230 = vsub.f32 %v3710, %v6214
        %v6231 = vmul.f32 %v6230, 1.442695
        %v6232 = vpow.pop %v6231
        %v6233 = vsub.f32 %v3802, %v6214
        %v6234 = vmul.f32 %v6233, 1.442695
        %v6235 = vpow.pop %v6234
        %v6236 = vsub.f32 %v3848, %v6214
        %v6237 = vmul.f32 %v6236, 1.442695
        %v6238 = vpow.pop %v6237
        %v6239 = vadd.f32 %v6217, %v6220
        %v6240 = vadd.f32 %v6239, %v6223
        %v6241 = vadd.f32 %v6240, %v6226
        %v6242 = vadd.f32 %v6241, %v6229
        %v6243 = vadd.f32 %v6242, %v6232
        %v6244 = vadd.f32 %v6243, %v6235
        %v6245 = vadd.f32 %v6244, %v6238
        %v6246 = vrcp.pop %v6245
        %v6247 = vmul.f32 1.0, %v6246
        %v6248 = vmul.f32 %v6217, %v6247
        %v6249 = vmul.f32 %v6248, %v2175
        %v6250 = vmul.f32 %v6248, %v2176
        %v6251 = vmul.f32 %v6248, %v2177
        %v6252 = vmul.f32 %v6248, %v2178
        %v6253 = vmul.f32 %v6248, %v2179
        %v6254 = vmul.f32 %v6248, %v2180
        %v6255 = vmul.f32 %v6248, %v2181
        %v6256 = vmul.f32 %v6248, %v2182
        %v6257 = vmul.f32 %v6220, %v6247
        %v6258 = vmul.f32 %v6257, %v2183
        %v6259 = vmul.f32 %v6257, %v2184
        %v6260 = vmul.f32 %v6257, %v2185
        %v6261 = vmul.f32 %v6257, %v2186
        %v6262 = vmul.f32 %v6257, %v2187
        %v6263 = vmul.f32 %v6257, %v2188
        %v6264 = vmul.f32 %v6257, %v2189
        %v6265 = vmul.f32 %v6257, %v2190
        %v6266 = vadd.f32 %v6249, %v6258
        %v6267 = vadd.f32 %v6250, %v6259
        %v6268 = vadd.f32 %v6251, %v6260
        %v6269 = vadd.f32 %v6252, %v6261
        %v6270 = vadd.f32 %v6253, %v6262
        %v6271 = vadd.f32 %v6254, %v6263
        %v6272 = vadd.f32 %v6255, %v6264
        %v6273 = vadd.f32 %v6256, %v6265
        %v6274 = vmul.f32 %v6223, %v6247
        %v6275 = vmul.f32 %v6274, %v2191
        %v6276 = vmul.f32 %v6274, %v2192
        %v6277 = vmul.f32 %v6274, %v2193
        %v6278 = vmul.f32 %v6274, %v2194
        %v6279 = vmul.f32 %v6274, %v2195
        %v6280 = vmul.f32 %v6274, %v2196
        %v6281 = vmul.f32 %v6274, %v2197
        %v6282 = vmul.f32 %v6274, %v2198
        %v6283 = vadd.f32 %v6266, %v6275
        %v6284 = vadd.f32 %v6267, %v6276
        %v6285 = vadd.f32 %v6268, %v6277
        %v6286 = vadd.f32 %v6269, %v6278
        %v6287 = vadd.f32 %v6270, %v6279
        %v6288 = vadd.f32 %v6271, %v6280
        %v6289 = vadd.f32 %v6272, %v6281
        %v6290 = vadd.f32 %v6273, %v6282
        %v6291 = vmul.f32 %v6226, %v6247
        %v6292 = vmul.f32 %v6291, %v2199
        %v6293 = vmul.f32 %v6291, %v2200
        %v6294 = vmul.f32 %v6291, %v2201
        %v6295 = vmul.f32 %v6291, %v2202
        %v6296 = vmul.f32 %v6291, %v2203
        %v6297 = vmul.f32 %v6291, %v2204
        %v6298 = vmul.f32 %v6291, %v2205
        %v6299 = vmul.f32 %v6291, %v2206
        %v6300 = vadd.f32 %v6283, %v6292
        %v6301 = vadd.f32 %v6284, %v6293
        %v6302 = vadd.f32 %v6285, %v6294
        %v6303 = vadd.f32 %v6286, %v6295
        %v6304 = vadd.f32 %v6287, %v6296
        %v6305 = vadd.f32 %v6288, %v6297
        %v6306 = vadd.f32 %v6289, %v6298
        %v6307 = vadd.f32 %v6290, %v6299
        %v6308 = vmul.f32 %v6229, %v6247
        %v6309 = vmul.f32 %v6308, %v2207
        %v6310 = vmul.f32 %v6308, %v2208
        %v6311 = vmul.f32 %v6308, %v2209
        %v6312 = vmul.f32 %v6308, %v2210
        %v6313 = vmul.f32 %v6308, %v2211
        %v6314 = vmul.f32 %v6308, %v2212
        %v6315 = vmul.f32 %v6308, %v2213
        %v6316 = vmul.f32 %v6308, %v2214
        %v6317 = vadd.f32 %v6300, %v6309
        %v6318 = vadd.f32 %v6301, %v6310
        %v6319 = vadd.f32 %v6302, %v6311
        %v6320 = vadd.f32 %v6303, %v6312
        %v6321 = vadd.f32 %v6304, %v6313
        %v6322 = vadd.f32 %v6305, %v6314
        %v6323 = vadd.f32 %v6306, %v6315
        %v6324 = vadd.f32 %v6307, %v6316
        %v6325 = vmul.f32 %v6232, %v6247
        %v6326 = vmul.f32 %v6325, %v2215
        %v6327 = vmul.f32 %v6325, %v2216
        %v6328 = vmul.f32 %v6325, %v2217
        %v6329 = vmul.f32 %v6325, %v2218
        %v6330 = vmul.f32 %v6325, %v2219
        %v6331 = vmul.f32 %v6325, %v2220
        %v6332 = vmul.f32 %v6325, %v2221
        %v6333 = vmul.f32 %v6325, %v2222
        %v6334 = vadd.f32 %v6317, %v6326
        %v6335 = vadd.f32 %v6318, %v6327
        %v6336 = vadd.f32 %v6319, %v6328
        %v6337 = vadd.f32 %v6320, %v6329
        %v6338 = vadd.f32 %v6321, %v6330
        %v6339 = vadd.f32 %v6322, %v6331
        %v6340 = vadd.f32 %v6323, %v6332
        %v6341 = vadd.f32 %v6324, %v6333
        %v6342 = vmul.f32 %v6235, %v6247
        %v6343 = vmul.f32 %v6342, %v2223
        %v6344 = vmul.f32 %v6342, %v2224
        %v6345 = vmul.f32 %v6342, %v2225
        %v6346 = vmul.f32 %v6342, %v2226
        %v6347 = vmul.f32 %v6342, %v2227
        %v6348 = vmul.f32 %v6342, %v2228
        %v6349 = vmul.f32 %v6342, %v2229
        %v6350 = vmul.f32 %v6342, %v2230
        %v6351 = vadd.f32 %v6334, %v6343
        %v6352 = vadd.f32 %v6335, %v6344
        %v6353 = vadd.f32 %v6336, %v6345
        %v6354 = vadd.f32 %v6337, %v6346
        %v6355 = vadd.f32 %v6338, %v6347
        %v6356 = vadd.f32 %v6339, %v6348
        %v6357 = vadd.f32 %v6340, %v6349
        %v6358 = vadd.f32 %v6341, %v6350
        %v6359 = vmul.f32 %v6238, %v6247
        %v6360 = vmul.f32 %v6359, %v2231
        %v6361 = vmul.f32 %v6359, %v2232
        %v6362 = vmul.f32 %v6359, %v2233
        %v6363 = vmul.f32 %v6359, %v2234
        %v6364 = vmul.f32 %v6359, %v2235
        %v6365 = vmul.f32 %v6359, %v2236
        %v6366 = vmul.f32 %v6359, %v2237
        %v6367 = vmul.f32 %v6359, %v2238
        %v6368 = vadd.f32 %v6351, %v6360
        %v6369 = vadd.f32 %v6352, %v6361
        %v6370 = vadd.f32 %v6353, %v6362
        %v6371 = vadd.f32 %v6354, %v6363
        %v6372 = vadd.f32 %v6355, %v6364
        %v6373 = vadd.f32 %v6356, %v6365
        %v6374 = vadd.f32 %v6357, %v6366
        %v6375 = vadd.f32 %v6358, %v6367
        %v6376 = vadd.f32 %v6368, %v1795
        %v6377 = vadd.f32 %v6369, %v1800
        %v6378 = vadd.f32 %v6370, %v1805
        %v6379 = vadd.f32 %v6371, %v1810
        %v6380 = vadd.f32 %v6372, %v1815
        %v6381 = vadd.f32 %v6373, %v1820
        %v6382 = vadd.f32 %v6374, %v1825
        %v6383 = vadd.f32 %v6375, %v1830
        %v6385 = vsel %vm392, %v6376, 0
        %v6388 = vsel %vm392, %v6377, 0
        %v6391 = vsel %vm392, %v6378, 0
        %v6394 = vsel %vm392, %v6379, 0
        %v6397 = vsel %vm392, %v6380, 0
        %v6400 = vsel %vm392, %v6381, 0
        %v6403 = vsel %vm392, %v6382, 0
        %v6406 = vsel %vm392, %v6383, 0
        %6408 = vmatprep.subr.mxu0 0.0
        %6409 = vmatpush1.msra.mxu0 %v246
        %6410 = vmatprep.subr.mxu0 0.0
        %6411 = vmatpush1.msra.mxu0 0.0
        %6412 = vmatprep.subr.mxu0 0.0
        %6413 = vmatpush1.msra.mxu0 0.0
        %6414 = vmatprep.subr.mxu0 0.0
        %6415 = vmatpush1.msra.mxu0 0.0
        %6416 = vmatprep.subr.mxu0 0.0
        %6417 = vmatpush1.msra.mxu0 0.0
        %6418 = vmatprep.subr.mxu0 0.0
        %6419 = vmatpush1.msra.mxu0 0.0
        %6420 = vmatprep.subr.mxu0 0.0
        %6421 = vmatpush1.msra.mxu0 0.0
        %6422 = vmatprep.subr.mxu0 0.0
        %6423 = vmatpush1.msra.mxu0 0.0
        %6424 = vmatprep.subr.mxu0 0.0
        %6425 = vmatpush1.msra.mxu0 0.0
        %6426 = vmatprep.subr.mxu0 0.0
        %6427 = vmatpush1.msra.mxu0 0.0
        %6428 = vmatprep.subr.mxu0 0.0
        %6429 = vmatpush1.msra.mxu0 0.0
        %6430 = vmatprep.subr.mxu0 0.0
        %6431 = vmatpush1.msra.mxu0 0.0
        %6432 = vmatprep.subr.mxu0 0.0
        %6433 = vmatpush1.msra.mxu0 0.0
        %6434 = vmatprep.subr.mxu0 0.0
        %6435 = vmatpush1.msra.mxu0 0.0
        %6436 = vmatprep.subr.mxu0 0.0
        %6437 = vmatpush1.msra.mxu0 0.0
        %6438 = vmatprep.subr.mxu0 0.0
        %6439 = vmatpush1.msra.mxu0 0.0
        %6440 = vmatprep.subr.mxu0 0.0
        %6441 = vmatpush1.msra.mxu0 0.0
        %6442 = vmatprep.subr.mxu0 0.0
        %6443 = vmatpush1.msra.mxu0 0.0
        %6444 = vmatprep.subr.mxu0 0.0
        %6445 = vmatpush1.msra.mxu0 0.0
        %6446 = vmatprep.subr.mxu0 0.0
        %6447 = vmatpush1.msra.mxu0 0.0
        %6448 = vmatprep.subr.mxu0 0.0
        %6449 = vmatpush1.msra.mxu0 0.0
        %6450 = vmatprep.subr.mxu0 0.0
        %6451 = vmatpush1.msra.mxu0 0.0
        %6452 = vmatprep.subr.mxu0 0.0
        %6453 = vmatpush1.msra.mxu0 0.0
        %6454 = vmatprep.subr.mxu0 0.0
        %6455 = vmatpush1.msra.mxu0 0.0
        %6456 = vmatprep.subr.mxu0 0.0
        %6457 = vmatpush1.msra.mxu0 0.0
        %6458 = vmatprep.subr.mxu0 0.0
        %6459 = vmatpush1.msra.mxu0 0.0
        %6460 = vmatprep.subr.mxu0 0.0
        %6461 = vmatpush1.msra.mxu0 0.0
        %6462 = vmatprep.subr.mxu0 0.0
        %6463 = vmatpush1.msra.mxu0 0.0
        %6464 = vmatprep.subr.mxu0 0.0
        %6465 = vmatpush1.msra.mxu0 0.0
        %6466 = vmatprep.subr.mxu0 0.0
        %6467 = vmatpush1.msra.mxu0 0.0
        %6468 = vmatprep.subr.mxu0 0.0
        %6469 = vmatpush1.msra.mxu0 0.0
        %6470 = vmatprep.subr.mxu0 0.0
        %6471 = vmatpush1.msra.mxu0 0.0
        %6472 = vmatprep.mubr.f32.mxu0 0.0
        %6473 = vmatmul.mubr.f32.gmra.mrb[0].mxu0 %v6385
        %v6474 = vpop.f32.mrb[0].mxu0
        %v6475 = vadd.f32 %v4075, %v6474
        %v6476 = vpop.f32.mrb[0].mxu0
        %6477 = vmatprep.mubr.f32.mxu0 0.0
        %6478 = vmatmul.mubr.f32.gmra.mrb[0].mxu0 %v6388
        %v6479 = vpop.f32.mrb[0].mxu0
        %v6480 = vadd.f32 %v4075, %v6479
        %v6481 = vpop.f32.mrb[0].mxu0
        %6482 = vmatprep.mubr.f32.mxu0 0.0
        %6483 = vmatmul.mubr.f32.gmra.mrb[0].mxu0 %v6391
        %v6484 = vpop.f32.mrb[0].mxu0
        %v6485 = vadd.f32 %v4075, %v6484
        %v6486 = vpop.f32.mrb[0].mxu0
        %6487 = vmatprep.mubr.f32.mxu0 0.0
        %6488 = vmatmul.mubr.f32.gmra.mrb[0].mxu0 %v6394
        %v6489 = vpop.f32.mrb[0].mxu0
        %v6490 = vadd.f32 %v4075, %v6489
        %v6491 = vpop.f32.mrb[0].mxu0
        %6492 = vmatprep.mubr.f32.mxu0 0.0
        %6493 = vmatmul.mubr.f32.gmra.mrb[0].mxu0 %v6397
        %v6494 = vpop.f32.mrb[0].mxu0
        %v6495 = vadd.f32 %v4075, %v6494
        %v6496 = vpop.f32.mrb[0].mxu0
        %6497 = vmatprep.mubr.f32.mxu0 0.0
        %6498 = vmatmul.mubr.f32.gmra.mrb[0].mxu0 %v6400
        %v6499 = vpop.f32.mrb[0].mxu0
        %v6500 = vadd.f32 %v4075, %v6499
        %v6501 = vpop.f32.mrb[0].mxu0
        %6502 = vmatprep.mubr.f32.mxu0 0.0
        %6503 = vmatmul.mubr.f32.gmra.mrb[0].mxu0 %v6403
        %v6504 = vpop.f32.mrb[0].mxu0
        %v6505 = vadd.f32 %v4075, %v6504
        %v6506 = vpop.f32.mrb[0].mxu0
        %6507 = vmatprep.mubr.f32.mxu0 0.0
        %6508 = vmatmul.mubr.f32.gmra.mrb[0].mxu0 %v6406
        %v6509 = vpop.f32.mrb[0].mxu0
        %v6510 = vadd.f32 %v4075, %v6509
        %v6511 = vpop.f32.mrb[0].mxu0
        %6512 = vdwg.mxu0
        %v6513 = vxor.u32 %v6475, 2147483648
        %v6514 = vxor.u32 %v6480, 2147483648
        %v6515 = vxor.u32 %v6485, 2147483648
        %v6516 = vxor.u32 %v6490, 2147483648
        %v6517 = vxor.u32 %v6495, 2147483648
        %v6518 = vxor.u32 %v6500, 2147483648
        %v6519 = vxor.u32 %v6505, 2147483648
        %v6520 = vxor.u32 %v6510, 2147483648
        %v6521 = vmul.f32 %v6513, 1.442695
        %v6522 = vpow.pop %v6521
        %v6523 = vmul.f32 %v6514, 1.442695
        %v6524 = vpow.pop %v6523
        %v6525 = vmul.f32 %v6515, 1.442695
        %v6526 = vpow.pop %v6525
        %v6527 = vmul.f32 %v6516, 1.442695
        %v6528 = vpow.pop %v6527
        %v6529 = vmul.f32 %v6517, 1.442695
        %v6530 = vpow.pop %v6529
        %v6531 = vmul.f32 %v6518, 1.442695
        %v6532 = vpow.pop %v6531
        %v6533 = vmul.f32 %v6519, 1.442695
        %v6534 = vpow.pop %v6533
        %v6535 = vmul.f32 %v6520, 1.442695
        %v6536 = vpow.pop %v6535
        %v6537 = vadd.f32 %v6522, 1.0
        %v6538 = vadd.f32 %v6524, 1.0
        %v6539 = vadd.f32 %v6526, 1.0
        %v6540 = vadd.f32 %v6528, 1.0
        %v6541 = vadd.f32 %v6530, 1.0
        %v6542 = vadd.f32 %v6532, 1.0
        %v6543 = vadd.f32 %v6534, 1.0
        %v6544 = vadd.f32 %v6536, 1.0
        %v6545 = vrcp.pop %v6537
        %v6546 = vmul.f32 1.0, %v6545
        %v6547 = vrcp.pop %v6538
        %v6548 = vmul.f32 1.0, %v6547
        %v6549 = vrcp.pop %v6539
        %v6550 = vmul.f32 1.0, %v6549
        %v6551 = vrcp.pop %v6540
        %v6552 = vmul.f32 1.0, %v6551
        %v6553 = vrcp.pop %v6541
        %v6554 = vmul.f32 1.0, %v6553
        %v6555 = vrcp.pop %v6542
        %v6556 = vmul.f32 1.0, %v6555
        %v6557 = vrcp.pop %v6543
        %v6558 = vmul.f32 1.0, %v6557
        %v6559 = vrcp.pop %v6544
        %v6560 = vmul.f32 1.0, %v6559
        %v6561 = vld [vmem:[%s1695] sm:$0xff]
        %v6562 = vld [vmem:[%s1695 + $0x8] sm:$0xff]
        %v6563 = vld [vmem:[%s1695 + $0x10] sm:$0xff]
        %v6564 = vld [vmem:[%s1695 + $0x18] sm:$0xff]
        %v6565 = vld [vmem:[%s1695 + $0x20] sm:$0xff]
        %v6566 = vld [vmem:[%s1695 + $0x28] sm:$0xff]
        %v6567 = vld [vmem:[%s1695 + $0x30] sm:$0xff]
        %v6568 = vld [vmem:[%s1695 + $0x38] sm:$0xff]
        %v6569 = vmul.f32 %v6546, %v6561
        %v6570 = vmul.f32 %v6548, %v6562
        %v6571 = vmul.f32 %v6550, %v6563
        %v6572 = vmul.f32 %v6552, %v6564
        %v6573 = vmul.f32 %v6554, %v6565
        %v6574 = vmul.f32 %v6556, %v6566
        %v6575 = vmul.f32 %v6558, %v6567
        %v6576 = vmul.f32 %v6560, %v6568
        %v6577 = vadd.f32 %v6569, %v6561
        %v6578 = vadd.f32 %v6570, %v6562
        %v6579 = vadd.f32 %v6571, %v6563
        %v6580 = vadd.f32 %v6572, %v6564
        %v6581 = vadd.f32 %v6573, %v6565
        %v6582 = vadd.f32 %v6574, %v6566
        %v6583 = vadd.f32 %v6575, %v6567
        %v6584 = vadd.f32 %v6576, %v6568
        %s6585 = scalar_lea.vmem %s242, 384 [#allocation5]
        %6586 = vst.msk [vmem:[%s6585] sm:$0xff] %vm262, %v6577
        %6587 = vst.msk [vmem:[%s6585 + $0x8] sm:$0xff] %vm262, %v6578
        %6588 = vst.msk [vmem:[%s6585 + $0x10] sm:$0xff] %vm262, %v6579
        %6589 = vst.msk [vmem:[%s6585 + $0x18] sm:$0xff] %vm262, %v6580
        %6590 = vst.msk [vmem:[%s6585 + $0x20] sm:$0xff] %vm262, %v6581
        %6591 = vst.msk [vmem:[%s6585 + $0x28] sm:$0xff] %vm262, %v6582
        %6592 = vst.msk [vmem:[%s6585 + $0x30] sm:$0xff] %vm262, %v6583
        %6593 = vst.msk [vmem:[%s6585 + $0x38] sm:$0xff] %vm262, %v6584
        %v6594 = vmax.f32 %v2606, %v2928
        %v6595 = vmax.f32 %v6594, %v3204
        %v6596 = vmax.f32 %v6595, %v3434
        %v6597 = vmax.f32 %v6596, %v3618
        %v6598 = vmax.f32 %v6597, %v3756
        %v6599 = vmax.f32 %v6598, %v3848
        %v6600 = vmax.f32 %v6599, %v3894
        %v6601 = vsub.f32 %v2606, %v6600
        %v6602 = vmul.f32 %v6601, 1.442695
        %v6603 = vpow.pop %v6602
        %v6604 = vsub.f32 %v2928, %v6600
        %v6605 = vmul.f32 %v6604, 1.442695
        %v6606 = vpow.pop %v6605
        %v6607 = vsub.f32 %v3204, %v6600
        %v6608 = vmul.f32 %v6607, 1.442695
        %v6609 = vpow.pop %v6608
        %v6610 = vsub.f32 %v3434, %v6600
        %v6611 = vmul.f32 %v6610, 1.442695
        %v6612 = vpow.pop %v6611
        %v6613 = vsub.f32 %v3618, %v6600
        %v6614 = vmul.f32 %v6613, 1.442695
        %v6615 = vpow.pop %v6614
        %v6616 = vsub.f32 %v3756, %v6600
        %v6617 = vmul.f32 %v6616, 1.442695
        %v6618 = vpow.pop %v6617
        %v6619 = vsub.f32 %v3848, %v6600
        %v6620 = vmul.f32 %v6619, 1.442695
        %v6621 = vpow.pop %v6620
        %v6622 = vsub.f32 %v3894, %v6600
        %v6623 = vmul.f32 %v6622, 1.442695
        %v6624 = vpow.pop %v6623
        %v6625 = vadd.f32 %v6603, %v6606
        %v6626 = vadd.f32 %v6625, %v6609
        %v6627 = vadd.f32 %v6626, %v6612
        %v6628 = vadd.f32 %v6627, %v6615
        %v6629 = vadd.f32 %v6628, %v6618
        %v6630 = vadd.f32 %v6629, %v6621
        %v6631 = vadd.f32 %v6630, %v6624
        %v6632 = vrcp.pop %v6631
        %v6633 = vmul.f32 1.0, %v6632
        %v6634 = vmul.f32 %v6603, %v6633
        %v6635 = vmul.f32 %v6634, %v2175
        %v6636 = vmul.f32 %v6634, %v2176
        %v6637 = vmul.f32 %v6634, %v2177
        %v6638 = vmul.f32 %v6634, %v2178
        %v6639 = vmul.f32 %v6634, %v2179
        %v6640 = vmul.f32 %v6634, %v2180
        %v6641 = vmul.f32 %v6634, %v2181
        %v6642 = vmul.f32 %v6634, %v2182
        %v6643 = vmul.f32 %v6606, %v6633
        %v6644 = vmul.f32 %v6643, %v2183
        %v6645 = vmul.f32 %v6643, %v2184
        %v6646 = vmul.f32 %v6643, %v2185
        %v6647 = vmul.f32 %v6643, %v2186
        %v6648 = vmul.f32 %v6643, %v2187
        %v6649 = vmul.f32 %v6643, %v2188
        %v6650 = vmul.f32 %v6643, %v2189
        %v6651 = vmul.f32 %v6643, %v2190
        %v6652 = vadd.f32 %v6635, %v6644
        %v6653 = vadd.f32 %v6636, %v6645
        %v6654 = vadd.f32 %v6637, %v6646
        %v6655 = vadd.f32 %v6638, %v6647
        %v6656 = vadd.f32 %v6639, %v6648
        %v6657 = vadd.f32 %v6640, %v6649
        %v6658 = vadd.f32 %v6641, %v6650
        %v6659 = vadd.f32 %v6642, %v6651
        %v6660 = vmul.f32 %v6609, %v6633
        %v6661 = vmul.f32 %v6660, %v2191
        %v6662 = vmul.f32 %v6660, %v2192
        %v6663 = vmul.f32 %v6660, %v2193
        %v6664 = vmul.f32 %v6660, %v2194
        %v6665 = vmul.f32 %v6660, %v2195
        %v6666 = vmul.f32 %v6660, %v2196
        %v6667 = vmul.f32 %v6660, %v2197
        %v6668 = vmul.f32 %v6660, %v2198
        %v6669 = vadd.f32 %v6652, %v6661
        %v6670 = vadd.f32 %v6653, %v6662
        %v6671 = vadd.f32 %v6654, %v6663
        %v6672 = vadd.f32 %v6655, %v6664
        %v6673 = vadd.f32 %v6656, %v6665
        %v6674 = vadd.f32 %v6657, %v6666
        %v6675 = vadd.f32 %v6658, %v6667
        %v6676 = vadd.f32 %v6659, %v6668
        %v6677 = vmul.f32 %v6612, %v6633
        %v6678 = vmul.f32 %v6677, %v2199
        %v6679 = vmul.f32 %v6677, %v2200
        %v6680 = vmul.f32 %v6677, %v2201
        %v6681 = vmul.f32 %v6677, %v2202
        %v6682 = vmul.f32 %v6677, %v2203
        %v6683 = vmul.f32 %v6677, %v2204
        %v6684 = vmul.f32 %v6677, %v2205
        %v6685 = vmul.f32 %v6677, %v2206
        %v6686 = vadd.f32 %v6669, %v6678
        %v6687 = vadd.f32 %v6670, %v6679
        %v6688 = vadd.f32 %v6671, %v6680
        %v6689 = vadd.f32 %v6672, %v6681
        %v6690 = vadd.f32 %v6673, %v6682
        %v6691 = vadd.f32 %v6674, %v6683
        %v6692 = vadd.f32 %v6675, %v6684
        %v6693 = vadd.f32 %v6676, %v6685
        %v6694 = vmul.f32 %v6615, %v6633
        %v6695 = vmul.f32 %v6694, %v2207
        %v6696 = vmul.f32 %v6694, %v2208
        %v6697 = vmul.f32 %v6694, %v2209
        %v6698 = vmul.f32 %v6694, %v2210
        %v6699 = vmul.f32 %v6694, %v2211
        %v6700 = vmul.f32 %v6694, %v2212
        %v6701 = vmul.f32 %v6694, %v2213
        %v6702 = vmul.f32 %v6694, %v2214
        %v6703 = vadd.f32 %v6686, %v6695
        %v6704 = vadd.f32 %v6687, %v6696
        %v6705 = vadd.f32 %v6688, %v6697
        %v6706 = vadd.f32 %v6689, %v6698
        %v6707 = vadd.f32 %v6690, %v6699
        %v6708 = vadd.f32 %v6691, %v6700
        %v6709 = vadd.f32 %v6692, %v6701
        %v6710 = vadd.f32 %v6693, %v6702
        %v6711 = vmul.f32 %v6618, %v6633
        %v6712 = vmul.f32 %v6711, %v2215
        %v6713 = vmul.f32 %v6711, %v2216
        %v6714 = vmul.f32 %v6711, %v2217
        %v6715 = vmul.f32 %v6711, %v2218
        %v6716 = vmul.f32 %v6711, %v2219
        %v6717 = vmul.f32 %v6711, %v2220
        %v6718 = vmul.f32 %v6711, %v2221
        %v6719 = vmul.f32 %v6711, %v2222
        %v6720 = vadd.f32 %v6703, %v6712
        %v6721 = vadd.f32 %v6704, %v6713
        %v6722 = vadd.f32 %v6705, %v6714
        %v6723 = vadd.f32 %v6706, %v6715
        %v6724 = vadd.f32 %v6707, %v6716
        %v6725 = vadd.f32 %v6708, %v6717
        %v6726 = vadd.f32 %v6709, %v6718
        %v6727 = vadd.f32 %v6710, %v6719
        %v6728 = vmul.f32 %v6621, %v6633
        %v6729 = vmul.f32 %v6728, %v2223
        %v6730 = vmul.f32 %v6728, %v2224
        %v6731 = vmul.f32 %v6728, %v2225
        %v6732 = vmul.f32 %v6728, %v2226
        %v6733 = vmul.f32 %v6728, %v2227
        %v6734 = vmul.f32 %v6728, %v2228
        %v6735 = vmul.f32 %v6728, %v2229
        %v6736 = vmul.f32 %v6728, %v2230
        %v6737 = vadd.f32 %v6720, %v6729
        %v6738 = vadd.f32 %v6721, %v6730
        %v6739 = vadd.f32 %v6722, %v6731
        %v6740 = vadd.f32 %v6723, %v6732
        %v6741 = vadd.f32 %v6724, %v6733
        %v6742 = vadd.f32 %v6725, %v6734
        %v6743 = vadd.f32 %v6726, %v6735
        %v6744 = vadd.f32 %v6727, %v6736
        %v6745 = vmul.f32 %v6624, %v6633
        %v6746 = vmul.f32 %v6745, %v2231
        %v6747 = vmul.f32 %v6745, %v2232
        %v6748 = vmul.f32 %v6745, %v2233
        %v6749 = vmul.f32 %v6745, %v2234
        %v6750 = vmul.f32 %v6745, %v2235
        %v6751 = vmul.f32 %v6745, %v2236
        %v6752 = vmul.f32 %v6745, %v2237
        %v6753 = vmul.f32 %v6745, %v2238
        %v6754 = vadd.f32 %v6737, %v6746
        %v6755 = vadd.f32 %v6738, %v6747
        %v6756 = vadd.f32 %v6739, %v6748
        %v6757 = vadd.f32 %v6740, %v6749
        %v6758 = vadd.f32 %v6741, %v6750
        %v6759 = vadd.f32 %v6742, %v6751
        %v6760 = vadd.f32 %v6743, %v6752
        %v6761 = vadd.f32 %v6744, %v6753
        %v6762 = vadd.f32 %v6754, %v2035
        %v6763 = vadd.f32 %v6755, %v2040
        %v6764 = vadd.f32 %v6756, %v2045
        %v6765 = vadd.f32 %v6757, %v2050
        %v6766 = vadd.f32 %v6758, %v2055
        %v6767 = vadd.f32 %v6759, %v2060
        %v6768 = vadd.f32 %v6760, %v2065
        %v6769 = vadd.f32 %v6761, %v2070
        %v6771 = vsel %vm392, %v6762, 0
        %v6774 = vsel %vm392, %v6763, 0
        %v6777 = vsel %vm392, %v6764, 0
        %v6780 = vsel %vm392, %v6765, 0
        %v6783 = vsel %vm392, %v6766, 0
        %v6786 = vsel %vm392, %v6767, 0
        %v6789 = vsel %vm392, %v6768, 0
        %v6792 = vsel %vm392, %v6769, 0
        %6794 = vmatprep.subr.mxu0 0.0
        %6795 = vmatpush1.msra.mxu0 %v246
        %6796 = vmatprep.subr.mxu0 0.0
        %6797 = vmatpush1.msra.mxu0 0.0
        %6798 = vmatprep.subr.mxu0 0.0
        %6799 = vmatpush1.msra.mxu0 0.0
        %6800 = vmatprep.subr.mxu0 0.0
        %6801 = vmatpush1.msra.mxu0 0.0
        %6802 = vmatprep.subr.mxu0 0.0
        %6803 = vmatpush1.msra.mxu0 0.0
        %6804 = vmatprep.subr.mxu0 0.0
        %6805 = vmatpush1.msra.mxu0 0.0
        %6806 = vmatprep.subr.mxu0 0.0
        %6807 = vmatpush1.msra.mxu0 0.0
        %6808 = vmatprep.subr.mxu0 0.0
        %6809 = vmatpush1.msra.mxu0 0.0
        %6810 = vmatprep.subr.mxu0 0.0
        %6811 = vmatpush1.msra.mxu0 0.0
        %6812 = vmatprep.subr.mxu0 0.0
        %6813 = vmatpush1.msra.mxu0 0.0
        %6814 = vmatprep.subr.mxu0 0.0
        %6815 = vmatpush1.msra.mxu0 0.0
        %6816 = vmatprep.subr.mxu0 0.0
        %6817 = vmatpush1.msra.mxu0 0.0
        %6818 = vmatprep.subr.mxu0 0.0
        %6819 = vmatpush1.msra.mxu0 0.0
        %6820 = vmatprep.subr.mxu0 0.0
        %6821 = vmatpush1.msra.mxu0 0.0
        %6822 = vmatprep.subr.mxu0 0.0
        %6823 = vmatpush1.msra.mxu0 0.0
        %6824 = vmatprep.subr.mxu0 0.0
        %6825 = vmatpush1.msra.mxu0 0.0
        %6826 = vmatprep.subr.mxu0 0.0
        %6827 = vmatpush1.msra.mxu0 0.0
        %6828 = vmatprep.subr.mxu0 0.0
        %6829 = vmatpush1.msra.mxu0 0.0
        %6830 = vmatprep.subr.mxu0 0.0
        %6831 = vmatpush1.msra.mxu0 0.0
        %6832 = vmatprep.subr.mxu0 0.0
        %6833 = vmatpush1.msra.mxu0 0.0
        %6834 = vmatprep.subr.mxu0 0.0
        %6835 = vmatpush1.msra.mxu0 0.0
        %6836 = vmatprep.subr.mxu0 0.0
        %6837 = vmatpush1.msra.mxu0 0.0
        %6838 = vmatprep.subr.mxu0 0.0
        %6839 = vmatpush1.msra.mxu0 0.0
        %6840 = vmatprep.subr.mxu0 0.0
        %6841 = vmatpush1.msra.mxu0 0.0
        %6842 = vmatprep.subr.mxu0 0.0
        %6843 = vmatpush1.msra.mxu0 0.0
        %6844 = vmatprep.subr.mxu0 0.0
        %6845 = vmatpush1.msra.mxu0 0.0
        %6846 = vmatprep.subr.mxu0 0.0
        %6847 = vmatpush1.msra.mxu0 0.0
        %6848 = vmatprep.subr.mxu0 0.0
        %6849 = vmatpush1.msra.mxu0 0.0
        %6850 = vmatprep.subr.mxu0 0.0
        %6851 = vmatpush1.msra.mxu0 0.0
        %6852 = vmatprep.subr.mxu0 0.0
        %6853 = vmatpush1.msra.mxu0 0.0
        %6854 = vmatprep.subr.mxu0 0.0
        %6855 = vmatpush1.msra.mxu0 0.0
        %6856 = vmatprep.subr.mxu0 0.0
        %6857 = vmatpush1.msra.mxu0 0.0
        %6858 = vmatprep.mubr.f32.mxu0 0.0
        %6859 = vmatmul.mubr.f32.gmra.mrb[0].mxu0 %v6771
        %v6860 = vpop.f32.mrb[0].mxu0
        %v6861 = vadd.f32 %v4075, %v6860
        %v6862 = vpop.f32.mrb[0].mxu0
        %6863 = vmatprep.mubr.f32.mxu0 0.0
        %6864 = vmatmul.mubr.f32.gmra.mrb[0].mxu0 %v6774
        %v6865 = vpop.f32.mrb[0].mxu0
        %v6866 = vadd.f32 %v4075, %v6865
        %v6867 = vpop.f32.mrb[0].mxu0
        %6868 = vmatprep.mubr.f32.mxu0 0.0
        %6869 = vmatmul.mubr.f32.gmra.mrb[0].mxu0 %v6777
        %v6870 = vpop.f32.mrb[0].mxu0
        %v6871 = vadd.f32 %v4075, %v6870
        %v6872 = vpop.f32.mrb[0].mxu0
        %6873 = vmatprep.mubr.f32.mxu0 0.0
        %6874 = vmatmul.mubr.f32.gmra.mrb[0].mxu0 %v6780
        %v6875 = vpop.f32.mrb[0].mxu0
        %v6876 = vadd.f32 %v4075, %v6875
        %v6877 = vpop.f32.mrb[0].mxu0
        %6878 = vmatprep.mubr.f32.mxu0 0.0
        %6879 = vmatmul.mubr.f32.gmra.mrb[0].mxu0 %v6783
        %v6880 = vpop.f32.mrb[0].mxu0
        %v6881 = vadd.f32 %v4075, %v6880
        %v6882 = vpop.f32.mrb[0].mxu0
        %6883 = vmatprep.mubr.f32.mxu0 0.0
        %6884 = vmatmul.mubr.f32.gmra.mrb[0].mxu0 %v6786
        %v6885 = vpop.f32.mrb[0].mxu0
        %v6886 = vadd.f32 %v4075, %v6885
        %v6887 = vpop.f32.mrb[0].mxu0
        %6888 = vmatprep.mubr.f32.mxu0 0.0
        %6889 = vmatmul.mubr.f32.gmra.mrb[0].mxu0 %v6789
        %v6890 = vpop.f32.mrb[0].mxu0
        %v6891 = vadd.f32 %v4075, %v6890
        %v6892 = vpop.f32.mrb[0].mxu0
        %6893 = vmatprep.mubr.f32.mxu0 0.0
        %6894 = vmatmul.mubr.f32.gmra.mrb[0].mxu0 %v6792
        %v6895 = vpop.f32.mrb[0].mxu0
        %v6896 = vadd.f32 %v4075, %v6895
        %v6897 = vpop.f32.mrb[0].mxu0
        %6898 = vdwg.mxu0
        %v6899 = vxor.u32 %v6861, 2147483648
        %v6900 = vxor.u32 %v6866, 2147483648
        %v6901 = vxor.u32 %v6871, 2147483648
        %v6902 = vxor.u32 %v6876, 2147483648
        %v6903 = vxor.u32 %v6881, 2147483648
        %v6904 = vxor.u32 %v6886, 2147483648
        %v6905 = vxor.u32 %v6891, 2147483648
        %v6906 = vxor.u32 %v6896, 2147483648
        %v6907 = vmul.f32 %v6899, 1.442695
        %v6908 = vpow.pop %v6907
        %v6909 = vmul.f32 %v6900, 1.442695
        %v6910 = vpow.pop %v6909
        %v6911 = vmul.f32 %v6901, 1.442695
        %v6912 = vpow.pop %v6911
        %v6913 = vmul.f32 %v6902, 1.442695
        %v6914 = vpow.pop %v6913
        %v6915 = vmul.f32 %v6903, 1.442695
        %v6916 = vpow.pop %v6915
        %v6917 = vmul.f32 %v6904, 1.442695
        %v6918 = vpow.pop %v6917
        %v6919 = vmul.f32 %v6905, 1.442695
        %v6920 = vpow.pop %v6919
        %v6921 = vmul.f32 %v6906, 1.442695
        %v6922 = vpow.pop %v6921
        %v6923 = vadd.f32 %v6908, 1.0
        %v6924 = vadd.f32 %v6910, 1.0
        %v6925 = vadd.f32 %v6912, 1.0
        %v6926 = vadd.f32 %v6914, 1.0
        %v6927 = vadd.f32 %v6916, 1.0
        %v6928 = vadd.f32 %v6918, 1.0
        %v6929 = vadd.f32 %v6920, 1.0
        %v6930 = vadd.f32 %v6922, 1.0
        %v6931 = vrcp.pop %v6923
        %v6932 = vmul.f32 1.0, %v6931
        %v6933 = vrcp.pop %v6924
        %v6934 = vmul.f32 1.0, %v6933
        %v6935 = vrcp.pop %v6925
        %v6936 = vmul.f32 1.0, %v6935
        %v6937 = vrcp.pop %v6926
        %v6938 = vmul.f32 1.0, %v6937
        %v6939 = vrcp.pop %v6927
        %v6940 = vmul.f32 1.0, %v6939
        %v6941 = vrcp.pop %v6928
        %v6942 = vmul.f32 1.0, %v6941
        %v6943 = vrcp.pop %v6929
        %v6944 = vmul.f32 1.0, %v6943
        %v6945 = vrcp.pop %v6930
        %v6946 = vmul.f32 1.0, %v6945
        %v6947 = vld [vmem:[%s1935] sm:$0xff]
        %v6948 = vld [vmem:[%s1935 + $0x8] sm:$0xff]
        %v6949 = vld [vmem:[%s1935 + $0x10] sm:$0xff]
        %v6950 = vld [vmem:[%s1935 + $0x18] sm:$0xff]
        %v6951 = vld [vmem:[%s1935 + $0x20] sm:$0xff]
        %v6952 = vld [vmem:[%s1935 + $0x28] sm:$0xff]
        %v6953 = vld [vmem:[%s1935 + $0x30] sm:$0xff]
        %v6954 = vld [vmem:[%s1935 + $0x38] sm:$0xff]
        %v6955 = vmul.f32 %v6932, %v6947
        %v6956 = vmul.f32 %v6934, %v6948
        %v6957 = vmul.f32 %v6936, %v6949
        %v6958 = vmul.f32 %v6938, %v6950
        %v6959 = vmul.f32 %v6940, %v6951
        %v6960 = vmul.f32 %v6942, %v6952
        %v6961 = vmul.f32 %v6944, %v6953
        %v6962 = vmul.f32 %v6946, %v6954
        %v6963 = vadd.f32 %v6955, %v6947
        %v6964 = vadd.f32 %v6956, %v6948
        %v6965 = vadd.f32 %v6957, %v6949
        %v6966 = vadd.f32 %v6958, %v6950
        %v6967 = vadd.f32 %v6959, %v6951
        %v6968 = vadd.f32 %v6960, %v6952
        %v6969 = vadd.f32 %v6961, %v6953
        %v6970 = vadd.f32 %v6962, %v6954
        %s6971 = scalar_lea.vmem %s242, 448 [#allocation5]
        %6972 = vst.msk [vmem:[%s6971] sm:$0xff] %vm262, %v6963
        %6973 = vst.msk [vmem:[%s6971 + $0x8] sm:$0xff] %vm262, %v6964
        %6974 = vst.msk [vmem:[%s6971 + $0x10] sm:$0xff] %vm262, %v6965
        %6975 = vst.msk [vmem:[%s6971 + $0x18] sm:$0xff] %vm262, %v6966
        %6976 = vst.msk [vmem:[%s6971 + $0x20] sm:$0xff] %vm262, %v6967
        %6977 = vst.msk [vmem:[%s6971 + $0x28] sm:$0xff] %vm262, %v6968
        %6978 = vst.msk [vmem:[%s6971 + $0x30] sm:$0xff] %vm262, %v6969
        %6979 = vst.msk [vmem:[%s6971 + $0x38] sm:$0xff] %vm262, %v6970
        %s6980 = sand.u32 %s140, 1
        %s6981 = scalar_lea.sflag [#allocation4], %s6980
        %s6982 = sand.u32 %s140, 1
        %s6983 = smul.addr %s6982, 512
        %s6984 = scalar_lea.vmem [#allocation5], %s6983
        // Predicated region
        $region45: #{m2a_3dcnn_forward.1} parent=39 // pred_check
          %p6985 = pneg %p150
        $region46: #{m2a_3dcnn_forward.1} parent=39 // pred_check_branch
          %6987 = sbr.rel (%p6985) target = $region48
        $region47: #{m2a_3dcnn_forward.1} parent=39 // pred_region
          %s6989 = ssub.s32 8192, 8192
          %6990 = vsyncadd %s6981, %s6989
          %s6991 = smul.addr %s22, 64
          %s6992 = smul.addr %s6991, 128
          %s6993 = scalar_lea.hbm %s5, %s6992
          %s6994 = sshll.u32 %s6984, 4
          %s6995 = int_to_ptr.vmem [resolvable:$true] %s6994
          %7000 = dma.vmem_to_hbm [thread:$0]  %s6995, 8192, %s6993, %s6981, 128, 128, 8
        $region48: #{m2a_3dcnn_forward.1} parent=39 // pred_fallthru
          _
      $region40: #{m2a_3dcnn_forward.1} parent=5 // pred_fallthru
        _
      %p7001 = scmp.le.s32.totalorder 2, %s17
      // Predicated region
      $region49: #{m2a_3dcnn_forward.1} parent=5 // pred_check
        %p7002 = pneg %p7001
      $region50: #{m2a_3dcnn_forward.1} parent=5 // pred_check_branch
        %7004 = sbr.rel (%p7002) target = $region52
      $region51: #{m2a_3dcnn_forward.1} parent=5 // pred_region
        %s7005 = ssub.s32 %s17, 2
        // Predicated region
        $region53: #{m2a_3dcnn_forward.1} parent=51 // pred_check
          %p7006 = pneg %p156
        $region54: #{m2a_3dcnn_forward.1} parent=51 // pred_check_branch
          %7008 = sbr.rel (%p7006) target = $region56
        $region55: #{m2a_3dcnn_forward.1} parent=51 // pred_region
          %s7009 = sand.u32 %s141, 1
          %s7010 = scalar_lea.sflag [#allocation4], %s7009
          %s7011 = sand.u32 %s141, 1
          %s7012 = smul.addr %s7011, 512
          %s7013 = scalar_lea.vmem [#allocation5], %s7012
          %7014 = dma.done %s7010, 8192
        $region56: #{m2a_3dcnn_forward.1} parent=51 // pred_fallthru
          _
      $region52: #{m2a_3dcnn_forward.1} parent=5 // pred_fallthru
        _
    $region6: #{m2a_3dcnn_forward.1} parent=1 // loop_footer
      %s21 = sadd.s32 1, %s17
    $region7: #{m2a_3dcnn_forward.1} parent=1 // loop_footer_branch
      %16 = sbr.rel target = $region3
    $region8: #{m2a_3dcnn_forward.1} parent=1 // loop_exit
      _
    %7015 = vsyncpa [#allocation3], 1
    %s7016 = scalar_lea.sflag [#allocation3], 1
    %7017 = vsyncpa %s7016, 1
    %7018 = vsyncpa [#allocation4], 1
    %s7019 = scalar_lea.sflag [#allocation4], 1
    %7020 = vsyncpa %s7019, 1

</llo_original>
